<compile_context>
chip_gen: v5e
topology: v5e:2x2
jax: 0.10.0
libtpu: 0.0.40
codegen_flags: <defaults>
</compile_context>

<pallas_src>
import functools
import math

import numpy as np
import jax
import jax.numpy as jnp
from jax import lax
from jax.experimental import pallas as pl
from jax.experimental.pallas import tpu as pltpu


# ----------------------------- in-kernel helpers -----------------------------

def _gelu(x):
    # TODO(synk): PyTorch F.gelu default is the exact erf form; the tanh
    # approximation is used for robust Mosaic lowering (|diff| ~1e-3).
    return 0.5 * x * (1.0 + jnp.tanh(0.7978845608028654 * (x + 0.044715 * x * x * x)))


def _layer_norm(x, w, b, eps=1e-5):
    mu = jnp.mean(x, axis=-1, keepdims=True)
    var = jnp.mean(jnp.square(x - mu), axis=-1, keepdims=True)
    return (x - mu) * lax.rsqrt(var + eps) * w + b


# ------------------------ parameter flattening (ordering) ---------------------

LAYER_KEYS = ("ln1_w", "ln1_b", "wqkv", "bqkv", "wo", "bo",
              "ln2_w", "ln2_b", "w1", "b1", "w2", "b2")
TOP_KEYS = ("src_embed", "r1_w", "r1_b", "r2_w", "r2_b", "r4_w", "r4_b",
            "bnk1_w", "bnk1_b", "r5_w", "r5_b", "r6_w", "r6_b", "r8_w", "r8_b",
            "norm2_w", "norm2_b", "norm_w", "norm_b",
            "one_w", "one_b", "out_w", "out_b")
LAYER_NAMES = ("top0", "top1", "mid0", "mid1", "bot0")


def flatten_params(params):
    flat = [params[k] for k in TOP_KEYS]
    for ln in LAYER_NAMES:
        flat.extend(params[ln][k] for k in LAYER_KEYS)
    return flat


# ------------------------------- fused kernel ---------------------------------

def _encoder_layer(x, lp, mask_bias, B, L):
    """Pre-LN encoder layer on (B*L, D) rows; attention done per batch element."""
    D = lp["wo"].shape[0]
    h = _layer_norm(x, lp["ln1_w"][...], lp["ln1_b"][...])
    # Fused QKV: one MXU push, then static lane slices.
    qkv = jnp.dot(h, lp["wqkv"][...], preferred_element_type=jnp.float32) + lp["bqkv"][...]
    q = qkv[:, :D] * (1.0 / math.sqrt(D))          # fold 1/sqrt(d) into q
    k = qkv[:, D:2 * D]
    v = qkv[:, 2 * D:3 * D]
    attn = []
    for b in range(B):                              # B is tiny; unrolled
        rows = slice(b * L, (b + 1) * L)
        s = lax.dot_general(q[rows], k[rows], (((1,), (1,)), ((), ())),
                            preferred_element_type=jnp.float32) + mask_bias
        s = s - jnp.max(s, axis=-1, keepdims=True)
        p = jnp.exp(s)
        p = p * pl.reciprocal(jnp.sum(p, axis=-1, keepdims=True), approx=True)
        attn.append(jnp.dot(p, v[rows], preferred_element_type=jnp.float32))
    a = jnp.concatenate(attn, axis=0)
    a = jnp.dot(a, lp["wo"][...], preferred_element_type=jnp.float32) + lp["bo"][...]
    x = x + a
    h2 = _layer_norm(x, lp["ln2_w"][...], lp["ln2_b"][...])
    f = _gelu(jnp.dot(h2, lp["w1"][...], preferred_element_type=jnp.float32) + lp["b1"][...])
    f = jnp.dot(f, lp["w2"][...], preferred_element_type=jnp.float32) + lp["b2"][...]
    return x + f


def _build_fused_kernel(B, L):
    def kernel(inv_ref, mask_ref, *rest):
        o_ref = rest[-1]
        prefs = rest[:-1]

        # Re-assemble the parameter dict from positional refs.
        p = {}
        i = 0
        for kname in TOP_KEYS:
            p[kname] = prefs[i]
            i += 1
        for ln in LAYER_NAMES:
            sub = {}
            for kname in LAYER_KEYS:
                sub[kname] = prefs[i]
                i += 1
            p[ln] = sub

        mask_bias = mask_ref[...]

        def lin(x, wname, bname, act=None, skip=None):
            y = jnp.dot(x, p[wname][...],
                        preferred_element_type=jnp.float32) + p[bname][...]
            if act == "gelu":
                y = _gelu(y)
            if skip is not None:                    # F_filter: x = x * skip
                y = y * skip
            return y

        # emb = src_embed[None] * invec[..., None], flattened to (B*L, d_model)
        src = p["src_embed"][...]
        x = jnp.concatenate([src] * B, axis=0) * inv_ref[...]

        # --- UEncoder.forward ---
        x = lin(x, "r1_w", "r1_b")                                # rescale_1
        x = _encoder_layer(x, p["top0"], mask_bias, B, L)
        x = _encoder_layer(x, p["top1"], mask_bias, B, L)
        top_skip = x
        x = lin(x, "r2_w", "r2_b")                                # rescale_2
        x = _encoder_layer(x, p["mid0"], mask_bias, B, L)
        x = _encoder_layer(x, p["mid1"], mask_bias, B, L)
        mid_skip = x
        x = lin(x, "r4_w", "r4_b")                                # rescale_4
        x = _encoder_layer(x, p["bot0"], mask_bias, B, L)
        bot = x
        x = _layer_norm(x, p["norm2_w"][...], p["norm2_b"][...])  # norm2
        x = lin(x, "bnk1_w", "bnk1_b", act="gelu")                # gelu(bnk1)
        x = lin(x, "r5_w", "r5_b", skip=bot)                      # rescale_5 * bot
        x = _encoder_layer(x, p["bot0"], mask_bias, B, L)
        x = lin(x, "r6_w", "r6_b", skip=mid_skip)                 # rescale_6 * mid2_skip
        x = _encoder_layer(x, p["mid1"], mask_bias, B, L)
        x = _encoder_layer(x, p["mid0"], mask_bias, B, L)
        x = lin(x, "r8_w", "r8_b", skip=top_skip)                 # rescale_8 * top_skip
        x = _encoder_layer(x, p["top1"], mask_bias, B, L)
        x = _encoder_layer(x, p["top0"], mask_bias, B, L)
        x = _layer_norm(x, p["norm_w"][...], p["norm_b"][...])    # final norm

        # head: out_fc(oned_final_embed(x).squeeze(-1)) — single (B, n) store
        t = jnp.sum(x * p["one_w"][...], axis=-1, keepdims=True) + p["one_b"][...]
        out_w = p["out_w"][...]
        out_b = p["out_b"][...]
        rows = [jnp.sum(t[b * L:(b + 1) * L] * out_w, axis=0, keepdims=True) + out_b
                for b in range(B)]
        o_ref[...] = jnp.concatenate(rows, axis=0)
    return kernel


def ecct_forward(invec, params, mask_bias):
    B, L = invec.shape
    n = params["out_w"].shape[1]
    flat = flatten_params(params)
    inv2 = invec.reshape(B * L, 1).astype(jnp.float32)
    num_in = 2 + len(flat)
    vmem_specs = [pl.BlockSpec(memory_space=pltpu.MemorySpace.VMEM)
                  for _ in range(num_in)]
    # TODO(synk): on v7x (2 TensorCores) the batch could additionally be split
    # across cores via pl.core_map; a single fused launch is already
    # latency-optimal at these sizes on v5e/v6e.
    return pl.pallas_call(
        _build_fused_kernel(B, L),
        out_shape=jax.ShapeDtypeStruct((B, n), jnp.float32),
        in_specs=vmem_specs,
        out_specs=pl.BlockSpec(memory_space=pltpu.MemorySpace.VMEM),
    )(inv2, mask_bias, *flat)


# ----------------------------- parameter init ---------------------------------

def _xavier(key, shape):
    a = math.sqrt(6.0 / (shape[0] + shape[1]))
    return jax.random.uniform(key, shape, jnp.float32, -a, a)


def init_encoder_layer(key, size, d_ff):
    ks = jax.random.split(key, 6)
    z = lambda d: jnp.zeros((1, d), jnp.float32)
    wq = _xavier(ks[0], (size, size))
    wk = _xavier(ks[1], (size, size))
    wv = _xavier(ks[2], (size, size))
    return {
        "ln1_w": jnp.ones((1, size), jnp.float32), "ln1_b": z(size),
        "wqkv": jnp.concatenate([wq, wk, wv], axis=1), "bqkv": z(3 * size),
        "wo": _xavier(ks[3], (size, size)), "bo": z(size),
        "ln2_w": jnp.ones((1, size), jnp.float32), "ln2_b": z(size),
        "w1": _xavier(ks[4], (size, d_ff)), "b1": z(d_ff),
        "w2": _xavier(ks[5], (d_ff, size)), "b2": z(size),
    }


def init_params(key, n, m, d_model):
    L = n + m
    s1, s2, s3 = d_model // 2, 3 * d_model // 4, 5 * d_model // 4
    ks = jax.random.split(key, 16)
    z = lambda d: jnp.zeros((1, d), jnp.float32)
    return {
        "src_embed": _xavier(ks[0], (L, d_model)),
        "r1_w": _xavier(ks[1], (d_model, s1)), "r1_b": z(s1),
        "r2_w": _xavier(ks[2], (s1, s2)), "r2_b": z(s2),
        "r4_w": _xavier(ks[3], (s2, s3)), "r4_b": z(s3),
        "bnk1_w": _xavier(ks[4], (s3, s3 + 32)), "bnk1_b": z(s3 + 32),
        "r5_w": _xavier(ks[5], (s3 + 32, s3)), "r5_b": z(s3),
        "r6_w": _xavier(ks[6], (s3, s2)), "r6_b": z(s2),
        "r8_w": _xavier(ks[7], (s2, s1)), "r8_b": z(s1),
        "norm2_w": jnp.ones((1, s3), jnp.float32), "norm2_b": z(s3),
        "norm_w": jnp.ones((1, s1), jnp.float32), "norm_b": z(s1),
        "one_w": _xavier(ks[8], (1, s1)), "one_b": jnp.zeros((1, 1), jnp.float32),
        "out_w": _xavier(ks[9], (L, n)), "out_b": z(n),
        "top0": init_encoder_layer(ks[10], s1, 4 * s1),
        "top1": init_encoder_layer(ks[11], s1, 4 * s1),
        "mid0": init_encoder_layer(ks[12], s2, 4 * s2),
        "mid1": init_encoder_layer(ks[13], s2, 4 * s2),
        "bot0": init_encoder_layer(ks[14], s3, 4 * s3),
    }


# --------------------------- mask (ECC_Transformer.get_mask) ------------------

def build_mask_bias(pc, n):
    m = pc.shape[0]
    L = n + m
    mask = np.eye(L)
    for ii in range(m):
        idx = np.where(pc[ii] > 0)[0]
        for jj in idx:
            for kk in idx:
                if jj != kk:
                    mask[jj, kk] += 1
                    mask[kk, jj] += 1
                    mask[n + ii, jj] += 1
                    mask[jj, n + ii] += 1
    src_mask = ~(mask > 0)  # True = masked, as in the PyTorch buffer
    return jnp.asarray(np.where(src_mask, -1e9, 0.0), dtype=jnp.float32)


# ----------------------------------- main --------------------------------------

if __name__ == "__main__":
    n, m, d_model, B = 12, 4, 32, 2          # code.n, pc rows, args.d_model, batch
    L = n + m                                 # sequence length = 16

    # Small deterministic parity-check matrix (code.pc_matrix)
    pc = np.zeros((m, n), dtype=np.int64)
    for i in range(m):
        pc[i, [i, i + 4, i + 8, (i + 1) % n]] = 1
    mask_bias = build_mask_bias(pc, n)

    key = jax.random.PRNGKey(0)
    pkey, dkey = jax.random.split(key)
    params = init_params(pkey, n, m, d_model)
    invec = jax.random.normal(dkey, (B, L), dtype=jnp.float32)

    fwd = jax.jit(functools.partial(ecct_forward, mask_bias=mask_bias))
    out = jax.block_until_ready(fwd(invec, params))
    assert out.shape == (B, n) and out.dtype == jnp.float32
    print("KERNEL_OK")
</pallas_src>

<mosaic_0001>
module attributes {stable_mosaic.version = 11 : i64} {
  func.func @kernel(%arg0: memref<32x1xf32, #tpu.memory_space<vmem>>, %arg1: memref<16x16xf32, #tpu.memory_space<vmem>>, %arg2: memref<16x32xf32, #tpu.memory_space<vmem>>, %arg3: memref<32x16xf32, #tpu.memory_space<vmem>>, %arg4: memref<1x16xf32, #tpu.memory_space<vmem>>, %arg5: memref<16x24xf32, #tpu.memory_space<vmem>>, %arg6: memref<1x24xf32, #tpu.memory_space<vmem>>, %arg7: memref<24x40xf32, #tpu.memory_space<vmem>>, %arg8: memref<1x40xf32, #tpu.memory_space<vmem>>, %arg9: memref<40x72xf32, #tpu.memory_space<vmem>>, %arg10: memref<1x72xf32, #tpu.memory_space<vmem>>, %arg11: memref<72x40xf32, #tpu.memory_space<vmem>>, %arg12: memref<1x40xf32, #tpu.memory_space<vmem>>, %arg13: memref<40x24xf32, #tpu.memory_space<vmem>>, %arg14: memref<1x24xf32, #tpu.memory_space<vmem>>, %arg15: memref<24x16xf32, #tpu.memory_space<vmem>>, %arg16: memref<1x16xf32, #tpu.memory_space<vmem>>, %arg17: memref<1x40xf32, #tpu.memory_space<vmem>>, %arg18: memref<1x40xf32, #tpu.memory_space<vmem>>, %arg19: memref<1x16xf32, #tpu.memory_space<vmem>>, %arg20: memref<1x16xf32, #tpu.memory_space<vmem>>, %arg21: memref<1x16xf32, #tpu.memory_space<vmem>>, %arg22: memref<1x1xf32, #tpu.memory_space<vmem>>, %arg23: memref<16x12xf32, #tpu.memory_space<vmem>>, %arg24: memref<1x12xf32, #tpu.memory_space<vmem>>, %arg25: memref<1x16xf32, #tpu.memory_space<vmem>>, %arg26: memref<1x16xf32, #tpu.memory_space<vmem>>, %arg27: memref<16x48xf32, #tpu.memory_space<vmem>>, %arg28: memref<1x48xf32, #tpu.memory_space<vmem>>, %arg29: memref<16x16xf32, #tpu.memory_space<vmem>>, %arg30: memref<1x16xf32, #tpu.memory_space<vmem>>, %arg31: memref<1x16xf32, #tpu.memory_space<vmem>>, %arg32: memref<1x16xf32, #tpu.memory_space<vmem>>, %arg33: memref<16x64xf32, #tpu.memory_space<vmem>>, %arg34: memref<1x64xf32, #tpu.memory_space<vmem>>, %arg35: memref<64x16xf32, #tpu.memory_space<vmem>>, %arg36: memref<1x16xf32, #tpu.memory_space<vmem>>, %arg37: memref<1x16xf32, #tpu.memory_space<vmem>>, %arg38: memref<1x16xf32, #tpu.memory_space<vmem>>, %arg39: memref<16x48xf32, #tpu.memory_space<vmem>>, %arg40: memref<1x48xf32, #tpu.memory_space<vmem>>, %arg41: memref<16x16xf32, #tpu.memory_space<vmem>>, %arg42: memref<1x16xf32, #tpu.memory_space<vmem>>, %arg43: memref<1x16xf32, #tpu.memory_space<vmem>>, %arg44: memref<1x16xf32, #tpu.memory_space<vmem>>, %arg45: memref<16x64xf32, #tpu.memory_space<vmem>>, %arg46: memref<1x64xf32, #tpu.memory_space<vmem>>, %arg47: memref<64x16xf32, #tpu.memory_space<vmem>>, %arg48: memref<1x16xf32, #tpu.memory_space<vmem>>, %arg49: memref<1x24xf32, #tpu.memory_space<vmem>>, %arg50: memref<1x24xf32, #tpu.memory_space<vmem>>, %arg51: memref<24x72xf32, #tpu.memory_space<vmem>>, %arg52: memref<1x72xf32, #tpu.memory_space<vmem>>, %arg53: memref<24x24xf32, #tpu.memory_space<vmem>>, %arg54: memref<1x24xf32, #tpu.memory_space<vmem>>, %arg55: memref<1x24xf32, #tpu.memory_space<vmem>>, %arg56: memref<1x24xf32, #tpu.memory_space<vmem>>, %arg57: memref<24x96xf32, #tpu.memory_space<vmem>>, %arg58: memref<1x96xf32, #tpu.memory_space<vmem>>, %arg59: memref<96x24xf32, #tpu.memory_space<vmem>>, %arg60: memref<1x24xf32, #tpu.memory_space<vmem>>, %arg61: memref<1x24xf32, #tpu.memory_space<vmem>>, %arg62: memref<1x24xf32, #tpu.memory_space<vmem>>, %arg63: memref<24x72xf32, #tpu.memory_space<vmem>>, %arg64: memref<1x72xf32, #tpu.memory_space<vmem>>, %arg65: memref<24x24xf32, #tpu.memory_space<vmem>>, %arg66: memref<1x24xf32, #tpu.memory_space<vmem>>, %arg67: memref<1x24xf32, #tpu.memory_space<vmem>>, %arg68: memref<1x24xf32, #tpu.memory_space<vmem>>, %arg69: memref<24x96xf32, #tpu.memory_space<vmem>>, %arg70: memref<1x96xf32, #tpu.memory_space<vmem>>, %arg71: memref<96x24xf32, #tpu.memory_space<vmem>>, %arg72: memref<1x24xf32, #tpu.memory_space<vmem>>, %arg73: memref<1x40xf32, #tpu.memory_space<vmem>>, %arg74: memref<1x40xf32, #tpu.memory_space<vmem>>, %arg75: memref<40x120xf32, #tpu.memory_space<vmem>>, %arg76: memref<1x120xf32, #tpu.memory_space<vmem>>, %arg77: memref<40x40xf32, #tpu.memory_space<vmem>>, %arg78: memref<1x40xf32, #tpu.memory_space<vmem>>, %arg79: memref<1x40xf32, #tpu.memory_space<vmem>>, %arg80: memref<1x40xf32, #tpu.memory_space<vmem>>, %arg81: memref<40x160xf32, #tpu.memory_space<vmem>>, %arg82: memref<1x160xf32, #tpu.memory_space<vmem>>, %arg83: memref<160x40xf32, #tpu.memory_space<vmem>>, %arg84: memref<1x40xf32, #tpu.memory_space<vmem>>, %arg85: memref<2x12xf32, #tpu.memory_space<vmem>>) attributes {dimension_semantics = [], scalar_prefetch = 0 : i64, scratch_operands = 0 : i64, tpu.core_type = #tpu.core_type<tc>} {
    %c0 = arith.constant 0 : index
    %c0_0 = arith.constant 0 : index
    %0 = vector.load %arg1[%c0, %c0_0] : memref<16x16xf32, #tpu.memory_space<vmem>>, vector<16x16xf32>
    %c0_1 = arith.constant 0 : index
    %c0_2 = arith.constant 0 : index
    %1 = vector.load %arg2[%c0_1, %c0_2] : memref<16x32xf32, #tpu.memory_space<vmem>>, vector<16x32xf32>
    %2 = tpu.concatenate %1, %1 in 0 : vector<16x32xf32>, vector<16x32xf32> -> vector<32x32xf32>
    %c0_3 = arith.constant 0 : index
    %c0_4 = arith.constant 0 : index
    %3 = vector.load %arg0[%c0_3, %c0_4] : memref<32x1xf32, #tpu.memory_space<vmem>>, vector<32x1xf32>
    %4 = vector.broadcast %3 : vector<32x1xf32> to vector<32x32xf32>
    %5 = arith.mulf %2, %4 : vector<32x32xf32>
    %c0_5 = arith.constant 0 : index
    %c0_6 = arith.constant 0 : index
    %6 = vector.load %arg3[%c0_5, %c0_6] : memref<32x16xf32, #tpu.memory_space<vmem>>, vector<32x16xf32>
    %cst = arith.constant dense<0.000000e+00> : vector<32x16xf32>
    %7 = tpu.matmul %5, %6, %cst {dimension_numbers = #tpu.dot_dimension_numbers<[1], [0], [0], [1], [0, 0, 1, 1], [], []>} : vector<32x32xf32>, vector<32x16xf32>, vector<32x16xf32> -> vector<32x16xf32>
    %c0_7 = arith.constant 0 : index
    %c0_8 = arith.constant 0 : index
    %8 = vector.load %arg4[%c0_7, %c0_8] : memref<1x16xf32, #tpu.memory_space<vmem>>, vector<1x16xf32>
    %9 = vector.broadcast %8 : vector<1x16xf32> to vector<32x16xf32>
    %10 = arith.addf %7, %9 : vector<32x16xf32>
    %c0_9 = arith.constant 0 : index
    %c0_10 = arith.constant 0 : index
    %11 = vector.load %arg25[%c0_9, %c0_10] : memref<1x16xf32, #tpu.memory_space<vmem>>, vector<1x16xf32>
    %c0_11 = arith.constant 0 : index
    %c0_12 = arith.constant 0 : index
    %12 = vector.load %arg26[%c0_11, %c0_12] : memref<1x16xf32, #tpu.memory_space<vmem>>, vector<1x16xf32>
    %cst_13 = arith.constant dense<0.000000e+00> : vector<32xf32>
    %13 = vector.multi_reduction <add>, %10, %cst_13 [1] : vector<32x16xf32> to vector<32xf32>
    %14 = vector.shape_cast %13 : vector<32xf32> to vector<32x1xf32>
    %cst_14 = arith.constant 1.600000e+01 : f32
    %15 = vector.broadcast %cst_14 : f32 to vector<32x1xf32>
    %16 = arith.divf %14, %15 : vector<32x1xf32>
    %17 = vector.broadcast %16 : vector<32x1xf32> to vector<32x16xf32>
    %18 = arith.subf %10, %17 : vector<32x16xf32>
    %19 = arith.mulf %18, %18 : vector<32x16xf32>
    %cst_15 = arith.constant dense<0.000000e+00> : vector<32xf32>
    %20 = vector.multi_reduction <add>, %19, %cst_15 [1] : vector<32x16xf32> to vector<32xf32>
    %21 = vector.shape_cast %20 : vector<32xf32> to vector<32x1xf32>
    %cst_16 = arith.constant 1.600000e+01 : f32
    %22 = vector.broadcast %cst_16 : f32 to vector<32x1xf32>
    %23 = arith.divf %21, %22 : vector<32x1xf32>
    %24 = vector.broadcast %16 : vector<32x1xf32> to vector<32x16xf32>
    %25 = arith.subf %10, %24 : vector<32x16xf32>
    %cst_17 = arith.constant 9.99999974E-6 : f32
    %26 = vector.broadcast %cst_17 : f32 to vector<32x1xf32>
    %27 = arith.addf %23, %26 : vector<32x1xf32>
    %28 = math.rsqrt %27 : vector<32x1xf32>
    %29 = vector.broadcast %28 : vector<32x1xf32> to vector<32x16xf32>
    %30 = arith.mulf %25, %29 : vector<32x16xf32>
    %31 = vector.broadcast %11 : vector<1x16xf32> to vector<32x16xf32>
    %32 = arith.mulf %30, %31 : vector<32x16xf32>
    %33 = vector.broadcast %12 : vector<1x16xf32> to vector<32x16xf32>
    %34 = arith.addf %32, %33 : vector<32x16xf32>
    %c0_18 = arith.constant 0 : index
    %c0_19 = arith.constant 0 : index
    %35 = vector.load %arg27[%c0_18, %c0_19] : memref<16x48xf32, #tpu.memory_space<vmem>>, vector<16x48xf32>
    %cst_20 = arith.constant dense<0.000000e+00> : vector<32x48xf32>
    %36 = tpu.matmul %34, %35, %cst_20 {dimension_numbers = #tpu.dot_dimension_numbers<[1], [0], [0], [1], [0, 0, 1, 1], [], []>} : vector<32x16xf32>, vector<16x48xf32>, vector<32x48xf32> -> vector<32x48xf32>
    %c0_21 = arith.constant 0 : index
    %c0_22 = arith.constant 0 : index
    %37 = vector.load %arg28[%c0_21, %c0_22] : memref<1x48xf32, #tpu.memory_space<vmem>>, vector<1x48xf32>
    %38 = vector.broadcast %37 : vector<1x48xf32> to vector<32x48xf32>
    %39 = arith.addf %36, %38 : vector<32x48xf32>
    %40 = vector.extract_strided_slice %39 {offsets = [0, 0], sizes = [32, 16], strides = [1, 1]} : vector<32x48xf32> to vector<32x16xf32>
    %cst_23 = arith.constant 2.500000e-01 : f32
    %41 = vector.broadcast %cst_23 : f32 to vector<32x16xf32>
    %42 = arith.mulf %40, %41 : vector<32x16xf32>
    %43 = vector.extract_strided_slice %39 {offsets = [0, 16], sizes = [32, 16], strides = [1, 1]} : vector<32x48xf32> to vector<32x16xf32>
    %44 = vector.extract_strided_slice %39 {offsets = [0, 32], sizes = [32, 16], strides = [1, 1]} : vector<32x48xf32> to vector<32x16xf32>
    %45 = vector.extract_strided_slice %42 {offsets = [0, 0], sizes = [16, 16], strides = [1, 1]} : vector<32x16xf32> to vector<16x16xf32>
    %46 = vector.extract_strided_slice %43 {offsets = [0, 0], sizes = [16, 16], strides = [1, 1]} : vector<32x16xf32> to vector<16x16xf32>
    %cst_24 = arith.constant dense<0.000000e+00> : vector<16x16xf32>
    %47 = tpu.matmul %45, %46, %cst_24 {dimension_numbers = #tpu.dot_dimension_numbers<[1], [1], [0], [0], [0, 0, 1, 0], [], []>} : vector<16x16xf32>, vector<16x16xf32>, vector<16x16xf32> -> vector<16x16xf32>
    %48 = arith.addf %47, %0 : vector<16x16xf32>
    %cst_25 = arith.constant dense<0xFF800000> : vector<16xf32>
    %49 = vector.multi_reduction <maximumf>, %48, %cst_25 [1] : vector<16x16xf32> to vector<16xf32>
    %50 = vector.shape_cast %49 : vector<16xf32> to vector<16x1xf32>
    %51 = vector.broadcast %50 : vector<16x1xf32> to vector<16x16xf32>
    %52 = arith.subf %48, %51 : vector<16x16xf32>
    %53 = math.exp %52 : vector<16x16xf32>
    %cst_26 = arith.constant dense<0.000000e+00> : vector<16xf32>
    %54 = vector.multi_reduction <add>, %53, %cst_26 [1] : vector<16x16xf32> to vector<16xf32>
    %55 = vector.shape_cast %54 : vector<16xf32> to vector<16x1xf32>
    %56 = tpu.reciprocal %55 {approx = true} : vector<16x1xf32> -> vector<16x1xf32>
    %57 = vector.broadcast %56 : vector<16x1xf32> to vector<16x16xf32>
    %58 = arith.mulf %53, %57 : vector<16x16xf32>
    %59 = vector.extract_strided_slice %44 {offsets = [0, 0], sizes = [16, 16], strides = [1, 1]} : vector<32x16xf32> to vector<16x16xf32>
    %cst_27 = arith.constant dense<0.000000e+00> : vector<16x16xf32>
    %60 = tpu.matmul %58, %59, %cst_27 {dimension_numbers = #tpu.dot_dimension_numbers<[1], [0], [0], [1], [0, 0, 1, 1], [], []>} : vector<16x16xf32>, vector<16x16xf32>, vector<16x16xf32> -> vector<16x16xf32>
    %61 = vector.extract_strided_slice %42 {offsets = [16, 0], sizes = [16, 16], strides = [1, 1]} : vector<32x16xf32> to vector<16x16xf32>
    %62 = vector.extract_strided_slice %43 {offsets = [16, 0], sizes = [16, 16], strides = [1, 1]} : vector<32x16xf32> to vector<16x16xf32>
    %cst_28 = arith.constant dense<0.000000e+00> : vector<16x16xf32>
    %63 = tpu.matmul %61, %62, %cst_28 {dimension_numbers = #tpu.dot_dimension_numbers<[1], [1], [0], [0], [0, 0, 1, 0], [], []>} : vector<16x16xf32>, vector<16x16xf32>, vector<16x16xf32> -> vector<16x16xf32>
    %64 = arith.addf %63, %0 : vector<16x16xf32>
    %cst_29 = arith.constant dense<0xFF800000> : vector<16xf32>
    %65 = vector.multi_reduction <maximumf>, %64, %cst_29 [1] : vector<16x16xf32> to vector<16xf32>
    %66 = vector.shape_cast %65 : vector<16xf32> to vector<16x1xf32>
    %67 = vector.broadcast %66 : vector<16x1xf32> to vector<16x16xf32>
    %68 = arith.subf %64, %67 : vector<16x16xf32>
    %69 = math.exp %68 : vector<16x16xf32>
    %cst_30 = arith.constant dense<0.000000e+00> : vector<16xf32>
    %70 = vector.multi_reduction <add>, %69, %cst_30 [1] : vector<16x16xf32> to vector<16xf32>
    %71 = vector.shape_cast %70 : vector<16xf32> to vector<16x1xf32>
    %72 = tpu.reciprocal %71 {approx = true} : vector<16x1xf32> -> vector<16x1xf32>
    %73 = vector.broadcast %72 : vector<16x1xf32> to vector<16x16xf32>
    %74 = arith.mulf %69, %73 : vector<16x16xf32>
    %75 = vector.extract_strided_slice %44 {offsets = [16, 0], sizes = [16, 16], strides = [1, 1]} : vector<32x16xf32> to vector<16x16xf32>
    %cst_31 = arith.constant dense<0.000000e+00> : vector<16x16xf32>
    %76 = tpu.matmul %74, %75, %cst_31 {dimension_numbers = #tpu.dot_dimension_numbers<[1], [0], [0], [1], [0, 0, 1, 1], [], []>} : vector<16x16xf32>, vector<16x16xf32>, vector<16x16xf32> -> vector<16x16xf32>
    %77 = tpu.concatenate %60, %76 in 0 : vector<16x16xf32>, vector<16x16xf32> -> vector<32x16xf32>
    %c0_32 = arith.constant 0 : index
    %c0_33 = arith.constant 0 : index
    %78 = vector.load %arg29[%c0_32, %c0_33] : memref<16x16xf32, #tpu.memory_space<vmem>>, vector<16x16xf32>
    %cst_34 = arith.constant dense<0.000000e+00> : vector<32x16xf32>
    %79 = tpu.matmul %77, %78, %cst_34 {dimension_numbers = #tpu.dot_dimension_numbers<[1], [0], [0], [1], [0, 0, 1, 1], [], []>} : vector<32x16xf32>, vector<16x16xf32>, vector<32x16xf32> -> vector<32x16xf32>
    %c0_35 = arith.constant 0 : index
    %c0_36 = arith.constant 0 : index
    %80 = vector.load %arg30[%c0_35, %c0_36] : memref<1x16xf32, #tpu.memory_space<vmem>>, vector<1x16xf32>
    %81 = vector.broadcast %80 : vector<1x16xf32> to vector<32x16xf32>
    %82 = arith.addf %79, %81 : vector<32x16xf32>
    %83 = arith.addf %10, %82 : vector<32x16xf32>
    %c0_37 = arith.constant 0 : index
    %c0_38 = arith.constant 0 : index
    %84 = vector.load %arg31[%c0_37, %c0_38] : memref<1x16xf32, #tpu.memory_space<vmem>>, vector<1x16xf32>
    %c0_39 = arith.constant 0 : index
    %c0_40 = arith.constant 0 : index
    %85 = vector.load %arg32[%c0_39, %c0_40] : memref<1x16xf32, #tpu.memory_space<vmem>>, vector<1x16xf32>
    %cst_41 = arith.constant dense<0.000000e+00> : vector<32xf32>
    %86 = vector.multi_reduction <add>, %83, %cst_41 [1] : vector<32x16xf32> to vector<32xf32>
    %87 = vector.shape_cast %86 : vector<32xf32> to vector<32x1xf32>
    %cst_42 = arith.constant 1.600000e+01 : f32
    %88 = vector.broadcast %cst_42 : f32 to vector<32x1xf32>
    %89 = arith.divf %87, %88 : vector<32x1xf32>
    %90 = vector.broadcast %89 : vector<32x1xf32> to vector<32x16xf32>
    %91 = arith.subf %83, %90 : vector<32x16xf32>
    %92 = arith.mulf %91, %91 : vector<32x16xf32>
    %cst_43 = arith.constant dense<0.000000e+00> : vector<32xf32>
    %93 = vector.multi_reduction <add>, %92, %cst_43 [1] : vector<32x16xf32> to vector<32xf32>
    %94 = vector.shape_cast %93 : vector<32xf32> to vector<32x1xf32>
    %cst_44 = arith.constant 1.600000e+01 : f32
    %95 = vector.broadcast %cst_44 : f32 to vector<32x1xf32>
    %96 = arith.divf %94, %95 : vector<32x1xf32>
    %97 = vector.broadcast %89 : vector<32x1xf32> to vector<32x16xf32>
    %98 = arith.subf %83, %97 : vector<32x16xf32>
    %cst_45 = arith.constant 9.99999974E-6 : f32
    %99 = vector.broadcast %cst_45 : f32 to vector<32x1xf32>
    %100 = arith.addf %96, %99 : vector<32x1xf32>
    %101 = math.rsqrt %100 : vector<32x1xf32>
    %102 = vector.broadcast %101 : vector<32x1xf32> to vector<32x16xf32>
    %103 = arith.mulf %98, %102 : vector<32x16xf32>
    %104 = vector.broadcast %84 : vector<1x16xf32> to vector<32x16xf32>
    %105 = arith.mulf %103, %104 : vector<32x16xf32>
    %106 = vector.broadcast %85 : vector<1x16xf32> to vector<32x16xf32>
    %107 = arith.addf %105, %106 : vector<32x16xf32>
    %c0_46 = arith.constant 0 : index
    %c0_47 = arith.constant 0 : index
    %108 = vector.load %arg33[%c0_46, %c0_47] : memref<16x64xf32, #tpu.memory_space<vmem>>, vector<16x64xf32>
    %cst_48 = arith.constant dense<0.000000e+00> : vector<32x64xf32>
    %109 = tpu.matmul %107, %108, %cst_48 {dimension_numbers = #tpu.dot_dimension_numbers<[1], [0], [0], [1], [0, 0, 1, 1], [], []>} : vector<32x16xf32>, vector<16x64xf32>, vector<32x64xf32> -> vector<32x64xf32>
    %c0_49 = arith.constant 0 : index
    %c0_50 = arith.constant 0 : index
    %110 = vector.load %arg34[%c0_49, %c0_50] : memref<1x64xf32, #tpu.memory_space<vmem>>, vector<1x64xf32>
    %111 = vector.broadcast %110 : vector<1x64xf32> to vector<32x64xf32>
    %112 = arith.addf %109, %111 : vector<32x64xf32>
    %cst_51 = arith.constant 5.000000e-01 : f32
    %113 = vector.broadcast %cst_51 : f32 to vector<32x64xf32>
    %114 = arith.mulf %113, %112 : vector<32x64xf32>
    %cst_52 = arith.constant 4.471500e-02 : f32
    %115 = vector.broadcast %cst_52 : f32 to vector<32x64xf32>
    %116 = arith.mulf %115, %112 : vector<32x64xf32>
    %117 = arith.mulf %116, %112 : vector<32x64xf32>
    %118 = arith.mulf %117, %112 : vector<32x64xf32>
    %119 = arith.addf %112, %118 : vector<32x64xf32>
    %cst_53 = arith.constant 0.797884583 : f32
    %120 = vector.broadcast %cst_53 : f32 to vector<32x64xf32>
    %121 = arith.mulf %120, %119 : vector<32x64xf32>
    %122 = math.tanh %121 : vector<32x64xf32>
    %cst_54 = arith.constant 1.000000e+00 : f32
    %123 = vector.broadcast %cst_54 : f32 to vector<32x64xf32>
    %124 = arith.addf %123, %122 : vector<32x64xf32>
    %125 = arith.mulf %114, %124 : vector<32x64xf32>
    %c0_55 = arith.constant 0 : index
    %c0_56 = arith.constant 0 : index
    %126 = vector.load %arg35[%c0_55, %c0_56] : memref<64x16xf32, #tpu.memory_space<vmem>>, vector<64x16xf32>
    %cst_57 = arith.constant dense<0.000000e+00> : vector<32x16xf32>
    %127 = tpu.matmul %125, %126, %cst_57 {dimension_numbers = #tpu.dot_dimension_numbers<[1], [0], [0], [1], [0, 0, 1, 1], [], []>} : vector<32x64xf32>, vector<64x16xf32>, vector<32x16xf32> -> vector<32x16xf32>
    %c0_58 = arith.constant 0 : index
    %c0_59 = arith.constant 0 : index
    %128 = vector.load %arg36[%c0_58, %c0_59] : memref<1x16xf32, #tpu.memory_space<vmem>>, vector<1x16xf32>
    %129 = vector.broadcast %128 : vector<1x16xf32> to vector<32x16xf32>
    %130 = arith.addf %127, %129 : vector<32x16xf32>
    %131 = arith.addf %83, %130 : vector<32x16xf32>
    %c0_60 = arith.constant 0 : index
    %c0_61 = arith.constant 0 : index
    %132 = vector.load %arg37[%c0_60, %c0_61] : memref<1x16xf32, #tpu.memory_space<vmem>>, vector<1x16xf32>
    %c0_62 = arith.constant 0 : index
    %c0_63 = arith.constant 0 : index
    %133 = vector.load %arg38[%c0_62, %c0_63] : memref<1x16xf32, #tpu.memory_space<vmem>>, vector<1x16xf32>
    %cst_64 = arith.constant dense<0.000000e+00> : vector<32xf32>
    %134 = vector.multi_reduction <add>, %131, %cst_64 [1] : vector<32x16xf32> to vector<32xf32>
    %135 = vector.shape_cast %134 : vector<32xf32> to vector<32x1xf32>
    %cst_65 = arith.constant 1.600000e+01 : f32
    %136 = vector.broadcast %cst_65 : f32 to vector<32x1xf32>
    %137 = arith.divf %135, %136 : vector<32x1xf32>
    %138 = vector.broadcast %137 : vector<32x1xf32> to vector<32x16xf32>
    %139 = arith.subf %131, %138 : vector<32x16xf32>
    %140 = arith.mulf %139, %139 : vector<32x16xf32>
    %cst_66 = arith.constant dense<0.000000e+00> : vector<32xf32>
    %141 = vector.multi_reduction <add>, %140, %cst_66 [1] : vector<32x16xf32> to vector<32xf32>
    %142 = vector.shape_cast %141 : vector<32xf32> to vector<32x1xf32>
    %cst_67 = arith.constant 1.600000e+01 : f32
    %143 = vector.broadcast %cst_67 : f32 to vector<32x1xf32>
    %144 = arith.divf %142, %143 : vector<32x1xf32>
    %145 = vector.broadcast %137 : vector<32x1xf32> to vector<32x16xf32>
    %146 = arith.subf %131, %145 : vector<32x16xf32>
    %cst_68 = arith.constant 9.99999974E-6 : f32
    %147 = vector.broadcast %cst_68 : f32 to vector<32x1xf32>
    %148 = arith.addf %144, %147 : vector<32x1xf32>
    %149 = math.rsqrt %148 : vector<32x1xf32>
    %150 = vector.broadcast %149 : vector<32x1xf32> to vector<32x16xf32>
    %151 = arith.mulf %146, %150 : vector<32x16xf32>
    %152 = vector.broadcast %132 : vector<1x16xf32> to vector<32x16xf32>
    %153 = arith.mulf %151, %152 : vector<32x16xf32>
    %154 = vector.broadcast %133 : vector<1x16xf32> to vector<32x16xf32>
    %155 = arith.addf %153, %154 : vector<32x16xf32>
    %c0_69 = arith.constant 0 : index
    %c0_70 = arith.constant 0 : index
    %156 = vector.load %arg39[%c0_69, %c0_70] : memref<16x48xf32, #tpu.memory_space<vmem>>, vector<16x48xf32>
    %cst_71 = arith.constant dense<0.000000e+00> : vector<32x48xf32>
    %157 = tpu.matmul %155, %156, %cst_71 {dimension_numbers = #tpu.dot_dimension_numbers<[1], [0], [0], [1], [0, 0, 1, 1], [], []>} : vector<32x16xf32>, vector<16x48xf32>, vector<32x48xf32> -> vector<32x48xf32>
    %c0_72 = arith.constant 0 : index
    %c0_73 = arith.constant 0 : index
    %158 = vector.load %arg40[%c0_72, %c0_73] : memref<1x48xf32, #tpu.memory_space<vmem>>, vector<1x48xf32>
    %159 = vector.broadcast %158 : vector<1x48xf32> to vector<32x48xf32>
    %160 = arith.addf %157, %159 : vector<32x48xf32>
    %161 = vector.extract_strided_slice %160 {offsets = [0, 0], sizes = [32, 16], strides = [1, 1]} : vector<32x48xf32> to vector<32x16xf32>
    %cst_74 = arith.constant 2.500000e-01 : f32
    %162 = vector.broadcast %cst_74 : f32 to vector<32x16xf32>
    %163 = arith.mulf %161, %162 : vector<32x16xf32>
    %164 = vector.extract_strided_slice %160 {offsets = [0, 16], sizes = [32, 16], strides = [1, 1]} : vector<32x48xf32> to vector<32x16xf32>
    %165 = vector.extract_strided_slice %160 {offsets = [0, 32], sizes = [32, 16], strides = [1, 1]} : vector<32x48xf32> to vector<32x16xf32>
    %166 = vector.extract_strided_slice %163 {offsets = [0, 0], sizes = [16, 16], strides = [1, 1]} : vector<32x16xf32> to vector<16x16xf32>
    %167 = vector.extract_strided_slice %164 {offsets = [0, 0], sizes = [16, 16], strides = [1, 1]} : vector<32x16xf32> to vector<16x16xf32>
    %cst_75 = arith.constant dense<0.000000e+00> : vector<16x16xf32>
    %168 = tpu.matmul %166, %167, %cst_75 {dimension_numbers = #tpu.dot_dimension_numbers<[1], [1], [0], [0], [0, 0, 1, 0], [], []>} : vector<16x16xf32>, vector<16x16xf32>, vector<16x16xf32> -> vector<16x16xf32>
    %169 = arith.addf %168, %0 : vector<16x16xf32>
    %cst_76 = arith.constant dense<0xFF800000> : vector<16xf32>
    %170 = vector.multi_reduction <maximumf>, %169, %cst_76 [1] : vector<16x16xf32> to vector<16xf32>
    %171 = vector.shape_cast %170 : vector<16xf32> to vector<16x1xf32>
    %172 = vector.broadcast %171 : vector<16x1xf32> to vector<16x16xf32>
    %173 = arith.subf %169, %172 : vector<16x16xf32>
    %174 = math.exp %173 : vector<16x16xf32>
    %cst_77 = arith.constant dense<0.000000e+00> : vector<16xf32>
    %175 = vector.multi_reduction <add>, %174, %cst_77 [1] : vector<16x16xf32> to vector<16xf32>
    %176 = vector.shape_cast %175 : vector<16xf32> to vector<16x1xf32>
    %177 = tpu.reciprocal %176 {approx = true} : vector<16x1xf32> -> vector<16x1xf32>
    %178 = vector.broadcast %177 : vector<16x1xf32> to vector<16x16xf32>
    %179 = arith.mulf %174, %178 : vector<16x16xf32>
    %180 = vector.extract_strided_slice %165 {offsets = [0, 0], sizes = [16, 16], strides = [1, 1]} : vector<32x16xf32> to vector<16x16xf32>
    %cst_78 = arith.constant dense<0.000000e+00> : vector<16x16xf32>
    %181 = tpu.matmul %179, %180, %cst_78 {dimension_numbers = #tpu.dot_dimension_numbers<[1], [0], [0], [1], [0, 0, 1, 1], [], []>} : vector<16x16xf32>, vector<16x16xf32>, vector<16x16xf32> -> vector<16x16xf32>
    %182 = vector.extract_strided_slice %163 {offsets = [16, 0], sizes = [16, 16], strides = [1, 1]} : vector<32x16xf32> to vector<16x16xf32>
    %183 = vector.extract_strided_slice %164 {offsets = [16, 0], sizes = [16, 16], strides = [1, 1]} : vector<32x16xf32> to vector<16x16xf32>
    %cst_79 = arith.constant dense<0.000000e+00> : vector<16x16xf32>
    %184 = tpu.matmul %182, %183, %cst_79 {dimension_numbers = #tpu.dot_dimension_numbers<[1], [1], [0], [0], [0, 0, 1, 0], [], []>} : vector<16x16xf32>, vector<16x16xf32>, vector<16x16xf32> -> vector<16x16xf32>
    %185 = arith.addf %184, %0 : vector<16x16xf32>
    %cst_80 = arith.constant dense<0xFF800000> : vector<16xf32>
    %186 = vector.multi_reduction <maximumf>, %185, %cst_80 [1] : vector<16x16xf32> to vector<16xf32>
    %187 = vector.shape_cast %186 : vector<16xf32> to vector<16x1xf32>
    %188 = vector.broadcast %187 : vector<16x1xf32> to vector<16x16xf32>
    %189 = arith.subf %185, %188 : vector<16x16xf32>
    %190 = math.exp %189 : vector<16x16xf32>
    %cst_81 = arith.constant dense<0.000000e+00> : vector<16xf32>
    %191 = vector.multi_reduction <add>, %190, %cst_81 [1] : vector<16x16xf32> to vector<16xf32>
    %192 = vector.shape_cast %191 : vector<16xf32> to vector<16x1xf32>
    %193 = tpu.reciprocal %192 {approx = true} : vector<16x1xf32> -> vector<16x1xf32>
    %194 = vector.broadcast %193 : vector<16x1xf32> to vector<16x16xf32>
    %195 = arith.mulf %190, %194 : vector<16x16xf32>
    %196 = vector.extract_strided_slice %165 {offsets = [16, 0], sizes = [16, 16], strides = [1, 1]} : vector<32x16xf32> to vector<16x16xf32>
    %cst_82 = arith.constant dense<0.000000e+00> : vector<16x16xf32>
    %197 = tpu.matmul %195, %196, %cst_82 {dimension_numbers = #tpu.dot_dimension_numbers<[1], [0], [0], [1], [0, 0, 1, 1], [], []>} : vector<16x16xf32>, vector<16x16xf32>, vector<16x16xf32> -> vector<16x16xf32>
    %198 = tpu.concatenate %181, %197 in 0 : vector<16x16xf32>, vector<16x16xf32> -> vector<32x16xf32>
    %c0_83 = arith.constant 0 : index
    %c0_84 = arith.constant 0 : index
    %199 = vector.load %arg41[%c0_83, %c0_84] : memref<16x16xf32, #tpu.memory_space<vmem>>, vector<16x16xf32>
    %cst_85 = arith.constant dense<0.000000e+00> : vector<32x16xf32>
    %200 = tpu.matmul %198, %199, %cst_85 {dimension_numbers = #tpu.dot_dimension_numbers<[1], [0], [0], [1], [0, 0, 1, 1], [], []>} : vector<32x16xf32>, vector<16x16xf32>, vector<32x16xf32> -> vector<32x16xf32>
    %c0_86 = arith.constant 0 : index
    %c0_87 = arith.constant 0 : index
    %201 = vector.load %arg42[%c0_86, %c0_87] : memref<1x16xf32, #tpu.memory_space<vmem>>, vector<1x16xf32>
    %202 = vector.broadcast %201 : vector<1x16xf32> to vector<32x16xf32>
    %203 = arith.addf %200, %202 : vector<32x16xf32>
    %204 = arith.addf %131, %203 : vector<32x16xf32>
    %c0_88 = arith.constant 0 : index
    %c0_89 = arith.constant 0 : index
    %205 = vector.load %arg43[%c0_88, %c0_89] : memref<1x16xf32, #tpu.memory_space<vmem>>, vector<1x16xf32>
    %c0_90 = arith.constant 0 : index
    %c0_91 = arith.constant 0 : index
    %206 = vector.load %arg44[%c0_90, %c0_91] : memref<1x16xf32, #tpu.memory_space<vmem>>, vector<1x16xf32>
    %cst_92 = arith.constant dense<0.000000e+00> : vector<32xf32>
    %207 = vector.multi_reduction <add>, %204, %cst_92 [1] : vector<32x16xf32> to vector<32xf32>
    %208 = vector.shape_cast %207 : vector<32xf32> to vector<32x1xf32>
    %cst_93 = arith.constant 1.600000e+01 : f32
    %209 = vector.broadcast %cst_93 : f32 to vector<32x1xf32>
    %210 = arith.divf %208, %209 : vector<32x1xf32>
    %211 = vector.broadcast %210 : vector<32x1xf32> to vector<32x16xf32>
    %212 = arith.subf %204, %211 : vector<32x16xf32>
    %213 = arith.mulf %212, %212 : vector<32x16xf32>
    %cst_94 = arith.constant dense<0.000000e+00> : vector<32xf32>
    %214 = vector.multi_reduction <add>, %213, %cst_94 [1] : vector<32x16xf32> to vector<32xf32>
    %215 = vector.shape_cast %214 : vector<32xf32> to vector<32x1xf32>
    %cst_95 = arith.constant 1.600000e+01 : f32
    %216 = vector.broadcast %cst_95 : f32 to vector<32x1xf32>
    %217 = arith.divf %215, %216 : vector<32x1xf32>
    %218 = vector.broadcast %210 : vector<32x1xf32> to vector<32x16xf32>
    %219 = arith.subf %204, %218 : vector<32x16xf32>
    %cst_96 = arith.constant 9.99999974E-6 : f32
    %220 = vector.broadcast %cst_96 : f32 to vector<32x1xf32>
    %221 = arith.addf %217, %220 : vector<32x1xf32>
    %222 = math.rsqrt %221 : vector<32x1xf32>
    %223 = vector.broadcast %222 : vector<32x1xf32> to vector<32x16xf32>
    %224 = arith.mulf %219, %223 : vector<32x16xf32>
    %225 = vector.broadcast %205 : vector<1x16xf32> to vector<32x16xf32>
    %226 = arith.mulf %224, %225 : vector<32x16xf32>
    %227 = vector.broadcast %206 : vector<1x16xf32> to vector<32x16xf32>
    %228 = arith.addf %226, %227 : vector<32x16xf32>
    %c0_97 = arith.constant 0 : index
    %c0_98 = arith.constant 0 : index
    %229 = vector.load %arg45[%c0_97, %c0_98] : memref<16x64xf32, #tpu.memory_space<vmem>>, vector<16x64xf32>
    %cst_99 = arith.constant dense<0.000000e+00> : vector<32x64xf32>
    %230 = tpu.matmul %228, %229, %cst_99 {dimension_numbers = #tpu.dot_dimension_numbers<[1], [0], [0], [1], [0, 0, 1, 1], [], []>} : vector<32x16xf32>, vector<16x64xf32>, vector<32x64xf32> -> vector<32x64xf32>
    %c0_100 = arith.constant 0 : index
    %c0_101 = arith.constant 0 : index
    %231 = vector.load %arg46[%c0_100, %c0_101] : memref<1x64xf32, #tpu.memory_space<vmem>>, vector<1x64xf32>
    %232 = vector.broadcast %231 : vector<1x64xf32> to vector<32x64xf32>
    %233 = arith.addf %230, %232 : vector<32x64xf32>
    %cst_102 = arith.constant 5.000000e-01 : f32
    %234 = vector.broadcast %cst_102 : f32 to vector<32x64xf32>
    %235 = arith.mulf %234, %233 : vector<32x64xf32>
    %cst_103 = arith.constant 4.471500e-02 : f32
    %236 = vector.broadcast %cst_103 : f32 to vector<32x64xf32>
    %237 = arith.mulf %236, %233 : vector<32x64xf32>
    %238 = arith.mulf %237, %233 : vector<32x64xf32>
    %239 = arith.mulf %238, %233 : vector<32x64xf32>
    %240 = arith.addf %233, %239 : vector<32x64xf32>
    %cst_104 = arith.constant 0.797884583 : f32
    %241 = vector.broadcast %cst_104 : f32 to vector<32x64xf32>
    %242 = arith.mulf %241, %240 : vector<32x64xf32>
    %243 = math.tanh %242 : vector<32x64xf32>
    %cst_105 = arith.constant 1.000000e+00 : f32
    %244 = vector.broadcast %cst_105 : f32 to vector<32x64xf32>
    %245 = arith.addf %244, %243 : vector<32x64xf32>
    %246 = arith.mulf %235, %245 : vector<32x64xf32>
    %c0_106 = arith.constant 0 : index
    %c0_107 = arith.constant 0 : index
    %247 = vector.load %arg47[%c0_106, %c0_107] : memref<64x16xf32, #tpu.memory_space<vmem>>, vector<64x16xf32>
    %cst_108 = arith.constant dense<0.000000e+00> : vector<32x16xf32>
    %248 = tpu.matmul %246, %247, %cst_108 {dimension_numbers = #tpu.dot_dimension_numbers<[1], [0], [0], [1], [0, 0, 1, 1], [], []>} : vector<32x64xf32>, vector<64x16xf32>, vector<32x16xf32> -> vector<32x16xf32>
    %c0_109 = arith.constant 0 : index
    %c0_110 = arith.constant 0 : index
    %249 = vector.load %arg48[%c0_109, %c0_110] : memref<1x16xf32, #tpu.memory_space<vmem>>, vector<1x16xf32>
    %250 = vector.broadcast %249 : vector<1x16xf32> to vector<32x16xf32>
    %251 = arith.addf %248, %250 : vector<32x16xf32>
    %252 = arith.addf %204, %251 : vector<32x16xf32>
    %c0_111 = arith.constant 0 : index
    %c0_112 = arith.constant 0 : index
    %253 = vector.load %arg5[%c0_111, %c0_112] : memref<16x24xf32, #tpu.memory_space<vmem>>, vector<16x24xf32>
    %cst_113 = arith.constant dense<0.000000e+00> : vector<32x24xf32>
    %254 = tpu.matmul %252, %253, %cst_113 {dimension_numbers = #tpu.dot_dimension_numbers<[1], [0], [0], [1], [0, 0, 1, 1], [], []>} : vector<32x16xf32>, vector<16x24xf32>, vector<32x24xf32> -> vector<32x24xf32>
    %c0_114 = arith.constant 0 : index
    %c0_115 = arith.constant 0 : index
    %255 = vector.load %arg6[%c0_114, %c0_115] : memref<1x24xf32, #tpu.memory_space<vmem>>, vector<1x24xf32>
    %256 = vector.broadcast %255 : vector<1x24xf32> to vector<32x24xf32>
    %257 = arith.addf %254, %256 : vector<32x24xf32>
    %c0_116 = arith.constant 0 : index
    %c0_117 = arith.constant 0 : index
    %258 = vector.load %arg49[%c0_116, %c0_117] : memref<1x24xf32, #tpu.memory_space<vmem>>, vector<1x24xf32>
    %c0_118 = arith.constant 0 : index
    %c0_119 = arith.constant 0 : index
    %259 = vector.load %arg50[%c0_118, %c0_119] : memref<1x24xf32, #tpu.memory_space<vmem>>, vector<1x24xf32>
    %cst_120 = arith.constant dense<0.000000e+00> : vector<32xf32>
    %260 = vector.multi_reduction <add>, %257, %cst_120 [1] : vector<32x24xf32> to vector<32xf32>
    %261 = vector.shape_cast %260 : vector<32xf32> to vector<32x1xf32>
    %cst_121 = arith.constant 2.400000e+01 : f32
    %262 = vector.broadcast %cst_121 : f32 to vector<32x1xf32>
    %263 = arith.divf %261, %262 : vector<32x1xf32>
    %264 = vector.broadcast %263 : vector<32x1xf32> to vector<32x24xf32>
    %265 = arith.subf %257, %264 : vector<32x24xf32>
    %266 = arith.mulf %265, %265 : vector<32x24xf32>
    %cst_122 = arith.constant dense<0.000000e+00> : vector<32xf32>
    %267 = vector.multi_reduction <add>, %266, %cst_122 [1] : vector<32x24xf32> to vector<32xf32>
    %268 = vector.shape_cast %267 : vector<32xf32> to vector<32x1xf32>
    %cst_123 = arith.constant 2.400000e+01 : f32
    %269 = vector.broadcast %cst_123 : f32 to vector<32x1xf32>
    %270 = arith.divf %268, %269 : vector<32x1xf32>
    %271 = vector.broadcast %263 : vector<32x1xf32> to vector<32x24xf32>
    %272 = arith.subf %257, %271 : vector<32x24xf32>
    %cst_124 = arith.constant 9.99999974E-6 : f32
    %273 = vector.broadcast %cst_124 : f32 to vector<32x1xf32>
    %274 = arith.addf %270, %273 : vector<32x1xf32>
    %275 = math.rsqrt %274 : vector<32x1xf32>
    %276 = vector.broadcast %275 : vector<32x1xf32> to vector<32x24xf32>
    %277 = arith.mulf %272, %276 : vector<32x24xf32>
    %278 = vector.broadcast %258 : vector<1x24xf32> to vector<32x24xf32>
    %279 = arith.mulf %277, %278 : vector<32x24xf32>
    %280 = vector.broadcast %259 : vector<1x24xf32> to vector<32x24xf32>
    %281 = arith.addf %279, %280 : vector<32x24xf32>
    %c0_125 = arith.constant 0 : index
    %c0_126 = arith.constant 0 : index
    %282 = vector.load %arg51[%c0_125, %c0_126] : memref<24x72xf32, #tpu.memory_space<vmem>>, vector<24x72xf32>
    %cst_127 = arith.constant dense<0.000000e+00> : vector<32x72xf32>
    %283 = tpu.matmul %281, %282, %cst_127 {dimension_numbers = #tpu.dot_dimension_numbers<[1], [0], [0], [1], [0, 0, 1, 1], [], []>} : vector<32x24xf32>, vector<24x72xf32>, vector<32x72xf32> -> vector<32x72xf32>
    %c0_128 = arith.constant 0 : index
    %c0_129 = arith.constant 0 : index
    %284 = vector.load %arg52[%c0_128, %c0_129] : memref<1x72xf32, #tpu.memory_space<vmem>>, vector<1x72xf32>
    %285 = vector.broadcast %284 : vector<1x72xf32> to vector<32x72xf32>
    %286 = arith.addf %283, %285 : vector<32x72xf32>
    %287 = vector.extract_strided_slice %286 {offsets = [0, 0], sizes = [32, 24], strides = [1, 1]} : vector<32x72xf32> to vector<32x24xf32>
    %cst_130 = arith.constant 0.204124153 : f32
    %288 = vector.broadcast %cst_130 : f32 to vector<32x24xf32>
    %289 = arith.mulf %287, %288 : vector<32x24xf32>
    %290 = vector.extract_strided_slice %286 {offsets = [0, 24], sizes = [32, 24], strides = [1, 1]} : vector<32x72xf32> to vector<32x24xf32>
    %291 = vector.extract_strided_slice %286 {offsets = [0, 48], sizes = [32, 24], strides = [1, 1]} : vector<32x72xf32> to vector<32x24xf32>
    %292 = vector.extract_strided_slice %289 {offsets = [0, 0], sizes = [16, 24], strides = [1, 1]} : vector<32x24xf32> to vector<16x24xf32>
    %293 = vector.extract_strided_slice %290 {offsets = [0, 0], sizes = [16, 24], strides = [1, 1]} : vector<32x24xf32> to vector<16x24xf32>
    %cst_131 = arith.constant dense<0.000000e+00> : vector<16x16xf32>
    %294 = tpu.matmul %292, %293, %cst_131 {dimension_numbers = #tpu.dot_dimension_numbers<[1], [1], [0], [0], [0, 0, 1, 0], [], []>} : vector<16x24xf32>, vector<16x24xf32>, vector<16x16xf32> -> vector<16x16xf32>
    %295 = arith.addf %294, %0 : vector<16x16xf32>
    %cst_132 = arith.constant dense<0xFF800000> : vector<16xf32>
    %296 = vector.multi_reduction <maximumf>, %295, %cst_132 [1] : vector<16x16xf32> to vector<16xf32>
    %297 = vector.shape_cast %296 : vector<16xf32> to vector<16x1xf32>
    %298 = vector.broadcast %297 : vector<16x1xf32> to vector<16x16xf32>
    %299 = arith.subf %295, %298 : vector<16x16xf32>
    %300 = math.exp %299 : vector<16x16xf32>
    %cst_133 = arith.constant dense<0.000000e+00> : vector<16xf32>
    %301 = vector.multi_reduction <add>, %300, %cst_133 [1] : vector<16x16xf32> to vector<16xf32>
    %302 = vector.shape_cast %301 : vector<16xf32> to vector<16x1xf32>
    %303 = tpu.reciprocal %302 {approx = true} : vector<16x1xf32> -> vector<16x1xf32>
    %304 = vector.broadcast %303 : vector<16x1xf32> to vector<16x16xf32>
    %305 = arith.mulf %300, %304 : vector<16x16xf32>
    %306 = vector.extract_strided_slice %291 {offsets = [0, 0], sizes = [16, 24], strides = [1, 1]} : vector<32x24xf32> to vector<16x24xf32>
    %cst_134 = arith.constant dense<0.000000e+00> : vector<16x24xf32>
    %307 = tpu.matmul %305, %306, %cst_134 {dimension_numbers = #tpu.dot_dimension_numbers<[1], [0], [0], [1], [0, 0, 1, 1], [], []>} : vector<16x16xf32>, vector<16x24xf32>, vector<16x24xf32> -> vector<16x24xf32>
    %308 = vector.extract_strided_slice %289 {offsets = [16, 0], sizes = [16, 24], strides = [1, 1]} : vector<32x24xf32> to vector<16x24xf32>
    %309 = vector.extract_strided_slice %290 {offsets = [16, 0], sizes = [16, 24], strides = [1, 1]} : vector<32x24xf32> to vector<16x24xf32>
    %cst_135 = arith.constant dense<0.000000e+00> : vector<16x16xf32>
    %310 = tpu.matmul %308, %309, %cst_135 {dimension_numbers = #tpu.dot_dimension_numbers<[1], [1], [0], [0], [0, 0, 1, 0], [], []>} : vector<16x24xf32>, vector<16x24xf32>, vector<16x16xf32> -> vector<16x16xf32>
    %311 = arith.addf %310, %0 : vector<16x16xf32>
    %cst_136 = arith.constant dense<0xFF800000> : vector<16xf32>
    %312 = vector.multi_reduction <maximumf>, %311, %cst_136 [1] : vector<16x16xf32> to vector<16xf32>
    %313 = vector.shape_cast %312 : vector<16xf32> to vector<16x1xf32>
    %314 = vector.broadcast %313 : vector<16x1xf32> to vector<16x16xf32>
    %315 = arith.subf %311, %314 : vector<16x16xf32>
    %316 = math.exp %315 : vector<16x16xf32>
    %cst_137 = arith.constant dense<0.000000e+00> : vector<16xf32>
    %317 = vector.multi_reduction <add>, %316, %cst_137 [1] : vector<16x16xf32> to vector<16xf32>
    %318 = vector.shape_cast %317 : vector<16xf32> to vector<16x1xf32>
    %319 = tpu.reciprocal %318 {approx = true} : vector<16x1xf32> -> vector<16x1xf32>
    %320 = vector.broadcast %319 : vector<16x1xf32> to vector<16x16xf32>
    %321 = arith.mulf %316, %320 : vector<16x16xf32>
    %322 = vector.extract_strided_slice %291 {offsets = [16, 0], sizes = [16, 24], strides = [1, 1]} : vector<32x24xf32> to vector<16x24xf32>
    %cst_138 = arith.constant dense<0.000000e+00> : vector<16x24xf32>
    %323 = tpu.matmul %321, %322, %cst_138 {dimension_numbers = #tpu.dot_dimension_numbers<[1], [0], [0], [1], [0, 0, 1, 1], [], []>} : vector<16x16xf32>, vector<16x24xf32>, vector<16x24xf32> -> vector<16x24xf32>
    %324 = tpu.concatenate %307, %323 in 0 : vector<16x24xf32>, vector<16x24xf32> -> vector<32x24xf32>
    %c0_139 = arith.constant 0 : index
    %c0_140 = arith.constant 0 : index
    %325 = vector.load %arg53[%c0_139, %c0_140] : memref<24x24xf32, #tpu.memory_space<vmem>>, vector<24x24xf32>
    %cst_141 = arith.constant dense<0.000000e+00> : vector<32x24xf32>
    %326 = tpu.matmul %324, %325, %cst_141 {dimension_numbers = #tpu.dot_dimension_numbers<[1], [0], [0], [1], [0, 0, 1, 1], [], []>} : vector<32x24xf32>, vector<24x24xf32>, vector<32x24xf32> -> vector<32x24xf32>
    %c0_142 = arith.constant 0 : index
    %c0_143 = arith.constant 0 : index
    %327 = vector.load %arg54[%c0_142, %c0_143] : memref<1x24xf32, #tpu.memory_space<vmem>>, vector<1x24xf32>
    %328 = vector.broadcast %327 : vector<1x24xf32> to vector<32x24xf32>
    %329 = arith.addf %326, %328 : vector<32x24xf32>
    %330 = arith.addf %257, %329 : vector<32x24xf32>
    %c0_144 = arith.constant 0 : index
    %c0_145 = arith.constant 0 : index
    %331 = vector.load %arg55[%c0_144, %c0_145] : memref<1x24xf32, #tpu.memory_space<vmem>>, vector<1x24xf32>
    %c0_146 = arith.constant 0 : index
    %c0_147 = arith.constant 0 : index
    %332 = vector.load %arg56[%c0_146, %c0_147] : memref<1x24xf32, #tpu.memory_space<vmem>>, vector<1x24xf32>
    %cst_148 = arith.constant dense<0.000000e+00> : vector<32xf32>
    %333 = vector.multi_reduction <add>, %330, %cst_148 [1] : vector<32x24xf32> to vector<32xf32>
    %334 = vector.shape_cast %333 : vector<32xf32> to vector<32x1xf32>
    %cst_149 = arith.constant 2.400000e+01 : f32
    %335 = vector.broadcast %cst_149 : f32 to vector<32x1xf32>
    %336 = arith.divf %334, %335 : vector<32x1xf32>
    %337 = vector.broadcast %336 : vector<32x1xf32> to vector<32x24xf32>
    %338 = arith.subf %330, %337 : vector<32x24xf32>
    %339 = arith.mulf %338, %338 : vector<32x24xf32>
    %cst_150 = arith.constant dense<0.000000e+00> : vector<32xf32>
    %340 = vector.multi_reduction <add>, %339, %cst_150 [1] : vector<32x24xf32> to vector<32xf32>
    %341 = vector.shape_cast %340 : vector<32xf32> to vector<32x1xf32>
    %cst_151 = arith.constant 2.400000e+01 : f32
    %342 = vector.broadcast %cst_151 : f32 to vector<32x1xf32>
    %343 = arith.divf %341, %342 : vector<32x1xf32>
    %344 = vector.broadcast %336 : vector<32x1xf32> to vector<32x24xf32>
    %345 = arith.subf %330, %344 : vector<32x24xf32>
    %cst_152 = arith.constant 9.99999974E-6 : f32
    %346 = vector.broadcast %cst_152 : f32 to vector<32x1xf32>
    %347 = arith.addf %343, %346 : vector<32x1xf32>
    %348 = math.rsqrt %347 : vector<32x1xf32>
    %349 = vector.broadcast %348 : vector<32x1xf32> to vector<32x24xf32>
    %350 = arith.mulf %345, %349 : vector<32x24xf32>
    %351 = vector.broadcast %331 : vector<1x24xf32> to vector<32x24xf32>
    %352 = arith.mulf %350, %351 : vector<32x24xf32>
    %353 = vector.broadcast %332 : vector<1x24xf32> to vector<32x24xf32>
    %354 = arith.addf %352, %353 : vector<32x24xf32>
    %c0_153 = arith.constant 0 : index
    %c0_154 = arith.constant 0 : index
    %355 = vector.load %arg57[%c0_153, %c0_154] : memref<24x96xf32, #tpu.memory_space<vmem>>, vector<24x96xf32>
    %cst_155 = arith.constant dense<0.000000e+00> : vector<32x96xf32>
    %356 = tpu.matmul %354, %355, %cst_155 {dimension_numbers = #tpu.dot_dimension_numbers<[1], [0], [0], [1], [0, 0, 1, 1], [], []>} : vector<32x24xf32>, vector<24x96xf32>, vector<32x96xf32> -> vector<32x96xf32>
    %c0_156 = arith.constant 0 : index
    %c0_157 = arith.constant 0 : index
    %357 = vector.load %arg58[%c0_156, %c0_157] : memref<1x96xf32, #tpu.memory_space<vmem>>, vector<1x96xf32>
    %358 = vector.broadcast %357 : vector<1x96xf32> to vector<32x96xf32>
    %359 = arith.addf %356, %358 : vector<32x96xf32>
    %cst_158 = arith.constant 5.000000e-01 : f32
    %360 = vector.broadcast %cst_158 : f32 to vector<32x96xf32>
    %361 = arith.mulf %360, %359 : vector<32x96xf32>
    %cst_159 = arith.constant 4.471500e-02 : f32
    %362 = vector.broadcast %cst_159 : f32 to vector<32x96xf32>
    %363 = arith.mulf %362, %359 : vector<32x96xf32>
    %364 = arith.mulf %363, %359 : vector<32x96xf32>
    %365 = arith.mulf %364, %359 : vector<32x96xf32>
    %366 = arith.addf %359, %365 : vector<32x96xf32>
    %cst_160 = arith.constant 0.797884583 : f32
    %367 = vector.broadcast %cst_160 : f32 to vector<32x96xf32>
    %368 = arith.mulf %367, %366 : vector<32x96xf32>
    %369 = math.tanh %368 : vector<32x96xf32>
    %cst_161 = arith.constant 1.000000e+00 : f32
    %370 = vector.broadcast %cst_161 : f32 to vector<32x96xf32>
    %371 = arith.addf %370, %369 : vector<32x96xf32>
    %372 = arith.mulf %361, %371 : vector<32x96xf32>
    %c0_162 = arith.constant 0 : index
    %c0_163 = arith.constant 0 : index
    %373 = vector.load %arg59[%c0_162, %c0_163] : memref<96x24xf32, #tpu.memory_space<vmem>>, vector<96x24xf32>
    %cst_164 = arith.constant dense<0.000000e+00> : vector<32x24xf32>
    %374 = tpu.matmul %372, %373, %cst_164 {dimension_numbers = #tpu.dot_dimension_numbers<[1], [0], [0], [1], [0, 0, 1, 1], [], []>} : vector<32x96xf32>, vector<96x24xf32>, vector<32x24xf32> -> vector<32x24xf32>
    %c0_165 = arith.constant 0 : index
    %c0_166 = arith.constant 0 : index
    %375 = vector.load %arg60[%c0_165, %c0_166] : memref<1x24xf32, #tpu.memory_space<vmem>>, vector<1x24xf32>
    %376 = vector.broadcast %375 : vector<1x24xf32> to vector<32x24xf32>
    %377 = arith.addf %374, %376 : vector<32x24xf32>
    %378 = arith.addf %330, %377 : vector<32x24xf32>
    %c0_167 = arith.constant 0 : index
    %c0_168 = arith.constant 0 : index
    %379 = vector.load %arg61[%c0_167, %c0_168] : memref<1x24xf32, #tpu.memory_space<vmem>>, vector<1x24xf32>
    %c0_169 = arith.constant 0 : index
    %c0_170 = arith.constant 0 : index
    %380 = vector.load %arg62[%c0_169, %c0_170] : memref<1x24xf32, #tpu.memory_space<vmem>>, vector<1x24xf32>
    %cst_171 = arith.constant dense<0.000000e+00> : vector<32xf32>
    %381 = vector.multi_reduction <add>, %378, %cst_171 [1] : vector<32x24xf32> to vector<32xf32>
    %382 = vector.shape_cast %381 : vector<32xf32> to vector<32x1xf32>
    %cst_172 = arith.constant 2.400000e+01 : f32
    %383 = vector.broadcast %cst_172 : f32 to vector<32x1xf32>
    %384 = arith.divf %382, %383 : vector<32x1xf32>
    %385 = vector.broadcast %384 : vector<32x1xf32> to vector<32x24xf32>
    %386 = arith.subf %378, %385 : vector<32x24xf32>
    %387 = arith.mulf %386, %386 : vector<32x24xf32>
    %cst_173 = arith.constant dense<0.000000e+00> : vector<32xf32>
    %388 = vector.multi_reduction <add>, %387, %cst_173 [1] : vector<32x24xf32> to vector<32xf32>
    %389 = vector.shape_cast %388 : vector<32xf32> to vector<32x1xf32>
    %cst_174 = arith.constant 2.400000e+01 : f32
    %390 = vector.broadcast %cst_174 : f32 to vector<32x1xf32>
    %391 = arith.divf %389, %390 : vector<32x1xf32>
    %392 = vector.broadcast %384 : vector<32x1xf32> to vector<32x24xf32>
    %393 = arith.subf %378, %392 : vector<32x24xf32>
    %cst_175 = arith.constant 9.99999974E-6 : f32
    %394 = vector.broadcast %cst_175 : f32 to vector<32x1xf32>
    %395 = arith.addf %391, %394 : vector<32x1xf32>
    %396 = math.rsqrt %395 : vector<32x1xf32>
    %397 = vector.broadcast %396 : vector<32x1xf32> to vector<32x24xf32>
    %398 = arith.mulf %393, %397 : vector<32x24xf32>
    %399 = vector.broadcast %379 : vector<1x24xf32> to vector<32x24xf32>
    %400 = arith.mulf %398, %399 : vector<32x24xf32>
    %401 = vector.broadcast %380 : vector<1x24xf32> to vector<32x24xf32>
    %402 = arith.addf %400, %401 : vector<32x24xf32>
    %c0_176 = arith.constant 0 : index
    %c0_177 = arith.constant 0 : index
    %403 = vector.load %arg63[%c0_176, %c0_177] : memref<24x72xf32, #tpu.memory_space<vmem>>, vector<24x72xf32>
    %cst_178 = arith.constant dense<0.000000e+00> : vector<32x72xf32>
    %404 = tpu.matmul %402, %403, %cst_178 {dimension_numbers = #tpu.dot_dimension_numbers<[1], [0], [0], [1], [0, 0, 1, 1], [], []>} : vector<32x24xf32>, vector<24x72xf32>, vector<32x72xf32> -> vector<32x72xf32>
    %c0_179 = arith.constant 0 : index
    %c0_180 = arith.constant 0 : index
    %405 = vector.load %arg64[%c0_179, %c0_180] : memref<1x72xf32, #tpu.memory_space<vmem>>, vector<1x72xf32>
    %406 = vector.broadcast %405 : vector<1x72xf32> to vector<32x72xf32>
    %407 = arith.addf %404, %406 : vector<32x72xf32>
    %408 = vector.extract_strided_slice %407 {offsets = [0, 0], sizes = [32, 24], strides = [1, 1]} : vector<32x72xf32> to vector<32x24xf32>
    %cst_181 = arith.constant 0.204124153 : f32
    %409 = vector.broadcast %cst_181 : f32 to vector<32x24xf32>
    %410 = arith.mulf %408, %409 : vector<32x24xf32>
    %411 = vector.extract_strided_slice %407 {offsets = [0, 24], sizes = [32, 24], strides = [1, 1]} : vector<32x72xf32> to vector<32x24xf32>
    %412 = vector.extract_strided_slice %407 {offsets = [0, 48], sizes = [32, 24], strides = [1, 1]} : vector<32x72xf32> to vector<32x24xf32>
    %413 = vector.extract_strided_slice %410 {offsets = [0, 0], sizes = [16, 24], strides = [1, 1]} : vector<32x24xf32> to vector<16x24xf32>
    %414 = vector.extract_strided_slice %411 {offsets = [0, 0], sizes = [16, 24], strides = [1, 1]} : vector<32x24xf32> to vector<16x24xf32>
    %cst_182 = arith.constant dense<0.000000e+00> : vector<16x16xf32>
    %415 = tpu.matmul %413, %414, %cst_182 {dimension_numbers = #tpu.dot_dimension_numbers<[1], [1], [0], [0], [0, 0, 1, 0], [], []>} : vector<16x24xf32>, vector<16x24xf32>, vector<16x16xf32> -> vector<16x16xf32>
    %416 = arith.addf %415, %0 : vector<16x16xf32>
    %cst_183 = arith.constant dense<0xFF800000> : vector<16xf32>
    %417 = vector.multi_reduction <maximumf>, %416, %cst_183 [1] : vector<16x16xf32> to vector<16xf32>
    %418 = vector.shape_cast %417 : vector<16xf32> to vector<16x1xf32>
    %419 = vector.broadcast %418 : vector<16x1xf32> to vector<16x16xf32>
    %420 = arith.subf %416, %419 : vector<16x16xf32>
    %421 = math.exp %420 : vector<16x16xf32>
    %cst_184 = arith.constant dense<0.000000e+00> : vector<16xf32>
    %422 = vector.multi_reduction <add>, %421, %cst_184 [1] : vector<16x16xf32> to vector<16xf32>
    %423 = vector.shape_cast %422 : vector<16xf32> to vector<16x1xf32>
    %424 = tpu.reciprocal %423 {approx = true} : vector<16x1xf32> -> vector<16x1xf32>
    %425 = vector.broadcast %424 : vector<16x1xf32> to vector<16x16xf32>
    %426 = arith.mulf %421, %425 : vector<16x16xf32>
    %427 = vector.extract_strided_slice %412 {offsets = [0, 0], sizes = [16, 24], strides = [1, 1]} : vector<32x24xf32> to vector<16x24xf32>
    %cst_185 = arith.constant dense<0.000000e+00> : vector<16x24xf32>
    %428 = tpu.matmul %426, %427, %cst_185 {dimension_numbers = #tpu.dot_dimension_numbers<[1], [0], [0], [1], [0, 0, 1, 1], [], []>} : vector<16x16xf32>, vector<16x24xf32>, vector<16x24xf32> -> vector<16x24xf32>
    %429 = vector.extract_strided_slice %410 {offsets = [16, 0], sizes = [16, 24], strides = [1, 1]} : vector<32x24xf32> to vector<16x24xf32>
    %430 = vector.extract_strided_slice %411 {offsets = [16, 0], sizes = [16, 24], strides = [1, 1]} : vector<32x24xf32> to vector<16x24xf32>
    %cst_186 = arith.constant dense<0.000000e+00> : vector<16x16xf32>
    %431 = tpu.matmul %429, %430, %cst_186 {dimension_numbers = #tpu.dot_dimension_numbers<[1], [1], [0], [0], [0, 0, 1, 0], [], []>} : vector<16x24xf32>, vector<16x24xf32>, vector<16x16xf32> -> vector<16x16xf32>
    %432 = arith.addf %431, %0 : vector<16x16xf32>
    %cst_187 = arith.constant dense<0xFF800000> : vector<16xf32>
    %433 = vector.multi_reduction <maximumf>, %432, %cst_187 [1] : vector<16x16xf32> to vector<16xf32>
    %434 = vector.shape_cast %433 : vector<16xf32> to vector<16x1xf32>
    %435 = vector.broadcast %434 : vector<16x1xf32> to vector<16x16xf32>
    %436 = arith.subf %432, %435 : vector<16x16xf32>
    %437 = math.exp %436 : vector<16x16xf32>
    %cst_188 = arith.constant dense<0.000000e+00> : vector<16xf32>
    %438 = vector.multi_reduction <add>, %437, %cst_188 [1] : vector<16x16xf32> to vector<16xf32>
    %439 = vector.shape_cast %438 : vector<16xf32> to vector<16x1xf32>
    %440 = tpu.reciprocal %439 {approx = true} : vector<16x1xf32> -> vector<16x1xf32>
    %441 = vector.broadcast %440 : vector<16x1xf32> to vector<16x16xf32>
    %442 = arith.mulf %437, %441 : vector<16x16xf32>
    %443 = vector.extract_strided_slice %412 {offsets = [16, 0], sizes = [16, 24], strides = [1, 1]} : vector<32x24xf32> to vector<16x24xf32>
    %cst_189 = arith.constant dense<0.000000e+00> : vector<16x24xf32>
    %444 = tpu.matmul %442, %443, %cst_189 {dimension_numbers = #tpu.dot_dimension_numbers<[1], [0], [0], [1], [0, 0, 1, 1], [], []>} : vector<16x16xf32>, vector<16x24xf32>, vector<16x24xf32> -> vector<16x24xf32>
    %445 = tpu.concatenate %428, %444 in 0 : vector<16x24xf32>, vector<16x24xf32> -> vector<32x24xf32>
    %c0_190 = arith.constant 0 : index
    %c0_191 = arith.constant 0 : index
    %446 = vector.load %arg65[%c0_190, %c0_191] : memref<24x24xf32, #tpu.memory_space<vmem>>, vector<24x24xf32>
    %cst_192 = arith.constant dense<0.000000e+00> : vector<32x24xf32>
    %447 = tpu.matmul %445, %446, %cst_192 {dimension_numbers = #tpu.dot_dimension_numbers<[1], [0], [0], [1], [0, 0, 1, 1], [], []>} : vector<32x24xf32>, vector<24x24xf32>, vector<32x24xf32> -> vector<32x24xf32>
    %c0_193 = arith.constant 0 : index
    %c0_194 = arith.constant 0 : index
    %448 = vector.load %arg66[%c0_193, %c0_194] : memref<1x24xf32, #tpu.memory_space<vmem>>, vector<1x24xf32>
    %449 = vector.broadcast %448 : vector<1x24xf32> to vector<32x24xf32>
    %450 = arith.addf %447, %449 : vector<32x24xf32>
    %451 = arith.addf %378, %450 : vector<32x24xf32>
    %c0_195 = arith.constant 0 : index
    %c0_196 = arith.constant 0 : index
    %452 = vector.load %arg67[%c0_195, %c0_196] : memref<1x24xf32, #tpu.memory_space<vmem>>, vector<1x24xf32>
    %c0_197 = arith.constant 0 : index
    %c0_198 = arith.constant 0 : index
    %453 = vector.load %arg68[%c0_197, %c0_198] : memref<1x24xf32, #tpu.memory_space<vmem>>, vector<1x24xf32>
    %cst_199 = arith.constant dense<0.000000e+00> : vector<32xf32>
    %454 = vector.multi_reduction <add>, %451, %cst_199 [1] : vector<32x24xf32> to vector<32xf32>
    %455 = vector.shape_cast %454 : vector<32xf32> to vector<32x1xf32>
    %cst_200 = arith.constant 2.400000e+01 : f32
    %456 = vector.broadcast %cst_200 : f32 to vector<32x1xf32>
    %457 = arith.divf %455, %456 : vector<32x1xf32>
    %458 = vector.broadcast %457 : vector<32x1xf32> to vector<32x24xf32>
    %459 = arith.subf %451, %458 : vector<32x24xf32>
    %460 = arith.mulf %459, %459 : vector<32x24xf32>
    %cst_201 = arith.constant dense<0.000000e+00> : vector<32xf32>
    %461 = vector.multi_reduction <add>, %460, %cst_201 [1] : vector<32x24xf32> to vector<32xf32>
    %462 = vector.shape_cast %461 : vector<32xf32> to vector<32x1xf32>
    %cst_202 = arith.constant 2.400000e+01 : f32
    %463 = vector.broadcast %cst_202 : f32 to vector<32x1xf32>
    %464 = arith.divf %462, %463 : vector<32x1xf32>
    %465 = vector.broadcast %457 : vector<32x1xf32> to vector<32x24xf32>
    %466 = arith.subf %451, %465 : vector<32x24xf32>
    %cst_203 = arith.constant 9.99999974E-6 : f32
    %467 = vector.broadcast %cst_203 : f32 to vector<32x1xf32>
    %468 = arith.addf %464, %467 : vector<32x1xf32>
    %469 = math.rsqrt %468 : vector<32x1xf32>
    %470 = vector.broadcast %469 : vector<32x1xf32> to vector<32x24xf32>
    %471 = arith.mulf %466, %470 : vector<32x24xf32>
    %472 = vector.broadcast %452 : vector<1x24xf32> to vector<32x24xf32>
    %473 = arith.mulf %471, %472 : vector<32x24xf32>
    %474 = vector.broadcast %453 : vector<1x24xf32> to vector<32x24xf32>
    %475 = arith.addf %473, %474 : vector<32x24xf32>
    %c0_204 = arith.constant 0 : index
    %c0_205 = arith.constant 0 : index
    %476 = vector.load %arg69[%c0_204, %c0_205] : memref<24x96xf32, #tpu.memory_space<vmem>>, vector<24x96xf32>
    %cst_206 = arith.constant dense<0.000000e+00> : vector<32x96xf32>
    %477 = tpu.matmul %475, %476, %cst_206 {dimension_numbers = #tpu.dot_dimension_numbers<[1], [0], [0], [1], [0, 0, 1, 1], [], []>} : vector<32x24xf32>, vector<24x96xf32>, vector<32x96xf32> -> vector<32x96xf32>
    %c0_207 = arith.constant 0 : index
    %c0_208 = arith.constant 0 : index
    %478 = vector.load %arg70[%c0_207, %c0_208] : memref<1x96xf32, #tpu.memory_space<vmem>>, vector<1x96xf32>
    %479 = vector.broadcast %478 : vector<1x96xf32> to vector<32x96xf32>
    %480 = arith.addf %477, %479 : vector<32x96xf32>
    %cst_209 = arith.constant 5.000000e-01 : f32
    %481 = vector.broadcast %cst_209 : f32 to vector<32x96xf32>
    %482 = arith.mulf %481, %480 : vector<32x96xf32>
    %cst_210 = arith.constant 4.471500e-02 : f32
    %483 = vector.broadcast %cst_210 : f32 to vector<32x96xf32>
    %484 = arith.mulf %483, %480 : vector<32x96xf32>
    %485 = arith.mulf %484, %480 : vector<32x96xf32>
    %486 = arith.mulf %485, %480 : vector<32x96xf32>
    %487 = arith.addf %480, %486 : vector<32x96xf32>
    %cst_211 = arith.constant 0.797884583 : f32
    %488 = vector.broadcast %cst_211 : f32 to vector<32x96xf32>
    %489 = arith.mulf %488, %487 : vector<32x96xf32>
    %490 = math.tanh %489 : vector<32x96xf32>
    %cst_212 = arith.constant 1.000000e+00 : f32
    %491 = vector.broadcast %cst_212 : f32 to vector<32x96xf32>
    %492 = arith.addf %491, %490 : vector<32x96xf32>
    %493 = arith.mulf %482, %492 : vector<32x96xf32>
    %c0_213 = arith.constant 0 : index
    %c0_214 = arith.constant 0 : index
    %494 = vector.load %arg71[%c0_213, %c0_214] : memref<96x24xf32, #tpu.memory_space<vmem>>, vector<96x24xf32>
    %cst_215 = arith.constant dense<0.000000e+00> : vector<32x24xf32>
    %495 = tpu.matmul %493, %494, %cst_215 {dimension_numbers = #tpu.dot_dimension_numbers<[1], [0], [0], [1], [0, 0, 1, 1], [], []>} : vector<32x96xf32>, vector<96x24xf32>, vector<32x24xf32> -> vector<32x24xf32>
    %c0_216 = arith.constant 0 : index
    %c0_217 = arith.constant 0 : index
    %496 = vector.load %arg72[%c0_216, %c0_217] : memref<1x24xf32, #tpu.memory_space<vmem>>, vector<1x24xf32>
    %497 = vector.broadcast %496 : vector<1x24xf32> to vector<32x24xf32>
    %498 = arith.addf %495, %497 : vector<32x24xf32>
    %499 = arith.addf %451, %498 : vector<32x24xf32>
    %c0_218 = arith.constant 0 : index
    %c0_219 = arith.constant 0 : index
    %500 = vector.load %arg7[%c0_218, %c0_219] : memref<24x40xf32, #tpu.memory_space<vmem>>, vector<24x40xf32>
    %cst_220 = arith.constant dense<0.000000e+00> : vector<32x40xf32>
    %501 = tpu.matmul %499, %500, %cst_220 {dimension_numbers = #tpu.dot_dimension_numbers<[1], [0], [0], [1], [0, 0, 1, 1], [], []>} : vector<32x24xf32>, vector<24x40xf32>, vector<32x40xf32> -> vector<32x40xf32>
    %c0_221 = arith.constant 0 : index
    %c0_222 = arith.constant 0 : index
    %502 = vector.load %arg8[%c0_221, %c0_222] : memref<1x40xf32, #tpu.memory_space<vmem>>, vector<1x40xf32>
    %503 = vector.broadcast %502 : vector<1x40xf32> to vector<32x40xf32>
    %504 = arith.addf %501, %503 : vector<32x40xf32>
    %c0_223 = arith.constant 0 : index
    %c0_224 = arith.constant 0 : index
    %505 = vector.load %arg73[%c0_223, %c0_224] : memref<1x40xf32, #tpu.memory_space<vmem>>, vector<1x40xf32>
    %c0_225 = arith.constant 0 : index
    %c0_226 = arith.constant 0 : index
    %506 = vector.load %arg74[%c0_225, %c0_226] : memref<1x40xf32, #tpu.memory_space<vmem>>, vector<1x40xf32>
    %cst_227 = arith.constant dense<0.000000e+00> : vector<32xf32>
    %507 = vector.multi_reduction <add>, %504, %cst_227 [1] : vector<32x40xf32> to vector<32xf32>
    %508 = vector.shape_cast %507 : vector<32xf32> to vector<32x1xf32>
    %cst_228 = arith.constant 4.000000e+01 : f32
    %509 = vector.broadcast %cst_228 : f32 to vector<32x1xf32>
    %510 = arith.divf %508, %509 : vector<32x1xf32>
    %511 = vector.broadcast %510 : vector<32x1xf32> to vector<32x40xf32>
    %512 = arith.subf %504, %511 : vector<32x40xf32>
    %513 = arith.mulf %512, %512 : vector<32x40xf32>
    %cst_229 = arith.constant dense<0.000000e+00> : vector<32xf32>
    %514 = vector.multi_reduction <add>, %513, %cst_229 [1] : vector<32x40xf32> to vector<32xf32>
    %515 = vector.shape_cast %514 : vector<32xf32> to vector<32x1xf32>
    %cst_230 = arith.constant 4.000000e+01 : f32
    %516 = vector.broadcast %cst_230 : f32 to vector<32x1xf32>
    %517 = arith.divf %515, %516 : vector<32x1xf32>
    %518 = vector.broadcast %510 : vector<32x1xf32> to vector<32x40xf32>
    %519 = arith.subf %504, %518 : vector<32x40xf32>
    %cst_231 = arith.constant 9.99999974E-6 : f32
    %520 = vector.broadcast %cst_231 : f32 to vector<32x1xf32>
    %521 = arith.addf %517, %520 : vector<32x1xf32>
    %522 = math.rsqrt %521 : vector<32x1xf32>
    %523 = vector.broadcast %522 : vector<32x1xf32> to vector<32x40xf32>
    %524 = arith.mulf %519, %523 : vector<32x40xf32>
    %525 = vector.broadcast %505 : vector<1x40xf32> to vector<32x40xf32>
    %526 = arith.mulf %524, %525 : vector<32x40xf32>
    %527 = vector.broadcast %506 : vector<1x40xf32> to vector<32x40xf32>
    %528 = arith.addf %526, %527 : vector<32x40xf32>
    %c0_232 = arith.constant 0 : index
    %c0_233 = arith.constant 0 : index
    %529 = vector.load %arg75[%c0_232, %c0_233] : memref<40x120xf32, #tpu.memory_space<vmem>>, vector<40x120xf32>
    %cst_234 = arith.constant dense<0.000000e+00> : vector<32x120xf32>
    %530 = tpu.matmul %528, %529, %cst_234 {dimension_numbers = #tpu.dot_dimension_numbers<[1], [0], [0], [1], [0, 0, 1, 1], [], []>} : vector<32x40xf32>, vector<40x120xf32>, vector<32x120xf32> -> vector<32x120xf32>
    %c0_235 = arith.constant 0 : index
    %c0_236 = arith.constant 0 : index
    %531 = vector.load %arg76[%c0_235, %c0_236] : memref<1x120xf32, #tpu.memory_space<vmem>>, vector<1x120xf32>
    %532 = vector.broadcast %531 : vector<1x120xf32> to vector<32x120xf32>
    %533 = arith.addf %530, %532 : vector<32x120xf32>
    %534 = vector.extract_strided_slice %533 {offsets = [0, 0], sizes = [32, 40], strides = [1, 1]} : vector<32x120xf32> to vector<32x40xf32>
    %cst_237 = arith.constant 0.158113882 : f32
    %535 = vector.broadcast %cst_237 : f32 to vector<32x40xf32>
    %536 = arith.mulf %534, %535 : vector<32x40xf32>
    %537 = vector.extract_strided_slice %533 {offsets = [0, 40], sizes = [32, 40], strides = [1, 1]} : vector<32x120xf32> to vector<32x40xf32>
    %538 = vector.extract_strided_slice %533 {offsets = [0, 80], sizes = [32, 40], strides = [1, 1]} : vector<32x120xf32> to vector<32x40xf32>
    %539 = vector.extract_strided_slice %536 {offsets = [0, 0], sizes = [16, 40], strides = [1, 1]} : vector<32x40xf32> to vector<16x40xf32>
    %540 = vector.extract_strided_slice %537 {offsets = [0, 0], sizes = [16, 40], strides = [1, 1]} : vector<32x40xf32> to vector<16x40xf32>
    %cst_238 = arith.constant dense<0.000000e+00> : vector<16x16xf32>
    %541 = tpu.matmul %539, %540, %cst_238 {dimension_numbers = #tpu.dot_dimension_numbers<[1], [1], [0], [0], [0, 0, 1, 0], [], []>} : vector<16x40xf32>, vector<16x40xf32>, vector<16x16xf32> -> vector<16x16xf32>
    %542 = arith.addf %541, %0 : vector<16x16xf32>
    %cst_239 = arith.constant dense<0xFF800000> : vector<16xf32>
    %543 = vector.multi_reduction <maximumf>, %542, %cst_239 [1] : vector<16x16xf32> to vector<16xf32>
    %544 = vector.shape_cast %543 : vector<16xf32> to vector<16x1xf32>
    %545 = vector.broadcast %544 : vector<16x1xf32> to vector<16x16xf32>
    %546 = arith.subf %542, %545 : vector<16x16xf32>
    %547 = math.exp %546 : vector<16x16xf32>
    %cst_240 = arith.constant dense<0.000000e+00> : vector<16xf32>
    %548 = vector.multi_reduction <add>, %547, %cst_240 [1] : vector<16x16xf32> to vector<16xf32>
    %549 = vector.shape_cast %548 : vector<16xf32> to vector<16x1xf32>
    %550 = tpu.reciprocal %549 {approx = true} : vector<16x1xf32> -> vector<16x1xf32>
    %551 = vector.broadcast %550 : vector<16x1xf32> to vector<16x16xf32>
    %552 = arith.mulf %547, %551 : vector<16x16xf32>
    %553 = vector.extract_strided_slice %538 {offsets = [0, 0], sizes = [16, 40], strides = [1, 1]} : vector<32x40xf32> to vector<16x40xf32>
    %cst_241 = arith.constant dense<0.000000e+00> : vector<16x40xf32>
    %554 = tpu.matmul %552, %553, %cst_241 {dimension_numbers = #tpu.dot_dimension_numbers<[1], [0], [0], [1], [0, 0, 1, 1], [], []>} : vector<16x16xf32>, vector<16x40xf32>, vector<16x40xf32> -> vector<16x40xf32>
    %555 = vector.extract_strided_slice %536 {offsets = [16, 0], sizes = [16, 40], strides = [1, 1]} : vector<32x40xf32> to vector<16x40xf32>
    %556 = vector.extract_strided_slice %537 {offsets = [16, 0], sizes = [16, 40], strides = [1, 1]} : vector<32x40xf32> to vector<16x40xf32>
    %cst_242 = arith.constant dense<0.000000e+00> : vector<16x16xf32>
    %557 = tpu.matmul %555, %556, %cst_242 {dimension_numbers = #tpu.dot_dimension_numbers<[1], [1], [0], [0], [0, 0, 1, 0], [], []>} : vector<16x40xf32>, vector<16x40xf32>, vector<16x16xf32> -> vector<16x16xf32>
    %558 = arith.addf %557, %0 : vector<16x16xf32>
    %cst_243 = arith.constant dense<0xFF800000> : vector<16xf32>
    %559 = vector.multi_reduction <maximumf>, %558, %cst_243 [1] : vector<16x16xf32> to vector<16xf32>
    %560 = vector.shape_cast %559 : vector<16xf32> to vector<16x1xf32>
    %561 = vector.broadcast %560 : vector<16x1xf32> to vector<16x16xf32>
    %562 = arith.subf %558, %561 : vector<16x16xf32>
    %563 = math.exp %562 : vector<16x16xf32>
    %cst_244 = arith.constant dense<0.000000e+00> : vector<16xf32>
    %564 = vector.multi_reduction <add>, %563, %cst_244 [1] : vector<16x16xf32> to vector<16xf32>
    %565 = vector.shape_cast %564 : vector<16xf32> to vector<16x1xf32>
    %566 = tpu.reciprocal %565 {approx = true} : vector<16x1xf32> -> vector<16x1xf32>
    %567 = vector.broadcast %566 : vector<16x1xf32> to vector<16x16xf32>
    %568 = arith.mulf %563, %567 : vector<16x16xf32>
    %569 = vector.extract_strided_slice %538 {offsets = [16, 0], sizes = [16, 40], strides = [1, 1]} : vector<32x40xf32> to vector<16x40xf32>
    %cst_245 = arith.constant dense<0.000000e+00> : vector<16x40xf32>
    %570 = tpu.matmul %568, %569, %cst_245 {dimension_numbers = #tpu.dot_dimension_numbers<[1], [0], [0], [1], [0, 0, 1, 1], [], []>} : vector<16x16xf32>, vector<16x40xf32>, vector<16x40xf32> -> vector<16x40xf32>
    %571 = tpu.concatenate %554, %570 in 0 : vector<16x40xf32>, vector<16x40xf32> -> vector<32x40xf32>
    %c0_246 = arith.constant 0 : index
    %c0_247 = arith.constant 0 : index
    %572 = vector.load %arg77[%c0_246, %c0_247] : memref<40x40xf32, #tpu.memory_space<vmem>>, vector<40x40xf32>
    %cst_248 = arith.constant dense<0.000000e+00> : vector<32x40xf32>
    %573 = tpu.matmul %571, %572, %cst_248 {dimension_numbers = #tpu.dot_dimension_numbers<[1], [0], [0], [1], [0, 0, 1, 1], [], []>} : vector<32x40xf32>, vector<40x40xf32>, vector<32x40xf32> -> vector<32x40xf32>
    %c0_249 = arith.constant 0 : index
    %c0_250 = arith.constant 0 : index
    %574 = vector.load %arg78[%c0_249, %c0_250] : memref<1x40xf32, #tpu.memory_space<vmem>>, vector<1x40xf32>
    %575 = vector.broadcast %574 : vector<1x40xf32> to vector<32x40xf32>
    %576 = arith.addf %573, %575 : vector<32x40xf32>
    %577 = arith.addf %504, %576 : vector<32x40xf32>
    %c0_251 = arith.constant 0 : index
    %c0_252 = arith.constant 0 : index
    %578 = vector.load %arg79[%c0_251, %c0_252] : memref<1x40xf32, #tpu.memory_space<vmem>>, vector<1x40xf32>
    %c0_253 = arith.constant 0 : index
    %c0_254 = arith.constant 0 : index
    %579 = vector.load %arg80[%c0_253, %c0_254] : memref<1x40xf32, #tpu.memory_space<vmem>>, vector<1x40xf32>
    %cst_255 = arith.constant dense<0.000000e+00> : vector<32xf32>
    %580 = vector.multi_reduction <add>, %577, %cst_255 [1] : vector<32x40xf32> to vector<32xf32>
    %581 = vector.shape_cast %580 : vector<32xf32> to vector<32x1xf32>
    %cst_256 = arith.constant 4.000000e+01 : f32
    %582 = vector.broadcast %cst_256 : f32 to vector<32x1xf32>
    %583 = arith.divf %581, %582 : vector<32x1xf32>
    %584 = vector.broadcast %583 : vector<32x1xf32> to vector<32x40xf32>
    %585 = arith.subf %577, %584 : vector<32x40xf32>
    %586 = arith.mulf %585, %585 : vector<32x40xf32>
    %cst_257 = arith.constant dense<0.000000e+00> : vector<32xf32>
    %587 = vector.multi_reduction <add>, %586, %cst_257 [1] : vector<32x40xf32> to vector<32xf32>
    %588 = vector.shape_cast %587 : vector<32xf32> to vector<32x1xf32>
    %cst_258 = arith.constant 4.000000e+01 : f32
    %589 = vector.broadcast %cst_258 : f32 to vector<32x1xf32>
    %590 = arith.divf %588, %589 : vector<32x1xf32>
    %591 = vector.broadcast %583 : vector<32x1xf32> to vector<32x40xf32>
    %592 = arith.subf %577, %591 : vector<32x40xf32>
    %cst_259 = arith.constant 9.99999974E-6 : f32
    %593 = vector.broadcast %cst_259 : f32 to vector<32x1xf32>
    %594 = arith.addf %590, %593 : vector<32x1xf32>
    %595 = math.rsqrt %594 : vector<32x1xf32>
    %596 = vector.broadcast %595 : vector<32x1xf32> to vector<32x40xf32>
    %597 = arith.mulf %592, %596 : vector<32x40xf32>
    %598 = vector.broadcast %578 : vector<1x40xf32> to vector<32x40xf32>
    %599 = arith.mulf %597, %598 : vector<32x40xf32>
    %600 = vector.broadcast %579 : vector<1x40xf32> to vector<32x40xf32>
    %601 = arith.addf %599, %600 : vector<32x40xf32>
    %c0_260 = arith.constant 0 : index
    %c0_261 = arith.constant 0 : index
    %602 = vector.load %arg81[%c0_260, %c0_261] : memref<40x160xf32, #tpu.memory_space<vmem>>, vector<40x160xf32>
    %cst_262 = arith.constant dense<0.000000e+00> : vector<32x160xf32>
    %603 = tpu.matmul %601, %602, %cst_262 {dimension_numbers = #tpu.dot_dimension_numbers<[1], [0], [0], [1], [0, 0, 1, 1], [], []>} : vector<32x40xf32>, vector<40x160xf32>, vector<32x160xf32> -> vector<32x160xf32>
    %c0_263 = arith.constant 0 : index
    %c0_264 = arith.constant 0 : index
    %604 = vector.load %arg82[%c0_263, %c0_264] : memref<1x160xf32, #tpu.memory_space<vmem>>, vector<1x160xf32>
    %605 = vector.broadcast %604 : vector<1x160xf32> to vector<32x160xf32>
    %606 = arith.addf %603, %605 : vector<32x160xf32>
    %cst_265 = arith.constant 5.000000e-01 : f32
    %607 = vector.broadcast %cst_265 : f32 to vector<32x160xf32>
    %608 = arith.mulf %607, %606 : vector<32x160xf32>
    %cst_266 = arith.constant 4.471500e-02 : f32
    %609 = vector.broadcast %cst_266 : f32 to vector<32x160xf32>
    %610 = arith.mulf %609, %606 : vector<32x160xf32>
    %611 = arith.mulf %610, %606 : vector<32x160xf32>
    %612 = arith.mulf %611, %606 : vector<32x160xf32>
    %613 = arith.addf %606, %612 : vector<32x160xf32>
    %cst_267 = arith.constant 0.797884583 : f32
    %614 = vector.broadcast %cst_267 : f32 to vector<32x160xf32>
    %615 = arith.mulf %614, %613 : vector<32x160xf32>
    %616 = math.tanh %615 : vector<32x160xf32>
    %cst_268 = arith.constant 1.000000e+00 : f32
    %617 = vector.broadcast %cst_268 : f32 to vector<32x160xf32>
    %618 = arith.addf %617, %616 : vector<32x160xf32>
    %619 = arith.mulf %608, %618 : vector<32x160xf32>
    %c0_269 = arith.constant 0 : index
    %c0_270 = arith.constant 0 : index
    %620 = vector.load %arg83[%c0_269, %c0_270] : memref<160x40xf32, #tpu.memory_space<vmem>>, vector<160x40xf32>
    %cst_271 = arith.constant dense<0.000000e+00> : vector<32x40xf32>
    %621 = tpu.matmul %619, %620, %cst_271 {dimension_numbers = #tpu.dot_dimension_numbers<[1], [0], [0], [1], [0, 0, 1, 1], [], []>} : vector<32x160xf32>, vector<160x40xf32>, vector<32x40xf32> -> vector<32x40xf32>
    %c0_272 = arith.constant 0 : index
    %c0_273 = arith.constant 0 : index
    %622 = vector.load %arg84[%c0_272, %c0_273] : memref<1x40xf32, #tpu.memory_space<vmem>>, vector<1x40xf32>
    %623 = vector.broadcast %622 : vector<1x40xf32> to vector<32x40xf32>
    %624 = arith.addf %621, %623 : vector<32x40xf32>
    %625 = arith.addf %577, %624 : vector<32x40xf32>
    %c0_274 = arith.constant 0 : index
    %c0_275 = arith.constant 0 : index
    %626 = vector.load %arg17[%c0_274, %c0_275] : memref<1x40xf32, #tpu.memory_space<vmem>>, vector<1x40xf32>
    %c0_276 = arith.constant 0 : index
    %c0_277 = arith.constant 0 : index
    %627 = vector.load %arg18[%c0_276, %c0_277] : memref<1x40xf32, #tpu.memory_space<vmem>>, vector<1x40xf32>
    %cst_278 = arith.constant dense<0.000000e+00> : vector<32xf32>
    %628 = vector.multi_reduction <add>, %625, %cst_278 [1] : vector<32x40xf32> to vector<32xf32>
    %629 = vector.shape_cast %628 : vector<32xf32> to vector<32x1xf32>
    %cst_279 = arith.constant 4.000000e+01 : f32
    %630 = vector.broadcast %cst_279 : f32 to vector<32x1xf32>
    %631 = arith.divf %629, %630 : vector<32x1xf32>
    %632 = vector.broadcast %631 : vector<32x1xf32> to vector<32x40xf32>
    %633 = arith.subf %625, %632 : vector<32x40xf32>
    %634 = arith.mulf %633, %633 : vector<32x40xf32>
    %cst_280 = arith.constant dense<0.000000e+00> : vector<32xf32>
    %635 = vector.multi_reduction <add>, %634, %cst_280 [1] : vector<32x40xf32> to vector<32xf32>
    %636 = vector.shape_cast %635 : vector<32xf32> to vector<32x1xf32>
    %cst_281 = arith.constant 4.000000e+01 : f32
    %637 = vector.broadcast %cst_281 : f32 to vector<32x1xf32>
    %638 = arith.divf %636, %637 : vector<32x1xf32>
    %639 = vector.broadcast %631 : vector<32x1xf32> to vector<32x40xf32>
    %640 = arith.subf %625, %639 : vector<32x40xf32>
    %cst_282 = arith.constant 9.99999974E-6 : f32
    %641 = vector.broadcast %cst_282 : f32 to vector<32x1xf32>
    %642 = arith.addf %638, %641 : vector<32x1xf32>
    %643 = math.rsqrt %642 : vector<32x1xf32>
    %644 = vector.broadcast %643 : vector<32x1xf32> to vector<32x40xf32>
    %645 = arith.mulf %640, %644 : vector<32x40xf32>
    %646 = vector.broadcast %626 : vector<1x40xf32> to vector<32x40xf32>
    %647 = arith.mulf %645, %646 : vector<32x40xf32>
    %648 = vector.broadcast %627 : vector<1x40xf32> to vector<32x40xf32>
    %649 = arith.addf %647, %648 : vector<32x40xf32>
    %c0_283 = arith.constant 0 : index
    %c0_284 = arith.constant 0 : index
    %650 = vector.load %arg9[%c0_283, %c0_284] : memref<40x72xf32, #tpu.memory_space<vmem>>, vector<40x72xf32>
    %cst_285 = arith.constant dense<0.000000e+00> : vector<32x72xf32>
    %651 = tpu.matmul %649, %650, %cst_285 {dimension_numbers = #tpu.dot_dimension_numbers<[1], [0], [0], [1], [0, 0, 1, 1], [], []>} : vector<32x40xf32>, vector<40x72xf32>, vector<32x72xf32> -> vector<32x72xf32>
    %c0_286 = arith.constant 0 : index
    %c0_287 = arith.constant 0 : index
    %652 = vector.load %arg10[%c0_286, %c0_287] : memref<1x72xf32, #tpu.memory_space<vmem>>, vector<1x72xf32>
    %653 = vector.broadcast %652 : vector<1x72xf32> to vector<32x72xf32>
    %654 = arith.addf %651, %653 : vector<32x72xf32>
    %cst_288 = arith.constant 5.000000e-01 : f32
    %655 = vector.broadcast %cst_288 : f32 to vector<32x72xf32>
    %656 = arith.mulf %655, %654 : vector<32x72xf32>
    %cst_289 = arith.constant 4.471500e-02 : f32
    %657 = vector.broadcast %cst_289 : f32 to vector<32x72xf32>
    %658 = arith.mulf %657, %654 : vector<32x72xf32>
    %659 = arith.mulf %658, %654 : vector<32x72xf32>
    %660 = arith.mulf %659, %654 : vector<32x72xf32>
    %661 = arith.addf %654, %660 : vector<32x72xf32>
    %cst_290 = arith.constant 0.797884583 : f32
    %662 = vector.broadcast %cst_290 : f32 to vector<32x72xf32>
    %663 = arith.mulf %662, %661 : vector<32x72xf32>
    %664 = math.tanh %663 : vector<32x72xf32>
    %cst_291 = arith.constant 1.000000e+00 : f32
    %665 = vector.broadcast %cst_291 : f32 to vector<32x72xf32>
    %666 = arith.addf %665, %664 : vector<32x72xf32>
    %667 = arith.mulf %656, %666 : vector<32x72xf32>
    %c0_292 = arith.constant 0 : index
    %c0_293 = arith.constant 0 : index
    %668 = vector.load %arg11[%c0_292, %c0_293] : memref<72x40xf32, #tpu.memory_space<vmem>>, vector<72x40xf32>
    %cst_294 = arith.constant dense<0.000000e+00> : vector<32x40xf32>
    %669 = tpu.matmul %667, %668, %cst_294 {dimension_numbers = #tpu.dot_dimension_numbers<[1], [0], [0], [1], [0, 0, 1, 1], [], []>} : vector<32x72xf32>, vector<72x40xf32>, vector<32x40xf32> -> vector<32x40xf32>
    %c0_295 = arith.constant 0 : index
    %c0_296 = arith.constant 0 : index
    %670 = vector.load %arg12[%c0_295, %c0_296] : memref<1x40xf32, #tpu.memory_space<vmem>>, vector<1x40xf32>
    %671 = vector.broadcast %670 : vector<1x40xf32> to vector<32x40xf32>
    %672 = arith.addf %669, %671 : vector<32x40xf32>
    %673 = arith.mulf %672, %625 : vector<32x40xf32>
    %c0_297 = arith.constant 0 : index
    %c0_298 = arith.constant 0 : index
    %674 = vector.load %arg73[%c0_297, %c0_298] : memref<1x40xf32, #tpu.memory_space<vmem>>, vector<1x40xf32>
    %c0_299 = arith.constant 0 : index
    %c0_300 = arith.constant 0 : index
    %675 = vector.load %arg74[%c0_299, %c0_300] : memref<1x40xf32, #tpu.memory_space<vmem>>, vector<1x40xf32>
    %cst_301 = arith.constant dense<0.000000e+00> : vector<32xf32>
    %676 = vector.multi_reduction <add>, %673, %cst_301 [1] : vector<32x40xf32> to vector<32xf32>
    %677 = vector.shape_cast %676 : vector<32xf32> to vector<32x1xf32>
    %cst_302 = arith.constant 4.000000e+01 : f32
    %678 = vector.broadcast %cst_302 : f32 to vector<32x1xf32>
    %679 = arith.divf %677, %678 : vector<32x1xf32>
    %680 = vector.broadcast %679 : vector<32x1xf32> to vector<32x40xf32>
    %681 = arith.subf %673, %680 : vector<32x40xf32>
    %682 = arith.mulf %681, %681 : vector<32x40xf32>
    %cst_303 = arith.constant dense<0.000000e+00> : vector<32xf32>
    %683 = vector.multi_reduction <add>, %682, %cst_303 [1] : vector<32x40xf32> to vector<32xf32>
    %684 = vector.shape_cast %683 : vector<32xf32> to vector<32x1xf32>
    %cst_304 = arith.constant 4.000000e+01 : f32
    %685 = vector.broadcast %cst_304 : f32 to vector<32x1xf32>
    %686 = arith.divf %684, %685 : vector<32x1xf32>
    %687 = vector.broadcast %679 : vector<32x1xf32> to vector<32x40xf32>
    %688 = arith.subf %673, %687 : vector<32x40xf32>
    %cst_305 = arith.constant 9.99999974E-6 : f32
    %689 = vector.broadcast %cst_305 : f32 to vector<32x1xf32>
    %690 = arith.addf %686, %689 : vector<32x1xf32>
    %691 = math.rsqrt %690 : vector<32x1xf32>
    %692 = vector.broadcast %691 : vector<32x1xf32> to vector<32x40xf32>
    %693 = arith.mulf %688, %692 : vector<32x40xf32>
    %694 = vector.broadcast %674 : vector<1x40xf32> to vector<32x40xf32>
    %695 = arith.mulf %693, %694 : vector<32x40xf32>
    %696 = vector.broadcast %675 : vector<1x40xf32> to vector<32x40xf32>
    %697 = arith.addf %695, %696 : vector<32x40xf32>
    %c0_306 = arith.constant 0 : index
    %c0_307 = arith.constant 0 : index
    %698 = vector.load %arg75[%c0_306, %c0_307] : memref<40x120xf32, #tpu.memory_space<vmem>>, vector<40x120xf32>
    %cst_308 = arith.constant dense<0.000000e+00> : vector<32x120xf32>
    %699 = tpu.matmul %697, %698, %cst_308 {dimension_numbers = #tpu.dot_dimension_numbers<[1], [0], [0], [1], [0, 0, 1, 1], [], []>} : vector<32x40xf32>, vector<40x120xf32>, vector<32x120xf32> -> vector<32x120xf32>
    %c0_309 = arith.constant 0 : index
    %c0_310 = arith.constant 0 : index
    %700 = vector.load %arg76[%c0_309, %c0_310] : memref<1x120xf32, #tpu.memory_space<vmem>>, vector<1x120xf32>
    %701 = vector.broadcast %700 : vector<1x120xf32> to vector<32x120xf32>
    %702 = arith.addf %699, %701 : vector<32x120xf32>
    %703 = vector.extract_strided_slice %702 {offsets = [0, 0], sizes = [32, 40], strides = [1, 1]} : vector<32x120xf32> to vector<32x40xf32>
    %cst_311 = arith.constant 0.158113882 : f32
    %704 = vector.broadcast %cst_311 : f32 to vector<32x40xf32>
    %705 = arith.mulf %703, %704 : vector<32x40xf32>
    %706 = vector.extract_strided_slice %702 {offsets = [0, 40], sizes = [32, 40], strides = [1, 1]} : vector<32x120xf32> to vector<32x40xf32>
    %707 = vector.extract_strided_slice %702 {offsets = [0, 80], sizes = [32, 40], strides = [1, 1]} : vector<32x120xf32> to vector<32x40xf32>
    %708 = vector.extract_strided_slice %705 {offsets = [0, 0], sizes = [16, 40], strides = [1, 1]} : vector<32x40xf32> to vector<16x40xf32>
    %709 = vector.extract_strided_slice %706 {offsets = [0, 0], sizes = [16, 40], strides = [1, 1]} : vector<32x40xf32> to vector<16x40xf32>
    %cst_312 = arith.constant dense<0.000000e+00> : vector<16x16xf32>
    %710 = tpu.matmul %708, %709, %cst_312 {dimension_numbers = #tpu.dot_dimension_numbers<[1], [1], [0], [0], [0, 0, 1, 0], [], []>} : vector<16x40xf32>, vector<16x40xf32>, vector<16x16xf32> -> vector<16x16xf32>
    %711 = arith.addf %710, %0 : vector<16x16xf32>
    %cst_313 = arith.constant dense<0xFF800000> : vector<16xf32>
    %712 = vector.multi_reduction <maximumf>, %711, %cst_313 [1] : vector<16x16xf32> to vector<16xf32>
    %713 = vector.shape_cast %712 : vector<16xf32> to vector<16x1xf32>
    %714 = vector.broadcast %713 : vector<16x1xf32> to vector<16x16xf32>
    %715 = arith.subf %711, %714 : vector<16x16xf32>
    %716 = math.exp %715 : vector<16x16xf32>
    %cst_314 = arith.constant dense<0.000000e+00> : vector<16xf32>
    %717 = vector.multi_reduction <add>, %716, %cst_314 [1] : vector<16x16xf32> to vector<16xf32>
    %718 = vector.shape_cast %717 : vector<16xf32> to vector<16x1xf32>
    %719 = tpu.reciprocal %718 {approx = true} : vector<16x1xf32> -> vector<16x1xf32>
    %720 = vector.broadcast %719 : vector<16x1xf32> to vector<16x16xf32>
    %721 = arith.mulf %716, %720 : vector<16x16xf32>
    %722 = vector.extract_strided_slice %707 {offsets = [0, 0], sizes = [16, 40], strides = [1, 1]} : vector<32x40xf32> to vector<16x40xf32>
    %cst_315 = arith.constant dense<0.000000e+00> : vector<16x40xf32>
    %723 = tpu.matmul %721, %722, %cst_315 {dimension_numbers = #tpu.dot_dimension_numbers<[1], [0], [0], [1], [0, 0, 1, 1], [], []>} : vector<16x16xf32>, vector<16x40xf32>, vector<16x40xf32> -> vector<16x40xf32>
    %724 = vector.extract_strided_slice %705 {offsets = [16, 0], sizes = [16, 40], strides = [1, 1]} : vector<32x40xf32> to vector<16x40xf32>
    %725 = vector.extract_strided_slice %706 {offsets = [16, 0], sizes = [16, 40], strides = [1, 1]} : vector<32x40xf32> to vector<16x40xf32>
    %cst_316 = arith.constant dense<0.000000e+00> : vector<16x16xf32>
    %726 = tpu.matmul %724, %725, %cst_316 {dimension_numbers = #tpu.dot_dimension_numbers<[1], [1], [0], [0], [0, 0, 1, 0], [], []>} : vector<16x40xf32>, vector<16x40xf32>, vector<16x16xf32> -> vector<16x16xf32>
    %727 = arith.addf %726, %0 : vector<16x16xf32>
    %cst_317 = arith.constant dense<0xFF800000> : vector<16xf32>
    %728 = vector.multi_reduction <maximumf>, %727, %cst_317 [1] : vector<16x16xf32> to vector<16xf32>
    %729 = vector.shape_cast %728 : vector<16xf32> to vector<16x1xf32>
    %730 = vector.broadcast %729 : vector<16x1xf32> to vector<16x16xf32>
    %731 = arith.subf %727, %730 : vector<16x16xf32>
    %732 = math.exp %731 : vector<16x16xf32>
    %cst_318 = arith.constant dense<0.000000e+00> : vector<16xf32>
    %733 = vector.multi_reduction <add>, %732, %cst_318 [1] : vector<16x16xf32> to vector<16xf32>
    %734 = vector.shape_cast %733 : vector<16xf32> to vector<16x1xf32>
    %735 = tpu.reciprocal %734 {approx = true} : vector<16x1xf32> -> vector<16x1xf32>
    %736 = vector.broadcast %735 : vector<16x1xf32> to vector<16x16xf32>
    %737 = arith.mulf %732, %736 : vector<16x16xf32>
    %738 = vector.extract_strided_slice %707 {offsets = [16, 0], sizes = [16, 40], strides = [1, 1]} : vector<32x40xf32> to vector<16x40xf32>
    %cst_319 = arith.constant dense<0.000000e+00> : vector<16x40xf32>
    %739 = tpu.matmul %737, %738, %cst_319 {dimension_numbers = #tpu.dot_dimension_numbers<[1], [0], [0], [1], [0, 0, 1, 1], [], []>} : vector<16x16xf32>, vector<16x40xf32>, vector<16x40xf32> -> vector<16x40xf32>
    %740 = tpu.concatenate %723, %739 in 0 : vector<16x40xf32>, vector<16x40xf32> -> vector<32x40xf32>
    %c0_320 = arith.constant 0 : index
    %c0_321 = arith.constant 0 : index
    %741 = vector.load %arg77[%c0_320, %c0_321] : memref<40x40xf32, #tpu.memory_space<vmem>>, vector<40x40xf32>
    %cst_322 = arith.constant dense<0.000000e+00> : vector<32x40xf32>
    %742 = tpu.matmul %740, %741, %cst_322 {dimension_numbers = #tpu.dot_dimension_numbers<[1], [0], [0], [1], [0, 0, 1, 1], [], []>} : vector<32x40xf32>, vector<40x40xf32>, vector<32x40xf32> -> vector<32x40xf32>
    %c0_323 = arith.constant 0 : index
    %c0_324 = arith.constant 0 : index
    %743 = vector.load %arg78[%c0_323, %c0_324] : memref<1x40xf32, #tpu.memory_space<vmem>>, vector<1x40xf32>
    %744 = vector.broadcast %743 : vector<1x40xf32> to vector<32x40xf32>
    %745 = arith.addf %742, %744 : vector<32x40xf32>
    %746 = arith.addf %673, %745 : vector<32x40xf32>
    %c0_325 = arith.constant 0 : index
    %c0_326 = arith.constant 0 : index
    %747 = vector.load %arg79[%c0_325, %c0_326] : memref<1x40xf32, #tpu.memory_space<vmem>>, vector<1x40xf32>
    %c0_327 = arith.constant 0 : index
    %c0_328 = arith.constant 0 : index
    %748 = vector.load %arg80[%c0_327, %c0_328] : memref<1x40xf32, #tpu.memory_space<vmem>>, vector<1x40xf32>
    %cst_329 = arith.constant dense<0.000000e+00> : vector<32xf32>
    %749 = vector.multi_reduction <add>, %746, %cst_329 [1] : vector<32x40xf32> to vector<32xf32>
    %750 = vector.shape_cast %749 : vector<32xf32> to vector<32x1xf32>
    %cst_330 = arith.constant 4.000000e+01 : f32
    %751 = vector.broadcast %cst_330 : f32 to vector<32x1xf32>
    %752 = arith.divf %750, %751 : vector<32x1xf32>
    %753 = vector.broadcast %752 : vector<32x1xf32> to vector<32x40xf32>
    %754 = arith.subf %746, %753 : vector<32x40xf32>
    %755 = arith.mulf %754, %754 : vector<32x40xf32>
    %cst_331 = arith.constant dense<0.000000e+00> : vector<32xf32>
    %756 = vector.multi_reduction <add>, %755, %cst_331 [1] : vector<32x40xf32> to vector<32xf32>
    %757 = vector.shape_cast %756 : vector<32xf32> to vector<32x1xf32>
    %cst_332 = arith.constant 4.000000e+01 : f32
    %758 = vector.broadcast %cst_332 : f32 to vector<32x1xf32>
    %759 = arith.divf %757, %758 : vector<32x1xf32>
    %760 = vector.broadcast %752 : vector<32x1xf32> to vector<32x40xf32>
    %761 = arith.subf %746, %760 : vector<32x40xf32>
    %cst_333 = arith.constant 9.99999974E-6 : f32
    %762 = vector.broadcast %cst_333 : f32 to vector<32x1xf32>
    %763 = arith.addf %759, %762 : vector<32x1xf32>
    %764 = math.rsqrt %763 : vector<32x1xf32>
    %765 = vector.broadcast %764 : vector<32x1xf32> to vector<32x40xf32>
    %766 = arith.mulf %761, %765 : vector<32x40xf32>
    %767 = vector.broadcast %747 : vector<1x40xf32> to vector<32x40xf32>
    %768 = arith.mulf %766, %767 : vector<32x40xf32>
    %769 = vector.broadcast %748 : vector<1x40xf32> to vector<32x40xf32>
    %770 = arith.addf %768, %769 : vector<32x40xf32>
    %c0_334 = arith.constant 0 : index
    %c0_335 = arith.constant 0 : index
    %771 = vector.load %arg81[%c0_334, %c0_335] : memref<40x160xf32, #tpu.memory_space<vmem>>, vector<40x160xf32>
    %cst_336 = arith.constant dense<0.000000e+00> : vector<32x160xf32>
    %772 = tpu.matmul %770, %771, %cst_336 {dimension_numbers = #tpu.dot_dimension_numbers<[1], [0], [0], [1], [0, 0, 1, 1], [], []>} : vector<32x40xf32>, vector<40x160xf32>, vector<32x160xf32> -> vector<32x160xf32>
    %c0_337 = arith.constant 0 : index
    %c0_338 = arith.constant 0 : index
    %773 = vector.load %arg82[%c0_337, %c0_338] : memref<1x160xf32, #tpu.memory_space<vmem>>, vector<1x160xf32>
    %774 = vector.broadcast %773 : vector<1x160xf32> to vector<32x160xf32>
    %775 = arith.addf %772, %774 : vector<32x160xf32>
    %cst_339 = arith.constant 5.000000e-01 : f32
    %776 = vector.broadcast %cst_339 : f32 to vector<32x160xf32>
    %777 = arith.mulf %776, %775 : vector<32x160xf32>
    %cst_340 = arith.constant 4.471500e-02 : f32
    %778 = vector.broadcast %cst_340 : f32 to vector<32x160xf32>
    %779 = arith.mulf %778, %775 : vector<32x160xf32>
    %780 = arith.mulf %779, %775 : vector<32x160xf32>
    %781 = arith.mulf %780, %775 : vector<32x160xf32>
    %782 = arith.addf %775, %781 : vector<32x160xf32>
    %cst_341 = arith.constant 0.797884583 : f32
    %783 = vector.broadcast %cst_341 : f32 to vector<32x160xf32>
    %784 = arith.mulf %783, %782 : vector<32x160xf32>
    %785 = math.tanh %784 : vector<32x160xf32>
    %cst_342 = arith.constant 1.000000e+00 : f32
    %786 = vector.broadcast %cst_342 : f32 to vector<32x160xf32>
    %787 = arith.addf %786, %785 : vector<32x160xf32>
    %788 = arith.mulf %777, %787 : vector<32x160xf32>
    %c0_343 = arith.constant 0 : index
    %c0_344 = arith.constant 0 : index
    %789 = vector.load %arg83[%c0_343, %c0_344] : memref<160x40xf32, #tpu.memory_space<vmem>>, vector<160x40xf32>
    %cst_345 = arith.constant dense<0.000000e+00> : vector<32x40xf32>
    %790 = tpu.matmul %788, %789, %cst_345 {dimension_numbers = #tpu.dot_dimension_numbers<[1], [0], [0], [1], [0, 0, 1, 1], [], []>} : vector<32x160xf32>, vector<160x40xf32>, vector<32x40xf32> -> vector<32x40xf32>
    %c0_346 = arith.constant 0 : index
    %c0_347 = arith.constant 0 : index
    %791 = vector.load %arg84[%c0_346, %c0_347] : memref<1x40xf32, #tpu.memory_space<vmem>>, vector<1x40xf32>
    %792 = vector.broadcast %791 : vector<1x40xf32> to vector<32x40xf32>
    %793 = arith.addf %790, %792 : vector<32x40xf32>
    %794 = arith.addf %746, %793 : vector<32x40xf32>
    %c0_348 = arith.constant 0 : index
    %c0_349 = arith.constant 0 : index
    %795 = vector.load %arg13[%c0_348, %c0_349] : memref<40x24xf32, #tpu.memory_space<vmem>>, vector<40x24xf32>
    %cst_350 = arith.constant dense<0.000000e+00> : vector<32x24xf32>
    %796 = tpu.matmul %794, %795, %cst_350 {dimension_numbers = #tpu.dot_dimension_numbers<[1], [0], [0], [1], [0, 0, 1, 1], [], []>} : vector<32x40xf32>, vector<40x24xf32>, vector<32x24xf32> -> vector<32x24xf32>
    %c0_351 = arith.constant 0 : index
    %c0_352 = arith.constant 0 : index
    %797 = vector.load %arg14[%c0_351, %c0_352] : memref<1x24xf32, #tpu.memory_space<vmem>>, vector<1x24xf32>
    %798 = vector.broadcast %797 : vector<1x24xf32> to vector<32x24xf32>
    %799 = arith.addf %796, %798 : vector<32x24xf32>
    %800 = arith.mulf %799, %499 : vector<32x24xf32>
    %c0_353 = arith.constant 0 : index
    %c0_354 = arith.constant 0 : index
    %801 = vector.load %arg61[%c0_353, %c0_354] : memref<1x24xf32, #tpu.memory_space<vmem>>, vector<1x24xf32>
    %c0_355 = arith.constant 0 : index
    %c0_356 = arith.constant 0 : index
    %802 = vector.load %arg62[%c0_355, %c0_356] : memref<1x24xf32, #tpu.memory_space<vmem>>, vector<1x24xf32>
    %cst_357 = arith.constant dense<0.000000e+00> : vector<32xf32>
    %803 = vector.multi_reduction <add>, %800, %cst_357 [1] : vector<32x24xf32> to vector<32xf32>
    %804 = vector.shape_cast %803 : vector<32xf32> to vector<32x1xf32>
    %cst_358 = arith.constant 2.400000e+01 : f32
    %805 = vector.broadcast %cst_358 : f32 to vector<32x1xf32>
    %806 = arith.divf %804, %805 : vector<32x1xf32>
    %807 = vector.broadcast %806 : vector<32x1xf32> to vector<32x24xf32>
    %808 = arith.subf %800, %807 : vector<32x24xf32>
    %809 = arith.mulf %808, %808 : vector<32x24xf32>
    %cst_359 = arith.constant dense<0.000000e+00> : vector<32xf32>
    %810 = vector.multi_reduction <add>, %809, %cst_359 [1] : vector<32x24xf32> to vector<32xf32>
    %811 = vector.shape_cast %810 : vector<32xf32> to vector<32x1xf32>
    %cst_360 = arith.constant 2.400000e+01 : f32
    %812 = vector.broadcast %cst_360 : f32 to vector<32x1xf32>
    %813 = arith.divf %811, %812 : vector<32x1xf32>
    %814 = vector.broadcast %806 : vector<32x1xf32> to vector<32x24xf32>
    %815 = arith.subf %800, %814 : vector<32x24xf32>
    %cst_361 = arith.constant 9.99999974E-6 : f32
    %816 = vector.broadcast %cst_361 : f32 to vector<32x1xf32>
    %817 = arith.addf %813, %816 : vector<32x1xf32>
    %818 = math.rsqrt %817 : vector<32x1xf32>
    %819 = vector.broadcast %818 : vector<32x1xf32> to vector<32x24xf32>
    %820 = arith.mulf %815, %819 : vector<32x24xf32>
    %821 = vector.broadcast %801 : vector<1x24xf32> to vector<32x24xf32>
    %822 = arith.mulf %820, %821 : vector<32x24xf32>
    %823 = vector.broadcast %802 : vector<1x24xf32> to vector<32x24xf32>
    %824 = arith.addf %822, %823 : vector<32x24xf32>
    %c0_362 = arith.constant 0 : index
    %c0_363 = arith.constant 0 : index
    %825 = vector.load %arg63[%c0_362, %c0_363] : memref<24x72xf32, #tpu.memory_space<vmem>>, vector<24x72xf32>
    %cst_364 = arith.constant dense<0.000000e+00> : vector<32x72xf32>
    %826 = tpu.matmul %824, %825, %cst_364 {dimension_numbers = #tpu.dot_dimension_numbers<[1], [0], [0], [1], [0, 0, 1, 1], [], []>} : vector<32x24xf32>, vector<24x72xf32>, vector<32x72xf32> -> vector<32x72xf32>
    %c0_365 = arith.constant 0 : index
    %c0_366 = arith.constant 0 : index
    %827 = vector.load %arg64[%c0_365, %c0_366] : memref<1x72xf32, #tpu.memory_space<vmem>>, vector<1x72xf32>
    %828 = vector.broadcast %827 : vector<1x72xf32> to vector<32x72xf32>
    %829 = arith.addf %826, %828 : vector<32x72xf32>
    %830 = vector.extract_strided_slice %829 {offsets = [0, 0], sizes = [32, 24], strides = [1, 1]} : vector<32x72xf32> to vector<32x24xf32>
    %cst_367 = arith.constant 0.204124153 : f32
    %831 = vector.broadcast %cst_367 : f32 to vector<32x24xf32>
    %832 = arith.mulf %830, %831 : vector<32x24xf32>
    %833 = vector.extract_strided_slice %829 {offsets = [0, 24], sizes = [32, 24], strides = [1, 1]} : vector<32x72xf32> to vector<32x24xf32>
    %834 = vector.extract_strided_slice %829 {offsets = [0, 48], sizes = [32, 24], strides = [1, 1]} : vector<32x72xf32> to vector<32x24xf32>
    %835 = vector.extract_strided_slice %832 {offsets = [0, 0], sizes = [16, 24], strides = [1, 1]} : vector<32x24xf32> to vector<16x24xf32>
    %836 = vector.extract_strided_slice %833 {offsets = [0, 0], sizes = [16, 24], strides = [1, 1]} : vector<32x24xf32> to vector<16x24xf32>
    %cst_368 = arith.constant dense<0.000000e+00> : vector<16x16xf32>
    %837 = tpu.matmul %835, %836, %cst_368 {dimension_numbers = #tpu.dot_dimension_numbers<[1], [1], [0], [0], [0, 0, 1, 0], [], []>} : vector<16x24xf32>, vector<16x24xf32>, vector<16x16xf32> -> vector<16x16xf32>
    %838 = arith.addf %837, %0 : vector<16x16xf32>
    %cst_369 = arith.constant dense<0xFF800000> : vector<16xf32>
    %839 = vector.multi_reduction <maximumf>, %838, %cst_369 [1] : vector<16x16xf32> to vector<16xf32>
    %840 = vector.shape_cast %839 : vector<16xf32> to vector<16x1xf32>
    %841 = vector.broadcast %840 : vector<16x1xf32> to vector<16x16xf32>
    %842 = arith.subf %838, %841 : vector<16x16xf32>
    %843 = math.exp %842 : vector<16x16xf32>
    %cst_370 = arith.constant dense<0.000000e+00> : vector<16xf32>
    %844 = vector.multi_reduction <add>, %843, %cst_370 [1] : vector<16x16xf32> to vector<16xf32>
    %845 = vector.shape_cast %844 : vector<16xf32> to vector<16x1xf32>
    %846 = tpu.reciprocal %845 {approx = true} : vector<16x1xf32> -> vector<16x1xf32>
    %847 = vector.broadcast %846 : vector<16x1xf32> to vector<16x16xf32>
    %848 = arith.mulf %843, %847 : vector<16x16xf32>
    %849 = vector.extract_strided_slice %834 {offsets = [0, 0], sizes = [16, 24], strides = [1, 1]} : vector<32x24xf32> to vector<16x24xf32>
    %cst_371 = arith.constant dense<0.000000e+00> : vector<16x24xf32>
    %850 = tpu.matmul %848, %849, %cst_371 {dimension_numbers = #tpu.dot_dimension_numbers<[1], [0], [0], [1], [0, 0, 1, 1], [], []>} : vector<16x16xf32>, vector<16x24xf32>, vector<16x24xf32> -> vector<16x24xf32>
    %851 = vector.extract_strided_slice %832 {offsets = [16, 0], sizes = [16, 24], strides = [1, 1]} : vector<32x24xf32> to vector<16x24xf32>
    %852 = vector.extract_strided_slice %833 {offsets = [16, 0], sizes = [16, 24], strides = [1, 1]} : vector<32x24xf32> to vector<16x24xf32>
    %cst_372 = arith.constant dense<0.000000e+00> : vector<16x16xf32>
    %853 = tpu.matmul %851, %852, %cst_372 {dimension_numbers = #tpu.dot_dimension_numbers<[1], [1], [0], [0], [0, 0, 1, 0], [], []>} : vector<16x24xf32>, vector<16x24xf32>, vector<16x16xf32> -> vector<16x16xf32>
    %854 = arith.addf %853, %0 : vector<16x16xf32>
    %cst_373 = arith.constant dense<0xFF800000> : vector<16xf32>
    %855 = vector.multi_reduction <maximumf>, %854, %cst_373 [1] : vector<16x16xf32> to vector<16xf32>
    %856 = vector.shape_cast %855 : vector<16xf32> to vector<16x1xf32>
    %857 = vector.broadcast %856 : vector<16x1xf32> to vector<16x16xf32>
    %858 = arith.subf %854, %857 : vector<16x16xf32>
    %859 = math.exp %858 : vector<16x16xf32>
    %cst_374 = arith.constant dense<0.000000e+00> : vector<16xf32>
    %860 = vector.multi_reduction <add>, %859, %cst_374 [1] : vector<16x16xf32> to vector<16xf32>
    %861 = vector.shape_cast %860 : vector<16xf32> to vector<16x1xf32>
    %862 = tpu.reciprocal %861 {approx = true} : vector<16x1xf32> -> vector<16x1xf32>
    %863 = vector.broadcast %862 : vector<16x1xf32> to vector<16x16xf32>
    %864 = arith.mulf %859, %863 : vector<16x16xf32>
    %865 = vector.extract_strided_slice %834 {offsets = [16, 0], sizes = [16, 24], strides = [1, 1]} : vector<32x24xf32> to vector<16x24xf32>
    %cst_375 = arith.constant dense<0.000000e+00> : vector<16x24xf32>
    %866 = tpu.matmul %864, %865, %cst_375 {dimension_numbers = #tpu.dot_dimension_numbers<[1], [0], [0], [1], [0, 0, 1, 1], [], []>} : vector<16x16xf32>, vector<16x24xf32>, vector<16x24xf32> -> vector<16x24xf32>
    %867 = tpu.concatenate %850, %866 in 0 : vector<16x24xf32>, vector<16x24xf32> -> vector<32x24xf32>
    %c0_376 = arith.constant 0 : index
    %c0_377 = arith.constant 0 : index
    %868 = vector.load %arg65[%c0_376, %c0_377] : memref<24x24xf32, #tpu.memory_space<vmem>>, vector<24x24xf32>
    %cst_378 = arith.constant dense<0.000000e+00> : vector<32x24xf32>
    %869 = tpu.matmul %867, %868, %cst_378 {dimension_numbers = #tpu.dot_dimension_numbers<[1], [0], [0], [1], [0, 0, 1, 1], [], []>} : vector<32x24xf32>, vector<24x24xf32>, vector<32x24xf32> -> vector<32x24xf32>
    %c0_379 = arith.constant 0 : index
    %c0_380 = arith.constant 0 : index
    %870 = vector.load %arg66[%c0_379, %c0_380] : memref<1x24xf32, #tpu.memory_space<vmem>>, vector<1x24xf32>
    %871 = vector.broadcast %870 : vector<1x24xf32> to vector<32x24xf32>
    %872 = arith.addf %869, %871 : vector<32x24xf32>
    %873 = arith.addf %800, %872 : vector<32x24xf32>
    %c0_381 = arith.constant 0 : index
    %c0_382 = arith.constant 0 : index
    %874 = vector.load %arg67[%c0_381, %c0_382] : memref<1x24xf32, #tpu.memory_space<vmem>>, vector<1x24xf32>
    %c0_383 = arith.constant 0 : index
    %c0_384 = arith.constant 0 : index
    %875 = vector.load %arg68[%c0_383, %c0_384] : memref<1x24xf32, #tpu.memory_space<vmem>>, vector<1x24xf32>
    %cst_385 = arith.constant dense<0.000000e+00> : vector<32xf32>
    %876 = vector.multi_reduction <add>, %873, %cst_385 [1] : vector<32x24xf32> to vector<32xf32>
    %877 = vector.shape_cast %876 : vector<32xf32> to vector<32x1xf32>
    %cst_386 = arith.constant 2.400000e+01 : f32
    %878 = vector.broadcast %cst_386 : f32 to vector<32x1xf32>
    %879 = arith.divf %877, %878 : vector<32x1xf32>
    %880 = vector.broadcast %879 : vector<32x1xf32> to vector<32x24xf32>
    %881 = arith.subf %873, %880 : vector<32x24xf32>
    %882 = arith.mulf %881, %881 : vector<32x24xf32>
    %cst_387 = arith.constant dense<0.000000e+00> : vector<32xf32>
    %883 = vector.multi_reduction <add>, %882, %cst_387 [1] : vector<32x24xf32> to vector<32xf32>
    %884 = vector.shape_cast %883 : vector<32xf32> to vector<32x1xf32>
    %cst_388 = arith.constant 2.400000e+01 : f32
    %885 = vector.broadcast %cst_388 : f32 to vector<32x1xf32>
    %886 = arith.divf %884, %885 : vector<32x1xf32>
    %887 = vector.broadcast %879 : vector<32x1xf32> to vector<32x24xf32>
    %888 = arith.subf %873, %887 : vector<32x24xf32>
    %cst_389 = arith.constant 9.99999974E-6 : f32
    %889 = vector.broadcast %cst_389 : f32 to vector<32x1xf32>
    %890 = arith.addf %886, %889 : vector<32x1xf32>
    %891 = math.rsqrt %890 : vector<32x1xf32>
    %892 = vector.broadcast %891 : vector<32x1xf32> to vector<32x24xf32>
    %893 = arith.mulf %888, %892 : vector<32x24xf32>
    %894 = vector.broadcast %874 : vector<1x24xf32> to vector<32x24xf32>
    %895 = arith.mulf %893, %894 : vector<32x24xf32>
    %896 = vector.broadcast %875 : vector<1x24xf32> to vector<32x24xf32>
    %897 = arith.addf %895, %896 : vector<32x24xf32>
    %c0_390 = arith.constant 0 : index
    %c0_391 = arith.constant 0 : index
    %898 = vector.load %arg69[%c0_390, %c0_391] : memref<24x96xf32, #tpu.memory_space<vmem>>, vector<24x96xf32>
    %cst_392 = arith.constant dense<0.000000e+00> : vector<32x96xf32>
    %899 = tpu.matmul %897, %898, %cst_392 {dimension_numbers = #tpu.dot_dimension_numbers<[1], [0], [0], [1], [0, 0, 1, 1], [], []>} : vector<32x24xf32>, vector<24x96xf32>, vector<32x96xf32> -> vector<32x96xf32>
    %c0_393 = arith.constant 0 : index
    %c0_394 = arith.constant 0 : index
    %900 = vector.load %arg70[%c0_393, %c0_394] : memref<1x96xf32, #tpu.memory_space<vmem>>, vector<1x96xf32>
    %901 = vector.broadcast %900 : vector<1x96xf32> to vector<32x96xf32>
    %902 = arith.addf %899, %901 : vector<32x96xf32>
    %cst_395 = arith.constant 5.000000e-01 : f32
    %903 = vector.broadcast %cst_395 : f32 to vector<32x96xf32>
    %904 = arith.mulf %903, %902 : vector<32x96xf32>
    %cst_396 = arith.constant 4.471500e-02 : f32
    %905 = vector.broadcast %cst_396 : f32 to vector<32x96xf32>
    %906 = arith.mulf %905, %902 : vector<32x96xf32>
    %907 = arith.mulf %906, %902 : vector<32x96xf32>
    %908 = arith.mulf %907, %902 : vector<32x96xf32>
    %909 = arith.addf %902, %908 : vector<32x96xf32>
    %cst_397 = arith.constant 0.797884583 : f32
    %910 = vector.broadcast %cst_397 : f32 to vector<32x96xf32>
    %911 = arith.mulf %910, %909 : vector<32x96xf32>
    %912 = math.tanh %911 : vector<32x96xf32>
    %cst_398 = arith.constant 1.000000e+00 : f32
    %913 = vector.broadcast %cst_398 : f32 to vector<32x96xf32>
    %914 = arith.addf %913, %912 : vector<32x96xf32>
    %915 = arith.mulf %904, %914 : vector<32x96xf32>
    %c0_399 = arith.constant 0 : index
    %c0_400 = arith.constant 0 : index
    %916 = vector.load %arg71[%c0_399, %c0_400] : memref<96x24xf32, #tpu.memory_space<vmem>>, vector<96x24xf32>
    %cst_401 = arith.constant dense<0.000000e+00> : vector<32x24xf32>
    %917 = tpu.matmul %915, %916, %cst_401 {dimension_numbers = #tpu.dot_dimension_numbers<[1], [0], [0], [1], [0, 0, 1, 1], [], []>} : vector<32x96xf32>, vector<96x24xf32>, vector<32x24xf32> -> vector<32x24xf32>
    %c0_402 = arith.constant 0 : index
    %c0_403 = arith.constant 0 : index
    %918 = vector.load %arg72[%c0_402, %c0_403] : memref<1x24xf32, #tpu.memory_space<vmem>>, vector<1x24xf32>
    %919 = vector.broadcast %918 : vector<1x24xf32> to vector<32x24xf32>
    %920 = arith.addf %917, %919 : vector<32x24xf32>
    %921 = arith.addf %873, %920 : vector<32x24xf32>
    %c0_404 = arith.constant 0 : index
    %c0_405 = arith.constant 0 : index
    %922 = vector.load %arg49[%c0_404, %c0_405] : memref<1x24xf32, #tpu.memory_space<vmem>>, vector<1x24xf32>
    %c0_406 = arith.constant 0 : index
    %c0_407 = arith.constant 0 : index
    %923 = vector.load %arg50[%c0_406, %c0_407] : memref<1x24xf32, #tpu.memory_space<vmem>>, vector<1x24xf32>
    %cst_408 = arith.constant dense<0.000000e+00> : vector<32xf32>
    %924 = vector.multi_reduction <add>, %921, %cst_408 [1] : vector<32x24xf32> to vector<32xf32>
    %925 = vector.shape_cast %924 : vector<32xf32> to vector<32x1xf32>
    %cst_409 = arith.constant 2.400000e+01 : f32
    %926 = vector.broadcast %cst_409 : f32 to vector<32x1xf32>
    %927 = arith.divf %925, %926 : vector<32x1xf32>
    %928 = vector.broadcast %927 : vector<32x1xf32> to vector<32x24xf32>
    %929 = arith.subf %921, %928 : vector<32x24xf32>
    %930 = arith.mulf %929, %929 : vector<32x24xf32>
    %cst_410 = arith.constant dense<0.000000e+00> : vector<32xf32>
    %931 = vector.multi_reduction <add>, %930, %cst_410 [1] : vector<32x24xf32> to vector<32xf32>
    %932 = vector.shape_cast %931 : vector<32xf32> to vector<32x1xf32>
    %cst_411 = arith.constant 2.400000e+01 : f32
    %933 = vector.broadcast %cst_411 : f32 to vector<32x1xf32>
    %934 = arith.divf %932, %933 : vector<32x1xf32>
    %935 = vector.broadcast %927 : vector<32x1xf32> to vector<32x24xf32>
    %936 = arith.subf %921, %935 : vector<32x24xf32>
    %cst_412 = arith.constant 9.99999974E-6 : f32
    %937 = vector.broadcast %cst_412 : f32 to vector<32x1xf32>
    %938 = arith.addf %934, %937 : vector<32x1xf32>
    %939 = math.rsqrt %938 : vector<32x1xf32>
    %940 = vector.broadcast %939 : vector<32x1xf32> to vector<32x24xf32>
    %941 = arith.mulf %936, %940 : vector<32x24xf32>
    %942 = vector.broadcast %922 : vector<1x24xf32> to vector<32x24xf32>
    %943 = arith.mulf %941, %942 : vector<32x24xf32>
    %944 = vector.broadcast %923 : vector<1x24xf32> to vector<32x24xf32>
    %945 = arith.addf %943, %944 : vector<32x24xf32>
    %c0_413 = arith.constant 0 : index
    %c0_414 = arith.constant 0 : index
    %946 = vector.load %arg51[%c0_413, %c0_414] : memref<24x72xf32, #tpu.memory_space<vmem>>, vector<24x72xf32>
    %cst_415 = arith.constant dense<0.000000e+00> : vector<32x72xf32>
    %947 = tpu.matmul %945, %946, %cst_415 {dimension_numbers = #tpu.dot_dimension_numbers<[1], [0], [0], [1], [0, 0, 1, 1], [], []>} : vector<32x24xf32>, vector<24x72xf32>, vector<32x72xf32> -> vector<32x72xf32>
    %c0_416 = arith.constant 0 : index
    %c0_417 = arith.constant 0 : index
    %948 = vector.load %arg52[%c0_416, %c0_417] : memref<1x72xf32, #tpu.memory_space<vmem>>, vector<1x72xf32>
    %949 = vector.broadcast %948 : vector<1x72xf32> to vector<32x72xf32>
    %950 = arith.addf %947, %949 : vector<32x72xf32>
    %951 = vector.extract_strided_slice %950 {offsets = [0, 0], sizes = [32, 24], strides = [1, 1]} : vector<32x72xf32> to vector<32x24xf32>
    %cst_418 = arith.constant 0.204124153 : f32
    %952 = vector.broadcast %cst_418 : f32 to vector<32x24xf32>
    %953 = arith.mulf %951, %952 : vector<32x24xf32>
    %954 = vector.extract_strided_slice %950 {offsets = [0, 24], sizes = [32, 24], strides = [1, 1]} : vector<32x72xf32> to vector<32x24xf32>
    %955 = vector.extract_strided_slice %950 {offsets = [0, 48], sizes = [32, 24], strides = [1, 1]} : vector<32x72xf32> to vector<32x24xf32>
    %956 = vector.extract_strided_slice %953 {offsets = [0, 0], sizes = [16, 24], strides = [1, 1]} : vector<32x24xf32> to vector<16x24xf32>
    %957 = vector.extract_strided_slice %954 {offsets = [0, 0], sizes = [16, 24], strides = [1, 1]} : vector<32x24xf32> to vector<16x24xf32>
    %cst_419 = arith.constant dense<0.000000e+00> : vector<16x16xf32>
    %958 = tpu.matmul %956, %957, %cst_419 {dimension_numbers = #tpu.dot_dimension_numbers<[1], [1], [0], [0], [0, 0, 1, 0], [], []>} : vector<16x24xf32>, vector<16x24xf32>, vector<16x16xf32> -> vector<16x16xf32>
    %959 = arith.addf %958, %0 : vector<16x16xf32>
    %cst_420 = arith.constant dense<0xFF800000> : vector<16xf32>
    %960 = vector.multi_reduction <maximumf>, %959, %cst_420 [1] : vector<16x16xf32> to vector<16xf32>
    %961 = vector.shape_cast %960 : vector<16xf32> to vector<16x1xf32>
    %962 = vector.broadcast %961 : vector<16x1xf32> to vector<16x16xf32>
    %963 = arith.subf %959, %962 : vector<16x16xf32>
    %964 = math.exp %963 : vector<16x16xf32>
    %cst_421 = arith.constant dense<0.000000e+00> : vector<16xf32>
    %965 = vector.multi_reduction <add>, %964, %cst_421 [1] : vector<16x16xf32> to vector<16xf32>
    %966 = vector.shape_cast %965 : vector<16xf32> to vector<16x1xf32>
    %967 = tpu.reciprocal %966 {approx = true} : vector<16x1xf32> -> vector<16x1xf32>
    %968 = vector.broadcast %967 : vector<16x1xf32> to vector<16x16xf32>
    %969 = arith.mulf %964, %968 : vector<16x16xf32>
    %970 = vector.extract_strided_slice %955 {offsets = [0, 0], sizes = [16, 24], strides = [1, 1]} : vector<32x24xf32> to vector<16x24xf32>
    %cst_422 = arith.constant dense<0.000000e+00> : vector<16x24xf32>
    %971 = tpu.matmul %969, %970, %cst_422 {dimension_numbers = #tpu.dot_dimension_numbers<[1], [0], [0], [1], [0, 0, 1, 1], [], []>} : vector<16x16xf32>, vector<16x24xf32>, vector<16x24xf32> -> vector<16x24xf32>
    %972 = vector.extract_strided_slice %953 {offsets = [16, 0], sizes = [16, 24], strides = [1, 1]} : vector<32x24xf32> to vector<16x24xf32>
    %973 = vector.extract_strided_slice %954 {offsets = [16, 0], sizes = [16, 24], strides = [1, 1]} : vector<32x24xf32> to vector<16x24xf32>
    %cst_423 = arith.constant dense<0.000000e+00> : vector<16x16xf32>
    %974 = tpu.matmul %972, %973, %cst_423 {dimension_numbers = #tpu.dot_dimension_numbers<[1], [1], [0], [0], [0, 0, 1, 0], [], []>} : vector<16x24xf32>, vector<16x24xf32>, vector<16x16xf32> -> vector<16x16xf32>
    %975 = arith.addf %974, %0 : vector<16x16xf32>
    %cst_424 = arith.constant dense<0xFF800000> : vector<16xf32>
    %976 = vector.multi_reduction <maximumf>, %975, %cst_424 [1] : vector<16x16xf32> to vector<16xf32>
    %977 = vector.shape_cast %976 : vector<16xf32> to vector<16x1xf32>
    %978 = vector.broadcast %977 : vector<16x1xf32> to vector<16x16xf32>
    %979 = arith.subf %975, %978 : vector<16x16xf32>
    %980 = math.exp %979 : vector<16x16xf32>
    %cst_425 = arith.constant dense<0.000000e+00> : vector<16xf32>
    %981 = vector.multi_reduction <add>, %980, %cst_425 [1] : vector<16x16xf32> to vector<16xf32>
    %982 = vector.shape_cast %981 : vector<16xf32> to vector<16x1xf32>
    %983 = tpu.reciprocal %982 {approx = true} : vector<16x1xf32> -> vector<16x1xf32>
    %984 = vector.broadcast %983 : vector<16x1xf32> to vector<16x16xf32>
    %985 = arith.mulf %980, %984 : vector<16x16xf32>
    %986 = vector.extract_strided_slice %955 {offsets = [16, 0], sizes = [16, 24], strides = [1, 1]} : vector<32x24xf32> to vector<16x24xf32>
    %cst_426 = arith.constant dense<0.000000e+00> : vector<16x24xf32>
    %987 = tpu.matmul %985, %986, %cst_426 {dimension_numbers = #tpu.dot_dimension_numbers<[1], [0], [0], [1], [0, 0, 1, 1], [], []>} : vector<16x16xf32>, vector<16x24xf32>, vector<16x24xf32> -> vector<16x24xf32>
    %988 = tpu.concatenate %971, %987 in 0 : vector<16x24xf32>, vector<16x24xf32> -> vector<32x24xf32>
    %c0_427 = arith.constant 0 : index
    %c0_428 = arith.constant 0 : index
    %989 = vector.load %arg53[%c0_427, %c0_428] : memref<24x24xf32, #tpu.memory_space<vmem>>, vector<24x24xf32>
    %cst_429 = arith.constant dense<0.000000e+00> : vector<32x24xf32>
    %990 = tpu.matmul %988, %989, %cst_429 {dimension_numbers = #tpu.dot_dimension_numbers<[1], [0], [0], [1], [0, 0, 1, 1], [], []>} : vector<32x24xf32>, vector<24x24xf32>, vector<32x24xf32> -> vector<32x24xf32>
    %c0_430 = arith.constant 0 : index
    %c0_431 = arith.constant 0 : index
    %991 = vector.load %arg54[%c0_430, %c0_431] : memref<1x24xf32, #tpu.memory_space<vmem>>, vector<1x24xf32>
    %992 = vector.broadcast %991 : vector<1x24xf32> to vector<32x24xf32>
    %993 = arith.addf %990, %992 : vector<32x24xf32>
    %994 = arith.addf %921, %993 : vector<32x24xf32>
    %c0_432 = arith.constant 0 : index
    %c0_433 = arith.constant 0 : index
    %995 = vector.load %arg55[%c0_432, %c0_433] : memref<1x24xf32, #tpu.memory_space<vmem>>, vector<1x24xf32>
    %c0_434 = arith.constant 0 : index
    %c0_435 = arith.constant 0 : index
    %996 = vector.load %arg56[%c0_434, %c0_435] : memref<1x24xf32, #tpu.memory_space<vmem>>, vector<1x24xf32>
    %cst_436 = arith.constant dense<0.000000e+00> : vector<32xf32>
    %997 = vector.multi_reduction <add>, %994, %cst_436 [1] : vector<32x24xf32> to vector<32xf32>
    %998 = vector.shape_cast %997 : vector<32xf32> to vector<32x1xf32>
    %cst_437 = arith.constant 2.400000e+01 : f32
    %999 = vector.broadcast %cst_437 : f32 to vector<32x1xf32>
    %1000 = arith.divf %998, %999 : vector<32x1xf32>
    %1001 = vector.broadcast %1000 : vector<32x1xf32> to vector<32x24xf32>
    %1002 = arith.subf %994, %1001 : vector<32x24xf32>
    %1003 = arith.mulf %1002, %1002 : vector<32x24xf32>
    %cst_438 = arith.constant dense<0.000000e+00> : vector<32xf32>
    %1004 = vector.multi_reduction <add>, %1003, %cst_438 [1] : vector<32x24xf32> to vector<32xf32>
    %1005 = vector.shape_cast %1004 : vector<32xf32> to vector<32x1xf32>
    %cst_439 = arith.constant 2.400000e+01 : f32
    %1006 = vector.broadcast %cst_439 : f32 to vector<32x1xf32>
    %1007 = arith.divf %1005, %1006 : vector<32x1xf32>
    %1008 = vector.broadcast %1000 : vector<32x1xf32> to vector<32x24xf32>
    %1009 = arith.subf %994, %1008 : vector<32x24xf32>
    %cst_440 = arith.constant 9.99999974E-6 : f32
    %1010 = vector.broadcast %cst_440 : f32 to vector<32x1xf32>
    %1011 = arith.addf %1007, %1010 : vector<32x1xf32>
    %1012 = math.rsqrt %1011 : vector<32x1xf32>
    %1013 = vector.broadcast %1012 : vector<32x1xf32> to vector<32x24xf32>
    %1014 = arith.mulf %1009, %1013 : vector<32x24xf32>
    %1015 = vector.broadcast %995 : vector<1x24xf32> to vector<32x24xf32>
    %1016 = arith.mulf %1014, %1015 : vector<32x24xf32>
    %1017 = vector.broadcast %996 : vector<1x24xf32> to vector<32x24xf32>
    %1018 = arith.addf %1016, %1017 : vector<32x24xf32>
    %c0_441 = arith.constant 0 : index
    %c0_442 = arith.constant 0 : index
    %1019 = vector.load %arg57[%c0_441, %c0_442] : memref<24x96xf32, #tpu.memory_space<vmem>>, vector<24x96xf32>
    %cst_443 = arith.constant dense<0.000000e+00> : vector<32x96xf32>
    %1020 = tpu.matmul %1018, %1019, %cst_443 {dimension_numbers = #tpu.dot_dimension_numbers<[1], [0], [0], [1], [0, 0, 1, 1], [], []>} : vector<32x24xf32>, vector<24x96xf32>, vector<32x96xf32> -> vector<32x96xf32>
    %c0_444 = arith.constant 0 : index
    %c0_445 = arith.constant 0 : index
    %1021 = vector.load %arg58[%c0_444, %c0_445] : memref<1x96xf32, #tpu.memory_space<vmem>>, vector<1x96xf32>
    %1022 = vector.broadcast %1021 : vector<1x96xf32> to vector<32x96xf32>
    %1023 = arith.addf %1020, %1022 : vector<32x96xf32>
    %cst_446 = arith.constant 5.000000e-01 : f32
    %1024 = vector.broadcast %cst_446 : f32 to vector<32x96xf32>
    %1025 = arith.mulf %1024, %1023 : vector<32x96xf32>
    %cst_447 = arith.constant 4.471500e-02 : f32
    %1026 = vector.broadcast %cst_447 : f32 to vector<32x96xf32>
    %1027 = arith.mulf %1026, %1023 : vector<32x96xf32>
    %1028 = arith.mulf %1027, %1023 : vector<32x96xf32>
    %1029 = arith.mulf %1028, %1023 : vector<32x96xf32>
    %1030 = arith.addf %1023, %1029 : vector<32x96xf32>
    %cst_448 = arith.constant 0.797884583 : f32
    %1031 = vector.broadcast %cst_448 : f32 to vector<32x96xf32>
    %1032 = arith.mulf %1031, %1030 : vector<32x96xf32>
    %1033 = math.tanh %1032 : vector<32x96xf32>
    %cst_449 = arith.constant 1.000000e+00 : f32
    %1034 = vector.broadcast %cst_449 : f32 to vector<32x96xf32>
    %1035 = arith.addf %1034, %1033 : vector<32x96xf32>
    %1036 = arith.mulf %1025, %1035 : vector<32x96xf32>
    %c0_450 = arith.constant 0 : index
    %c0_451 = arith.constant 0 : index
    %1037 = vector.load %arg59[%c0_450, %c0_451] : memref<96x24xf32, #tpu.memory_space<vmem>>, vector<96x24xf32>
    %cst_452 = arith.constant dense<0.000000e+00> : vector<32x24xf32>
    %1038 = tpu.matmul %1036, %1037, %cst_452 {dimension_numbers = #tpu.dot_dimension_numbers<[1], [0], [0], [1], [0, 0, 1, 1], [], []>} : vector<32x96xf32>, vector<96x24xf32>, vector<32x24xf32> -> vector<32x24xf32>
    %c0_453 = arith.constant 0 : index
    %c0_454 = arith.constant 0 : index
    %1039 = vector.load %arg60[%c0_453, %c0_454] : memref<1x24xf32, #tpu.memory_space<vmem>>, vector<1x24xf32>
    %1040 = vector.broadcast %1039 : vector<1x24xf32> to vector<32x24xf32>
    %1041 = arith.addf %1038, %1040 : vector<32x24xf32>
    %1042 = arith.addf %994, %1041 : vector<32x24xf32>
    %c0_455 = arith.constant 0 : index
    %c0_456 = arith.constant 0 : index
    %1043 = vector.load %arg15[%c0_455, %c0_456] : memref<24x16xf32, #tpu.memory_space<vmem>>, vector<24x16xf32>
    %cst_457 = arith.constant dense<0.000000e+00> : vector<32x16xf32>
    %1044 = tpu.matmul %1042, %1043, %cst_457 {dimension_numbers = #tpu.dot_dimension_numbers<[1], [0], [0], [1], [0, 0, 1, 1], [], []>} : vector<32x24xf32>, vector<24x16xf32>, vector<32x16xf32> -> vector<32x16xf32>
    %c0_458 = arith.constant 0 : index
    %c0_459 = arith.constant 0 : index
    %1045 = vector.load %arg16[%c0_458, %c0_459] : memref<1x16xf32, #tpu.memory_space<vmem>>, vector<1x16xf32>
    %1046 = vector.broadcast %1045 : vector<1x16xf32> to vector<32x16xf32>
    %1047 = arith.addf %1044, %1046 : vector<32x16xf32>
    %1048 = arith.mulf %1047, %252 : vector<32x16xf32>
    %c0_460 = arith.constant 0 : index
    %c0_461 = arith.constant 0 : index
    %1049 = vector.load %arg37[%c0_460, %c0_461] : memref<1x16xf32, #tpu.memory_space<vmem>>, vector<1x16xf32>
    %c0_462 = arith.constant 0 : index
    %c0_463 = arith.constant 0 : index
    %1050 = vector.load %arg38[%c0_462, %c0_463] : memref<1x16xf32, #tpu.memory_space<vmem>>, vector<1x16xf32>
    %cst_464 = arith.constant dense<0.000000e+00> : vector<32xf32>
    %1051 = vector.multi_reduction <add>, %1048, %cst_464 [1] : vector<32x16xf32> to vector<32xf32>
    %1052 = vector.shape_cast %1051 : vector<32xf32> to vector<32x1xf32>
    %cst_465 = arith.constant 1.600000e+01 : f32
    %1053 = vector.broadcast %cst_465 : f32 to vector<32x1xf32>
    %1054 = arith.divf %1052, %1053 : vector<32x1xf32>
    %1055 = vector.broadcast %1054 : vector<32x1xf32> to vector<32x16xf32>
    %1056 = arith.subf %1048, %1055 : vector<32x16xf32>
    %1057 = arith.mulf %1056, %1056 : vector<32x16xf32>
    %cst_466 = arith.constant dense<0.000000e+00> : vector<32xf32>
    %1058 = vector.multi_reduction <add>, %1057, %cst_466 [1] : vector<32x16xf32> to vector<32xf32>
    %1059 = vector.shape_cast %1058 : vector<32xf32> to vector<32x1xf32>
    %cst_467 = arith.constant 1.600000e+01 : f32
    %1060 = vector.broadcast %cst_467 : f32 to vector<32x1xf32>
    %1061 = arith.divf %1059, %1060 : vector<32x1xf32>
    %1062 = vector.broadcast %1054 : vector<32x1xf32> to vector<32x16xf32>
    %1063 = arith.subf %1048, %1062 : vector<32x16xf32>
    %cst_468 = arith.constant 9.99999974E-6 : f32
    %1064 = vector.broadcast %cst_468 : f32 to vector<32x1xf32>
    %1065 = arith.addf %1061, %1064 : vector<32x1xf32>
    %1066 = math.rsqrt %1065 : vector<32x1xf32>
    %1067 = vector.broadcast %1066 : vector<32x1xf32> to vector<32x16xf32>
    %1068 = arith.mulf %1063, %1067 : vector<32x16xf32>
    %1069 = vector.broadcast %1049 : vector<1x16xf32> to vector<32x16xf32>
    %1070 = arith.mulf %1068, %1069 : vector<32x16xf32>
    %1071 = vector.broadcast %1050 : vector<1x16xf32> to vector<32x16xf32>
    %1072 = arith.addf %1070, %1071 : vector<32x16xf32>
    %c0_469 = arith.constant 0 : index
    %c0_470 = arith.constant 0 : index
    %1073 = vector.load %arg39[%c0_469, %c0_470] : memref<16x48xf32, #tpu.memory_space<vmem>>, vector<16x48xf32>
    %cst_471 = arith.constant dense<0.000000e+00> : vector<32x48xf32>
    %1074 = tpu.matmul %1072, %1073, %cst_471 {dimension_numbers = #tpu.dot_dimension_numbers<[1], [0], [0], [1], [0, 0, 1, 1], [], []>} : vector<32x16xf32>, vector<16x48xf32>, vector<32x48xf32> -> vector<32x48xf32>
    %c0_472 = arith.constant 0 : index
    %c0_473 = arith.constant 0 : index
    %1075 = vector.load %arg40[%c0_472, %c0_473] : memref<1x48xf32, #tpu.memory_space<vmem>>, vector<1x48xf32>
    %1076 = vector.broadcast %1075 : vector<1x48xf32> to vector<32x48xf32>
    %1077 = arith.addf %1074, %1076 : vector<32x48xf32>
    %1078 = vector.extract_strided_slice %1077 {offsets = [0, 0], sizes = [32, 16], strides = [1, 1]} : vector<32x48xf32> to vector<32x16xf32>
    %cst_474 = arith.constant 2.500000e-01 : f32
    %1079 = vector.broadcast %cst_474 : f32 to vector<32x16xf32>
    %1080 = arith.mulf %1078, %1079 : vector<32x16xf32>
    %1081 = vector.extract_strided_slice %1077 {offsets = [0, 16], sizes = [32, 16], strides = [1, 1]} : vector<32x48xf32> to vector<32x16xf32>
    %1082 = vector.extract_strided_slice %1077 {offsets = [0, 32], sizes = [32, 16], strides = [1, 1]} : vector<32x48xf32> to vector<32x16xf32>
    %1083 = vector.extract_strided_slice %1080 {offsets = [0, 0], sizes = [16, 16], strides = [1, 1]} : vector<32x16xf32> to vector<16x16xf32>
    %1084 = vector.extract_strided_slice %1081 {offsets = [0, 0], sizes = [16, 16], strides = [1, 1]} : vector<32x16xf32> to vector<16x16xf32>
    %cst_475 = arith.constant dense<0.000000e+00> : vector<16x16xf32>
    %1085 = tpu.matmul %1083, %1084, %cst_475 {dimension_numbers = #tpu.dot_dimension_numbers<[1], [1], [0], [0], [0, 0, 1, 0], [], []>} : vector<16x16xf32>, vector<16x16xf32>, vector<16x16xf32> -> vector<16x16xf32>
    %1086 = arith.addf %1085, %0 : vector<16x16xf32>
    %cst_476 = arith.constant dense<0xFF800000> : vector<16xf32>
    %1087 = vector.multi_reduction <maximumf>, %1086, %cst_476 [1] : vector<16x16xf32> to vector<16xf32>
    %1088 = vector.shape_cast %1087 : vector<16xf32> to vector<16x1xf32>
    %1089 = vector.broadcast %1088 : vector<16x1xf32> to vector<16x16xf32>
    %1090 = arith.subf %1086, %1089 : vector<16x16xf32>
    %1091 = math.exp %1090 : vector<16x16xf32>
    %cst_477 = arith.constant dense<0.000000e+00> : vector<16xf32>
    %1092 = vector.multi_reduction <add>, %1091, %cst_477 [1] : vector<16x16xf32> to vector<16xf32>
    %1093 = vector.shape_cast %1092 : vector<16xf32> to vector<16x1xf32>
    %1094 = tpu.reciprocal %1093 {approx = true} : vector<16x1xf32> -> vector<16x1xf32>
    %1095 = vector.broadcast %1094 : vector<16x1xf32> to vector<16x16xf32>
    %1096 = arith.mulf %1091, %1095 : vector<16x16xf32>
    %1097 = vector.extract_strided_slice %1082 {offsets = [0, 0], sizes = [16, 16], strides = [1, 1]} : vector<32x16xf32> to vector<16x16xf32>
    %cst_478 = arith.constant dense<0.000000e+00> : vector<16x16xf32>
    %1098 = tpu.matmul %1096, %1097, %cst_478 {dimension_numbers = #tpu.dot_dimension_numbers<[1], [0], [0], [1], [0, 0, 1, 1], [], []>} : vector<16x16xf32>, vector<16x16xf32>, vector<16x16xf32> -> vector<16x16xf32>
    %1099 = vector.extract_strided_slice %1080 {offsets = [16, 0], sizes = [16, 16], strides = [1, 1]} : vector<32x16xf32> to vector<16x16xf32>
    %1100 = vector.extract_strided_slice %1081 {offsets = [16, 0], sizes = [16, 16], strides = [1, 1]} : vector<32x16xf32> to vector<16x16xf32>
    %cst_479 = arith.constant dense<0.000000e+00> : vector<16x16xf32>
    %1101 = tpu.matmul %1099, %1100, %cst_479 {dimension_numbers = #tpu.dot_dimension_numbers<[1], [1], [0], [0], [0, 0, 1, 0], [], []>} : vector<16x16xf32>, vector<16x16xf32>, vector<16x16xf32> -> vector<16x16xf32>
    %1102 = arith.addf %1101, %0 : vector<16x16xf32>
    %cst_480 = arith.constant dense<0xFF800000> : vector<16xf32>
    %1103 = vector.multi_reduction <maximumf>, %1102, %cst_480 [1] : vector<16x16xf32> to vector<16xf32>
    %1104 = vector.shape_cast %1103 : vector<16xf32> to vector<16x1xf32>
    %1105 = vector.broadcast %1104 : vector<16x1xf32> to vector<16x16xf32>
    %1106 = arith.subf %1102, %1105 : vector<16x16xf32>
    %1107 = math.exp %1106 : vector<16x16xf32>
    %cst_481 = arith.constant dense<0.000000e+00> : vector<16xf32>
    %1108 = vector.multi_reduction <add>, %1107, %cst_481 [1] : vector<16x16xf32> to vector<16xf32>
    %1109 = vector.shape_cast %1108 : vector<16xf32> to vector<16x1xf32>
    %1110 = tpu.reciprocal %1109 {approx = true} : vector<16x1xf32> -> vector<16x1xf32>
    %1111 = vector.broadcast %1110 : vector<16x1xf32> to vector<16x16xf32>
    %1112 = arith.mulf %1107, %1111 : vector<16x16xf32>
    %1113 = vector.extract_strided_slice %1082 {offsets = [16, 0], sizes = [16, 16], strides = [1, 1]} : vector<32x16xf32> to vector<16x16xf32>
    %cst_482 = arith.constant dense<0.000000e+00> : vector<16x16xf32>
    %1114 = tpu.matmul %1112, %1113, %cst_482 {dimension_numbers = #tpu.dot_dimension_numbers<[1], [0], [0], [1], [0, 0, 1, 1], [], []>} : vector<16x16xf32>, vector<16x16xf32>, vector<16x16xf32> -> vector<16x16xf32>
    %1115 = tpu.concatenate %1098, %1114 in 0 : vector<16x16xf32>, vector<16x16xf32> -> vector<32x16xf32>
    %c0_483 = arith.constant 0 : index
    %c0_484 = arith.constant 0 : index
    %1116 = vector.load %arg41[%c0_483, %c0_484] : memref<16x16xf32, #tpu.memory_space<vmem>>, vector<16x16xf32>
    %cst_485 = arith.constant dense<0.000000e+00> : vector<32x16xf32>
    %1117 = tpu.matmul %1115, %1116, %cst_485 {dimension_numbers = #tpu.dot_dimension_numbers<[1], [0], [0], [1], [0, 0, 1, 1], [], []>} : vector<32x16xf32>, vector<16x16xf32>, vector<32x16xf32> -> vector<32x16xf32>
    %c0_486 = arith.constant 0 : index
    %c0_487 = arith.constant 0 : index
    %1118 = vector.load %arg42[%c0_486, %c0_487] : memref<1x16xf32, #tpu.memory_space<vmem>>, vector<1x16xf32>
    %1119 = vector.broadcast %1118 : vector<1x16xf32> to vector<32x16xf32>
    %1120 = arith.addf %1117, %1119 : vector<32x16xf32>
    %1121 = arith.addf %1048, %1120 : vector<32x16xf32>
    %c0_488 = arith.constant 0 : index
    %c0_489 = arith.constant 0 : index
    %1122 = vector.load %arg43[%c0_488, %c0_489] : memref<1x16xf32, #tpu.memory_space<vmem>>, vector<1x16xf32>
    %c0_490 = arith.constant 0 : index
    %c0_491 = arith.constant 0 : index
    %1123 = vector.load %arg44[%c0_490, %c0_491] : memref<1x16xf32, #tpu.memory_space<vmem>>, vector<1x16xf32>
    %cst_492 = arith.constant dense<0.000000e+00> : vector<32xf32>
    %1124 = vector.multi_reduction <add>, %1121, %cst_492 [1] : vector<32x16xf32> to vector<32xf32>
    %1125 = vector.shape_cast %1124 : vector<32xf32> to vector<32x1xf32>
    %cst_493 = arith.constant 1.600000e+01 : f32
    %1126 = vector.broadcast %cst_493 : f32 to vector<32x1xf32>
    %1127 = arith.divf %1125, %1126 : vector<32x1xf32>
    %1128 = vector.broadcast %1127 : vector<32x1xf32> to vector<32x16xf32>
    %1129 = arith.subf %1121, %1128 : vector<32x16xf32>
    %1130 = arith.mulf %1129, %1129 : vector<32x16xf32>
    %cst_494 = arith.constant dense<0.000000e+00> : vector<32xf32>
    %1131 = vector.multi_reduction <add>, %1130, %cst_494 [1] : vector<32x16xf32> to vector<32xf32>
    %1132 = vector.shape_cast %1131 : vector<32xf32> to vector<32x1xf32>
    %cst_495 = arith.constant 1.600000e+01 : f32
    %1133 = vector.broadcast %cst_495 : f32 to vector<32x1xf32>
    %1134 = arith.divf %1132, %1133 : vector<32x1xf32>
    %1135 = vector.broadcast %1127 : vector<32x1xf32> to vector<32x16xf32>
    %1136 = arith.subf %1121, %1135 : vector<32x16xf32>
    %cst_496 = arith.constant 9.99999974E-6 : f32
    %1137 = vector.broadcast %cst_496 : f32 to vector<32x1xf32>
    %1138 = arith.addf %1134, %1137 : vector<32x1xf32>
    %1139 = math.rsqrt %1138 : vector<32x1xf32>
    %1140 = vector.broadcast %1139 : vector<32x1xf32> to vector<32x16xf32>
    %1141 = arith.mulf %1136, %1140 : vector<32x16xf32>
    %1142 = vector.broadcast %1122 : vector<1x16xf32> to vector<32x16xf32>
    %1143 = arith.mulf %1141, %1142 : vector<32x16xf32>
    %1144 = vector.broadcast %1123 : vector<1x16xf32> to vector<32x16xf32>
    %1145 = arith.addf %1143, %1144 : vector<32x16xf32>
    %c0_497 = arith.constant 0 : index
    %c0_498 = arith.constant 0 : index
    %1146 = vector.load %arg45[%c0_497, %c0_498] : memref<16x64xf32, #tpu.memory_space<vmem>>, vector<16x64xf32>
    %cst_499 = arith.constant dense<0.000000e+00> : vector<32x64xf32>
    %1147 = tpu.matmul %1145, %1146, %cst_499 {dimension_numbers = #tpu.dot_dimension_numbers<[1], [0], [0], [1], [0, 0, 1, 1], [], []>} : vector<32x16xf32>, vector<16x64xf32>, vector<32x64xf32> -> vector<32x64xf32>
    %c0_500 = arith.constant 0 : index
    %c0_501 = arith.constant 0 : index
    %1148 = vector.load %arg46[%c0_500, %c0_501] : memref<1x64xf32, #tpu.memory_space<vmem>>, vector<1x64xf32>
    %1149 = vector.broadcast %1148 : vector<1x64xf32> to vector<32x64xf32>
    %1150 = arith.addf %1147, %1149 : vector<32x64xf32>
    %cst_502 = arith.constant 5.000000e-01 : f32
    %1151 = vector.broadcast %cst_502 : f32 to vector<32x64xf32>
    %1152 = arith.mulf %1151, %1150 : vector<32x64xf32>
    %cst_503 = arith.constant 4.471500e-02 : f32
    %1153 = vector.broadcast %cst_503 : f32 to vector<32x64xf32>
    %1154 = arith.mulf %1153, %1150 : vector<32x64xf32>
    %1155 = arith.mulf %1154, %1150 : vector<32x64xf32>
    %1156 = arith.mulf %1155, %1150 : vector<32x64xf32>
    %1157 = arith.addf %1150, %1156 : vector<32x64xf32>
    %cst_504 = arith.constant 0.797884583 : f32
    %1158 = vector.broadcast %cst_504 : f32 to vector<32x64xf32>
    %1159 = arith.mulf %1158, %1157 : vector<32x64xf32>
    %1160 = math.tanh %1159 : vector<32x64xf32>
    %cst_505 = arith.constant 1.000000e+00 : f32
    %1161 = vector.broadcast %cst_505 : f32 to vector<32x64xf32>
    %1162 = arith.addf %1161, %1160 : vector<32x64xf32>
    %1163 = arith.mulf %1152, %1162 : vector<32x64xf32>
    %c0_506 = arith.constant 0 : index
    %c0_507 = arith.constant 0 : index
    %1164 = vector.load %arg47[%c0_506, %c0_507] : memref<64x16xf32, #tpu.memory_space<vmem>>, vector<64x16xf32>
    %cst_508 = arith.constant dense<0.000000e+00> : vector<32x16xf32>
    %1165 = tpu.matmul %1163, %1164, %cst_508 {dimension_numbers = #tpu.dot_dimension_numbers<[1], [0], [0], [1], [0, 0, 1, 1], [], []>} : vector<32x64xf32>, vector<64x16xf32>, vector<32x16xf32> -> vector<32x16xf32>
    %c0_509 = arith.constant 0 : index
    %c0_510 = arith.constant 0 : index
    %1166 = vector.load %arg48[%c0_509, %c0_510] : memref<1x16xf32, #tpu.memory_space<vmem>>, vector<1x16xf32>
    %1167 = vector.broadcast %1166 : vector<1x16xf32> to vector<32x16xf32>
    %1168 = arith.addf %1165, %1167 : vector<32x16xf32>
    %1169 = arith.addf %1121, %1168 : vector<32x16xf32>
    %c0_511 = arith.constant 0 : index
    %c0_512 = arith.constant 0 : index
    %1170 = vector.load %arg25[%c0_511, %c0_512] : memref<1x16xf32, #tpu.memory_space<vmem>>, vector<1x16xf32>
    %c0_513 = arith.constant 0 : index
    %c0_514 = arith.constant 0 : index
    %1171 = vector.load %arg26[%c0_513, %c0_514] : memref<1x16xf32, #tpu.memory_space<vmem>>, vector<1x16xf32>
    %cst_515 = arith.constant dense<0.000000e+00> : vector<32xf32>
    %1172 = vector.multi_reduction <add>, %1169, %cst_515 [1] : vector<32x16xf32> to vector<32xf32>
    %1173 = vector.shape_cast %1172 : vector<32xf32> to vector<32x1xf32>
    %cst_516 = arith.constant 1.600000e+01 : f32
    %1174 = vector.broadcast %cst_516 : f32 to vector<32x1xf32>
    %1175 = arith.divf %1173, %1174 : vector<32x1xf32>
    %1176 = vector.broadcast %1175 : vector<32x1xf32> to vector<32x16xf32>
    %1177 = arith.subf %1169, %1176 : vector<32x16xf32>
    %1178 = arith.mulf %1177, %1177 : vector<32x16xf32>
    %cst_517 = arith.constant dense<0.000000e+00> : vector<32xf32>
    %1179 = vector.multi_reduction <add>, %1178, %cst_517 [1] : vector<32x16xf32> to vector<32xf32>
    %1180 = vector.shape_cast %1179 : vector<32xf32> to vector<32x1xf32>
    %cst_518 = arith.constant 1.600000e+01 : f32
    %1181 = vector.broadcast %cst_518 : f32 to vector<32x1xf32>
    %1182 = arith.divf %1180, %1181 : vector<32x1xf32>
    %1183 = vector.broadcast %1175 : vector<32x1xf32> to vector<32x16xf32>
    %1184 = arith.subf %1169, %1183 : vector<32x16xf32>
    %cst_519 = arith.constant 9.99999974E-6 : f32
    %1185 = vector.broadcast %cst_519 : f32 to vector<32x1xf32>
    %1186 = arith.addf %1182, %1185 : vector<32x1xf32>
    %1187 = math.rsqrt %1186 : vector<32x1xf32>
    %1188 = vector.broadcast %1187 : vector<32x1xf32> to vector<32x16xf32>
    %1189 = arith.mulf %1184, %1188 : vector<32x16xf32>
    %1190 = vector.broadcast %1170 : vector<1x16xf32> to vector<32x16xf32>
    %1191 = arith.mulf %1189, %1190 : vector<32x16xf32>
    %1192 = vector.broadcast %1171 : vector<1x16xf32> to vector<32x16xf32>
    %1193 = arith.addf %1191, %1192 : vector<32x16xf32>
    %c0_520 = arith.constant 0 : index
    %c0_521 = arith.constant 0 : index
    %1194 = vector.load %arg27[%c0_520, %c0_521] : memref<16x48xf32, #tpu.memory_space<vmem>>, vector<16x48xf32>
    %cst_522 = arith.constant dense<0.000000e+00> : vector<32x48xf32>
    %1195 = tpu.matmul %1193, %1194, %cst_522 {dimension_numbers = #tpu.dot_dimension_numbers<[1], [0], [0], [1], [0, 0, 1, 1], [], []>} : vector<32x16xf32>, vector<16x48xf32>, vector<32x48xf32> -> vector<32x48xf32>
    %c0_523 = arith.constant 0 : index
    %c0_524 = arith.constant 0 : index
    %1196 = vector.load %arg28[%c0_523, %c0_524] : memref<1x48xf32, #tpu.memory_space<vmem>>, vector<1x48xf32>
    %1197 = vector.broadcast %1196 : vector<1x48xf32> to vector<32x48xf32>
    %1198 = arith.addf %1195, %1197 : vector<32x48xf32>
    %1199 = vector.extract_strided_slice %1198 {offsets = [0, 0], sizes = [32, 16], strides = [1, 1]} : vector<32x48xf32> to vector<32x16xf32>
    %cst_525 = arith.constant 2.500000e-01 : f32
    %1200 = vector.broadcast %cst_525 : f32 to vector<32x16xf32>
    %1201 = arith.mulf %1199, %1200 : vector<32x16xf32>
    %1202 = vector.extract_strided_slice %1198 {offsets = [0, 16], sizes = [32, 16], strides = [1, 1]} : vector<32x48xf32> to vector<32x16xf32>
    %1203 = vector.extract_strided_slice %1198 {offsets = [0, 32], sizes = [32, 16], strides = [1, 1]} : vector<32x48xf32> to vector<32x16xf32>
    %1204 = vector.extract_strided_slice %1201 {offsets = [0, 0], sizes = [16, 16], strides = [1, 1]} : vector<32x16xf32> to vector<16x16xf32>
    %1205 = vector.extract_strided_slice %1202 {offsets = [0, 0], sizes = [16, 16], strides = [1, 1]} : vector<32x16xf32> to vector<16x16xf32>
    %cst_526 = arith.constant dense<0.000000e+00> : vector<16x16xf32>
    %1206 = tpu.matmul %1204, %1205, %cst_526 {dimension_numbers = #tpu.dot_dimension_numbers<[1], [1], [0], [0], [0, 0, 1, 0], [], []>} : vector<16x16xf32>, vector<16x16xf32>, vector<16x16xf32> -> vector<16x16xf32>
    %1207 = arith.addf %1206, %0 : vector<16x16xf32>
    %cst_527 = arith.constant dense<0xFF800000> : vector<16xf32>
    %1208 = vector.multi_reduction <maximumf>, %1207, %cst_527 [1] : vector<16x16xf32> to vector<16xf32>
    %1209 = vector.shape_cast %1208 : vector<16xf32> to vector<16x1xf32>
    %1210 = vector.broadcast %1209 : vector<16x1xf32> to vector<16x16xf32>
    %1211 = arith.subf %1207, %1210 : vector<16x16xf32>
    %1212 = math.exp %1211 : vector<16x16xf32>
    %cst_528 = arith.constant dense<0.000000e+00> : vector<16xf32>
    %1213 = vector.multi_reduction <add>, %1212, %cst_528 [1] : vector<16x16xf32> to vector<16xf32>
    %1214 = vector.shape_cast %1213 : vector<16xf32> to vector<16x1xf32>
    %1215 = tpu.reciprocal %1214 {approx = true} : vector<16x1xf32> -> vector<16x1xf32>
    %1216 = vector.broadcast %1215 : vector<16x1xf32> to vector<16x16xf32>
    %1217 = arith.mulf %1212, %1216 : vector<16x16xf32>
    %1218 = vector.extract_strided_slice %1203 {offsets = [0, 0], sizes = [16, 16], strides = [1, 1]} : vector<32x16xf32> to vector<16x16xf32>
    %cst_529 = arith.constant dense<0.000000e+00> : vector<16x16xf32>
    %1219 = tpu.matmul %1217, %1218, %cst_529 {dimension_numbers = #tpu.dot_dimension_numbers<[1], [0], [0], [1], [0, 0, 1, 1], [], []>} : vector<16x16xf32>, vector<16x16xf32>, vector<16x16xf32> -> vector<16x16xf32>
    %1220 = vector.extract_strided_slice %1201 {offsets = [16, 0], sizes = [16, 16], strides = [1, 1]} : vector<32x16xf32> to vector<16x16xf32>
    %1221 = vector.extract_strided_slice %1202 {offsets = [16, 0], sizes = [16, 16], strides = [1, 1]} : vector<32x16xf32> to vector<16x16xf32>
    %cst_530 = arith.constant dense<0.000000e+00> : vector<16x16xf32>
    %1222 = tpu.matmul %1220, %1221, %cst_530 {dimension_numbers = #tpu.dot_dimension_numbers<[1], [1], [0], [0], [0, 0, 1, 0], [], []>} : vector<16x16xf32>, vector<16x16xf32>, vector<16x16xf32> -> vector<16x16xf32>
    %1223 = arith.addf %1222, %0 : vector<16x16xf32>
    %cst_531 = arith.constant dense<0xFF800000> : vector<16xf32>
    %1224 = vector.multi_reduction <maximumf>, %1223, %cst_531 [1] : vector<16x16xf32> to vector<16xf32>
    %1225 = vector.shape_cast %1224 : vector<16xf32> to vector<16x1xf32>
    %1226 = vector.broadcast %1225 : vector<16x1xf32> to vector<16x16xf32>
    %1227 = arith.subf %1223, %1226 : vector<16x16xf32>
    %1228 = math.exp %1227 : vector<16x16xf32>
    %cst_532 = arith.constant dense<0.000000e+00> : vector<16xf32>
    %1229 = vector.multi_reduction <add>, %1228, %cst_532 [1] : vector<16x16xf32> to vector<16xf32>
    %1230 = vector.shape_cast %1229 : vector<16xf32> to vector<16x1xf32>
    %1231 = tpu.reciprocal %1230 {approx = true} : vector<16x1xf32> -> vector<16x1xf32>
    %1232 = vector.broadcast %1231 : vector<16x1xf32> to vector<16x16xf32>
    %1233 = arith.mulf %1228, %1232 : vector<16x16xf32>
    %1234 = vector.extract_strided_slice %1203 {offsets = [16, 0], sizes = [16, 16], strides = [1, 1]} : vector<32x16xf32> to vector<16x16xf32>
    %cst_533 = arith.constant dense<0.000000e+00> : vector<16x16xf32>
    %1235 = tpu.matmul %1233, %1234, %cst_533 {dimension_numbers = #tpu.dot_dimension_numbers<[1], [0], [0], [1], [0, 0, 1, 1], [], []>} : vector<16x16xf32>, vector<16x16xf32>, vector<16x16xf32> -> vector<16x16xf32>
    %1236 = tpu.concatenate %1219, %1235 in 0 : vector<16x16xf32>, vector<16x16xf32> -> vector<32x16xf32>
    %c0_534 = arith.constant 0 : index
    %c0_535 = arith.constant 0 : index
    %1237 = vector.load %arg29[%c0_534, %c0_535] : memref<16x16xf32, #tpu.memory_space<vmem>>, vector<16x16xf32>
    %cst_536 = arith.constant dense<0.000000e+00> : vector<32x16xf32>
    %1238 = tpu.matmul %1236, %1237, %cst_536 {dimension_numbers = #tpu.dot_dimension_numbers<[1], [0], [0], [1], [0, 0, 1, 1], [], []>} : vector<32x16xf32>, vector<16x16xf32>, vector<32x16xf32> -> vector<32x16xf32>
    %c0_537 = arith.constant 0 : index
    %c0_538 = arith.constant 0 : index
    %1239 = vector.load %arg30[%c0_537, %c0_538] : memref<1x16xf32, #tpu.memory_space<vmem>>, vector<1x16xf32>
    %1240 = vector.broadcast %1239 : vector<1x16xf32> to vector<32x16xf32>
    %1241 = arith.addf %1238, %1240 : vector<32x16xf32>
    %1242 = arith.addf %1169, %1241 : vector<32x16xf32>
    %c0_539 = arith.constant 0 : index
    %c0_540 = arith.constant 0 : index
    %1243 = vector.load %arg31[%c0_539, %c0_540] : memref<1x16xf32, #tpu.memory_space<vmem>>, vector<1x16xf32>
    %c0_541 = arith.constant 0 : index
    %c0_542 = arith.constant 0 : index
    %1244 = vector.load %arg32[%c0_541, %c0_542] : memref<1x16xf32, #tpu.memory_space<vmem>>, vector<1x16xf32>
    %cst_543 = arith.constant dense<0.000000e+00> : vector<32xf32>
    %1245 = vector.multi_reduction <add>, %1242, %cst_543 [1] : vector<32x16xf32> to vector<32xf32>
    %1246 = vector.shape_cast %1245 : vector<32xf32> to vector<32x1xf32>
    %cst_544 = arith.constant 1.600000e+01 : f32
    %1247 = vector.broadcast %cst_544 : f32 to vector<32x1xf32>
    %1248 = arith.divf %1246, %1247 : vector<32x1xf32>
    %1249 = vector.broadcast %1248 : vector<32x1xf32> to vector<32x16xf32>
    %1250 = arith.subf %1242, %1249 : vector<32x16xf32>
    %1251 = arith.mulf %1250, %1250 : vector<32x16xf32>
    %cst_545 = arith.constant dense<0.000000e+00> : vector<32xf32>
    %1252 = vector.multi_reduction <add>, %1251, %cst_545 [1] : vector<32x16xf32> to vector<32xf32>
    %1253 = vector.shape_cast %1252 : vector<32xf32> to vector<32x1xf32>
    %cst_546 = arith.constant 1.600000e+01 : f32
    %1254 = vector.broadcast %cst_546 : f32 to vector<32x1xf32>
    %1255 = arith.divf %1253, %1254 : vector<32x1xf32>
    %1256 = vector.broadcast %1248 : vector<32x1xf32> to vector<32x16xf32>
    %1257 = arith.subf %1242, %1256 : vector<32x16xf32>
    %cst_547 = arith.constant 9.99999974E-6 : f32
    %1258 = vector.broadcast %cst_547 : f32 to vector<32x1xf32>
    %1259 = arith.addf %1255, %1258 : vector<32x1xf32>
    %1260 = math.rsqrt %1259 : vector<32x1xf32>
    %1261 = vector.broadcast %1260 : vector<32x1xf32> to vector<32x16xf32>
    %1262 = arith.mulf %1257, %1261 : vector<32x16xf32>
    %1263 = vector.broadcast %1243 : vector<1x16xf32> to vector<32x16xf32>
    %1264 = arith.mulf %1262, %1263 : vector<32x16xf32>
    %1265 = vector.broadcast %1244 : vector<1x16xf32> to vector<32x16xf32>
    %1266 = arith.addf %1264, %1265 : vector<32x16xf32>
    %c0_548 = arith.constant 0 : index
    %c0_549 = arith.constant 0 : index
    %1267 = vector.load %arg33[%c0_548, %c0_549] : memref<16x64xf32, #tpu.memory_space<vmem>>, vector<16x64xf32>
    %cst_550 = arith.constant dense<0.000000e+00> : vector<32x64xf32>
    %1268 = tpu.matmul %1266, %1267, %cst_550 {dimension_numbers = #tpu.dot_dimension_numbers<[1], [0], [0], [1], [0, 0, 1, 1], [], []>} : vector<32x16xf32>, vector<16x64xf32>, vector<32x64xf32> -> vector<32x64xf32>
    %c0_551 = arith.constant 0 : index
    %c0_552 = arith.constant 0 : index
    %1269 = vector.load %arg34[%c0_551, %c0_552] : memref<1x64xf32, #tpu.memory_space<vmem>>, vector<1x64xf32>
    %1270 = vector.broadcast %1269 : vector<1x64xf32> to vector<32x64xf32>
    %1271 = arith.addf %1268, %1270 : vector<32x64xf32>
    %cst_553 = arith.constant 5.000000e-01 : f32
    %1272 = vector.broadcast %cst_553 : f32 to vector<32x64xf32>
    %1273 = arith.mulf %1272, %1271 : vector<32x64xf32>
    %cst_554 = arith.constant 4.471500e-02 : f32
    %1274 = vector.broadcast %cst_554 : f32 to vector<32x64xf32>
    %1275 = arith.mulf %1274, %1271 : vector<32x64xf32>
    %1276 = arith.mulf %1275, %1271 : vector<32x64xf32>
    %1277 = arith.mulf %1276, %1271 : vector<32x64xf32>
    %1278 = arith.addf %1271, %1277 : vector<32x64xf32>
    %cst_555 = arith.constant 0.797884583 : f32
    %1279 = vector.broadcast %cst_555 : f32 to vector<32x64xf32>
    %1280 = arith.mulf %1279, %1278 : vector<32x64xf32>
    %1281 = math.tanh %1280 : vector<32x64xf32>
    %cst_556 = arith.constant 1.000000e+00 : f32
    %1282 = vector.broadcast %cst_556 : f32 to vector<32x64xf32>
    %1283 = arith.addf %1282, %1281 : vector<32x64xf32>
    %1284 = arith.mulf %1273, %1283 : vector<32x64xf32>
    %c0_557 = arith.constant 0 : index
    %c0_558 = arith.constant 0 : index
    %1285 = vector.load %arg35[%c0_557, %c0_558] : memref<64x16xf32, #tpu.memory_space<vmem>>, vector<64x16xf32>
    %cst_559 = arith.constant dense<0.000000e+00> : vector<32x16xf32>
    %1286 = tpu.matmul %1284, %1285, %cst_559 {dimension_numbers = #tpu.dot_dimension_numbers<[1], [0], [0], [1], [0, 0, 1, 1], [], []>} : vector<32x64xf32>, vector<64x16xf32>, vector<32x16xf32> -> vector<32x16xf32>
    %c0_560 = arith.constant 0 : index
    %c0_561 = arith.constant 0 : index
    %1287 = vector.load %arg36[%c0_560, %c0_561] : memref<1x16xf32, #tpu.memory_space<vmem>>, vector<1x16xf32>
    %1288 = vector.broadcast %1287 : vector<1x16xf32> to vector<32x16xf32>
    %1289 = arith.addf %1286, %1288 : vector<32x16xf32>
    %1290 = arith.addf %1242, %1289 : vector<32x16xf32>
    %c0_562 = arith.constant 0 : index
    %c0_563 = arith.constant 0 : index
    %1291 = vector.load %arg19[%c0_562, %c0_563] : memref<1x16xf32, #tpu.memory_space<vmem>>, vector<1x16xf32>
    %c0_564 = arith.constant 0 : index
    %c0_565 = arith.constant 0 : index
    %1292 = vector.load %arg20[%c0_564, %c0_565] : memref<1x16xf32, #tpu.memory_space<vmem>>, vector<1x16xf32>
    %cst_566 = arith.constant dense<0.000000e+00> : vector<32xf32>
    %1293 = vector.multi_reduction <add>, %1290, %cst_566 [1] : vector<32x16xf32> to vector<32xf32>
    %1294 = vector.shape_cast %1293 : vector<32xf32> to vector<32x1xf32>
    %cst_567 = arith.constant 1.600000e+01 : f32
    %1295 = vector.broadcast %cst_567 : f32 to vector<32x1xf32>
    %1296 = arith.divf %1294, %1295 : vector<32x1xf32>
    %1297 = vector.broadcast %1296 : vector<32x1xf32> to vector<32x16xf32>
    %1298 = arith.subf %1290, %1297 : vector<32x16xf32>
    %1299 = arith.mulf %1298, %1298 : vector<32x16xf32>
    %cst_568 = arith.constant dense<0.000000e+00> : vector<32xf32>
    %1300 = vector.multi_reduction <add>, %1299, %cst_568 [1] : vector<32x16xf32> to vector<32xf32>
    %1301 = vector.shape_cast %1300 : vector<32xf32> to vector<32x1xf32>
    %cst_569 = arith.constant 1.600000e+01 : f32
    %1302 = vector.broadcast %cst_569 : f32 to vector<32x1xf32>
    %1303 = arith.divf %1301, %1302 : vector<32x1xf32>
    %1304 = vector.broadcast %1296 : vector<32x1xf32> to vector<32x16xf32>
    %1305 = arith.subf %1290, %1304 : vector<32x16xf32>
    %cst_570 = arith.constant 9.99999974E-6 : f32
    %1306 = vector.broadcast %cst_570 : f32 to vector<32x1xf32>
    %1307 = arith.addf %1303, %1306 : vector<32x1xf32>
    %1308 = math.rsqrt %1307 : vector<32x1xf32>
    %1309 = vector.broadcast %1308 : vector<32x1xf32> to vector<32x16xf32>
    %1310 = arith.mulf %1305, %1309 : vector<32x16xf32>
    %1311 = vector.broadcast %1291 : vector<1x16xf32> to vector<32x16xf32>
    %1312 = arith.mulf %1310, %1311 : vector<32x16xf32>
    %1313 = vector.broadcast %1292 : vector<1x16xf32> to vector<32x16xf32>
    %1314 = arith.addf %1312, %1313 : vector<32x16xf32>
    %c0_571 = arith.constant 0 : index
    %c0_572 = arith.constant 0 : index
    %1315 = vector.load %arg21[%c0_571, %c0_572] : memref<1x16xf32, #tpu.memory_space<vmem>>, vector<1x16xf32>
    %1316 = vector.broadcast %1315 : vector<1x16xf32> to vector<32x16xf32>
    %1317 = arith.mulf %1314, %1316 : vector<32x16xf32>
    %cst_573 = arith.constant dense<0.000000e+00> : vector<32xf32>
    %1318 = vector.multi_reduction <add>, %1317, %cst_573 [1] : vector<32x16xf32> to vector<32xf32>
    %1319 = vector.shape_cast %1318 : vector<32xf32> to vector<32x1xf32>
    %c0_574 = arith.constant 0 : index
    %c0_575 = arith.constant 0 : index
    %1320 = vector.load %arg22[%c0_574, %c0_575] : memref<1x1xf32, #tpu.memory_space<vmem>>, vector<1x1xf32>
    %1321 = vector.broadcast %1320 : vector<1x1xf32> to vector<32x1xf32>
    %1322 = arith.addf %1319, %1321 : vector<32x1xf32>
    %c0_576 = arith.constant 0 : index
    %c0_577 = arith.constant 0 : index
    %1323 = vector.load %arg23[%c0_576, %c0_577] : memref<16x12xf32, #tpu.memory_space<vmem>>, vector<16x12xf32>
    %c0_578 = arith.constant 0 : index
    %c0_579 = arith.constant 0 : index
    %1324 = vector.load %arg24[%c0_578, %c0_579] : memref<1x12xf32, #tpu.memory_space<vmem>>, vector<1x12xf32>
    %1325 = vector.extract_strided_slice %1322 {offsets = [0, 0], sizes = [16, 1], strides = [1, 1]} : vector<32x1xf32> to vector<16x1xf32>
    %1326 = vector.broadcast %1325 : vector<16x1xf32> to vector<16x12xf32>
    %1327 = arith.mulf %1326, %1323 : vector<16x12xf32>
    %cst_580 = arith.constant dense<0.000000e+00> : vector<12xf32>
    %1328 = vector.multi_reduction <add>, %1327, %cst_580 [0] : vector<16x12xf32> to vector<12xf32>
    %1329 = vector.shape_cast %1328 : vector<12xf32> to vector<1x12xf32>
    %1330 = arith.addf %1329, %1324 : vector<1x12xf32>
    %1331 = vector.extract_strided_slice %1322 {offsets = [16, 0], sizes = [16, 1], strides = [1, 1]} : vector<32x1xf32> to vector<16x1xf32>
    %1332 = vector.broadcast %1331 : vector<16x1xf32> to vector<16x12xf32>
    %1333 = arith.mulf %1332, %1323 : vector<16x12xf32>
    %cst_581 = arith.constant dense<0.000000e+00> : vector<12xf32>
    %1334 = vector.multi_reduction <add>, %1333, %cst_581 [0] : vector<16x12xf32> to vector<12xf32>
    %1335 = vector.shape_cast %1334 : vector<12xf32> to vector<1x12xf32>
    %1336 = arith.addf %1335, %1324 : vector<1x12xf32>
    %1337 = tpu.concatenate %1330, %1336 in 0 : vector<1x12xf32>, vector<1x12xf32> -> vector<2x12xf32>
    %c0_582 = arith.constant 0 : index
    %c0_583 = arith.constant 0 : index
    %1338 = vector.load %arg85[%c0_582, %c0_583] : memref<2x12xf32, #tpu.memory_space<vmem>>, vector<2x12xf32>
    tpu.vector_store %arg85[%c0_582, %c0_583], %1337 {strides = array<i32>} : memref<2x12xf32, #tpu.memory_space<vmem>>, vector<2x12xf32>,
    return
  }
}

</mosaic_0001>

<llo_original>
// kernel: ecct_forward.1
$region0: #{ecct_forward.1}
  #allocation0 [shape = 'u32[]', space=smem, size = 0x4, offset = 0x4, fixed_abs, tag = 'smem constant byte address 0x4 - core index']
  #allocation1 [shape = 'u32[72,128]{1,0:T(1,128)}', space=vmem, size = 0x9000, scoped, tag = 'internal scratch']
  #allocation2 [shape = 'f32[1,1]{1,0:T(1,128)S(1)}', space=vmem, size = 0x200, scoped, tag = 'scoped memory for ecct_forward.1']
  %s0 = inlined_call_operand.smem [shape: u32[86], index: -1, kind: input, shape index: {}]
  %s1 = sld [smem:[%s0]]
  %s2 = scalar_lea.smem %s0, 1
  %s3 = sld [smem:[%s2]]
  %s4 = scalar_lea.smem %s0, 2
  %s5 = sld [smem:[%s4]]
  %s6 = scalar_lea.smem %s0, 3
  %s7 = sld [smem:[%s6]]
  %s8 = scalar_lea.smem %s0, 4
  %s9 = sld [smem:[%s8]]
  %s10 = scalar_lea.smem %s0, 5
  %s11 = sld [smem:[%s10]]
  %s12 = scalar_lea.smem %s0, 6
  %s13 = sld [smem:[%s12]]
  %s14 = scalar_lea.smem %s0, 7
  %s15 = sld [smem:[%s14]]
  %s16 = scalar_lea.smem %s0, 8
  %s17 = sld [smem:[%s16]]
  %s18 = scalar_lea.smem %s0, 9
  %s19 = sld [smem:[%s18]]
  %s20 = scalar_lea.smem %s0, 10
  %s21 = sld [smem:[%s20]]
  %s22 = scalar_lea.smem %s0, 11
  %s23 = sld [smem:[%s22]]
  %s24 = scalar_lea.smem %s0, 12
  %s25 = sld [smem:[%s24]]
  %s26 = scalar_lea.smem %s0, 13
  %s27 = sld [smem:[%s26]]
  %s28 = scalar_lea.smem %s0, 14
  %s29 = sld [smem:[%s28]]
  %s30 = scalar_lea.smem %s0, 15
  %s31 = sld [smem:[%s30]]
  %s32 = scalar_lea.smem %s0, 16
  %s33 = sld [smem:[%s32]]
  %s34 = scalar_lea.smem %s0, 17
  %s35 = sld [smem:[%s34]]
  %s36 = scalar_lea.smem %s0, 18
  %s37 = sld [smem:[%s36]]
  %s38 = scalar_lea.smem %s0, 19
  %s39 = sld [smem:[%s38]]
  %s40 = scalar_lea.smem %s0, 20
  %s41 = sld [smem:[%s40]]
  %s42 = scalar_lea.smem %s0, 21
  %s43 = sld [smem:[%s42]]
  %s44 = scalar_lea.smem %s0, 22
  %s45 = sld [smem:[%s44]]
  %s46 = scalar_lea.smem %s0, 23
  %s47 = sld [smem:[%s46]]
  %s48 = scalar_lea.smem %s0, 24
  %s49 = sld [smem:[%s48]]
  %s50 = scalar_lea.smem %s0, 25
  %s51 = sld [smem:[%s50]]
  %s52 = scalar_lea.smem %s0, 26
  %s53 = sld [smem:[%s52]]
  %s54 = scalar_lea.smem %s0, 27
  %s55 = sld [smem:[%s54]]
  %s56 = scalar_lea.smem %s0, 28
  %s57 = sld [smem:[%s56]]
  %s58 = scalar_lea.smem %s0, 29
  %s59 = sld [smem:[%s58]]
  %s60 = scalar_lea.smem %s0, 30
  %s61 = sld [smem:[%s60]]
  %s62 = scalar_lea.smem %s0, 31
  %s63 = sld [smem:[%s62]]
  %s64 = scalar_lea.smem %s0, 32
  %s65 = sld [smem:[%s64]]
  %s66 = scalar_lea.smem %s0, 33
  %s67 = sld [smem:[%s66]]
  %s68 = scalar_lea.smem %s0, 34
  %s69 = sld [smem:[%s68]]
  %s70 = scalar_lea.smem %s0, 35
  %s71 = sld [smem:[%s70]]
  %s72 = scalar_lea.smem %s0, 36
  %s73 = sld [smem:[%s72]]
  %s74 = scalar_lea.smem %s0, 37
  %s75 = sld [smem:[%s74]]
  %s76 = scalar_lea.smem %s0, 38
  %s77 = sld [smem:[%s76]]
  %s78 = scalar_lea.smem %s0, 39
  %s79 = sld [smem:[%s78]]
  %s80 = scalar_lea.smem %s0, 40
  %s81 = sld [smem:[%s80]]
  %s82 = scalar_lea.smem %s0, 41
  %s83 = sld [smem:[%s82]]
  %s84 = scalar_lea.smem %s0, 42
  %s85 = sld [smem:[%s84]]
  %s86 = scalar_lea.smem %s0, 43
  %s87 = sld [smem:[%s86]]
  %s88 = scalar_lea.smem %s0, 44
  %s89 = sld [smem:[%s88]]
  %s90 = scalar_lea.smem %s0, 45
  %s91 = sld [smem:[%s90]]
  %s92 = scalar_lea.smem %s0, 46
  %s93 = sld [smem:[%s92]]
  %s94 = scalar_lea.smem %s0, 47
  %s95 = sld [smem:[%s94]]
  %s96 = scalar_lea.smem %s0, 48
  %s97 = sld [smem:[%s96]]
  %s98 = scalar_lea.smem %s0, 49
  %s99 = sld [smem:[%s98]]
  %s100 = scalar_lea.smem %s0, 50
  %s101 = sld [smem:[%s100]]
  %s102 = scalar_lea.smem %s0, 51
  %s103 = sld [smem:[%s102]]
  %s104 = scalar_lea.smem %s0, 52
  %s105 = sld [smem:[%s104]]
  %s106 = scalar_lea.smem %s0, 53
  %s107 = sld [smem:[%s106]]
  %s108 = scalar_lea.smem %s0, 54
  %s109 = sld [smem:[%s108]]
  %s110 = scalar_lea.smem %s0, 55
  %s111 = sld [smem:[%s110]]
  %s112 = scalar_lea.smem %s0, 56
  %s113 = sld [smem:[%s112]]
  %s114 = scalar_lea.smem %s0, 57
  %s115 = sld [smem:[%s114]]
  %s116 = scalar_lea.smem %s0, 58
  %s117 = sld [smem:[%s116]]
  %s118 = scalar_lea.smem %s0, 59
  %s119 = sld [smem:[%s118]]
  %s120 = scalar_lea.smem %s0, 60
  %s121 = sld [smem:[%s120]]
  %s122 = scalar_lea.smem %s0, 61
  %s123 = sld [smem:[%s122]]
  %s124 = scalar_lea.smem %s0, 62
  %s125 = sld [smem:[%s124]]
  %s126 = scalar_lea.smem %s0, 63
  %s127 = sld [smem:[%s126]]
  %s128 = scalar_lea.smem %s0, 64
  %s129 = sld [smem:[%s128]]
  %s130 = scalar_lea.smem %s0, 65
  %s131 = sld [smem:[%s130]]
  %s132 = scalar_lea.smem %s0, 66
  %s133 = sld [smem:[%s132]]
  %s134 = scalar_lea.smem %s0, 67
  %s135 = sld [smem:[%s134]]
  %s136 = scalar_lea.smem %s0, 68
  %s137 = sld [smem:[%s136]]
  %s138 = scalar_lea.smem %s0, 69
  %s139 = sld [smem:[%s138]]
  %s140 = scalar_lea.smem %s0, 70
  %s141 = sld [smem:[%s140]]
  %s142 = scalar_lea.smem %s0, 71
  %s143 = sld [smem:[%s142]]
  %s144 = scalar_lea.smem %s0, 72
  %s145 = sld [smem:[%s144]]
  %s146 = scalar_lea.smem %s0, 73
  %s147 = sld [smem:[%s146]]
  %s148 = scalar_lea.smem %s0, 74
  %s149 = sld [smem:[%s148]]
  %s150 = scalar_lea.smem %s0, 75
  %s151 = sld [smem:[%s150]]
  %s152 = scalar_lea.smem %s0, 76
  %s153 = sld [smem:[%s152]]
  %s154 = scalar_lea.smem %s0, 77
  %s155 = sld [smem:[%s154]]
  %s156 = scalar_lea.smem %s0, 78
  %s157 = sld [smem:[%s156]]
  %s158 = scalar_lea.smem %s0, 79
  %s159 = sld [smem:[%s158]]
  %s160 = scalar_lea.smem %s0, 80
  %s161 = sld [smem:[%s160]]
  %s162 = scalar_lea.smem %s0, 81
  %s163 = sld [smem:[%s162]]
  %s164 = scalar_lea.smem %s0, 82
  %s165 = sld [smem:[%s164]]
  %s166 = scalar_lea.smem %s0, 83
  %s167 = sld [smem:[%s166]]
  %s168 = scalar_lea.smem %s0, 84
  %s169 = sld [smem:[%s168]]
  %s170 = scalar_lea.smem %s0, 85
  %s171 = sld [smem:[%s170]]
  %s172 = sld [smem:[#allocation0]]
  $region514: #{ecct_forward.1} parent=0
    _
  %s174 = ssub.s32 1, %s172
  %s175 = scalar_select 0, %s174, %s172
  %v176 = vstv %s45
  %177 = vst [vmem:[#allocation2] sm:$0x1] %v176
  $region1: #{ecct_forward.1} parent=0
    #allocation3 [shape = 'u8[512]{0}', space=vmem, size = 0x400, scoped, tag = 'input window, operand 21, single buffered']
    #allocation4 [shape = 's32[1]{0}', space=sflag, size = 0x4, scoped, tag = 'scoped memory for ecct_forward.1']
    #allocation5 [shape = 's32[1]{0}', space=sflag, size = 0x4, scoped, tag = 'scoped memory for ecct_forward.1']
    #allocation6 [shape = 'u8[512]{0}', space=vmem, size = 0x400, scoped, tag = 'input window, operand 24, single buffered']
    #allocation7 [shape = 's32[1]{0}', space=sflag, size = 0x4, scoped, tag = 'scoped memory for ecct_forward.1']
    #allocation8 [shape = 'u8[512]{0}', space=vmem, size = 0x400, scoped, tag = 'input window, operand 25, single buffered']
    #allocation9 [shape = 'u8[512]{0}', space=vmem, size = 0x400, scoped, tag = 'input window, operand 26, single buffered']
    #allocation10 [shape = 's32[1]{0}', space=sflag, size = 0x4, scoped, tag = 'scoped memory for ecct_forward.1']
    #allocation11 [shape = 'u8[512]{0}', space=vmem, size = 0x400, scoped, tag = 'input window, operand 28, single buffered']
    #allocation12 [shape = 'u8[512]{0}', space=vmem, size = 0x400, scoped, tag = 'input window, operand 30, single buffered']
    #allocation13 [shape = 's32[1]{0}', space=sflag, size = 0x4, scoped, tag = 'scoped memory for ecct_forward.1']
    #allocation14 [shape = 'u8[512]{0}', space=vmem, size = 0x400, scoped, tag = 'input window, operand 31, single buffered']
    #allocation15 [shape = 'u8[512]{0}', space=vmem, size = 0x400, scoped, tag = 'input window, operand 32, single buffered']
    #allocation16 [shape = 's32[1]{0}', space=sflag, size = 0x4, scoped, tag = 'scoped memory for ecct_forward.1']
    #allocation17 [shape = 'u8[512]{0}', space=vmem, size = 0x400, scoped, tag = 'input window, operand 34, single buffered']
    #allocation18 [shape = 'u8[512]{0}', space=vmem, size = 0x400, scoped, tag = 'input window, operand 36, single buffered']
    #allocation19 [shape = 's32[1]{0}', space=sflag, size = 0x4, scoped, tag = 'scoped memory for ecct_forward.1']
    #allocation20 [shape = 'u8[512]{0}', space=vmem, size = 0x400, scoped, tag = 'input window, operand 37, single buffered']
    #allocation21 [shape = 'u8[512]{0}', space=vmem, size = 0x400, scoped, tag = 'input window, operand 38, single buffered']
    #allocation22 [shape = 's32[1]{0}', space=sflag, size = 0x4, scoped, tag = 'scoped memory for ecct_forward.1']
    #allocation23 [shape = 'u8[512]{0}', space=vmem, size = 0x400, scoped, tag = 'input window, operand 40, single buffered']
    #allocation24 [shape = 'u8[512]{0}', space=vmem, size = 0x400, scoped, tag = 'input window, operand 42, single buffered']
    #allocation25 [shape = 's32[1]{0}', space=sflag, size = 0x4, scoped, tag = 'scoped memory for ecct_forward.1']
    #allocation26 [shape = 'u8[512]{0}', space=vmem, size = 0x400, scoped, tag = 'input window, operand 43, single buffered']
    #allocation27 [shape = 'u8[512]{0}', space=vmem, size = 0x400, scoped, tag = 'input window, operand 44, single buffered']
    #allocation28 [shape = 's32[1]{0}', space=sflag, size = 0x4, scoped, tag = 'scoped memory for ecct_forward.1']
    #allocation29 [shape = 'u8[512]{0}', space=vmem, size = 0x400, scoped, tag = 'input window, operand 46, single buffered']
    #allocation30 [shape = 'u8[512]{0}', space=vmem, size = 0x400, scoped, tag = 'input window, operand 48, single buffered']
    #allocation31 [shape = 's32[1]{0}', space=sflag, size = 0x4, scoped, tag = 'scoped memory for ecct_forward.1']
    #allocation32 [shape = 'u8[512]{0}', space=vmem, size = 0x400, scoped, tag = 'input window, operand 49, single buffered']
    #allocation33 [shape = 'u8[512]{0}', space=vmem, size = 0x400, scoped, tag = 'input window, operand 50, single buffered']
    #allocation34 [shape = 's32[1]{0}', space=sflag, size = 0x4, scoped, tag = 'scoped memory for ecct_forward.1']
    #allocation35 [shape = 'u8[512]{0}', space=vmem, size = 0x400, scoped, tag = 'input window, operand 52, single buffered']
    #allocation36 [shape = 'u8[512]{0}', space=vmem, size = 0x400, scoped, tag = 'input window, operand 54, single buffered']
    #allocation37 [shape = 's32[1]{0}', space=sflag, size = 0x4, scoped, tag = 'scoped memory for ecct_forward.1']
    #allocation38 [shape = 'u8[512]{0}', space=vmem, size = 0x400, scoped, tag = 'input window, operand 55, single buffered']
    #allocation39 [shape = 'u8[512]{0}', space=vmem, size = 0x400, scoped, tag = 'input window, operand 56, single buffered']
    #allocation40 [shape = 's32[1]{0}', space=sflag, size = 0x4, scoped, tag = 'scoped memory for ecct_forward.1']
    #allocation41 [shape = 'u8[512]{0}', space=vmem, size = 0x400, scoped, tag = 'input window, operand 58, single buffered']
    #allocation42 [shape = 'u8[512]{0}', space=vmem, size = 0x400, scoped, tag = 'input window, operand 60, single buffered']
    #allocation43 [shape = 's32[1]{0}', space=sflag, size = 0x4, scoped, tag = 'scoped memory for ecct_forward.1']
    #allocation44 [shape = 'u8[512]{0}', space=vmem, size = 0x400, scoped, tag = 'input window, operand 61, single buffered']
    #allocation45 [shape = 'u8[512]{0}', space=vmem, size = 0x400, scoped, tag = 'input window, operand 62, single buffered']
    #allocation46 [shape = 's32[1]{0}', space=sflag, size = 0x4, scoped, tag = 'scoped memory for ecct_forward.1']
    #allocation47 [shape = 'u8[512]{0}', space=vmem, size = 0x400, scoped, tag = 'input window, operand 64, single buffered']
    #allocation48 [shape = 'u8[512]{0}', space=vmem, size = 0x400, scoped, tag = 'input window, operand 66, single buffered']
    #allocation49 [shape = 's32[1]{0}', space=sflag, size = 0x4, scoped, tag = 'scoped memory for ecct_forward.1']
    #allocation50 [shape = 'u8[512]{0}', space=vmem, size = 0x400, scoped, tag = 'input window, operand 67, single buffered']
    #allocation51 [shape = 'u8[512]{0}', space=vmem, size = 0x400, scoped, tag = 'input window, operand 68, single buffered']
    #allocation52 [shape = 's32[1]{0}', space=sflag, size = 0x4, scoped, tag = 'scoped memory for ecct_forward.1']
    #allocation53 [shape = 'u8[512]{0}', space=vmem, size = 0x400, scoped, tag = 'input window, operand 70, single buffered']
    #allocation54 [shape = 'u8[512]{0}', space=vmem, size = 0x400, scoped, tag = 'input window, operand 72, single buffered']
    #allocation55 [shape = 's32[1]{0}', space=sflag, size = 0x4, scoped, tag = 'scoped memory for ecct_forward.1']
    #allocation56 [shape = 'u8[512]{0}', space=vmem, size = 0x400, scoped, tag = 'input window, operand 73, single buffered']
    #allocation57 [shape = 'u8[512]{0}', space=vmem, size = 0x400, scoped, tag = 'input window, operand 74, single buffered']
    #allocation58 [shape = 's32[1]{0}', space=sflag, size = 0x4, scoped, tag = 'scoped memory for ecct_forward.1']
    #allocation59 [shape = 'u8[512]{0}', space=vmem, size = 0x400, scoped, tag = 'input window, operand 76, single buffered']
    #allocation60 [shape = 'u8[512]{0}', space=vmem, size = 0x400, scoped, tag = 'input window, operand 78, single buffered']
    #allocation61 [shape = 's32[1]{0}', space=sflag, size = 0x4, scoped, tag = 'scoped memory for ecct_forward.1']
    #allocation62 [shape = 'u8[512]{0}', space=vmem, size = 0x400, scoped, tag = 'input window, operand 79, single buffered']
    #allocation63 [shape = 'u8[512]{0}', space=vmem, size = 0x400, scoped, tag = 'input window, operand 80, single buffered']
    #allocation64 [shape = 's32[1]{0}', space=sflag, size = 0x4, scoped, tag = 'scoped memory for ecct_forward.1']
    #allocation65 [shape = 'u8[512]{0}', space=vmem, size = 0x400, scoped, tag = 'input window, operand 84, single buffered']
    #allocation66 [shape = 'u8[1024]{0}', space=vmem, size = 0x400, scoped, tag = 'output window, operand 0, single buffered']
    %178 = vsyncpa [#allocation4], 0
    %179 = vsyncpa [#allocation7], 0
    %180 = vsyncpa [#allocation10], 0
    %181 = vsyncpa [#allocation13], 0
    %182 = vsyncpa [#allocation16], 0
    %183 = vsyncpa [#allocation19], 0
    %184 = vsyncpa [#allocation22], 0
    %185 = vsyncpa [#allocation25], 0
    %186 = vsyncpa [#allocation28], 0
    %187 = vsyncpa [#allocation31], 0
    %188 = vsyncpa [#allocation34], 0
    %189 = vsyncpa [#allocation37], 0
    %190 = vsyncpa [#allocation40], 0
    %191 = vsyncpa [#allocation43], 0
    %192 = vsyncpa [#allocation46], 0
    %193 = vsyncpa [#allocation49], 0
    %194 = vsyncpa [#allocation52], 0
    %195 = vsyncpa [#allocation55], 0
    %196 = vsyncpa [#allocation58], 0
    %197 = vsyncpa [#allocation61], 0
    %198 = vsyncpa [#allocation64], 0
    %199 = vsyncpa [#allocation5], 0
    // Predicated region
    $region2: #{ecct_forward.1} parent=1 // pred_check
      _
    $region3: #{ecct_forward.1} parent=1 // pred_check_branch
      %201 = sbr.rel (0) target = $region5
    $region4: #{ecct_forward.1} parent=1 // pred_region
      _
    $region5: #{ecct_forward.1} parent=1 // pred_fallthru
      _
    // Predicated region
    $region6: #{ecct_forward.1} parent=1 // pred_check
      _
    $region7: #{ecct_forward.1} parent=1 // pred_check_branch
      %203 = sbr.rel (0) target = $region9
    $region8: #{ecct_forward.1} parent=1 // pred_region
      _
    $region9: #{ecct_forward.1} parent=1 // pred_fallthru
      _
    // Predicated region
    $region10: #{ecct_forward.1} parent=1 // pred_check
      _
    $region11: #{ecct_forward.1} parent=1 // pred_check_branch
      %205 = sbr.rel (0) target = $region13
    $region12: #{ecct_forward.1} parent=1 // pred_region
      _
    $region13: #{ecct_forward.1} parent=1 // pred_fallthru
      _
    // Predicated region
    $region14: #{ecct_forward.1} parent=1 // pred_check
      _
    $region15: #{ecct_forward.1} parent=1 // pred_check_branch
      %207 = sbr.rel (0) target = $region17
    $region16: #{ecct_forward.1} parent=1 // pred_region
      _
    $region17: #{ecct_forward.1} parent=1 // pred_fallthru
      _
    // Predicated region
    $region18: #{ecct_forward.1} parent=1 // pred_check
      _
    $region19: #{ecct_forward.1} parent=1 // pred_check_branch
      %209 = sbr.rel (0) target = $region21
    $region20: #{ecct_forward.1} parent=1 // pred_region
      _
    $region21: #{ecct_forward.1} parent=1 // pred_fallthru
      _
    // Predicated region
    $region22: #{ecct_forward.1} parent=1 // pred_check
      _
    $region23: #{ecct_forward.1} parent=1 // pred_check_branch
      %211 = sbr.rel (0) target = $region25
    $region24: #{ecct_forward.1} parent=1 // pred_region
      _
    $region25: #{ecct_forward.1} parent=1 // pred_fallthru
      _
    // Predicated region
    $region26: #{ecct_forward.1} parent=1 // pred_check
      _
    $region27: #{ecct_forward.1} parent=1 // pred_check_branch
      %213 = sbr.rel (0) target = $region29
    $region28: #{ecct_forward.1} parent=1 // pred_region
      _
    $region29: #{ecct_forward.1} parent=1 // pred_fallthru
      _
    // Predicated region
    $region30: #{ecct_forward.1} parent=1 // pred_check
      _
    $region31: #{ecct_forward.1} parent=1 // pred_check_branch
      %215 = sbr.rel (0) target = $region33
    $region32: #{ecct_forward.1} parent=1 // pred_region
      _
    $region33: #{ecct_forward.1} parent=1 // pred_fallthru
      _
    // Predicated region
    $region34: #{ecct_forward.1} parent=1 // pred_check
      _
    $region35: #{ecct_forward.1} parent=1 // pred_check_branch
      %217 = sbr.rel (0) target = $region37
    $region36: #{ecct_forward.1} parent=1 // pred_region
      _
    $region37: #{ecct_forward.1} parent=1 // pred_fallthru
      _
    // Predicated region
    $region38: #{ecct_forward.1} parent=1 // pred_check
      _
    $region39: #{ecct_forward.1} parent=1 // pred_check_branch
      %219 = sbr.rel (0) target = $region41
    $region40: #{ecct_forward.1} parent=1 // pred_region
      _
    $region41: #{ecct_forward.1} parent=1 // pred_fallthru
      _
    // Predicated region
    $region42: #{ecct_forward.1} parent=1 // pred_check
      _
    $region43: #{ecct_forward.1} parent=1 // pred_check_branch
      %221 = sbr.rel (0) target = $region45
    $region44: #{ecct_forward.1} parent=1 // pred_region
      _
    $region45: #{ecct_forward.1} parent=1 // pred_fallthru
      _
    // Predicated region
    $region46: #{ecct_forward.1} parent=1 // pred_check
      _
    $region47: #{ecct_forward.1} parent=1 // pred_check_branch
      %223 = sbr.rel (0) target = $region49
    $region48: #{ecct_forward.1} parent=1 // pred_region
      _
    $region49: #{ecct_forward.1} parent=1 // pred_fallthru
      _
    // Predicated region
    $region50: #{ecct_forward.1} parent=1 // pred_check
      _
    $region51: #{ecct_forward.1} parent=1 // pred_check_branch
      %225 = sbr.rel (0) target = $region53
    $region52: #{ecct_forward.1} parent=1 // pred_region
      _
    $region53: #{ecct_forward.1} parent=1 // pred_fallthru
      _
    // Predicated region
    $region54: #{ecct_forward.1} parent=1 // pred_check
      _
    $region55: #{ecct_forward.1} parent=1 // pred_check_branch
      %227 = sbr.rel (0) target = $region57
    $region56: #{ecct_forward.1} parent=1 // pred_region
      _
    $region57: #{ecct_forward.1} parent=1 // pred_fallthru
      _
    // Predicated region
    $region58: #{ecct_forward.1} parent=1 // pred_check
      _
    $region59: #{ecct_forward.1} parent=1 // pred_check_branch
      %229 = sbr.rel (0) target = $region61
    $region60: #{ecct_forward.1} parent=1 // pred_region
      _
    $region61: #{ecct_forward.1} parent=1 // pred_fallthru
      _
    // Predicated region
    $region62: #{ecct_forward.1} parent=1 // pred_check
      _
    $region63: #{ecct_forward.1} parent=1 // pred_check_branch
      %231 = sbr.rel (0) target = $region65
    $region64: #{ecct_forward.1} parent=1 // pred_region
      _
    $region65: #{ecct_forward.1} parent=1 // pred_fallthru
      _
    // Predicated region
    $region66: #{ecct_forward.1} parent=1 // pred_check
      _
    $region67: #{ecct_forward.1} parent=1 // pred_check_branch
      %233 = sbr.rel (0) target = $region69
    $region68: #{ecct_forward.1} parent=1 // pred_region
      _
    $region69: #{ecct_forward.1} parent=1 // pred_fallthru
      _
    // Predicated region
    $region70: #{ecct_forward.1} parent=1 // pred_check
      _
    $region71: #{ecct_forward.1} parent=1 // pred_check_branch
      %235 = sbr.rel (0) target = $region73
    $region72: #{ecct_forward.1} parent=1 // pred_region
      _
    $region73: #{ecct_forward.1} parent=1 // pred_fallthru
      _
    // Predicated region
    $region74: #{ecct_forward.1} parent=1 // pred_check
      _
    $region75: #{ecct_forward.1} parent=1 // pred_check_branch
      %237 = sbr.rel (0) target = $region77
    $region76: #{ecct_forward.1} parent=1 // pred_region
      _
    $region77: #{ecct_forward.1} parent=1 // pred_fallthru
      _
    // Predicated region
    $region78: #{ecct_forward.1} parent=1 // pred_check
      _
    $region79: #{ecct_forward.1} parent=1 // pred_check_branch
      %239 = sbr.rel (0) target = $region81
    $region80: #{ecct_forward.1} parent=1 // pred_region
      _
    $region81: #{ecct_forward.1} parent=1 // pred_fallthru
      _
    // Predicated region
    $region82: #{ecct_forward.1} parent=1 // pred_check
      _
    $region83: #{ecct_forward.1} parent=1 // pred_check_branch
      %241 = sbr.rel (0) target = $region85
    $region84: #{ecct_forward.1} parent=1 // pred_region
      _
    $region85: #{ecct_forward.1} parent=1 // pred_fallthru
      _
    // Predicated region
    $region86: #{ecct_forward.1} parent=1 // pred_check
      _
    $region87: #{ecct_forward.1} parent=1 // pred_check_branch
      %243 = sbr.rel (0) target = $region89
    $region88: #{ecct_forward.1} parent=1 // pred_region
      %245 = vsyncadd [#allocation4], 0
      %s247 = sshll.u32 %s43, 4
      %s248 = int_to_ptr.hbm [resolvable:$true] %s247
      %s249 = sshll.u32 [#allocation3], 4
      %s250 = int_to_ptr.vmem [resolvable:$true] %s249
      %252 = dma.hbm_to_vmem [thread:$0]  %s248, 16, %s250, [#allocation4]
    $region89: #{ecct_forward.1} parent=1 // pred_fallthru
      _
    // Predicated region
    $region90: #{ecct_forward.1} parent=1 // pred_check
      _
    $region91: #{ecct_forward.1} parent=1 // pred_check_branch
      %254 = sbr.rel (0) target = $region93
    $region92: #{ecct_forward.1} parent=1 // pred_region
      _
    $region93: #{ecct_forward.1} parent=1 // pred_fallthru
      _
    // Predicated region
    $region94: #{ecct_forward.1} parent=1 // pred_check
      _
    $region95: #{ecct_forward.1} parent=1 // pred_check_branch
      %256 = sbr.rel (0) target = $region97
    $region96: #{ecct_forward.1} parent=1 // pred_region
      _
    $region97: #{ecct_forward.1} parent=1 // pred_fallthru
      _
    // Predicated region
    $region98: #{ecct_forward.1} parent=1 // pred_check
      _
    $region99: #{ecct_forward.1} parent=1 // pred_check_branch
      %258 = sbr.rel (0) target = $region101
    $region100: #{ecct_forward.1} parent=1 // pred_region
      %260 = vsyncadd [#allocation7], 0
      %s262 = sshll.u32 %s49, 4
      %s263 = int_to_ptr.hbm [resolvable:$true] %s262
      %s264 = sshll.u32 [#allocation6], 4
      %s265 = int_to_ptr.vmem [resolvable:$true] %s264
      %267 = dma.hbm_to_vmem [thread:$0]  %s263, 16, %s265, [#allocation7]
    $region101: #{ecct_forward.1} parent=1 // pred_fallthru
      _
    // Predicated region
    $region102: #{ecct_forward.1} parent=1 // pred_check
      _
    $region103: #{ecct_forward.1} parent=1 // pred_check_branch
      %269 = sbr.rel (0) target = $region105
    $region104: #{ecct_forward.1} parent=1 // pred_region
      %271 = vsyncadd [#allocation7], 0
      %s273 = sshll.u32 %s51, 4
      %s274 = int_to_ptr.hbm [resolvable:$true] %s273
      %s275 = sshll.u32 [#allocation8], 4
      %s276 = int_to_ptr.vmem [resolvable:$true] %s275
      %278 = dma.hbm_to_vmem [thread:$0]  %s274, 16, %s276, [#allocation7]
    $region105: #{ecct_forward.1} parent=1 // pred_fallthru
      _
    // Predicated region
    $region106: #{ecct_forward.1} parent=1 // pred_check
      _
    $region107: #{ecct_forward.1} parent=1 // pred_check_branch
      %280 = sbr.rel (0) target = $region109
    $region108: #{ecct_forward.1} parent=1 // pred_region
      %282 = vsyncadd [#allocation10], 0
      %s284 = sshll.u32 %s53, 4
      %s285 = int_to_ptr.hbm [resolvable:$true] %s284
      %s286 = sshll.u32 [#allocation9], 4
      %s287 = int_to_ptr.vmem [resolvable:$true] %s286
      %289 = dma.hbm_to_vmem [thread:$0]  %s285, 16, %s287, [#allocation10]
    $region109: #{ecct_forward.1} parent=1 // pred_fallthru
      _
    // Predicated region
    $region110: #{ecct_forward.1} parent=1 // pred_check
      _
    $region111: #{ecct_forward.1} parent=1 // pred_check_branch
      %291 = sbr.rel (0) target = $region113
    $region112: #{ecct_forward.1} parent=1 // pred_region
      _
    $region113: #{ecct_forward.1} parent=1 // pred_fallthru
      _
    // Predicated region
    $region114: #{ecct_forward.1} parent=1 // pred_check
      _
    $region115: #{ecct_forward.1} parent=1 // pred_check_branch
      %293 = sbr.rel (0) target = $region117
    $region116: #{ecct_forward.1} parent=1 // pred_region
      %295 = vsyncadd [#allocation10], 0
      %s297 = sshll.u32 %s57, 4
      %s298 = int_to_ptr.hbm [resolvable:$true] %s297
      %s299 = sshll.u32 [#allocation11], 4
      %s300 = int_to_ptr.vmem [resolvable:$true] %s299
      %302 = dma.hbm_to_vmem [thread:$0]  %s298, 16, %s300, [#allocation10]
    $region117: #{ecct_forward.1} parent=1 // pred_fallthru
      _
    // Predicated region
    $region118: #{ecct_forward.1} parent=1 // pred_check
      _
    $region119: #{ecct_forward.1} parent=1 // pred_check_branch
      %304 = sbr.rel (0) target = $region121
    $region120: #{ecct_forward.1} parent=1 // pred_region
      _
    $region121: #{ecct_forward.1} parent=1 // pred_fallthru
      _
    // Predicated region
    $region122: #{ecct_forward.1} parent=1 // pred_check
      _
    $region123: #{ecct_forward.1} parent=1 // pred_check_branch
      %306 = sbr.rel (0) target = $region125
    $region124: #{ecct_forward.1} parent=1 // pred_region
      %308 = vsyncadd [#allocation13], 0
      %s310 = sshll.u32 %s61, 4
      %s311 = int_to_ptr.hbm [resolvable:$true] %s310
      %s312 = sshll.u32 [#allocation12], 4
      %s313 = int_to_ptr.vmem [resolvable:$true] %s312
      %315 = dma.hbm_to_vmem [thread:$0]  %s311, 16, %s313, [#allocation13]
    $region125: #{ecct_forward.1} parent=1 // pred_fallthru
      _
    // Predicated region
    $region126: #{ecct_forward.1} parent=1 // pred_check
      _
    $region127: #{ecct_forward.1} parent=1 // pred_check_branch
      %317 = sbr.rel (0) target = $region129
    $region128: #{ecct_forward.1} parent=1 // pred_region
      %319 = vsyncadd [#allocation13], 0
      %s321 = sshll.u32 %s63, 4
      %s322 = int_to_ptr.hbm [resolvable:$true] %s321
      %s323 = sshll.u32 [#allocation14], 4
      %s324 = int_to_ptr.vmem [resolvable:$true] %s323
      %326 = dma.hbm_to_vmem [thread:$0]  %s322, 16, %s324, [#allocation13]
    $region129: #{ecct_forward.1} parent=1 // pred_fallthru
      _
    // Predicated region
    $region130: #{ecct_forward.1} parent=1 // pred_check
      _
    $region131: #{ecct_forward.1} parent=1 // pred_check_branch
      %328 = sbr.rel (0) target = $region133
    $region132: #{ecct_forward.1} parent=1 // pred_region
      %330 = vsyncadd [#allocation16], 0
      %s332 = sshll.u32 %s65, 4
      %s333 = int_to_ptr.hbm [resolvable:$true] %s332
      %s334 = sshll.u32 [#allocation15], 4
      %s335 = int_to_ptr.vmem [resolvable:$true] %s334
      %337 = dma.hbm_to_vmem [thread:$0]  %s333, 16, %s335, [#allocation16]
    $region133: #{ecct_forward.1} parent=1 // pred_fallthru
      _
    // Predicated region
    $region134: #{ecct_forward.1} parent=1 // pred_check
      _
    $region135: #{ecct_forward.1} parent=1 // pred_check_branch
      %339 = sbr.rel (0) target = $region137
    $region136: #{ecct_forward.1} parent=1 // pred_region
      _
    $region137: #{ecct_forward.1} parent=1 // pred_fallthru
      _
    // Predicated region
    $region138: #{ecct_forward.1} parent=1 // pred_check
      _
    $region139: #{ecct_forward.1} parent=1 // pred_check_branch
      %341 = sbr.rel (0) target = $region141
    $region140: #{ecct_forward.1} parent=1 // pred_region
      %343 = vsyncadd [#allocation16], 0
      %s345 = sshll.u32 %s69, 4
      %s346 = int_to_ptr.hbm [resolvable:$true] %s345
      %s347 = sshll.u32 [#allocation17], 4
      %s348 = int_to_ptr.vmem [resolvable:$true] %s347
      %350 = dma.hbm_to_vmem [thread:$0]  %s346, 16, %s348, [#allocation16]
    $region141: #{ecct_forward.1} parent=1 // pred_fallthru
      _
    // Predicated region
    $region142: #{ecct_forward.1} parent=1 // pred_check
      _
    $region143: #{ecct_forward.1} parent=1 // pred_check_branch
      %352 = sbr.rel (0) target = $region145
    $region144: #{ecct_forward.1} parent=1 // pred_region
      _
    $region145: #{ecct_forward.1} parent=1 // pred_fallthru
      _
    // Predicated region
    $region146: #{ecct_forward.1} parent=1 // pred_check
      _
    $region147: #{ecct_forward.1} parent=1 // pred_check_branch
      %354 = sbr.rel (0) target = $region149
    $region148: #{ecct_forward.1} parent=1 // pred_region
      %356 = vsyncadd [#allocation19], 0
      %s358 = sshll.u32 %s73, 4
      %s359 = int_to_ptr.hbm [resolvable:$true] %s358
      %s360 = sshll.u32 [#allocation18], 4
      %s361 = int_to_ptr.vmem [resolvable:$true] %s360
      %363 = dma.hbm_to_vmem [thread:$0]  %s359, 16, %s361, [#allocation19]
    $region149: #{ecct_forward.1} parent=1 // pred_fallthru
      _
    // Predicated region
    $region150: #{ecct_forward.1} parent=1 // pred_check
      _
    $region151: #{ecct_forward.1} parent=1 // pred_check_branch
      %365 = sbr.rel (0) target = $region153
    $region152: #{ecct_forward.1} parent=1 // pred_region
      %367 = vsyncadd [#allocation19], 0
      %s369 = sshll.u32 %s75, 4
      %s370 = int_to_ptr.hbm [resolvable:$true] %s369
      %s371 = sshll.u32 [#allocation20], 4
      %s372 = int_to_ptr.vmem [resolvable:$true] %s371
      %374 = dma.hbm_to_vmem [thread:$0]  %s370, 16, %s372, [#allocation19]
    $region153: #{ecct_forward.1} parent=1 // pred_fallthru
      _
    // Predicated region
    $region154: #{ecct_forward.1} parent=1 // pred_check
      _
    $region155: #{ecct_forward.1} parent=1 // pred_check_branch
      %376 = sbr.rel (0) target = $region157
    $region156: #{ecct_forward.1} parent=1 // pred_region
      %378 = vsyncadd [#allocation22], 0
      %s380 = sshll.u32 %s77, 4
      %s381 = int_to_ptr.hbm [resolvable:$true] %s380
      %s382 = sshll.u32 [#allocation21], 4
      %s383 = int_to_ptr.vmem [resolvable:$true] %s382
      %385 = dma.hbm_to_vmem [thread:$0]  %s381, 16, %s383, [#allocation22]
    $region157: #{ecct_forward.1} parent=1 // pred_fallthru
      _
    // Predicated region
    $region158: #{ecct_forward.1} parent=1 // pred_check
      _
    $region159: #{ecct_forward.1} parent=1 // pred_check_branch
      %387 = sbr.rel (0) target = $region161
    $region160: #{ecct_forward.1} parent=1 // pred_region
      _
    $region161: #{ecct_forward.1} parent=1 // pred_fallthru
      _
    // Predicated region
    $region162: #{ecct_forward.1} parent=1 // pred_check
      _
    $region163: #{ecct_forward.1} parent=1 // pred_check_branch
      %389 = sbr.rel (0) target = $region165
    $region164: #{ecct_forward.1} parent=1 // pred_region
      %391 = vsyncadd [#allocation22], 0
      %s393 = sshll.u32 %s81, 4
      %s394 = int_to_ptr.hbm [resolvable:$true] %s393
      %s395 = sshll.u32 [#allocation23], 4
      %s396 = int_to_ptr.vmem [resolvable:$true] %s395
      %398 = dma.hbm_to_vmem [thread:$0]  %s394, 16, %s396, [#allocation22]
    $region165: #{ecct_forward.1} parent=1 // pred_fallthru
      _
    // Predicated region
    $region166: #{ecct_forward.1} parent=1 // pred_check
      _
    $region167: #{ecct_forward.1} parent=1 // pred_check_branch
      %400 = sbr.rel (0) target = $region169
    $region168: #{ecct_forward.1} parent=1 // pred_region
      _
    $region169: #{ecct_forward.1} parent=1 // pred_fallthru
      _
    // Predicated region
    $region170: #{ecct_forward.1} parent=1 // pred_check
      _
    $region171: #{ecct_forward.1} parent=1 // pred_check_branch
      %402 = sbr.rel (0) target = $region173
    $region172: #{ecct_forward.1} parent=1 // pred_region
      %404 = vsyncadd [#allocation25], 0
      %s406 = sshll.u32 %s85, 4
      %s407 = int_to_ptr.hbm [resolvable:$true] %s406
      %s408 = sshll.u32 [#allocation24], 4
      %s409 = int_to_ptr.vmem [resolvable:$true] %s408
      %411 = dma.hbm_to_vmem [thread:$0]  %s407, 16, %s409, [#allocation25]
    $region173: #{ecct_forward.1} parent=1 // pred_fallthru
      _
    // Predicated region
    $region174: #{ecct_forward.1} parent=1 // pred_check
      _
    $region175: #{ecct_forward.1} parent=1 // pred_check_branch
      %413 = sbr.rel (0) target = $region177
    $region176: #{ecct_forward.1} parent=1 // pred_region
      %415 = vsyncadd [#allocation25], 0
      %s417 = sshll.u32 %s87, 4
      %s418 = int_to_ptr.hbm [resolvable:$true] %s417
      %s419 = sshll.u32 [#allocation26], 4
      %s420 = int_to_ptr.vmem [resolvable:$true] %s419
      %422 = dma.hbm_to_vmem [thread:$0]  %s418, 16, %s420, [#allocation25]
    $region177: #{ecct_forward.1} parent=1 // pred_fallthru
      _
    // Predicated region
    $region178: #{ecct_forward.1} parent=1 // pred_check
      _
    $region179: #{ecct_forward.1} parent=1 // pred_check_branch
      %424 = sbr.rel (0) target = $region181
    $region180: #{ecct_forward.1} parent=1 // pred_region
      %426 = vsyncadd [#allocation28], 0
      %s428 = sshll.u32 %s89, 4
      %s429 = int_to_ptr.hbm [resolvable:$true] %s428
      %s430 = sshll.u32 [#allocation27], 4
      %s431 = int_to_ptr.vmem [resolvable:$true] %s430
      %433 = dma.hbm_to_vmem [thread:$0]  %s429, 16, %s431, [#allocation28]
    $region181: #{ecct_forward.1} parent=1 // pred_fallthru
      _
    // Predicated region
    $region182: #{ecct_forward.1} parent=1 // pred_check
      _
    $region183: #{ecct_forward.1} parent=1 // pred_check_branch
      %435 = sbr.rel (0) target = $region185
    $region184: #{ecct_forward.1} parent=1 // pred_region
      _
    $region185: #{ecct_forward.1} parent=1 // pred_fallthru
      _
    // Predicated region
    $region186: #{ecct_forward.1} parent=1 // pred_check
      _
    $region187: #{ecct_forward.1} parent=1 // pred_check_branch
      %437 = sbr.rel (0) target = $region189
    $region188: #{ecct_forward.1} parent=1 // pred_region
      %439 = vsyncadd [#allocation28], 0
      %s441 = sshll.u32 %s93, 4
      %s442 = int_to_ptr.hbm [resolvable:$true] %s441
      %s443 = sshll.u32 [#allocation29], 4
      %s444 = int_to_ptr.vmem [resolvable:$true] %s443
      %446 = dma.hbm_to_vmem [thread:$0]  %s442, 16, %s444, [#allocation28]
    $region189: #{ecct_forward.1} parent=1 // pred_fallthru
      _
    // Predicated region
    $region190: #{ecct_forward.1} parent=1 // pred_check
      _
    $region191: #{ecct_forward.1} parent=1 // pred_check_branch
      %448 = sbr.rel (0) target = $region193
    $region192: #{ecct_forward.1} parent=1 // pred_region
      _
    $region193: #{ecct_forward.1} parent=1 // pred_fallthru
      _
    // Predicated region
    $region194: #{ecct_forward.1} parent=1 // pred_check
      _
    $region195: #{ecct_forward.1} parent=1 // pred_check_branch
      %450 = sbr.rel (0) target = $region197
    $region196: #{ecct_forward.1} parent=1 // pred_region
      %452 = vsyncadd [#allocation31], 0
      %s454 = sshll.u32 %s97, 4
      %s455 = int_to_ptr.hbm [resolvable:$true] %s454
      %s456 = sshll.u32 [#allocation30], 4
      %s457 = int_to_ptr.vmem [resolvable:$true] %s456
      %459 = dma.hbm_to_vmem [thread:$0]  %s455, 16, %s457, [#allocation31]
    $region197: #{ecct_forward.1} parent=1 // pred_fallthru
      _
    // Predicated region
    $region198: #{ecct_forward.1} parent=1 // pred_check
      _
    $region199: #{ecct_forward.1} parent=1 // pred_check_branch
      %461 = sbr.rel (0) target = $region201
    $region200: #{ecct_forward.1} parent=1 // pred_region
      %463 = vsyncadd [#allocation31], 0
      %s465 = sshll.u32 %s99, 4
      %s466 = int_to_ptr.hbm [resolvable:$true] %s465
      %s467 = sshll.u32 [#allocation32], 4
      %s468 = int_to_ptr.vmem [resolvable:$true] %s467
      %470 = dma.hbm_to_vmem [thread:$0]  %s466, 16, %s468, [#allocation31]
    $region201: #{ecct_forward.1} parent=1 // pred_fallthru
      _
    // Predicated region
    $region202: #{ecct_forward.1} parent=1 // pred_check
      _
    $region203: #{ecct_forward.1} parent=1 // pred_check_branch
      %472 = sbr.rel (0) target = $region205
    $region204: #{ecct_forward.1} parent=1 // pred_region
      %474 = vsyncadd [#allocation34], 0
      %s476 = sshll.u32 %s101, 4
      %s477 = int_to_ptr.hbm [resolvable:$true] %s476
      %s478 = sshll.u32 [#allocation33], 4
      %s479 = int_to_ptr.vmem [resolvable:$true] %s478
      %481 = dma.hbm_to_vmem [thread:$0]  %s477, 16, %s479, [#allocation34]
    $region205: #{ecct_forward.1} parent=1 // pred_fallthru
      _
    // Predicated region
    $region206: #{ecct_forward.1} parent=1 // pred_check
      _
    $region207: #{ecct_forward.1} parent=1 // pred_check_branch
      %483 = sbr.rel (0) target = $region209
    $region208: #{ecct_forward.1} parent=1 // pred_region
      _
    $region209: #{ecct_forward.1} parent=1 // pred_fallthru
      _
    // Predicated region
    $region210: #{ecct_forward.1} parent=1 // pred_check
      _
    $region211: #{ecct_forward.1} parent=1 // pred_check_branch
      %485 = sbr.rel (0) target = $region213
    $region212: #{ecct_forward.1} parent=1 // pred_region
      %487 = vsyncadd [#allocation34], 0
      %s489 = sshll.u32 %s105, 4
      %s490 = int_to_ptr.hbm [resolvable:$true] %s489
      %s491 = sshll.u32 [#allocation35], 4
      %s492 = int_to_ptr.vmem [resolvable:$true] %s491
      %494 = dma.hbm_to_vmem [thread:$0]  %s490, 16, %s492, [#allocation34]
    $region213: #{ecct_forward.1} parent=1 // pred_fallthru
      _
    // Predicated region
    $region214: #{ecct_forward.1} parent=1 // pred_check
      _
    $region215: #{ecct_forward.1} parent=1 // pred_check_branch
      %496 = sbr.rel (0) target = $region217
    $region216: #{ecct_forward.1} parent=1 // pred_region
      _
    $region217: #{ecct_forward.1} parent=1 // pred_fallthru
      _
    // Predicated region
    $region218: #{ecct_forward.1} parent=1 // pred_check
      _
    $region219: #{ecct_forward.1} parent=1 // pred_check_branch
      %498 = sbr.rel (0) target = $region221
    $region220: #{ecct_forward.1} parent=1 // pred_region
      %500 = vsyncadd [#allocation37], 0
      %s502 = sshll.u32 %s109, 4
      %s503 = int_to_ptr.hbm [resolvable:$true] %s502
      %s504 = sshll.u32 [#allocation36], 4
      %s505 = int_to_ptr.vmem [resolvable:$true] %s504
      %507 = dma.hbm_to_vmem [thread:$0]  %s503, 16, %s505, [#allocation37]
    $region221: #{ecct_forward.1} parent=1 // pred_fallthru
      _
    // Predicated region
    $region222: #{ecct_forward.1} parent=1 // pred_check
      _
    $region223: #{ecct_forward.1} parent=1 // pred_check_branch
      %509 = sbr.rel (0) target = $region225
    $region224: #{ecct_forward.1} parent=1 // pred_region
      %511 = vsyncadd [#allocation37], 0
      %s513 = sshll.u32 %s111, 4
      %s514 = int_to_ptr.hbm [resolvable:$true] %s513
      %s515 = sshll.u32 [#allocation38], 4
      %s516 = int_to_ptr.vmem [resolvable:$true] %s515
      %518 = dma.hbm_to_vmem [thread:$0]  %s514, 16, %s516, [#allocation37]
    $region225: #{ecct_forward.1} parent=1 // pred_fallthru
      _
    // Predicated region
    $region226: #{ecct_forward.1} parent=1 // pred_check
      _
    $region227: #{ecct_forward.1} parent=1 // pred_check_branch
      %520 = sbr.rel (0) target = $region229
    $region228: #{ecct_forward.1} parent=1 // pred_region
      %522 = vsyncadd [#allocation40], 0
      %s524 = sshll.u32 %s113, 4
      %s525 = int_to_ptr.hbm [resolvable:$true] %s524
      %s526 = sshll.u32 [#allocation39], 4
      %s527 = int_to_ptr.vmem [resolvable:$true] %s526
      %529 = dma.hbm_to_vmem [thread:$0]  %s525, 16, %s527, [#allocation40]
    $region229: #{ecct_forward.1} parent=1 // pred_fallthru
      _
    // Predicated region
    $region230: #{ecct_forward.1} parent=1 // pred_check
      _
    $region231: #{ecct_forward.1} parent=1 // pred_check_branch
      %531 = sbr.rel (0) target = $region233
    $region232: #{ecct_forward.1} parent=1 // pred_region
      _
    $region233: #{ecct_forward.1} parent=1 // pred_fallthru
      _
    // Predicated region
    $region234: #{ecct_forward.1} parent=1 // pred_check
      _
    $region235: #{ecct_forward.1} parent=1 // pred_check_branch
      %533 = sbr.rel (0) target = $region237
    $region236: #{ecct_forward.1} parent=1 // pred_region
      %535 = vsyncadd [#allocation40], 0
      %s537 = sshll.u32 %s117, 4
      %s538 = int_to_ptr.hbm [resolvable:$true] %s537
      %s539 = sshll.u32 [#allocation41], 4
      %s540 = int_to_ptr.vmem [resolvable:$true] %s539
      %542 = dma.hbm_to_vmem [thread:$0]  %s538, 16, %s540, [#allocation40]
    $region237: #{ecct_forward.1} parent=1 // pred_fallthru
      _
    // Predicated region
    $region238: #{ecct_forward.1} parent=1 // pred_check
      _
    $region239: #{ecct_forward.1} parent=1 // pred_check_branch
      %544 = sbr.rel (0) target = $region241
    $region240: #{ecct_forward.1} parent=1 // pred_region
      _
    $region241: #{ecct_forward.1} parent=1 // pred_fallthru
      _
    // Predicated region
    $region242: #{ecct_forward.1} parent=1 // pred_check
      _
    $region243: #{ecct_forward.1} parent=1 // pred_check_branch
      %546 = sbr.rel (0) target = $region245
    $region244: #{ecct_forward.1} parent=1 // pred_region
      %548 = vsyncadd [#allocation43], 0
      %s550 = sshll.u32 %s121, 4
      %s551 = int_to_ptr.hbm [resolvable:$true] %s550
      %s552 = sshll.u32 [#allocation42], 4
      %s553 = int_to_ptr.vmem [resolvable:$true] %s552
      %555 = dma.hbm_to_vmem [thread:$0]  %s551, 16, %s553, [#allocation43]
    $region245: #{ecct_forward.1} parent=1 // pred_fallthru
      _
    // Predicated region
    $region246: #{ecct_forward.1} parent=1 // pred_check
      _
    $region247: #{ecct_forward.1} parent=1 // pred_check_branch
      %557 = sbr.rel (0) target = $region249
    $region248: #{ecct_forward.1} parent=1 // pred_region
      %559 = vsyncadd [#allocation43], 0
      %s561 = sshll.u32 %s123, 4
      %s562 = int_to_ptr.hbm [resolvable:$true] %s561
      %s563 = sshll.u32 [#allocation44], 4
      %s564 = int_to_ptr.vmem [resolvable:$true] %s563
      %566 = dma.hbm_to_vmem [thread:$0]  %s562, 16, %s564, [#allocation43]
    $region249: #{ecct_forward.1} parent=1 // pred_fallthru
      _
    // Predicated region
    $region250: #{ecct_forward.1} parent=1 // pred_check
      _
    $region251: #{ecct_forward.1} parent=1 // pred_check_branch
      %568 = sbr.rel (0) target = $region253
    $region252: #{ecct_forward.1} parent=1 // pred_region
      %570 = vsyncadd [#allocation46], 0
      %s572 = sshll.u32 %s125, 4
      %s573 = int_to_ptr.hbm [resolvable:$true] %s572
      %s574 = sshll.u32 [#allocation45], 4
      %s575 = int_to_ptr.vmem [resolvable:$true] %s574
      %577 = dma.hbm_to_vmem [thread:$0]  %s573, 16, %s575, [#allocation46]
    $region253: #{ecct_forward.1} parent=1 // pred_fallthru
      _
    // Predicated region
    $region254: #{ecct_forward.1} parent=1 // pred_check
      _
    $region255: #{ecct_forward.1} parent=1 // pred_check_branch
      %579 = sbr.rel (0) target = $region257
    $region256: #{ecct_forward.1} parent=1 // pred_region
      _
    $region257: #{ecct_forward.1} parent=1 // pred_fallthru
      _
    // Predicated region
    $region258: #{ecct_forward.1} parent=1 // pred_check
      _
    $region259: #{ecct_forward.1} parent=1 // pred_check_branch
      %581 = sbr.rel (0) target = $region261
    $region260: #{ecct_forward.1} parent=1 // pred_region
      %583 = vsyncadd [#allocation46], 0
      %s585 = sshll.u32 %s129, 4
      %s586 = int_to_ptr.hbm [resolvable:$true] %s585
      %s587 = sshll.u32 [#allocation47], 4
      %s588 = int_to_ptr.vmem [resolvable:$true] %s587
      %590 = dma.hbm_to_vmem [thread:$0]  %s586, 16, %s588, [#allocation46]
    $region261: #{ecct_forward.1} parent=1 // pred_fallthru
      _
    // Predicated region
    $region262: #{ecct_forward.1} parent=1 // pred_check
      _
    $region263: #{ecct_forward.1} parent=1 // pred_check_branch
      %592 = sbr.rel (0) target = $region265
    $region264: #{ecct_forward.1} parent=1 // pred_region
      _
    $region265: #{ecct_forward.1} parent=1 // pred_fallthru
      _
    // Predicated region
    $region266: #{ecct_forward.1} parent=1 // pred_check
      _
    $region267: #{ecct_forward.1} parent=1 // pred_check_branch
      %594 = sbr.rel (0) target = $region269
    $region268: #{ecct_forward.1} parent=1 // pred_region
      %596 = vsyncadd [#allocation49], 0
      %s598 = sshll.u32 %s133, 4
      %s599 = int_to_ptr.hbm [resolvable:$true] %s598
      %s600 = sshll.u32 [#allocation48], 4
      %s601 = int_to_ptr.vmem [resolvable:$true] %s600
      %603 = dma.hbm_to_vmem [thread:$0]  %s599, 16, %s601, [#allocation49]
    $region269: #{ecct_forward.1} parent=1 // pred_fallthru
      _
    // Predicated region
    $region270: #{ecct_forward.1} parent=1 // pred_check
      _
    $region271: #{ecct_forward.1} parent=1 // pred_check_branch
      %605 = sbr.rel (0) target = $region273
    $region272: #{ecct_forward.1} parent=1 // pred_region
      %607 = vsyncadd [#allocation49], 0
      %s609 = sshll.u32 %s135, 4
      %s610 = int_to_ptr.hbm [resolvable:$true] %s609
      %s611 = sshll.u32 [#allocation50], 4
      %s612 = int_to_ptr.vmem [resolvable:$true] %s611
      %614 = dma.hbm_to_vmem [thread:$0]  %s610, 16, %s612, [#allocation49]
    $region273: #{ecct_forward.1} parent=1 // pred_fallthru
      _
    // Predicated region
    $region274: #{ecct_forward.1} parent=1 // pred_check
      _
    $region275: #{ecct_forward.1} parent=1 // pred_check_branch
      %616 = sbr.rel (0) target = $region277
    $region276: #{ecct_forward.1} parent=1 // pred_region
      %618 = vsyncadd [#allocation52], 0
      %s620 = sshll.u32 %s137, 4
      %s621 = int_to_ptr.hbm [resolvable:$true] %s620
      %s622 = sshll.u32 [#allocation51], 4
      %s623 = int_to_ptr.vmem [resolvable:$true] %s622
      %625 = dma.hbm_to_vmem [thread:$0]  %s621, 16, %s623, [#allocation52]
    $region277: #{ecct_forward.1} parent=1 // pred_fallthru
      _
    // Predicated region
    $region278: #{ecct_forward.1} parent=1 // pred_check
      _
    $region279: #{ecct_forward.1} parent=1 // pred_check_branch
      %627 = sbr.rel (0) target = $region281
    $region280: #{ecct_forward.1} parent=1 // pred_region
      _
    $region281: #{ecct_forward.1} parent=1 // pred_fallthru
      _
    // Predicated region
    $region282: #{ecct_forward.1} parent=1 // pred_check
      _
    $region283: #{ecct_forward.1} parent=1 // pred_check_branch
      %629 = sbr.rel (0) target = $region285
    $region284: #{ecct_forward.1} parent=1 // pred_region
      %631 = vsyncadd [#allocation52], 0
      %s633 = sshll.u32 %s141, 4
      %s634 = int_to_ptr.hbm [resolvable:$true] %s633
      %s635 = sshll.u32 [#allocation53], 4
      %s636 = int_to_ptr.vmem [resolvable:$true] %s635
      %638 = dma.hbm_to_vmem [thread:$0]  %s634, 16, %s636, [#allocation52]
    $region285: #{ecct_forward.1} parent=1 // pred_fallthru
      _
    // Predicated region
    $region286: #{ecct_forward.1} parent=1 // pred_check
      _
    $region287: #{ecct_forward.1} parent=1 // pred_check_branch
      %640 = sbr.rel (0) target = $region289
    $region288: #{ecct_forward.1} parent=1 // pred_region
      _
    $region289: #{ecct_forward.1} parent=1 // pred_fallthru
      _
    // Predicated region
    $region290: #{ecct_forward.1} parent=1 // pred_check
      _
    $region291: #{ecct_forward.1} parent=1 // pred_check_branch
      %642 = sbr.rel (0) target = $region293
    $region292: #{ecct_forward.1} parent=1 // pred_region
      %644 = vsyncadd [#allocation55], 0
      %s646 = sshll.u32 %s145, 4
      %s647 = int_to_ptr.hbm [resolvable:$true] %s646
      %s648 = sshll.u32 [#allocation54], 4
      %s649 = int_to_ptr.vmem [resolvable:$true] %s648
      %651 = dma.hbm_to_vmem [thread:$0]  %s647, 16, %s649, [#allocation55]
    $region293: #{ecct_forward.1} parent=1 // pred_fallthru
      _
    // Predicated region
    $region294: #{ecct_forward.1} parent=1 // pred_check
      _
    $region295: #{ecct_forward.1} parent=1 // pred_check_branch
      %653 = sbr.rel (0) target = $region297
    $region296: #{ecct_forward.1} parent=1 // pred_region
      %655 = vsyncadd [#allocation55], 0
      %s657 = sshll.u32 %s147, 4
      %s658 = int_to_ptr.hbm [resolvable:$true] %s657
      %s659 = sshll.u32 [#allocation56], 4
      %s660 = int_to_ptr.vmem [resolvable:$true] %s659
      %662 = dma.hbm_to_vmem [thread:$0]  %s658, 16, %s660, [#allocation55]
    $region297: #{ecct_forward.1} parent=1 // pred_fallthru
      _
    // Predicated region
    $region298: #{ecct_forward.1} parent=1 // pred_check
      _
    $region299: #{ecct_forward.1} parent=1 // pred_check_branch
      %664 = sbr.rel (0) target = $region301
    $region300: #{ecct_forward.1} parent=1 // pred_region
      %666 = vsyncadd [#allocation58], 0
      %s668 = sshll.u32 %s149, 4
      %s669 = int_to_ptr.hbm [resolvable:$true] %s668
      %s670 = sshll.u32 [#allocation57], 4
      %s671 = int_to_ptr.vmem [resolvable:$true] %s670
      %673 = dma.hbm_to_vmem [thread:$0]  %s669, 16, %s671, [#allocation58]
    $region301: #{ecct_forward.1} parent=1 // pred_fallthru
      _
    // Predicated region
    $region302: #{ecct_forward.1} parent=1 // pred_check
      _
    $region303: #{ecct_forward.1} parent=1 // pred_check_branch
      %675 = sbr.rel (0) target = $region305
    $region304: #{ecct_forward.1} parent=1 // pred_region
      _
    $region305: #{ecct_forward.1} parent=1 // pred_fallthru
      _
    // Predicated region
    $region306: #{ecct_forward.1} parent=1 // pred_check
      _
    $region307: #{ecct_forward.1} parent=1 // pred_check_branch
      %677 = sbr.rel (0) target = $region309
    $region308: #{ecct_forward.1} parent=1 // pred_region
      %679 = vsyncadd [#allocation58], 0
      %s681 = sshll.u32 %s153, 4
      %s682 = int_to_ptr.hbm [resolvable:$true] %s681
      %s683 = sshll.u32 [#allocation59], 4
      %s684 = int_to_ptr.vmem [resolvable:$true] %s683
      %686 = dma.hbm_to_vmem [thread:$0]  %s682, 16, %s684, [#allocation58]
    $region309: #{ecct_forward.1} parent=1 // pred_fallthru
      _
    // Predicated region
    $region310: #{ecct_forward.1} parent=1 // pred_check
      _
    $region311: #{ecct_forward.1} parent=1 // pred_check_branch
      %688 = sbr.rel (0) target = $region313
    $region312: #{ecct_forward.1} parent=1 // pred_region
      _
    $region313: #{ecct_forward.1} parent=1 // pred_fallthru
      _
    // Predicated region
    $region314: #{ecct_forward.1} parent=1 // pred_check
      _
    $region315: #{ecct_forward.1} parent=1 // pred_check_branch
      %690 = sbr.rel (0) target = $region317
    $region316: #{ecct_forward.1} parent=1 // pred_region
      %692 = vsyncadd [#allocation61], 0
      %s694 = sshll.u32 %s157, 4
      %s695 = int_to_ptr.hbm [resolvable:$true] %s694
      %s696 = sshll.u32 [#allocation60], 4
      %s697 = int_to_ptr.vmem [resolvable:$true] %s696
      %699 = dma.hbm_to_vmem [thread:$0]  %s695, 16, %s697, [#allocation61]
    $region317: #{ecct_forward.1} parent=1 // pred_fallthru
      _
    // Predicated region
    $region318: #{ecct_forward.1} parent=1 // pred_check
      _
    $region319: #{ecct_forward.1} parent=1 // pred_check_branch
      %701 = sbr.rel (0) target = $region321
    $region320: #{ecct_forward.1} parent=1 // pred_region
      %703 = vsyncadd [#allocation61], 0
      %s705 = sshll.u32 %s159, 4
      %s706 = int_to_ptr.hbm [resolvable:$true] %s705
      %s707 = sshll.u32 [#allocation62], 4
      %s708 = int_to_ptr.vmem [resolvable:$true] %s707
      %710 = dma.hbm_to_vmem [thread:$0]  %s706, 16, %s708, [#allocation61]
    $region321: #{ecct_forward.1} parent=1 // pred_fallthru
      _
    // Predicated region
    $region322: #{ecct_forward.1} parent=1 // pred_check
      _
    $region323: #{ecct_forward.1} parent=1 // pred_check_branch
      %712 = sbr.rel (0) target = $region325
    $region324: #{ecct_forward.1} parent=1 // pred_region
      %714 = vsyncadd [#allocation64], 0
      %s716 = sshll.u32 %s161, 4
      %s717 = int_to_ptr.hbm [resolvable:$true] %s716
      %s718 = sshll.u32 [#allocation63], 4
      %s719 = int_to_ptr.vmem [resolvable:$true] %s718
      %721 = dma.hbm_to_vmem [thread:$0]  %s717, 16, %s719, [#allocation64]
    $region325: #{ecct_forward.1} parent=1 // pred_fallthru
      _
    // Predicated region
    $region326: #{ecct_forward.1} parent=1 // pred_check
      _
    $region327: #{ecct_forward.1} parent=1 // pred_check_branch
      %723 = sbr.rel (0) target = $region329
    $region328: #{ecct_forward.1} parent=1 // pred_region
      _
    $region329: #{ecct_forward.1} parent=1 // pred_fallthru
      _
    // Predicated region
    $region330: #{ecct_forward.1} parent=1 // pred_check
      _
    $region331: #{ecct_forward.1} parent=1 // pred_check_branch
      %725 = sbr.rel (0) target = $region333
    $region332: #{ecct_forward.1} parent=1 // pred_region
      _
    $region333: #{ecct_forward.1} parent=1 // pred_fallthru
      _
    // Predicated region
    $region334: #{ecct_forward.1} parent=1 // pred_check
      _
    $region335: #{ecct_forward.1} parent=1 // pred_check_branch
      %727 = sbr.rel (0) target = $region337
    $region336: #{ecct_forward.1} parent=1 // pred_region
      _
    $region337: #{ecct_forward.1} parent=1 // pred_fallthru
      _
    // Predicated region
    $region338: #{ecct_forward.1} parent=1 // pred_check
      _
    $region339: #{ecct_forward.1} parent=1 // pred_check_branch
      %729 = sbr.rel (0) target = $region341
    $region340: #{ecct_forward.1} parent=1 // pred_region
      %731 = vsyncadd [#allocation64], 0
      %s733 = sshll.u32 %s169, 4
      %s734 = int_to_ptr.hbm [resolvable:$true] %s733
      %s735 = sshll.u32 [#allocation65], 4
      %s736 = int_to_ptr.vmem [resolvable:$true] %s735
      %738 = dma.hbm_to_vmem [thread:$0]  %s734, 16, %s736, [#allocation64]
    $region341: #{ecct_forward.1} parent=1 // pred_fallthru
      _
    // Predicated region
    $region342: #{ecct_forward.1} parent=1 // pred_check
      _
    $region343: #{ecct_forward.1} parent=1 // pred_check_branch
      %740 = sbr.rel (0) target = $region345
    $region344: #{ecct_forward.1} parent=1 // pred_region
      %742 = dma.done [#allocation4], 16
    $region345: #{ecct_forward.1} parent=1 // pred_fallthru
      _
    // Predicated region
    $region346: #{ecct_forward.1} parent=1 // pred_check
      _
    $region347: #{ecct_forward.1} parent=1 // pred_check_branch
      %744 = sbr.rel (0) target = $region349
    $region348: #{ecct_forward.1} parent=1 // pred_region
      %746 = dma.done [#allocation7], 16
    $region349: #{ecct_forward.1} parent=1 // pred_fallthru
      _
    // Predicated region
    $region350: #{ecct_forward.1} parent=1 // pred_check
      _
    $region351: #{ecct_forward.1} parent=1 // pred_check_branch
      %748 = sbr.rel (0) target = $region353
    $region352: #{ecct_forward.1} parent=1 // pred_region
      %750 = dma.done [#allocation7], 16
    $region353: #{ecct_forward.1} parent=1 // pred_fallthru
      _
    // Predicated region
    $region354: #{ecct_forward.1} parent=1 // pred_check
      _
    $region355: #{ecct_forward.1} parent=1 // pred_check_branch
      %752 = sbr.rel (0) target = $region357
    $region356: #{ecct_forward.1} parent=1 // pred_region
      %754 = dma.done [#allocation10], 16
    $region357: #{ecct_forward.1} parent=1 // pred_fallthru
      _
    // Predicated region
    $region358: #{ecct_forward.1} parent=1 // pred_check
      _
    $region359: #{ecct_forward.1} parent=1 // pred_check_branch
      %756 = sbr.rel (0) target = $region361
    $region360: #{ecct_forward.1} parent=1 // pred_region
      %758 = dma.done [#allocation10], 16
    $region361: #{ecct_forward.1} parent=1 // pred_fallthru
      _
    // Predicated region
    $region362: #{ecct_forward.1} parent=1 // pred_check
      _
    $region363: #{ecct_forward.1} parent=1 // pred_check_branch
      %760 = sbr.rel (0) target = $region365
    $region364: #{ecct_forward.1} parent=1 // pred_region
      %762 = dma.done [#allocation13], 16
    $region365: #{ecct_forward.1} parent=1 // pred_fallthru
      _
    // Predicated region
    $region366: #{ecct_forward.1} parent=1 // pred_check
      _
    $region367: #{ecct_forward.1} parent=1 // pred_check_branch
      %764 = sbr.rel (0) target = $region369
    $region368: #{ecct_forward.1} parent=1 // pred_region
      %766 = dma.done [#allocation13], 16
    $region369: #{ecct_forward.1} parent=1 // pred_fallthru
      _
    // Predicated region
    $region370: #{ecct_forward.1} parent=1 // pred_check
      _
    $region371: #{ecct_forward.1} parent=1 // pred_check_branch
      %768 = sbr.rel (0) target = $region373
    $region372: #{ecct_forward.1} parent=1 // pred_region
      %770 = dma.done [#allocation16], 16
    $region373: #{ecct_forward.1} parent=1 // pred_fallthru
      _
    // Predicated region
    $region374: #{ecct_forward.1} parent=1 // pred_check
      _
    $region375: #{ecct_forward.1} parent=1 // pred_check_branch
      %772 = sbr.rel (0) target = $region377
    $region376: #{ecct_forward.1} parent=1 // pred_region
      %774 = dma.done [#allocation16], 16
    $region377: #{ecct_forward.1} parent=1 // pred_fallthru
      _
    // Predicated region
    $region378: #{ecct_forward.1} parent=1 // pred_check
      _
    $region379: #{ecct_forward.1} parent=1 // pred_check_branch
      %776 = sbr.rel (0) target = $region381
    $region380: #{ecct_forward.1} parent=1 // pred_region
      %778 = dma.done [#allocation19], 16
    $region381: #{ecct_forward.1} parent=1 // pred_fallthru
      _
    // Predicated region
    $region382: #{ecct_forward.1} parent=1 // pred_check
      _
    $region383: #{ecct_forward.1} parent=1 // pred_check_branch
      %780 = sbr.rel (0) target = $region385
    $region384: #{ecct_forward.1} parent=1 // pred_region
      %782 = dma.done [#allocation19], 16
    $region385: #{ecct_forward.1} parent=1 // pred_fallthru
      _
    // Predicated region
    $region386: #{ecct_forward.1} parent=1 // pred_check
      _
    $region387: #{ecct_forward.1} parent=1 // pred_check_branch
      %784 = sbr.rel (0) target = $region389
    $region388: #{ecct_forward.1} parent=1 // pred_region
      %786 = dma.done [#allocation22], 16
    $region389: #{ecct_forward.1} parent=1 // pred_fallthru
      _
    // Predicated region
    $region390: #{ecct_forward.1} parent=1 // pred_check
      _
    $region391: #{ecct_forward.1} parent=1 // pred_check_branch
      %788 = sbr.rel (0) target = $region393
    $region392: #{ecct_forward.1} parent=1 // pred_region
      %790 = dma.done [#allocation22], 16
    $region393: #{ecct_forward.1} parent=1 // pred_fallthru
      _
    // Predicated region
    $region394: #{ecct_forward.1} parent=1 // pred_check
      _
    $region395: #{ecct_forward.1} parent=1 // pred_check_branch
      %792 = sbr.rel (0) target = $region397
    $region396: #{ecct_forward.1} parent=1 // pred_region
      %794 = dma.done [#allocation25], 16
    $region397: #{ecct_forward.1} parent=1 // pred_fallthru
      _
    // Predicated region
    $region398: #{ecct_forward.1} parent=1 // pred_check
      _
    $region399: #{ecct_forward.1} parent=1 // pred_check_branch
      %796 = sbr.rel (0) target = $region401
    $region400: #{ecct_forward.1} parent=1 // pred_region
      %798 = dma.done [#allocation25], 16
    $region401: #{ecct_forward.1} parent=1 // pred_fallthru
      _
    // Predicated region
    $region402: #{ecct_forward.1} parent=1 // pred_check
      _
    $region403: #{ecct_forward.1} parent=1 // pred_check_branch
      %800 = sbr.rel (0) target = $region405
    $region404: #{ecct_forward.1} parent=1 // pred_region
      %802 = dma.done [#allocation28], 16
    $region405: #{ecct_forward.1} parent=1 // pred_fallthru
      _
    // Predicated region
    $region406: #{ecct_forward.1} parent=1 // pred_check
      _
    $region407: #{ecct_forward.1} parent=1 // pred_check_branch
      %804 = sbr.rel (0) target = $region409
    $region408: #{ecct_forward.1} parent=1 // pred_region
      %806 = dma.done [#allocation28], 16
    $region409: #{ecct_forward.1} parent=1 // pred_fallthru
      _
    // Predicated region
    $region410: #{ecct_forward.1} parent=1 // pred_check
      _
    $region411: #{ecct_forward.1} parent=1 // pred_check_branch
      %808 = sbr.rel (0) target = $region413
    $region412: #{ecct_forward.1} parent=1 // pred_region
      %810 = dma.done [#allocation31], 16
    $region413: #{ecct_forward.1} parent=1 // pred_fallthru
      _
    // Predicated region
    $region414: #{ecct_forward.1} parent=1 // pred_check
      _
    $region415: #{ecct_forward.1} parent=1 // pred_check_branch
      %812 = sbr.rel (0) target = $region417
    $region416: #{ecct_forward.1} parent=1 // pred_region
      %814 = dma.done [#allocation31], 16
    $region417: #{ecct_forward.1} parent=1 // pred_fallthru
      _
    // Predicated region
    $region418: #{ecct_forward.1} parent=1 // pred_check
      _
    $region419: #{ecct_forward.1} parent=1 // pred_check_branch
      %816 = sbr.rel (0) target = $region421
    $region420: #{ecct_forward.1} parent=1 // pred_region
      %818 = dma.done [#allocation34], 16
    $region421: #{ecct_forward.1} parent=1 // pred_fallthru
      _
    // Predicated region
    $region422: #{ecct_forward.1} parent=1 // pred_check
      _
    $region423: #{ecct_forward.1} parent=1 // pred_check_branch
      %820 = sbr.rel (0) target = $region425
    $region424: #{ecct_forward.1} parent=1 // pred_region
      %822 = dma.done [#allocation34], 16
    $region425: #{ecct_forward.1} parent=1 // pred_fallthru
      _
    // Predicated region
    $region426: #{ecct_forward.1} parent=1 // pred_check
      _
    $region427: #{ecct_forward.1} parent=1 // pred_check_branch
      %824 = sbr.rel (0) target = $region429
    $region428: #{ecct_forward.1} parent=1 // pred_region
      %826 = dma.done [#allocation37], 16
    $region429: #{ecct_forward.1} parent=1 // pred_fallthru
      _
    // Predicated region
    $region430: #{ecct_forward.1} parent=1 // pred_check
      _
    $region431: #{ecct_forward.1} parent=1 // pred_check_branch
      %828 = sbr.rel (0) target = $region433
    $region432: #{ecct_forward.1} parent=1 // pred_region
      %830 = dma.done [#allocation37], 16
    $region433: #{ecct_forward.1} parent=1 // pred_fallthru
      _
    // Predicated region
    $region434: #{ecct_forward.1} parent=1 // pred_check
      _
    $region435: #{ecct_forward.1} parent=1 // pred_check_branch
      %832 = sbr.rel (0) target = $region437
    $region436: #{ecct_forward.1} parent=1 // pred_region
      %834 = dma.done [#allocation40], 16
    $region437: #{ecct_forward.1} parent=1 // pred_fallthru
      _
    // Predicated region
    $region438: #{ecct_forward.1} parent=1 // pred_check
      _
    $region439: #{ecct_forward.1} parent=1 // pred_check_branch
      %836 = sbr.rel (0) target = $region441
    $region440: #{ecct_forward.1} parent=1 // pred_region
      %838 = dma.done [#allocation40], 16
    $region441: #{ecct_forward.1} parent=1 // pred_fallthru
      _
    // Predicated region
    $region442: #{ecct_forward.1} parent=1 // pred_check
      _
    $region443: #{ecct_forward.1} parent=1 // pred_check_branch
      %840 = sbr.rel (0) target = $region445
    $region444: #{ecct_forward.1} parent=1 // pred_region
      %842 = dma.done [#allocation43], 16
    $region445: #{ecct_forward.1} parent=1 // pred_fallthru
      _
    // Predicated region
    $region446: #{ecct_forward.1} parent=1 // pred_check
      _
    $region447: #{ecct_forward.1} parent=1 // pred_check_branch
      %844 = sbr.rel (0) target = $region449
    $region448: #{ecct_forward.1} parent=1 // pred_region
      %846 = dma.done [#allocation43], 16
    $region449: #{ecct_forward.1} parent=1 // pred_fallthru
      _
    // Predicated region
    $region450: #{ecct_forward.1} parent=1 // pred_check
      _
    $region451: #{ecct_forward.1} parent=1 // pred_check_branch
      %848 = sbr.rel (0) target = $region453
    $region452: #{ecct_forward.1} parent=1 // pred_region
      %850 = dma.done [#allocation46], 16
    $region453: #{ecct_forward.1} parent=1 // pred_fallthru
      _
    // Predicated region
    $region454: #{ecct_forward.1} parent=1 // pred_check
      _
    $region455: #{ecct_forward.1} parent=1 // pred_check_branch
      %852 = sbr.rel (0) target = $region457
    $region456: #{ecct_forward.1} parent=1 // pred_region
      %854 = dma.done [#allocation46], 16
    $region457: #{ecct_forward.1} parent=1 // pred_fallthru
      _
    // Predicated region
    $region458: #{ecct_forward.1} parent=1 // pred_check
      _
    $region459: #{ecct_forward.1} parent=1 // pred_check_branch
      %856 = sbr.rel (0) target = $region461
    $region460: #{ecct_forward.1} parent=1 // pred_region
      %858 = dma.done [#allocation49], 16
    $region461: #{ecct_forward.1} parent=1 // pred_fallthru
      _
    // Predicated region
    $region462: #{ecct_forward.1} parent=1 // pred_check
      _
    $region463: #{ecct_forward.1} parent=1 // pred_check_branch
      %860 = sbr.rel (0) target = $region465
    $region464: #{ecct_forward.1} parent=1 // pred_region
      %862 = dma.done [#allocation49], 16
    $region465: #{ecct_forward.1} parent=1 // pred_fallthru
      _
    // Predicated region
    $region466: #{ecct_forward.1} parent=1 // pred_check
      _
    $region467: #{ecct_forward.1} parent=1 // pred_check_branch
      %864 = sbr.rel (0) target = $region469
    $region468: #{ecct_forward.1} parent=1 // pred_region
      %866 = dma.done [#allocation52], 16
    $region469: #{ecct_forward.1} parent=1 // pred_fallthru
      _
    // Predicated region
    $region470: #{ecct_forward.1} parent=1 // pred_check
      _
    $region471: #{ecct_forward.1} parent=1 // pred_check_branch
      %868 = sbr.rel (0) target = $region473
    $region472: #{ecct_forward.1} parent=1 // pred_region
      %870 = dma.done [#allocation52], 16
    $region473: #{ecct_forward.1} parent=1 // pred_fallthru
      _
    // Predicated region
    $region474: #{ecct_forward.1} parent=1 // pred_check
      _
    $region475: #{ecct_forward.1} parent=1 // pred_check_branch
      %872 = sbr.rel (0) target = $region477
    $region476: #{ecct_forward.1} parent=1 // pred_region
      %874 = dma.done [#allocation55], 16
    $region477: #{ecct_forward.1} parent=1 // pred_fallthru
      _
    // Predicated region
    $region478: #{ecct_forward.1} parent=1 // pred_check
      _
    $region479: #{ecct_forward.1} parent=1 // pred_check_branch
      %876 = sbr.rel (0) target = $region481
    $region480: #{ecct_forward.1} parent=1 // pred_region
      %878 = dma.done [#allocation55], 16
    $region481: #{ecct_forward.1} parent=1 // pred_fallthru
      _
    // Predicated region
    $region482: #{ecct_forward.1} parent=1 // pred_check
      _
    $region483: #{ecct_forward.1} parent=1 // pred_check_branch
      %880 = sbr.rel (0) target = $region485
    $region484: #{ecct_forward.1} parent=1 // pred_region
      %882 = dma.done [#allocation58], 16
    $region485: #{ecct_forward.1} parent=1 // pred_fallthru
      _
    // Predicated region
    $region486: #{ecct_forward.1} parent=1 // pred_check
      _
    $region487: #{ecct_forward.1} parent=1 // pred_check_branch
      %884 = sbr.rel (0) target = $region489
    $region488: #{ecct_forward.1} parent=1 // pred_region
      %886 = dma.done [#allocation58], 16
    $region489: #{ecct_forward.1} parent=1 // pred_fallthru
      _
    // Predicated region
    $region490: #{ecct_forward.1} parent=1 // pred_check
      _
    $region491: #{ecct_forward.1} parent=1 // pred_check_branch
      %888 = sbr.rel (0) target = $region493
    $region492: #{ecct_forward.1} parent=1 // pred_region
      %890 = dma.done [#allocation61], 16
    $region493: #{ecct_forward.1} parent=1 // pred_fallthru
      _
    // Predicated region
    $region494: #{ecct_forward.1} parent=1 // pred_check
      _
    $region495: #{ecct_forward.1} parent=1 // pred_check_branch
      %892 = sbr.rel (0) target = $region497
    $region496: #{ecct_forward.1} parent=1 // pred_region
      %894 = dma.done [#allocation61], 16
    $region497: #{ecct_forward.1} parent=1 // pred_fallthru
      _
    // Predicated region
    $region498: #{ecct_forward.1} parent=1 // pred_check
      _
    $region499: #{ecct_forward.1} parent=1 // pred_check_branch
      %896 = sbr.rel (0) target = $region501
    $region500: #{ecct_forward.1} parent=1 // pred_region
      %898 = dma.done [#allocation64], 16
    $region501: #{ecct_forward.1} parent=1 // pred_fallthru
      _
    // Predicated region
    $region502: #{ecct_forward.1} parent=1 // pred_check
      _
    $region503: #{ecct_forward.1} parent=1 // pred_check_branch
      %900 = sbr.rel (0) target = $region505
    $region504: #{ecct_forward.1} parent=1 // pred_region
      %902 = dma.done [#allocation64], 16
    $region505: #{ecct_forward.1} parent=1 // pred_fallthru
      _
    %v903 = vld [vmem:[%s3] sm:$0xff]
    %v904 = vld [vmem:[%s3 + $0x8] sm:$0xff]
    %v905 = vld [vmem:[%s5] sm:$0xff]
    %v906 = vld [vmem:[%s5 + $0x8] sm:$0xff]
    %v907 = vld [vmem:[%s1] sm:$0xff]
    %v908 = vld [vmem:[%s1 + $0x8] sm:$0xff]
    %v909 = vld [vmem:[%s1 + $0x10] sm:$0xff]
    %v910 = vld [vmem:[%s1 + $0x18] sm:$0xff]
    %912 = vset.pattern.permute.xlu0 0
    %913 = vperm.xlu0 %912, %v907
    %v914 = vpop.permute.xlu0 %913
    %917 = vset.pattern.permute.xlu0 0
    %918 = vperm.xlu0 %917, %v908
    %v919 = vpop.permute.xlu0 %918
    %922 = vset.pattern.permute.xlu0 0
    %923 = vperm.xlu0 %922, %v909
    %v924 = vpop.permute.xlu0 %923
    %927 = vset.pattern.permute.xlu0 0
    %928 = vperm.xlu0 %927, %v910
    %v929 = vpop.permute.xlu0 %928
    %v931 = vmul.f32 %v905, %v914
    %v932 = vmul.f32 %v906, %v919
    %v933 = vmul.f32 %v905, %v924
    %v934 = vmul.f32 %v906, %v929
    %v935 = vld [vmem:[%s7] sm:$0xff]
    %v936 = vld [vmem:[%s7 + $0x8] sm:$0xff]
    %v937 = vld [vmem:[%s7 + $0x10] sm:$0xff]
    %v938 = vld [vmem:[%s7 + $0x18] sm:$0xff]
    %v939 = vld [vmem:[%s9] sm:$0x1]
    %v941 = vperm.slane %v939, 0
    %vm943 = vcmask 261120
    %v945 = vsel %vm943, %v931, 0
    %v948 = vsel %vm943, %v932, 0
    %v951 = vsel %vm943, %v933, 0
    %v954 = vsel %vm943, %v934, 0
    %956 = vmatpush.msra.mxu0 0.0
    %957 = vmatpush.msra.mxu0 0.0
    %958 = vmatpush.msra.mxu0 0.0
    %959 = vmatpush.msra.mxu0 0.0
    %960 = vmatpush.msra.mxu0 0.0
    %961 = vmatpush.msra.mxu0 0.0
    %962 = vmatpush.msra.mxu0 0.0
    %963 = vmatpush.msra.mxu0 0.0
    %964 = vmatpush.msra.mxu0 0.0
    %965 = vmatpush.msra.mxu0 0.0
    %966 = vmatpush.msra.mxu0 0.0
    %967 = vmatpush.msra.mxu0 0.0
    %968 = vmatpush.msra.mxu0 %v938
    %969 = vmatpush.msra.mxu0 %v937
    %970 = vmatpush.msra.mxu0 %v936
    %971 = vmatpush.msra.mxu0 %v935
    %972 = vmatmul.f32.gmra.mxu0 %v945
    %v973 = vpop.f32.mrf.mxu0
    %v974 = vadd.f32 %v941, %v973
    %975 = vmatmul.f32.gmra.mxu0 %v948
    %v976 = vpop.f32.mrf.mxu0
    %v977 = vadd.f32 %v941, %v976
    %978 = vmatmul.f32.gmra.mxu0 %v951
    %v979 = vpop.f32.mrf.mxu0
    %v980 = vadd.f32 %v941, %v979
    %981 = vmatmul.f32.gmra.mxu0 %v954
    %v982 = vpop.f32.mrf.mxu0
    %v983 = vadd.f32 %v941, %v982
    %984 = vdwg.mxu0
    %v985 = vld [vmem:[#allocation8] sm:$0x1]
    %v986 = vld [vmem:[#allocation9] sm:$0x1]
    %vm987 = vcmask 130048
    %v988 = vsel %vm987, %v974, 0.0
    %989 = vadd.xlane.f32.xlu0 %v988
    %v990 = vpop.xlane.xlu0 %989
    %v991 = vsel %vm987, %v977, 0.0
    %992 = vadd.xlane.f32.xlu0 %v991
    %v993 = vpop.xlane.xlu0 %992
    %v994 = vsel %vm987, %v980, 0.0
    %995 = vadd.xlane.f32.xlu0 %v994
    %v996 = vpop.xlane.xlu0 %995
    %v997 = vsel %vm987, %v983, 0.0
    %998 = vadd.xlane.f32.xlu0 %v997
    %v999 = vpop.xlane.xlu0 %998
    %v1000 = vrcp.pop 16.0
    %v1001 = vmul.f32 16.0, %v1000
    %v1002 = vsub.f32 1.0, %v1001
    %v1003 = vmul.f32 %v1000, %v1002
    %v1004 = vadd.f32 %v1000, %v1003
    %vm1005 = vweird.f32 %v1000
    %v1006 = vsel %vm1005, %v1000, %v1004
    %v1007 = vmul.f32 %v990, %v1006
    %v1008 = vmul.f32 %v993, %v1006
    %v1009 = vmul.f32 %v996, %v1006
    %v1010 = vmul.f32 %v999, %v1006
    %v1011 = vsub.f32 %v974, %v1007
    %v1012 = vsub.f32 %v977, %v1008
    %v1013 = vsub.f32 %v980, %v1009
    %v1014 = vsub.f32 %v983, %v1010
    %v1015 = vmul.f32 %v1011, %v1011
    %v1016 = vmul.f32 %v1012, %v1012
    %v1017 = vmul.f32 %v1013, %v1013
    %v1018 = vmul.f32 %v1014, %v1014
    %v1019 = vsel %vm987, %v1015, 0.0
    %1020 = vadd.xlane.f32.xlu0 %v1019
    %v1021 = vpop.xlane.xlu0 %1020
    %v1022 = vsel %vm987, %v1016, 0.0
    %1023 = vadd.xlane.f32.xlu0 %v1022
    %v1024 = vpop.xlane.xlu0 %1023
    %v1025 = vsel %vm987, %v1017, 0.0
    %1026 = vadd.xlane.f32.xlu0 %v1025
    %v1027 = vpop.xlane.xlu0 %1026
    %v1028 = vsel %vm987, %v1018, 0.0
    %1029 = vadd.xlane.f32.xlu0 %v1028
    %v1030 = vpop.xlane.xlu0 %1029
    %v1031 = vmul.f32 %v1021, %v1006
    %v1032 = vmul.f32 %v1024, %v1006
    %v1033 = vmul.f32 %v1027, %v1006
    %v1034 = vmul.f32 %v1030, %v1006
    %v1035 = vadd.f32 %v1031, 1e-05
    %v1036 = vadd.f32 %v1032, 1e-05
    %v1037 = vadd.f32 %v1033, 1e-05
    %v1038 = vadd.f32 %v1034, 1e-05
    %v1039 = vrsqrt.pop %v1035
    %v1040 = vmul.f32 %v1039, %v1035
    %v1041 = vmul.f32 %v1040, %v1039
    %v1042 = vmul.f32 0.5, %v1041
    %v1043 = vsub.f32 1.5, %v1042
    %v1044 = vmul.f32 %v1039, %v1043
    %vm1045 = vweird.f32 %v1035
    %vm1046 = vweird.f32 %v1039
    %vm1047 = vmor %vm1045, %vm1046
    %v1048 = vsel %vm1047, %v1039, %v1044
    %v1049 = vrsqrt.pop %v1036
    %v1050 = vmul.f32 %v1049, %v1036
    %v1051 = vmul.f32 %v1050, %v1049
    %v1052 = vmul.f32 0.5, %v1051
    %v1053 = vsub.f32 1.5, %v1052
    %v1054 = vmul.f32 %v1049, %v1053
    %vm1055 = vweird.f32 %v1036
    %vm1056 = vweird.f32 %v1049
    %vm1057 = vmor %vm1055, %vm1056
    %v1058 = vsel %vm1057, %v1049, %v1054
    %v1059 = vrsqrt.pop %v1037
    %v1060 = vmul.f32 %v1059, %v1037
    %v1061 = vmul.f32 %v1060, %v1059
    %v1062 = vmul.f32 0.5, %v1061
    %v1063 = vsub.f32 1.5, %v1062
    %v1064 = vmul.f32 %v1059, %v1063
    %vm1065 = vweird.f32 %v1037
    %vm1066 = vweird.f32 %v1059
    %vm1067 = vmor %vm1065, %vm1066
    %v1068 = vsel %vm1067, %v1059, %v1064
    %v1069 = vrsqrt.pop %v1038
    %v1070 = vmul.f32 %v1069, %v1038
    %v1071 = vmul.f32 %v1070, %v1069
    %v1072 = vmul.f32 0.5, %v1071
    %v1073 = vsub.f32 1.5, %v1072
    %v1074 = vmul.f32 %v1069, %v1073
    %vm1075 = vweird.f32 %v1038
    %vm1076 = vweird.f32 %v1069
    %vm1077 = vmor %vm1075, %vm1076
    %v1078 = vsel %vm1077, %v1069, %v1074
    %v1079 = vmul.f32 %v1011, %v1048
    %v1080 = vmul.f32 %v1012, %v1058
    %v1081 = vmul.f32 %v1013, %v1068
    %v1082 = vmul.f32 %v1014, %v1078
    %v1084 = vperm.slane %v985, 0
    %v1086 = vmul.f32 %v1079, %v1084
    %v1087 = vmul.f32 %v1080, %v1084
    %v1088 = vmul.f32 %v1081, %v1084
    %v1089 = vmul.f32 %v1082, %v1084
    %v1091 = vperm.slane %v986, 0
    %v1093 = vadd.f32 %v1086, %v1091
    %v1094 = vadd.f32 %v1087, %v1091
    %v1095 = vadd.f32 %v1088, %v1091
    %v1096 = vadd.f32 %v1089, %v1091
    %v1097 = vld [vmem:[%s55] sm:$0xff]
    %v1098 = vld [vmem:[%s55 + $0x8] sm:$0xff]
    %v1099 = vld [vmem:[#allocation11] sm:$0x1]
    %v1101 = vperm.slane %v1099, 0
    %v1104 = vsel %vm987, %v1093, 0
    %v1107 = vsel %vm987, %v1094, 0
    %v1110 = vsel %vm987, %v1095, 0
    %v1113 = vsel %vm987, %v1096, 0
    %1115 = vmatpush.msra.mxu0 0.0
    %1116 = vmatpush.msra.mxu0 0.0
    %1117 = vmatpush.msra.mxu0 0.0
    %1118 = vmatpush.msra.mxu0 0.0
    %1119 = vmatpush.msra.mxu0 0.0
    %1120 = vmatpush.msra.mxu0 0.0
    %1121 = vmatpush.msra.mxu0 0.0
    %1122 = vmatpush.msra.mxu0 0.0
    %1123 = vmatpush.msra.mxu0 0.0
    %1124 = vmatpush.msra.mxu0 0.0
    %1125 = vmatpush.msra.mxu0 0.0
    %1126 = vmatpush.msra.mxu0 0.0
    %1127 = vmatpush.msra.mxu0 0.0
    %1128 = vmatpush.msra.mxu0 0.0
    %1129 = vmatpush.msra.mxu0 %v1098
    %1130 = vmatpush.msra.mxu0 %v1097
    %1131 = vmatmul.f32.gmra.mxu0 %v1104
    %v1132 = vpop.f32.mrf.mxu0
    %v1133 = vadd.f32 %v1101, %v1132
    %1134 = vmatmul.f32.gmra.mxu0 %v1107
    %v1135 = vpop.f32.mrf.mxu0
    %v1136 = vadd.f32 %v1101, %v1135
    %1137 = vmatmul.f32.gmra.mxu0 %v1110
    %v1138 = vpop.f32.mrf.mxu0
    %v1139 = vadd.f32 %v1101, %v1138
    %1140 = vmatmul.f32.gmra.mxu0 %v1113
    %v1141 = vpop.f32.mrf.mxu0
    %v1142 = vadd.f32 %v1101, %v1141
    %1143 = vdwg.mxu0
    %v1144 = vmul.f32 %v1133, 0.25
    %v1145 = vmul.f32 %v1136, 0.25
    %v1146 = vmul.f32 %v1139, 0.25
    %v1147 = vmul.f32 %v1142, 0.25
    %1150 = vrot.lane.b32.xlu0 %v1133, 112
    %v1151 = vpop.permute.xlu0 %1150
    %1152 = vrot.lane.b32.xlu0 %v1136, 112
    %v1153 = vpop.permute.xlu0 %1152
    %v1155 = vsel %vm987, %v1144, 0
    %v1158 = vsel %vm987, %v1145, 0
    %v1160 = vsel %vm987, %v1151, 0
    %v1162 = vsel %vm987, %v1153, 0
    %1164 = vmatpush.xpose.msra.mxu0 0.0
    %1165 = vmatpush.xpose.msra.mxu0 0.0
    %1166 = vmatpush.xpose.msra.mxu0 0.0
    %1167 = vmatpush.xpose.msra.mxu0 0.0
    %1168 = vmatpush.xpose.msra.mxu0 0.0
    %1169 = vmatpush.xpose.msra.mxu0 0.0
    %1170 = vmatpush.xpose.msra.mxu0 0.0
    %1171 = vmatpush.xpose.msra.mxu0 0.0
    %1172 = vmatpush.xpose.msra.mxu0 0.0
    %1173 = vmatpush.xpose.msra.mxu0 0.0
    %1174 = vmatpush.xpose.msra.mxu0 0.0
    %1175 = vmatpush.xpose.msra.mxu0 0.0
    %1176 = vmatpush.xpose.msra.mxu0 0.0
    %1177 = vmatpush.xpose.msra.mxu0 0.0
    %1178 = vmatpush.xpose.msra.mxu0 %v1162
    %1179 = vmatpush.xpose.msra.mxu0 %v1160
    %1180 = vmatmul.f32.gmra.mxu0 %v1155
    %v1181 = vpop.f32.mrf.mxu0
    %v1182 = vadd.f32 %v903, %v1181
    %1183 = vmatmul.f32.gmra.mxu0 %v1158
    %v1184 = vpop.f32.mrf.mxu0
    %v1185 = vadd.f32 %v904, %v1184
    %1186 = vdwg.mxu0
    %v1187 = vsel %vm987, %v1182, -inf
    %1188 = vmax.xlane.f32.xlu0 %v1187
    %v1189 = vpop.xlane.xlu0 %1188
    %v1190 = vsel %vm987, %v1185, -inf
    %1191 = vmax.xlane.f32.xlu0 %v1190
    %v1192 = vpop.xlane.xlu0 %1191
    %v1193 = vsub.f32 %v1182, %v1189
    %v1194 = vsub.f32 %v1185, %v1192
    %v1195 = vmul.f32 %v1193, 1.442695
    %v1196 = vpow.pop %v1195
    %v1197 = vmul.f32 %v1194, 1.442695
    %v1198 = vpow.pop %v1197
    %v1199 = vsel %vm987, %v1196, 0.0
    %1200 = vadd.xlane.f32.xlu0 %v1199
    %v1201 = vpop.xlane.xlu0 %1200
    %v1202 = vsel %vm987, %v1198, 0.0
    %1203 = vadd.xlane.f32.xlu0 %v1202
    %v1204 = vpop.xlane.xlu0 %1203
    %v1205 = vrcp.pop %v1201
    %v1206 = vrcp.pop %v1204
    %v1207 = vmul.f32 %v1196, %v1205
    %v1208 = vmul.f32 %v1198, %v1206
    %1209 = vrot.lane.b32.xlu0 %v1133, 96
    %v1210 = vpop.permute.xlu0 %1209
    %1211 = vrot.lane.b32.xlu0 %v1136, 96
    %v1212 = vpop.permute.xlu0 %1211
    %v1216 = vsel %vm987, %v1207, 0
    %v1219 = vsel %vm987, %v1208, 0
    %1221 = vmatpush.msra.mxu0 0.0
    %1222 = vmatpush.msra.mxu0 0.0
    %1223 = vmatpush.msra.mxu0 0.0
    %1224 = vmatpush.msra.mxu0 0.0
    %1225 = vmatpush.msra.mxu0 0.0
    %1226 = vmatpush.msra.mxu0 0.0
    %1227 = vmatpush.msra.mxu0 0.0
    %1228 = vmatpush.msra.mxu0 0.0
    %1229 = vmatpush.msra.mxu0 0.0
    %1230 = vmatpush.msra.mxu0 0.0
    %1231 = vmatpush.msra.mxu0 0.0
    %1232 = vmatpush.msra.mxu0 0.0
    %1233 = vmatpush.msra.mxu0 0.0
    %1234 = vmatpush.msra.mxu0 0.0
    %1235 = vmatpush.msra.mxu0 %v1212
    %1236 = vmatpush.msra.mxu0 %v1210
    %1237 = vmatmul.f32.gmra.mxu0 %v1216
    %v1238 = vpop.f32.mrf.mxu0
    %v1239 = vadd.f32 0.0, %v1238
    %1240 = vmatmul.f32.gmra.mxu0 %v1219
    %v1241 = vpop.f32.mrf.mxu0
    %v1242 = vadd.f32 0.0, %v1241
    %1243 = vdwg.mxu0
    %1246 = vrot.lane.b32.xlu0 %v1139, 112
    %v1247 = vpop.permute.xlu0 %1246
    %1248 = vrot.lane.b32.xlu0 %v1142, 112
    %v1249 = vpop.permute.xlu0 %1248
    %v1251 = vsel %vm987, %v1146, 0
    %v1254 = vsel %vm987, %v1147, 0
    %v1256 = vsel %vm987, %v1247, 0
    %v1258 = vsel %vm987, %v1249, 0
    %1260 = vmatpush.xpose.msra.mxu0 0.0
    %1261 = vmatpush.xpose.msra.mxu0 0.0
    %1262 = vmatpush.xpose.msra.mxu0 0.0
    %1263 = vmatpush.xpose.msra.mxu0 0.0
    %1264 = vmatpush.xpose.msra.mxu0 0.0
    %1265 = vmatpush.xpose.msra.mxu0 0.0
    %1266 = vmatpush.xpose.msra.mxu0 0.0
    %1267 = vmatpush.xpose.msra.mxu0 0.0
    %1268 = vmatpush.xpose.msra.mxu0 0.0
    %1269 = vmatpush.xpose.msra.mxu0 0.0
    %1270 = vmatpush.xpose.msra.mxu0 0.0
    %1271 = vmatpush.xpose.msra.mxu0 0.0
    %1272 = vmatpush.xpose.msra.mxu0 0.0
    %1273 = vmatpush.xpose.msra.mxu0 0.0
    %1274 = vmatpush.xpose.msra.mxu0 %v1258
    %1275 = vmatpush.xpose.msra.mxu0 %v1256
    %1276 = vmatmul.f32.gmra.mxu0 %v1251
    %v1277 = vpop.f32.mrf.mxu0
    %v1278 = vadd.f32 %v903, %v1277
    %1279 = vmatmul.f32.gmra.mxu0 %v1254
    %v1280 = vpop.f32.mrf.mxu0
    %v1281 = vadd.f32 %v904, %v1280
    %1282 = vdwg.mxu0
    %v1283 = vsel %vm987, %v1278, -inf
    %1284 = vmax.xlane.f32.xlu0 %v1283
    %v1285 = vpop.xlane.xlu0 %1284
    %v1286 = vsel %vm987, %v1281, -inf
    %1287 = vmax.xlane.f32.xlu0 %v1286
    %v1288 = vpop.xlane.xlu0 %1287
    %v1289 = vsub.f32 %v1278, %v1285
    %v1290 = vsub.f32 %v1281, %v1288
    %v1291 = vmul.f32 %v1289, 1.442695
    %v1292 = vpow.pop %v1291
    %v1293 = vmul.f32 %v1290, 1.442695
    %v1294 = vpow.pop %v1293
    %v1295 = vsel %vm987, %v1292, 0.0
    %1296 = vadd.xlane.f32.xlu0 %v1295
    %v1297 = vpop.xlane.xlu0 %1296
    %v1298 = vsel %vm987, %v1294, 0.0
    %1299 = vadd.xlane.f32.xlu0 %v1298
    %v1300 = vpop.xlane.xlu0 %1299
    %v1301 = vrcp.pop %v1297
    %v1302 = vrcp.pop %v1300
    %v1303 = vmul.f32 %v1292, %v1301
    %v1304 = vmul.f32 %v1294, %v1302
    %1305 = vrot.lane.b32.xlu0 %v1139, 96
    %v1306 = vpop.permute.xlu0 %1305
    %1307 = vrot.lane.b32.xlu0 %v1142, 96
    %v1308 = vpop.permute.xlu0 %1307
    %v1312 = vsel %vm987, %v1303, 0
    %v1315 = vsel %vm987, %v1304, 0
    %1317 = vmatpush.msra.mxu0 0.0
    %1318 = vmatpush.msra.mxu0 0.0
    %1319 = vmatpush.msra.mxu0 0.0
    %1320 = vmatpush.msra.mxu0 0.0
    %1321 = vmatpush.msra.mxu0 0.0
    %1322 = vmatpush.msra.mxu0 0.0
    %1323 = vmatpush.msra.mxu0 0.0
    %1324 = vmatpush.msra.mxu0 0.0
    %1325 = vmatpush.msra.mxu0 0.0
    %1326 = vmatpush.msra.mxu0 0.0
    %1327 = vmatpush.msra.mxu0 0.0
    %1328 = vmatpush.msra.mxu0 0.0
    %1329 = vmatpush.msra.mxu0 0.0
    %1330 = vmatpush.msra.mxu0 0.0
    %1331 = vmatpush.msra.mxu0 %v1308
    %1332 = vmatpush.msra.mxu0 %v1306
    %1333 = vmatmul.f32.gmra.mxu0 %v1312
    %v1334 = vpop.f32.mrf.mxu0
    %v1335 = vadd.f32 0.0, %v1334
    %1336 = vmatmul.f32.gmra.mxu0 %v1315
    %v1337 = vpop.f32.mrf.mxu0
    %v1338 = vadd.f32 0.0, %v1337
    %1339 = vdwg.mxu0
    %v1340 = vld [vmem:[%s59] sm:$0xff]
    %v1341 = vld [vmem:[%s59 + $0x8] sm:$0xff]
    %v1342 = vld [vmem:[#allocation12] sm:$0x1]
    %v1344 = vperm.slane %v1342, 0
    %v1347 = vsel %vm987, %v1239, 0
    %v1350 = vsel %vm987, %v1242, 0
    %v1353 = vsel %vm987, %v1335, 0
    %v1356 = vsel %vm987, %v1338, 0
    %1358 = vmatpush.msra.mxu0 0.0
    %1359 = vmatpush.msra.mxu0 0.0
    %1360 = vmatpush.msra.mxu0 0.0
    %1361 = vmatpush.msra.mxu0 0.0
    %1362 = vmatpush.msra.mxu0 0.0
    %1363 = vmatpush.msra.mxu0 0.0
    %1364 = vmatpush.msra.mxu0 0.0
    %1365 = vmatpush.msra.mxu0 0.0
    %1366 = vmatpush.msra.mxu0 0.0
    %1367 = vmatpush.msra.mxu0 0.0
    %1368 = vmatpush.msra.mxu0 0.0
    %1369 = vmatpush.msra.mxu0 0.0
    %1370 = vmatpush.msra.mxu0 0.0
    %1371 = vmatpush.msra.mxu0 0.0
    %1372 = vmatpush.msra.mxu0 %v1341
    %1373 = vmatpush.msra.mxu0 %v1340
    %1374 = vmatmul.f32.gmra.mxu0 %v1347
    %v1375 = vpop.f32.mrf.mxu0
    %v1376 = vadd.f32 %v1344, %v1375
    %1377 = vmatmul.f32.gmra.mxu0 %v1350
    %v1378 = vpop.f32.mrf.mxu0
    %v1379 = vadd.f32 %v1344, %v1378
    %1380 = vmatmul.f32.gmra.mxu0 %v1353
    %v1381 = vpop.f32.mrf.mxu0
    %v1382 = vadd.f32 %v1344, %v1381
    %1383 = vmatmul.f32.gmra.mxu0 %v1356
    %v1384 = vpop.f32.mrf.mxu0
    %v1385 = vadd.f32 %v1344, %v1384
    %1386 = vdwg.mxu0
    %v1387 = vadd.f32 %v974, %v1376
    %v1388 = vadd.f32 %v977, %v1379
    %v1389 = vadd.f32 %v980, %v1382
    %v1390 = vadd.f32 %v983, %v1385
    %v1391 = vld [vmem:[#allocation14] sm:$0x1]
    %v1392 = vld [vmem:[#allocation15] sm:$0x1]
    %v1393 = vsel %vm987, %v1387, 0.0
    %1394 = vadd.xlane.f32.xlu0 %v1393
    %v1395 = vpop.xlane.xlu0 %1394
    %v1396 = vsel %vm987, %v1388, 0.0
    %1397 = vadd.xlane.f32.xlu0 %v1396
    %v1398 = vpop.xlane.xlu0 %1397
    %v1399 = vsel %vm987, %v1389, 0.0
    %1400 = vadd.xlane.f32.xlu0 %v1399
    %v1401 = vpop.xlane.xlu0 %1400
    %v1402 = vsel %vm987, %v1390, 0.0
    %1403 = vadd.xlane.f32.xlu0 %v1402
    %v1404 = vpop.xlane.xlu0 %1403
    %v1405 = vmul.f32 %v1395, %v1006
    %v1406 = vmul.f32 %v1398, %v1006
    %v1407 = vmul.f32 %v1401, %v1006
    %v1408 = vmul.f32 %v1404, %v1006
    %v1409 = vsub.f32 %v1387, %v1405
    %v1410 = vsub.f32 %v1388, %v1406
    %v1411 = vsub.f32 %v1389, %v1407
    %v1412 = vsub.f32 %v1390, %v1408
    %v1413 = vmul.f32 %v1409, %v1409
    %v1414 = vmul.f32 %v1410, %v1410
    %v1415 = vmul.f32 %v1411, %v1411
    %v1416 = vmul.f32 %v1412, %v1412
    %v1417 = vsel %vm987, %v1413, 0.0
    %1418 = vadd.xlane.f32.xlu0 %v1417
    %v1419 = vpop.xlane.xlu0 %1418
    %v1420 = vsel %vm987, %v1414, 0.0
    %1421 = vadd.xlane.f32.xlu0 %v1420
    %v1422 = vpop.xlane.xlu0 %1421
    %v1423 = vsel %vm987, %v1415, 0.0
    %1424 = vadd.xlane.f32.xlu0 %v1423
    %v1425 = vpop.xlane.xlu0 %1424
    %v1426 = vsel %vm987, %v1416, 0.0
    %1427 = vadd.xlane.f32.xlu0 %v1426
    %v1428 = vpop.xlane.xlu0 %1427
    %v1429 = vmul.f32 %v1419, %v1006
    %v1430 = vmul.f32 %v1422, %v1006
    %v1431 = vmul.f32 %v1425, %v1006
    %v1432 = vmul.f32 %v1428, %v1006
    %v1433 = vadd.f32 %v1429, 1e-05
    %v1434 = vadd.f32 %v1430, 1e-05
    %v1435 = vadd.f32 %v1431, 1e-05
    %v1436 = vadd.f32 %v1432, 1e-05
    %v1437 = vrsqrt.pop %v1433
    %v1438 = vmul.f32 %v1437, %v1433
    %v1439 = vmul.f32 %v1438, %v1437
    %v1440 = vmul.f32 0.5, %v1439
    %v1441 = vsub.f32 1.5, %v1440
    %v1442 = vmul.f32 %v1437, %v1441
    %vm1443 = vweird.f32 %v1433
    %vm1444 = vweird.f32 %v1437
    %vm1445 = vmor %vm1443, %vm1444
    %v1446 = vsel %vm1445, %v1437, %v1442
    %v1447 = vrsqrt.pop %v1434
    %v1448 = vmul.f32 %v1447, %v1434
    %v1449 = vmul.f32 %v1448, %v1447
    %v1450 = vmul.f32 0.5, %v1449
    %v1451 = vsub.f32 1.5, %v1450
    %v1452 = vmul.f32 %v1447, %v1451
    %vm1453 = vweird.f32 %v1434
    %vm1454 = vweird.f32 %v1447
    %vm1455 = vmor %vm1453, %vm1454
    %v1456 = vsel %vm1455, %v1447, %v1452
    %v1457 = vrsqrt.pop %v1435
    %v1458 = vmul.f32 %v1457, %v1435
    %v1459 = vmul.f32 %v1458, %v1457
    %v1460 = vmul.f32 0.5, %v1459
    %v1461 = vsub.f32 1.5, %v1460
    %v1462 = vmul.f32 %v1457, %v1461
    %vm1463 = vweird.f32 %v1435
    %vm1464 = vweird.f32 %v1457
    %vm1465 = vmor %vm1463, %vm1464
    %v1466 = vsel %vm1465, %v1457, %v1462
    %v1467 = vrsqrt.pop %v1436
    %v1468 = vmul.f32 %v1467, %v1436
    %v1469 = vmul.f32 %v1468, %v1467
    %v1470 = vmul.f32 0.5, %v1469
    %v1471 = vsub.f32 1.5, %v1470
    %v1472 = vmul.f32 %v1467, %v1471
    %vm1473 = vweird.f32 %v1436
    %vm1474 = vweird.f32 %v1467
    %vm1475 = vmor %vm1473, %vm1474
    %v1476 = vsel %vm1475, %v1467, %v1472
    %v1477 = vmul.f32 %v1409, %v1446
    %v1478 = vmul.f32 %v1410, %v1456
    %v1479 = vmul.f32 %v1411, %v1466
    %v1480 = vmul.f32 %v1412, %v1476
    %v1482 = vperm.slane %v1391, 0
    %v1484 = vmul.f32 %v1477, %v1482
    %v1485 = vmul.f32 %v1478, %v1482
    %v1486 = vmul.f32 %v1479, %v1482
    %v1487 = vmul.f32 %v1480, %v1482
    %v1489 = vperm.slane %v1392, 0
    %v1491 = vadd.f32 %v1484, %v1489
    %v1492 = vadd.f32 %v1485, %v1489
    %v1493 = vadd.f32 %v1486, %v1489
    %v1494 = vadd.f32 %v1487, %v1489
    %v1495 = vld [vmem:[%s67] sm:$0xff]
    %v1496 = vld [vmem:[%s67 + $0x8] sm:$0xff]
    %v1497 = vld [vmem:[#allocation17] sm:$0x1]
    %v1499 = vperm.slane %v1497, 0
    %v1502 = vsel %vm987, %v1491, 0
    %v1505 = vsel %vm987, %v1492, 0
    %v1508 = vsel %vm987, %v1493, 0
    %v1511 = vsel %vm987, %v1494, 0
    %1513 = vmatpush.msra.mxu0 0.0
    %1514 = vmatpush.msra.mxu0 0.0
    %1515 = vmatpush.msra.mxu0 0.0
    %1516 = vmatpush.msra.mxu0 0.0
    %1517 = vmatpush.msra.mxu0 0.0
    %1518 = vmatpush.msra.mxu0 0.0
    %1519 = vmatpush.msra.mxu0 0.0
    %1520 = vmatpush.msra.mxu0 0.0
    %1521 = vmatpush.msra.mxu0 0.0
    %1522 = vmatpush.msra.mxu0 0.0
    %1523 = vmatpush.msra.mxu0 0.0
    %1524 = vmatpush.msra.mxu0 0.0
    %1525 = vmatpush.msra.mxu0 0.0
    %1526 = vmatpush.msra.mxu0 0.0
    %1527 = vmatpush.msra.mxu0 %v1496
    %1528 = vmatpush.msra.mxu0 %v1495
    %1529 = vmatmul.f32.gmra.mxu0 %v1502
    %v1530 = vpop.f32.mrf.mxu0
    %v1531 = vadd.f32 %v1499, %v1530
    %1532 = vmatmul.f32.gmra.mxu0 %v1505
    %v1533 = vpop.f32.mrf.mxu0
    %v1534 = vadd.f32 %v1499, %v1533
    %1535 = vmatmul.f32.gmra.mxu0 %v1508
    %v1536 = vpop.f32.mrf.mxu0
    %v1537 = vadd.f32 %v1499, %v1536
    %1538 = vmatmul.f32.gmra.mxu0 %v1511
    %v1539 = vpop.f32.mrf.mxu0
    %v1540 = vadd.f32 %v1499, %v1539
    %1541 = vdwg.mxu0
    %v1542 = vmul.f32 %v1531, 0.5
    %v1543 = vmul.f32 %v1534, 0.5
    %v1544 = vmul.f32 %v1537, 0.5
    %v1545 = vmul.f32 %v1540, 0.5
    %v1546 = vmul.f32 %v1531, 0.044715
    %v1547 = vmul.f32 %v1534, 0.044715
    %v1548 = vmul.f32 %v1537, 0.044715
    %v1549 = vmul.f32 %v1540, 0.044715
    %v1550 = vmul.f32 %v1546, %v1531
    %v1551 = vmul.f32 %v1547, %v1534
    %v1552 = vmul.f32 %v1548, %v1537
    %v1553 = vmul.f32 %v1549, %v1540
    %v1554 = vmul.f32 %v1550, %v1531
    %v1555 = vmul.f32 %v1551, %v1534
    %v1556 = vmul.f32 %v1552, %v1537
    %v1557 = vmul.f32 %v1553, %v1540
    %v1558 = vadd.f32 %v1531, %v1554
    %v1559 = vadd.f32 %v1534, %v1555
    %v1560 = vadd.f32 %v1537, %v1556
    %v1561 = vadd.f32 %v1540, %v1557
    %v1562 = vmul.f32 %v1558, 0.7978846
    %v1563 = vmul.f32 %v1559, 0.7978846
    %v1564 = vmul.f32 %v1560, 0.7978846
    %v1565 = vmul.f32 %v1561, 0.7978846
    %v1566 = vtanh.pop %v1562
    %v1567 = vtanh.pop %v1563
    %v1568 = vtanh.pop %v1564
    %v1569 = vtanh.pop %v1565
    %v1570 = vadd.f32 %v1566, 1.0
    %v1571 = vadd.f32 %v1567, 1.0
    %v1572 = vadd.f32 %v1568, 1.0
    %v1573 = vadd.f32 %v1569, 1.0
    %v1574 = vmul.f32 %v1542, %v1570
    %v1575 = vmul.f32 %v1543, %v1571
    %v1576 = vmul.f32 %v1544, %v1572
    %v1577 = vmul.f32 %v1545, %v1573
    %v1578 = vld [vmem:[%s71] sm:$0xff]
    %v1579 = vld [vmem:[%s71 + $0x8] sm:$0xff]
    %v1580 = vld [vmem:[%s71 + $0x10] sm:$0xff]
    %v1581 = vld [vmem:[%s71 + $0x18] sm:$0xff]
    %v1582 = vld [vmem:[%s71 + $0x20] sm:$0xff]
    %v1583 = vld [vmem:[%s71 + $0x28] sm:$0xff]
    %v1584 = vld [vmem:[%s71 + $0x30] sm:$0xff]
    %v1585 = vld [vmem:[%s71 + $0x38] sm:$0xff]
    %v1586 = vld [vmem:[#allocation18] sm:$0x1]
    %v1588 = vperm.slane %v1586, 0
    %vm1590 = vcmask 523264
    %v1592 = vsel %vm1590, %v1574, 0
    %v1595 = vsel %vm1590, %v1575, 0
    %v1598 = vsel %vm1590, %v1576, 0
    %v1601 = vsel %vm1590, %v1577, 0
    %1603 = vmatpush.msra.mxu0 0.0
    %1604 = vmatpush.msra.mxu0 0.0
    %1605 = vmatpush.msra.mxu0 0.0
    %1606 = vmatpush.msra.mxu0 0.0
    %1607 = vmatpush.msra.mxu0 0.0
    %1608 = vmatpush.msra.mxu0 0.0
    %1609 = vmatpush.msra.mxu0 0.0
    %1610 = vmatpush.msra.mxu0 0.0
    %1611 = vmatpush.msra.mxu0 %v1585
    %1612 = vmatpush.msra.mxu0 %v1584
    %1613 = vmatpush.msra.mxu0 %v1583
    %1614 = vmatpush.msra.mxu0 %v1582
    %1615 = vmatpush.msra.mxu0 %v1581
    %1616 = vmatpush.msra.mxu0 %v1580
    %1617 = vmatpush.msra.mxu0 %v1579
    %1618 = vmatpush.msra.mxu0 %v1578
    %1619 = vmatmul.f32.gmra.mxu0 %v1592
    %v1620 = vpop.f32.mrf.mxu0
    %v1621 = vadd.f32 %v1588, %v1620
    %1622 = vmatmul.f32.gmra.mxu0 %v1595
    %v1623 = vpop.f32.mrf.mxu0
    %v1624 = vadd.f32 %v1588, %v1623
    %1625 = vmatmul.f32.gmra.mxu0 %v1598
    %v1626 = vpop.f32.mrf.mxu0
    %v1627 = vadd.f32 %v1588, %v1626
    %1628 = vmatmul.f32.gmra.mxu0 %v1601
    %v1629 = vpop.f32.mrf.mxu0
    %v1630 = vadd.f32 %v1588, %v1629
    %1631 = vdwg.mxu0
    %v1632 = vadd.f32 %v1387, %v1621
    %v1633 = vadd.f32 %v1388, %v1624
    %v1634 = vadd.f32 %v1389, %v1627
    %v1635 = vadd.f32 %v1390, %v1630
    %v1636 = vld [vmem:[#allocation20] sm:$0x1]
    %v1637 = vld [vmem:[#allocation21] sm:$0x1]
    %v1638 = vsel %vm987, %v1632, 0.0
    %1639 = vadd.xlane.f32.xlu0 %v1638
    %v1640 = vpop.xlane.xlu0 %1639
    %v1641 = vsel %vm987, %v1633, 0.0
    %1642 = vadd.xlane.f32.xlu0 %v1641
    %v1643 = vpop.xlane.xlu0 %1642
    %v1644 = vsel %vm987, %v1634, 0.0
    %1645 = vadd.xlane.f32.xlu0 %v1644
    %v1646 = vpop.xlane.xlu0 %1645
    %v1647 = vsel %vm987, %v1635, 0.0
    %1648 = vadd.xlane.f32.xlu0 %v1647
    %v1649 = vpop.xlane.xlu0 %1648
    %v1650 = vmul.f32 %v1640, %v1006
    %v1651 = vmul.f32 %v1643, %v1006
    %v1652 = vmul.f32 %v1646, %v1006
    %v1653 = vmul.f32 %v1649, %v1006
    %v1654 = vsub.f32 %v1632, %v1650
    %v1655 = vsub.f32 %v1633, %v1651
    %v1656 = vsub.f32 %v1634, %v1652
    %v1657 = vsub.f32 %v1635, %v1653
    %v1658 = vmul.f32 %v1654, %v1654
    %v1659 = vmul.f32 %v1655, %v1655
    %v1660 = vmul.f32 %v1656, %v1656
    %v1661 = vmul.f32 %v1657, %v1657
    %v1662 = vsel %vm987, %v1658, 0.0
    %1663 = vadd.xlane.f32.xlu0 %v1662
    %v1664 = vpop.xlane.xlu0 %1663
    %v1665 = vsel %vm987, %v1659, 0.0
    %1666 = vadd.xlane.f32.xlu0 %v1665
    %v1667 = vpop.xlane.xlu0 %1666
    %v1668 = vsel %vm987, %v1660, 0.0
    %1669 = vadd.xlane.f32.xlu0 %v1668
    %v1670 = vpop.xlane.xlu0 %1669
    %v1671 = vsel %vm987, %v1661, 0.0
    %1672 = vadd.xlane.f32.xlu0 %v1671
    %v1673 = vpop.xlane.xlu0 %1672
    %v1674 = vmul.f32 %v1664, %v1006
    %v1675 = vmul.f32 %v1667, %v1006
    %v1676 = vmul.f32 %v1670, %v1006
    %v1677 = vmul.f32 %v1673, %v1006
    %v1678 = vadd.f32 %v1674, 1e-05
    %v1679 = vadd.f32 %v1675, 1e-05
    %v1680 = vadd.f32 %v1676, 1e-05
    %v1681 = vadd.f32 %v1677, 1e-05
    %v1682 = vrsqrt.pop %v1678
    %v1683 = vmul.f32 %v1682, %v1678
    %v1684 = vmul.f32 %v1683, %v1682
    %v1685 = vmul.f32 0.5, %v1684
    %v1686 = vsub.f32 1.5, %v1685
    %v1687 = vmul.f32 %v1682, %v1686
    %vm1688 = vweird.f32 %v1678
    %vm1689 = vweird.f32 %v1682
    %vm1690 = vmor %vm1688, %vm1689
    %v1691 = vsel %vm1690, %v1682, %v1687
    %v1692 = vrsqrt.pop %v1679
    %v1693 = vmul.f32 %v1692, %v1679
    %v1694 = vmul.f32 %v1693, %v1692
    %v1695 = vmul.f32 0.5, %v1694
    %v1696 = vsub.f32 1.5, %v1695
    %v1697 = vmul.f32 %v1692, %v1696
    %vm1698 = vweird.f32 %v1679
    %vm1699 = vweird.f32 %v1692
    %vm1700 = vmor %vm1698, %vm1699
    %v1701 = vsel %vm1700, %v1692, %v1697
    %v1702 = vrsqrt.pop %v1680
    %v1703 = vmul.f32 %v1702, %v1680
    %v1704 = vmul.f32 %v1703, %v1702
    %v1705 = vmul.f32 0.5, %v1704
    %v1706 = vsub.f32 1.5, %v1705
    %v1707 = vmul.f32 %v1702, %v1706
    %vm1708 = vweird.f32 %v1680
    %vm1709 = vweird.f32 %v1702
    %vm1710 = vmor %vm1708, %vm1709
    %v1711 = vsel %vm1710, %v1702, %v1707
    %v1712 = vrsqrt.pop %v1681
    %v1713 = vmul.f32 %v1712, %v1681
    %v1714 = vmul.f32 %v1713, %v1712
    %v1715 = vmul.f32 0.5, %v1714
    %v1716 = vsub.f32 1.5, %v1715
    %v1717 = vmul.f32 %v1712, %v1716
    %vm1718 = vweird.f32 %v1681
    %vm1719 = vweird.f32 %v1712
    %vm1720 = vmor %vm1718, %vm1719
    %v1721 = vsel %vm1720, %v1712, %v1717
    %v1722 = vmul.f32 %v1654, %v1691
    %v1723 = vmul.f32 %v1655, %v1701
    %v1724 = vmul.f32 %v1656, %v1711
    %v1725 = vmul.f32 %v1657, %v1721
    %v1727 = vperm.slane %v1636, 0
    %v1729 = vmul.f32 %v1722, %v1727
    %v1730 = vmul.f32 %v1723, %v1727
    %v1731 = vmul.f32 %v1724, %v1727
    %v1732 = vmul.f32 %v1725, %v1727
    %v1734 = vperm.slane %v1637, 0
    %v1736 = vadd.f32 %v1729, %v1734
    %v1737 = vadd.f32 %v1730, %v1734
    %v1738 = vadd.f32 %v1731, %v1734
    %v1739 = vadd.f32 %v1732, %v1734
    %v1740 = vld [vmem:[%s79] sm:$0xff]
    %v1741 = vld [vmem:[%s79 + $0x8] sm:$0xff]
    %v1742 = vld [vmem:[#allocation23] sm:$0x1]
    %v1744 = vperm.slane %v1742, 0
    %v1747 = vsel %vm987, %v1736, 0
    %v1750 = vsel %vm987, %v1737, 0
    %v1753 = vsel %vm987, %v1738, 0
    %v1756 = vsel %vm987, %v1739, 0
    %1758 = vmatpush.msra.mxu0 0.0
    %1759 = vmatpush.msra.mxu0 0.0
    %1760 = vmatpush.msra.mxu0 0.0
    %1761 = vmatpush.msra.mxu0 0.0
    %1762 = vmatpush.msra.mxu0 0.0
    %1763 = vmatpush.msra.mxu0 0.0
    %1764 = vmatpush.msra.mxu0 0.0
    %1765 = vmatpush.msra.mxu0 0.0
    %1766 = vmatpush.msra.mxu0 0.0
    %1767 = vmatpush.msra.mxu0 0.0
    %1768 = vmatpush.msra.mxu0 0.0
    %1769 = vmatpush.msra.mxu0 0.0
    %1770 = vmatpush.msra.mxu0 0.0
    %1771 = vmatpush.msra.mxu0 0.0
    %1772 = vmatpush.msra.mxu0 %v1741
    %1773 = vmatpush.msra.mxu0 %v1740
    %1774 = vmatmul.f32.gmra.mxu0 %v1747
    %v1775 = vpop.f32.mrf.mxu0
    %v1776 = vadd.f32 %v1744, %v1775
    %1777 = vmatmul.f32.gmra.mxu0 %v1750
    %v1778 = vpop.f32.mrf.mxu0
    %v1779 = vadd.f32 %v1744, %v1778
    %1780 = vmatmul.f32.gmra.mxu0 %v1753
    %v1781 = vpop.f32.mrf.mxu0
    %v1782 = vadd.f32 %v1744, %v1781
    %1783 = vmatmul.f32.gmra.mxu0 %v1756
    %v1784 = vpop.f32.mrf.mxu0
    %v1785 = vadd.f32 %v1744, %v1784
    %1786 = vdwg.mxu0
    %v1787 = vmul.f32 %v1776, 0.25
    %v1788 = vmul.f32 %v1779, 0.25
    %v1789 = vmul.f32 %v1782, 0.25
    %v1790 = vmul.f32 %v1785, 0.25
    %1793 = vrot.lane.b32.xlu0 %v1776, 112
    %v1794 = vpop.permute.xlu0 %1793
    %1795 = vrot.lane.b32.xlu0 %v1779, 112
    %v1796 = vpop.permute.xlu0 %1795
    %v1798 = vsel %vm987, %v1787, 0
    %v1801 = vsel %vm987, %v1788, 0
    %v1803 = vsel %vm987, %v1794, 0
    %v1805 = vsel %vm987, %v1796, 0
    %1807 = vmatpush.xpose.msra.mxu0 0.0
    %1808 = vmatpush.xpose.msra.mxu0 0.0
    %1809 = vmatpush.xpose.msra.mxu0 0.0
    %1810 = vmatpush.xpose.msra.mxu0 0.0
    %1811 = vmatpush.xpose.msra.mxu0 0.0
    %1812 = vmatpush.xpose.msra.mxu0 0.0
    %1813 = vmatpush.xpose.msra.mxu0 0.0
    %1814 = vmatpush.xpose.msra.mxu0 0.0
    %1815 = vmatpush.xpose.msra.mxu0 0.0
    %1816 = vmatpush.xpose.msra.mxu0 0.0
    %1817 = vmatpush.xpose.msra.mxu0 0.0
    %1818 = vmatpush.xpose.msra.mxu0 0.0
    %1819 = vmatpush.xpose.msra.mxu0 0.0
    %1820 = vmatpush.xpose.msra.mxu0 0.0
    %1821 = vmatpush.xpose.msra.mxu0 %v1805
    %1822 = vmatpush.xpose.msra.mxu0 %v1803
    %1823 = vmatmul.f32.gmra.mxu0 %v1798
    %v1824 = vpop.f32.mrf.mxu0
    %v1825 = vadd.f32 %v903, %v1824
    %1826 = vmatmul.f32.gmra.mxu0 %v1801
    %v1827 = vpop.f32.mrf.mxu0
    %v1828 = vadd.f32 %v904, %v1827
    %1829 = vdwg.mxu0
    %v1830 = vsel %vm987, %v1825, -inf
    %1831 = vmax.xlane.f32.xlu0 %v1830
    %v1832 = vpop.xlane.xlu0 %1831
    %v1833 = vsel %vm987, %v1828, -inf
    %1834 = vmax.xlane.f32.xlu0 %v1833
    %v1835 = vpop.xlane.xlu0 %1834
    %v1836 = vsub.f32 %v1825, %v1832
    %v1837 = vsub.f32 %v1828, %v1835
    %v1838 = vmul.f32 %v1836, 1.442695
    %v1839 = vpow.pop %v1838
    %v1840 = vmul.f32 %v1837, 1.442695
    %v1841 = vpow.pop %v1840
    %v1842 = vsel %vm987, %v1839, 0.0
    %1843 = vadd.xlane.f32.xlu0 %v1842
    %v1844 = vpop.xlane.xlu0 %1843
    %v1845 = vsel %vm987, %v1841, 0.0
    %1846 = vadd.xlane.f32.xlu0 %v1845
    %v1847 = vpop.xlane.xlu0 %1846
    %v1848 = vrcp.pop %v1844
    %v1849 = vrcp.pop %v1847
    %v1850 = vmul.f32 %v1839, %v1848
    %v1851 = vmul.f32 %v1841, %v1849
    %1852 = vrot.lane.b32.xlu0 %v1776, 96
    %v1853 = vpop.permute.xlu0 %1852
    %1854 = vrot.lane.b32.xlu0 %v1779, 96
    %v1855 = vpop.permute.xlu0 %1854
    %v1859 = vsel %vm987, %v1850, 0
    %v1862 = vsel %vm987, %v1851, 0
    %1864 = vmatpush.msra.mxu0 0.0
    %1865 = vmatpush.msra.mxu0 0.0
    %1866 = vmatpush.msra.mxu0 0.0
    %1867 = vmatpush.msra.mxu0 0.0
    %1868 = vmatpush.msra.mxu0 0.0
    %1869 = vmatpush.msra.mxu0 0.0
    %1870 = vmatpush.msra.mxu0 0.0
    %1871 = vmatpush.msra.mxu0 0.0
    %1872 = vmatpush.msra.mxu0 0.0
    %1873 = vmatpush.msra.mxu0 0.0
    %1874 = vmatpush.msra.mxu0 0.0
    %1875 = vmatpush.msra.mxu0 0.0
    %1876 = vmatpush.msra.mxu0 0.0
    %1877 = vmatpush.msra.mxu0 0.0
    %1878 = vmatpush.msra.mxu0 %v1855
    %1879 = vmatpush.msra.mxu0 %v1853
    %1880 = vmatmul.f32.gmra.mxu0 %v1859
    %v1881 = vpop.f32.mrf.mxu0
    %v1882 = vadd.f32 0.0, %v1881
    %1883 = vmatmul.f32.gmra.mxu0 %v1862
    %v1884 = vpop.f32.mrf.mxu0
    %v1885 = vadd.f32 0.0, %v1884
    %1886 = vdwg.mxu0
    %1889 = vrot.lane.b32.xlu0 %v1782, 112
    %v1890 = vpop.permute.xlu0 %1889
    %1891 = vrot.lane.b32.xlu0 %v1785, 112
    %v1892 = vpop.permute.xlu0 %1891
    %v1894 = vsel %vm987, %v1789, 0
    %v1897 = vsel %vm987, %v1790, 0
    %v1899 = vsel %vm987, %v1890, 0
    %v1901 = vsel %vm987, %v1892, 0
    %1903 = vmatpush.xpose.msra.mxu0 0.0
    %1904 = vmatpush.xpose.msra.mxu0 0.0
    %1905 = vmatpush.xpose.msra.mxu0 0.0
    %1906 = vmatpush.xpose.msra.mxu0 0.0
    %1907 = vmatpush.xpose.msra.mxu0 0.0
    %1908 = vmatpush.xpose.msra.mxu0 0.0
    %1909 = vmatpush.xpose.msra.mxu0 0.0
    %1910 = vmatpush.xpose.msra.mxu0 0.0
    %1911 = vmatpush.xpose.msra.mxu0 0.0
    %1912 = vmatpush.xpose.msra.mxu0 0.0
    %1913 = vmatpush.xpose.msra.mxu0 0.0
    %1914 = vmatpush.xpose.msra.mxu0 0.0
    %1915 = vmatpush.xpose.msra.mxu0 0.0
    %1916 = vmatpush.xpose.msra.mxu0 0.0
    %1917 = vmatpush.xpose.msra.mxu0 %v1901
    %1918 = vmatpush.xpose.msra.mxu0 %v1899
    %1919 = vmatmul.f32.gmra.mxu0 %v1894
    %v1920 = vpop.f32.mrf.mxu0
    %v1921 = vadd.f32 %v903, %v1920
    %1922 = vmatmul.f32.gmra.mxu0 %v1897
    %v1923 = vpop.f32.mrf.mxu0
    %v1924 = vadd.f32 %v904, %v1923
    %1925 = vdwg.mxu0
    %v1926 = vsel %vm987, %v1921, -inf
    %1927 = vmax.xlane.f32.xlu0 %v1926
    %v1928 = vpop.xlane.xlu0 %1927
    %v1929 = vsel %vm987, %v1924, -inf
    %1930 = vmax.xlane.f32.xlu0 %v1929
    %v1931 = vpop.xlane.xlu0 %1930
    %v1932 = vsub.f32 %v1921, %v1928
    %v1933 = vsub.f32 %v1924, %v1931
    %v1934 = vmul.f32 %v1932, 1.442695
    %v1935 = vpow.pop %v1934
    %v1936 = vmul.f32 %v1933, 1.442695
    %v1937 = vpow.pop %v1936
    %v1938 = vsel %vm987, %v1935, 0.0
    %1939 = vadd.xlane.f32.xlu0 %v1938
    %v1940 = vpop.xlane.xlu0 %1939
    %v1941 = vsel %vm987, %v1937, 0.0
    %1942 = vadd.xlane.f32.xlu0 %v1941
    %v1943 = vpop.xlane.xlu0 %1942
    %v1944 = vrcp.pop %v1940
    %v1945 = vrcp.pop %v1943
    %v1946 = vmul.f32 %v1935, %v1944
    %v1947 = vmul.f32 %v1937, %v1945
    %1948 = vrot.lane.b32.xlu0 %v1782, 96
    %v1949 = vpop.permute.xlu0 %1948
    %1950 = vrot.lane.b32.xlu0 %v1785, 96
    %v1951 = vpop.permute.xlu0 %1950
    %v1955 = vsel %vm987, %v1946, 0
    %v1958 = vsel %vm987, %v1947, 0
    %1960 = vmatpush.msra.mxu0 0.0
    %1961 = vmatpush.msra.mxu0 0.0
    %1962 = vmatpush.msra.mxu0 0.0
    %1963 = vmatpush.msra.mxu0 0.0
    %1964 = vmatpush.msra.mxu0 0.0
    %1965 = vmatpush.msra.mxu0 0.0
    %1966 = vmatpush.msra.mxu0 0.0
    %1967 = vmatpush.msra.mxu0 0.0
    %1968 = vmatpush.msra.mxu0 0.0
    %1969 = vmatpush.msra.mxu0 0.0
    %1970 = vmatpush.msra.mxu0 0.0
    %1971 = vmatpush.msra.mxu0 0.0
    %1972 = vmatpush.msra.mxu0 0.0
    %1973 = vmatpush.msra.mxu0 0.0
    %1974 = vmatpush.msra.mxu0 %v1951
    %1975 = vmatpush.msra.mxu0 %v1949
    %1976 = vmatmul.f32.gmra.mxu0 %v1955
    %v1977 = vpop.f32.mrf.mxu0
    %v1978 = vadd.f32 0.0, %v1977
    %1979 = vmatmul.f32.gmra.mxu0 %v1958
    %v1980 = vpop.f32.mrf.mxu0
    %v1981 = vadd.f32 0.0, %v1980
    %1982 = vdwg.mxu0
    %v1983 = vld [vmem:[%s83] sm:$0xff]
    %v1984 = vld [vmem:[%s83 + $0x8] sm:$0xff]
    %v1985 = vld [vmem:[#allocation24] sm:$0x1]
    %v1987 = vperm.slane %v1985, 0
    %v1990 = vsel %vm987, %v1882, 0
    %v1993 = vsel %vm987, %v1885, 0
    %v1996 = vsel %vm987, %v1978, 0
    %v1999 = vsel %vm987, %v1981, 0
    %2001 = vmatpush.msra.mxu0 0.0
    %2002 = vmatpush.msra.mxu0 0.0
    %2003 = vmatpush.msra.mxu0 0.0
    %2004 = vmatpush.msra.mxu0 0.0
    %2005 = vmatpush.msra.mxu0 0.0
    %2006 = vmatpush.msra.mxu0 0.0
    %2007 = vmatpush.msra.mxu0 0.0
    %2008 = vmatpush.msra.mxu0 0.0
    %2009 = vmatpush.msra.mxu0 0.0
    %2010 = vmatpush.msra.mxu0 0.0
    %2011 = vmatpush.msra.mxu0 0.0
    %2012 = vmatpush.msra.mxu0 0.0
    %2013 = vmatpush.msra.mxu0 0.0
    %2014 = vmatpush.msra.mxu0 0.0
    %2015 = vmatpush.msra.mxu0 %v1984
    %2016 = vmatpush.msra.mxu0 %v1983
    %2017 = vmatmul.f32.gmra.mxu0 %v1990
    %v2018 = vpop.f32.mrf.mxu0
    %v2019 = vadd.f32 %v1987, %v2018
    %2020 = vmatmul.f32.gmra.mxu0 %v1993
    %v2021 = vpop.f32.mrf.mxu0
    %v2022 = vadd.f32 %v1987, %v2021
    %2023 = vmatmul.f32.gmra.mxu0 %v1996
    %v2024 = vpop.f32.mrf.mxu0
    %v2025 = vadd.f32 %v1987, %v2024
    %2026 = vmatmul.f32.gmra.mxu0 %v1999
    %v2027 = vpop.f32.mrf.mxu0
    %v2028 = vadd.f32 %v1987, %v2027
    %2029 = vdwg.mxu0
    %v2030 = vadd.f32 %v1632, %v2019
    %v2031 = vadd.f32 %v1633, %v2022
    %v2032 = vadd.f32 %v1634, %v2025
    %v2033 = vadd.f32 %v1635, %v2028
    %v2034 = vld [vmem:[#allocation26] sm:$0x1]
    %v2035 = vld [vmem:[#allocation27] sm:$0x1]
    %v2036 = vsel %vm987, %v2030, 0.0
    %2037 = vadd.xlane.f32.xlu0 %v2036
    %v2038 = vpop.xlane.xlu0 %2037
    %v2039 = vsel %vm987, %v2031, 0.0
    %2040 = vadd.xlane.f32.xlu0 %v2039
    %v2041 = vpop.xlane.xlu0 %2040
    %v2042 = vsel %vm987, %v2032, 0.0
    %2043 = vadd.xlane.f32.xlu0 %v2042
    %v2044 = vpop.xlane.xlu0 %2043
    %v2045 = vsel %vm987, %v2033, 0.0
    %2046 = vadd.xlane.f32.xlu0 %v2045
    %v2047 = vpop.xlane.xlu0 %2046
    %v2048 = vmul.f32 %v2038, %v1006
    %v2049 = vmul.f32 %v2041, %v1006
    %v2050 = vmul.f32 %v2044, %v1006
    %v2051 = vmul.f32 %v2047, %v1006
    %v2052 = vsub.f32 %v2030, %v2048
    %v2053 = vsub.f32 %v2031, %v2049
    %v2054 = vsub.f32 %v2032, %v2050
    %v2055 = vsub.f32 %v2033, %v2051
    %v2056 = vmul.f32 %v2052, %v2052
    %v2057 = vmul.f32 %v2053, %v2053
    %v2058 = vmul.f32 %v2054, %v2054
    %v2059 = vmul.f32 %v2055, %v2055
    %v2060 = vsel %vm987, %v2056, 0.0
    %2061 = vadd.xlane.f32.xlu0 %v2060
    %v2062 = vpop.xlane.xlu0 %2061
    %v2063 = vsel %vm987, %v2057, 0.0
    %2064 = vadd.xlane.f32.xlu0 %v2063
    %v2065 = vpop.xlane.xlu0 %2064
    %v2066 = vsel %vm987, %v2058, 0.0
    %2067 = vadd.xlane.f32.xlu0 %v2066
    %v2068 = vpop.xlane.xlu0 %2067
    %v2069 = vsel %vm987, %v2059, 0.0
    %2070 = vadd.xlane.f32.xlu0 %v2069
    %v2071 = vpop.xlane.xlu0 %2070
    %v2072 = vmul.f32 %v2062, %v1006
    %v2073 = vmul.f32 %v2065, %v1006
    %v2074 = vmul.f32 %v2068, %v1006
    %v2075 = vmul.f32 %v2071, %v1006
    %v2076 = vadd.f32 %v2072, 1e-05
    %v2077 = vadd.f32 %v2073, 1e-05
    %v2078 = vadd.f32 %v2074, 1e-05
    %v2079 = vadd.f32 %v2075, 1e-05
    %v2080 = vrsqrt.pop %v2076
    %v2081 = vmul.f32 %v2080, %v2076
    %v2082 = vmul.f32 %v2081, %v2080
    %v2083 = vmul.f32 0.5, %v2082
    %v2084 = vsub.f32 1.5, %v2083
    %v2085 = vmul.f32 %v2080, %v2084
    %vm2086 = vweird.f32 %v2076
    %vm2087 = vweird.f32 %v2080
    %vm2088 = vmor %vm2086, %vm2087
    %v2089 = vsel %vm2088, %v2080, %v2085
    %v2090 = vrsqrt.pop %v2077
    %v2091 = vmul.f32 %v2090, %v2077
    %v2092 = vmul.f32 %v2091, %v2090
    %v2093 = vmul.f32 0.5, %v2092
    %v2094 = vsub.f32 1.5, %v2093
    %v2095 = vmul.f32 %v2090, %v2094
    %vm2096 = vweird.f32 %v2077
    %vm2097 = vweird.f32 %v2090
    %vm2098 = vmor %vm2096, %vm2097
    %v2099 = vsel %vm2098, %v2090, %v2095
    %v2100 = vrsqrt.pop %v2078
    %v2101 = vmul.f32 %v2100, %v2078
    %v2102 = vmul.f32 %v2101, %v2100
    %v2103 = vmul.f32 0.5, %v2102
    %v2104 = vsub.f32 1.5, %v2103
    %v2105 = vmul.f32 %v2100, %v2104
    %vm2106 = vweird.f32 %v2078
    %vm2107 = vweird.f32 %v2100
    %vm2108 = vmor %vm2106, %vm2107
    %v2109 = vsel %vm2108, %v2100, %v2105
    %v2110 = vrsqrt.pop %v2079
    %v2111 = vmul.f32 %v2110, %v2079
    %v2112 = vmul.f32 %v2111, %v2110
    %v2113 = vmul.f32 0.5, %v2112
    %v2114 = vsub.f32 1.5, %v2113
    %v2115 = vmul.f32 %v2110, %v2114
    %vm2116 = vweird.f32 %v2079
    %vm2117 = vweird.f32 %v2110
    %vm2118 = vmor %vm2116, %vm2117
    %v2119 = vsel %vm2118, %v2110, %v2115
    %v2120 = vmul.f32 %v2052, %v2089
    %v2121 = vmul.f32 %v2053, %v2099
    %v2122 = vmul.f32 %v2054, %v2109
    %v2123 = vmul.f32 %v2055, %v2119
    %v2125 = vperm.slane %v2034, 0
    %v2127 = vmul.f32 %v2120, %v2125
    %v2128 = vmul.f32 %v2121, %v2125
    %v2129 = vmul.f32 %v2122, %v2125
    %v2130 = vmul.f32 %v2123, %v2125
    %v2132 = vperm.slane %v2035, 0
    %v2134 = vadd.f32 %v2127, %v2132
    %v2135 = vadd.f32 %v2128, %v2132
    %v2136 = vadd.f32 %v2129, %v2132
    %v2137 = vadd.f32 %v2130, %v2132
    %v2138 = vld [vmem:[%s91] sm:$0xff]
    %v2139 = vld [vmem:[%s91 + $0x8] sm:$0xff]
    %v2140 = vld [vmem:[#allocation29] sm:$0x1]
    %v2142 = vperm.slane %v2140, 0
    %v2145 = vsel %vm987, %v2134, 0
    %v2148 = vsel %vm987, %v2135, 0
    %v2151 = vsel %vm987, %v2136, 0
    %v2154 = vsel %vm987, %v2137, 0
    %2156 = vmatpush.msra.mxu0 0.0
    %2157 = vmatpush.msra.mxu0 0.0
    %2158 = vmatpush.msra.mxu0 0.0
    %2159 = vmatpush.msra.mxu0 0.0
    %2160 = vmatpush.msra.mxu0 0.0
    %2161 = vmatpush.msra.mxu0 0.0
    %2162 = vmatpush.msra.mxu0 0.0
    %2163 = vmatpush.msra.mxu0 0.0
    %2164 = vmatpush.msra.mxu0 0.0
    %2165 = vmatpush.msra.mxu0 0.0
    %2166 = vmatpush.msra.mxu0 0.0
    %2167 = vmatpush.msra.mxu0 0.0
    %2168 = vmatpush.msra.mxu0 0.0
    %2169 = vmatpush.msra.mxu0 0.0
    %2170 = vmatpush.msra.mxu0 %v2139
    %2171 = vmatpush.msra.mxu0 %v2138
    %2172 = vmatmul.f32.gmra.mxu0 %v2145
    %v2173 = vpop.f32.mrf.mxu0
    %v2174 = vadd.f32 %v2142, %v2173
    %2175 = vmatmul.f32.gmra.mxu0 %v2148
    %v2176 = vpop.f32.mrf.mxu0
    %v2177 = vadd.f32 %v2142, %v2176
    %2178 = vmatmul.f32.gmra.mxu0 %v2151
    %v2179 = vpop.f32.mrf.mxu0
    %v2180 = vadd.f32 %v2142, %v2179
    %2181 = vmatmul.f32.gmra.mxu0 %v2154
    %v2182 = vpop.f32.mrf.mxu0
    %v2183 = vadd.f32 %v2142, %v2182
    %2184 = vdwg.mxu0
    %v2185 = vmul.f32 %v2174, 0.5
    %v2186 = vmul.f32 %v2177, 0.5
    %v2187 = vmul.f32 %v2180, 0.5
    %v2188 = vmul.f32 %v2183, 0.5
    %v2189 = vmul.f32 %v2174, 0.044715
    %v2190 = vmul.f32 %v2177, 0.044715
    %v2191 = vmul.f32 %v2180, 0.044715
    %v2192 = vmul.f32 %v2183, 0.044715
    %v2193 = vmul.f32 %v2189, %v2174
    %v2194 = vmul.f32 %v2190, %v2177
    %v2195 = vmul.f32 %v2191, %v2180
    %v2196 = vmul.f32 %v2192, %v2183
    %v2197 = vmul.f32 %v2193, %v2174
    %v2198 = vmul.f32 %v2194, %v2177
    %v2199 = vmul.f32 %v2195, %v2180
    %v2200 = vmul.f32 %v2196, %v2183
    %v2201 = vadd.f32 %v2174, %v2197
    %v2202 = vadd.f32 %v2177, %v2198
    %v2203 = vadd.f32 %v2180, %v2199
    %v2204 = vadd.f32 %v2183, %v2200
    %v2205 = vmul.f32 %v2201, 0.7978846
    %v2206 = vmul.f32 %v2202, 0.7978846
    %v2207 = vmul.f32 %v2203, 0.7978846
    %v2208 = vmul.f32 %v2204, 0.7978846
    %v2209 = vtanh.pop %v2205
    %v2210 = vtanh.pop %v2206
    %v2211 = vtanh.pop %v2207
    %v2212 = vtanh.pop %v2208
    %v2213 = vadd.f32 %v2209, 1.0
    %v2214 = vadd.f32 %v2210, 1.0
    %v2215 = vadd.f32 %v2211, 1.0
    %v2216 = vadd.f32 %v2212, 1.0
    %v2217 = vmul.f32 %v2185, %v2213
    %v2218 = vmul.f32 %v2186, %v2214
    %v2219 = vmul.f32 %v2187, %v2215
    %v2220 = vmul.f32 %v2188, %v2216
    %v2221 = vld [vmem:[%s95] sm:$0xff]
    %v2222 = vld [vmem:[%s95 + $0x8] sm:$0xff]
    %v2223 = vld [vmem:[%s95 + $0x10] sm:$0xff]
    %v2224 = vld [vmem:[%s95 + $0x18] sm:$0xff]
    %v2225 = vld [vmem:[%s95 + $0x20] sm:$0xff]
    %v2226 = vld [vmem:[%s95 + $0x28] sm:$0xff]
    %v2227 = vld [vmem:[%s95 + $0x30] sm:$0xff]
    %v2228 = vld [vmem:[%s95 + $0x38] sm:$0xff]
    %v2229 = vld [vmem:[#allocation30] sm:$0x1]
    %v2231 = vperm.slane %v2229, 0
    %v2234 = vsel %vm1590, %v2217, 0
    %v2237 = vsel %vm1590, %v2218, 0
    %v2240 = vsel %vm1590, %v2219, 0
    %v2243 = vsel %vm1590, %v2220, 0
    %2245 = vmatpush.msra.mxu0 0.0
    %2246 = vmatpush.msra.mxu0 0.0
    %2247 = vmatpush.msra.mxu0 0.0
    %2248 = vmatpush.msra.mxu0 0.0
    %2249 = vmatpush.msra.mxu0 0.0
    %2250 = vmatpush.msra.mxu0 0.0
    %2251 = vmatpush.msra.mxu0 0.0
    %2252 = vmatpush.msra.mxu0 0.0
    %2253 = vmatpush.msra.mxu0 %v2228
    %2254 = vmatpush.msra.mxu0 %v2227
    %2255 = vmatpush.msra.mxu0 %v2226
    %2256 = vmatpush.msra.mxu0 %v2225
    %2257 = vmatpush.msra.mxu0 %v2224
    %2258 = vmatpush.msra.mxu0 %v2223
    %2259 = vmatpush.msra.mxu0 %v2222
    %2260 = vmatpush.msra.mxu0 %v2221
    %2261 = vmatmul.f32.gmra.mxu0 %v2234
    %v2262 = vpop.f32.mrf.mxu0
    %v2263 = vadd.f32 %v2231, %v2262
    %2264 = vmatmul.f32.gmra.mxu0 %v2237
    %v2265 = vpop.f32.mrf.mxu0
    %v2266 = vadd.f32 %v2231, %v2265
    %2267 = vmatmul.f32.gmra.mxu0 %v2240
    %v2268 = vpop.f32.mrf.mxu0
    %v2269 = vadd.f32 %v2231, %v2268
    %2270 = vmatmul.f32.gmra.mxu0 %v2243
    %v2271 = vpop.f32.mrf.mxu0
    %v2272 = vadd.f32 %v2231, %v2271
    %2273 = vdwg.mxu0
    %v2274 = vadd.f32 %v2030, %v2263
    %v2275 = vadd.f32 %v2031, %v2266
    %v2276 = vadd.f32 %v2032, %v2269
    %v2277 = vadd.f32 %v2033, %v2272
    %v2278 = vld [vmem:[%s11] sm:$0xff]
    %v2279 = vld [vmem:[%s11 + $0x8] sm:$0xff]
    %v2280 = vld [vmem:[%s13] sm:$0x1]
    %v2282 = vperm.slane %v2280, 0
    %v2285 = vsel %vm987, %v2274, 0
    %v2288 = vsel %vm987, %v2275, 0
    %v2291 = vsel %vm987, %v2276, 0
    %v2294 = vsel %vm987, %v2277, 0
    %2296 = vmatpush.msra.mxu0 0.0
    %2297 = vmatpush.msra.mxu0 0.0
    %2298 = vmatpush.msra.mxu0 0.0
    %2299 = vmatpush.msra.mxu0 0.0
    %2300 = vmatpush.msra.mxu0 0.0
    %2301 = vmatpush.msra.mxu0 0.0
    %2302 = vmatpush.msra.mxu0 0.0
    %2303 = vmatpush.msra.mxu0 0.0
    %2304 = vmatpush.msra.mxu0 0.0
    %2305 = vmatpush.msra.mxu0 0.0
    %2306 = vmatpush.msra.mxu0 0.0
    %2307 = vmatpush.msra.mxu0 0.0
    %2308 = vmatpush.msra.mxu0 0.0
    %2309 = vmatpush.msra.mxu0 0.0
    %2310 = vmatpush.msra.mxu0 %v2279
    %2311 = vmatpush.msra.mxu0 %v2278
    %2312 = vmatmul.f32.gmra.mxu0 %v2285
    %v2313 = vpop.f32.mrf.mxu0
    %v2314 = vadd.f32 %v2282, %v2313
    %2315 = vmatmul.f32.gmra.mxu0 %v2288
    %v2316 = vpop.f32.mrf.mxu0
    %v2317 = vadd.f32 %v2282, %v2316
    %2318 = vmatmul.f32.gmra.mxu0 %v2291
    %v2319 = vpop.f32.mrf.mxu0
    %v2320 = vadd.f32 %v2282, %v2319
    %2321 = vmatmul.f32.gmra.mxu0 %v2294
    %v2322 = vpop.f32.mrf.mxu0
    %v2323 = vadd.f32 %v2282, %v2322
    %2324 = vdwg.mxu0
    %v2325 = vld [vmem:[#allocation32] sm:$0x1]
    %v2326 = vld [vmem:[#allocation33] sm:$0x1]
    %vm2327 = vcmask 195584
    %v2328 = vsel %vm2327, %v2314, 0.0
    %2329 = vadd.xlane.f32.xlu0 %v2328
    %v2330 = vpop.xlane.xlu0 %2329
    %v2331 = vsel %vm2327, %v2317, 0.0
    %2332 = vadd.xlane.f32.xlu0 %v2331
    %v2333 = vpop.xlane.xlu0 %2332
    %v2334 = vsel %vm2327, %v2320, 0.0
    %2335 = vadd.xlane.f32.xlu0 %v2334
    %v2336 = vpop.xlane.xlu0 %2335
    %v2337 = vsel %vm2327, %v2323, 0.0
    %2338 = vadd.xlane.f32.xlu0 %v2337
    %v2339 = vpop.xlane.xlu0 %2338
    %v2340 = vrcp.pop 24.0
    %v2341 = vmul.f32 24.0, %v2340
    %v2342 = vsub.f32 1.0, %v2341
    %v2343 = vmul.f32 %v2340, %v2342
    %v2344 = vadd.f32 %v2340, %v2343
    %vm2345 = vweird.f32 %v2340
    %v2346 = vsel %vm2345, %v2340, %v2344
    %v2347 = vmul.f32 %v2330, %v2346
    %v2348 = vmul.f32 %v2333, %v2346
    %v2349 = vmul.f32 %v2336, %v2346
    %v2350 = vmul.f32 %v2339, %v2346
    %v2351 = vsub.f32 %v2314, %v2347
    %v2352 = vsub.f32 %v2317, %v2348
    %v2353 = vsub.f32 %v2320, %v2349
    %v2354 = vsub.f32 %v2323, %v2350
    %v2355 = vmul.f32 %v2351, %v2351
    %v2356 = vmul.f32 %v2352, %v2352
    %v2357 = vmul.f32 %v2353, %v2353
    %v2358 = vmul.f32 %v2354, %v2354
    %v2359 = vsel %vm2327, %v2355, 0.0
    %2360 = vadd.xlane.f32.xlu0 %v2359
    %v2361 = vpop.xlane.xlu0 %2360
    %v2362 = vsel %vm2327, %v2356, 0.0
    %2363 = vadd.xlane.f32.xlu0 %v2362
    %v2364 = vpop.xlane.xlu0 %2363
    %v2365 = vsel %vm2327, %v2357, 0.0
    %2366 = vadd.xlane.f32.xlu0 %v2365
    %v2367 = vpop.xlane.xlu0 %2366
    %v2368 = vsel %vm2327, %v2358, 0.0
    %2369 = vadd.xlane.f32.xlu0 %v2368
    %v2370 = vpop.xlane.xlu0 %2369
    %v2371 = vmul.f32 %v2361, %v2346
    %v2372 = vmul.f32 %v2364, %v2346
    %v2373 = vmul.f32 %v2367, %v2346
    %v2374 = vmul.f32 %v2370, %v2346
    %v2375 = vadd.f32 %v2371, 1e-05
    %v2376 = vadd.f32 %v2372, 1e-05
    %v2377 = vadd.f32 %v2373, 1e-05
    %v2378 = vadd.f32 %v2374, 1e-05
    %v2379 = vrsqrt.pop %v2375
    %v2380 = vmul.f32 %v2379, %v2375
    %v2381 = vmul.f32 %v2380, %v2379
    %v2382 = vmul.f32 0.5, %v2381
    %v2383 = vsub.f32 1.5, %v2382
    %v2384 = vmul.f32 %v2379, %v2383
    %vm2385 = vweird.f32 %v2375
    %vm2386 = vweird.f32 %v2379
    %vm2387 = vmor %vm2385, %vm2386
    %v2388 = vsel %vm2387, %v2379, %v2384
    %v2389 = vrsqrt.pop %v2376
    %v2390 = vmul.f32 %v2389, %v2376
    %v2391 = vmul.f32 %v2390, %v2389
    %v2392 = vmul.f32 0.5, %v2391
    %v2393 = vsub.f32 1.5, %v2392
    %v2394 = vmul.f32 %v2389, %v2393
    %vm2395 = vweird.f32 %v2376
    %vm2396 = vweird.f32 %v2389
    %vm2397 = vmor %vm2395, %vm2396
    %v2398 = vsel %vm2397, %v2389, %v2394
    %v2399 = vrsqrt.pop %v2377
    %v2400 = vmul.f32 %v2399, %v2377
    %v2401 = vmul.f32 %v2400, %v2399
    %v2402 = vmul.f32 0.5, %v2401
    %v2403 = vsub.f32 1.5, %v2402
    %v2404 = vmul.f32 %v2399, %v2403
    %vm2405 = vweird.f32 %v2377
    %vm2406 = vweird.f32 %v2399
    %vm2407 = vmor %vm2405, %vm2406
    %v2408 = vsel %vm2407, %v2399, %v2404
    %v2409 = vrsqrt.pop %v2378
    %v2410 = vmul.f32 %v2409, %v2378
    %v2411 = vmul.f32 %v2410, %v2409
    %v2412 = vmul.f32 0.5, %v2411
    %v2413 = vsub.f32 1.5, %v2412
    %v2414 = vmul.f32 %v2409, %v2413
    %vm2415 = vweird.f32 %v2378
    %vm2416 = vweird.f32 %v2409
    %vm2417 = vmor %vm2415, %vm2416
    %v2418 = vsel %vm2417, %v2409, %v2414
    %v2419 = vmul.f32 %v2351, %v2388
    %v2420 = vmul.f32 %v2352, %v2398
    %v2421 = vmul.f32 %v2353, %v2408
    %v2422 = vmul.f32 %v2354, %v2418
    %v2424 = vperm.slane %v2325, 0
    %v2426 = vmul.f32 %v2419, %v2424
    %v2427 = vmul.f32 %v2420, %v2424
    %v2428 = vmul.f32 %v2421, %v2424
    %v2429 = vmul.f32 %v2422, %v2424
    %v2431 = vperm.slane %v2326, 0
    %v2433 = vadd.f32 %v2426, %v2431
    %v2434 = vadd.f32 %v2427, %v2431
    %v2435 = vadd.f32 %v2428, %v2431
    %v2436 = vadd.f32 %v2429, %v2431
    %v2437 = vld [vmem:[%s103] sm:$0xff]
    %v2438 = vld [vmem:[%s103 + $0x8] sm:$0xff]
    %v2439 = vld [vmem:[%s103 + $0x10] sm:$0xff]
    %v2440 = vld [vmem:[#allocation35] sm:$0x1]
    %v2442 = vperm.slane %v2440, 0
    %v2445 = vsel %vm2327, %v2433, 0
    %v2448 = vsel %vm2327, %v2434, 0
    %v2451 = vsel %vm2327, %v2435, 0
    %v2454 = vsel %vm2327, %v2436, 0
    %2456 = vmatpush.msra.mxu0 0.0
    %2457 = vmatpush.msra.mxu0 0.0
    %2458 = vmatpush.msra.mxu0 0.0
    %2459 = vmatpush.msra.mxu0 0.0
    %2460 = vmatpush.msra.mxu0 0.0
    %2461 = vmatpush.msra.mxu0 0.0
    %2462 = vmatpush.msra.mxu0 0.0
    %2463 = vmatpush.msra.mxu0 0.0
    %2464 = vmatpush.msra.mxu0 0.0
    %2465 = vmatpush.msra.mxu0 0.0
    %2466 = vmatpush.msra.mxu0 0.0
    %2467 = vmatpush.msra.mxu0 0.0
    %2468 = vmatpush.msra.mxu0 0.0
    %2469 = vmatpush.msra.mxu0 %v2439
    %2470 = vmatpush.msra.mxu0 %v2438
    %2471 = vmatpush.msra.mxu0 %v2437
    %2472 = vmatmul.f32.gmra.mxu0 %v2445
    %v2473 = vpop.f32.mrf.mxu0
    %v2474 = vadd.f32 %v2442, %v2473
    %2475 = vmatmul.f32.gmra.mxu0 %v2448
    %v2476 = vpop.f32.mrf.mxu0
    %v2477 = vadd.f32 %v2442, %v2476
    %2478 = vmatmul.f32.gmra.mxu0 %v2451
    %v2479 = vpop.f32.mrf.mxu0
    %v2480 = vadd.f32 %v2442, %v2479
    %2481 = vmatmul.f32.gmra.mxu0 %v2454
    %v2482 = vpop.f32.mrf.mxu0
    %v2483 = vadd.f32 %v2442, %v2482
    %2484 = vdwg.mxu0
    %v2485 = vmul.f32 %v2474, 0.20412415
    %v2486 = vmul.f32 %v2477, 0.20412415
    %v2487 = vmul.f32 %v2480, 0.20412415
    %v2488 = vmul.f32 %v2483, 0.20412415
    %2491 = vrot.lane.b32.xlu0 %v2474, 104
    %v2492 = vpop.permute.xlu0 %2491
    %2493 = vrot.lane.b32.xlu0 %v2477, 104
    %v2494 = vpop.permute.xlu0 %2493
    %v2496 = vsel %vm2327, %v2485, 0
    %v2499 = vsel %vm2327, %v2486, 0
    %v2501 = vsel %vm2327, %v2492, 0
    %v2503 = vsel %vm2327, %v2494, 0
    %2505 = vmatpush.xpose.msra.mxu0 0.0
    %2506 = vmatpush.xpose.msra.mxu0 0.0
    %2507 = vmatpush.xpose.msra.mxu0 0.0
    %2508 = vmatpush.xpose.msra.mxu0 0.0
    %2509 = vmatpush.xpose.msra.mxu0 0.0
    %2510 = vmatpush.xpose.msra.mxu0 0.0
    %2511 = vmatpush.xpose.msra.mxu0 0.0
    %2512 = vmatpush.xpose.msra.mxu0 0.0
    %2513 = vmatpush.xpose.msra.mxu0 0.0
    %2514 = vmatpush.xpose.msra.mxu0 0.0
    %2515 = vmatpush.xpose.msra.mxu0 0.0
    %2516 = vmatpush.xpose.msra.mxu0 0.0
    %2517 = vmatpush.xpose.msra.mxu0 0.0
    %2518 = vmatpush.xpose.msra.mxu0 0.0
    %2519 = vmatpush.xpose.msra.mxu0 %v2503
    %2520 = vmatpush.xpose.msra.mxu0 %v2501
    %2521 = vmatmul.f32.gmra.mxu0 %v2496
    %v2522 = vpop.f32.mrf.mxu0
    %v2523 = vadd.f32 %v903, %v2522
    %2524 = vmatmul.f32.gmra.mxu0 %v2499
    %v2525 = vpop.f32.mrf.mxu0
    %v2526 = vadd.f32 %v904, %v2525
    %2527 = vdwg.mxu0
    %v2528 = vsel %vm987, %v2523, -inf
    %2529 = vmax.xlane.f32.xlu0 %v2528
    %v2530 = vpop.xlane.xlu0 %2529
    %v2531 = vsel %vm987, %v2526, -inf
    %2532 = vmax.xlane.f32.xlu0 %v2531
    %v2533 = vpop.xlane.xlu0 %2532
    %v2534 = vsub.f32 %v2523, %v2530
    %v2535 = vsub.f32 %v2526, %v2533
    %v2536 = vmul.f32 %v2534, 1.442695
    %v2537 = vpow.pop %v2536
    %v2538 = vmul.f32 %v2535, 1.442695
    %v2539 = vpow.pop %v2538
    %v2540 = vsel %vm987, %v2537, 0.0
    %2541 = vadd.xlane.f32.xlu0 %v2540
    %v2542 = vpop.xlane.xlu0 %2541
    %v2543 = vsel %vm987, %v2539, 0.0
    %2544 = vadd.xlane.f32.xlu0 %v2543
    %v2545 = vpop.xlane.xlu0 %2544
    %v2546 = vrcp.pop %v2542
    %v2547 = vrcp.pop %v2545
    %v2548 = vmul.f32 %v2537, %v2546
    %v2549 = vmul.f32 %v2539, %v2547
    %2550 = vrot.lane.b32.xlu0 %v2474, 80
    %v2551 = vpop.permute.xlu0 %2550
    %2552 = vrot.lane.b32.xlu0 %v2477, 80
    %v2553 = vpop.permute.xlu0 %2552
    %v2557 = vsel %vm987, %v2548, 0
    %v2560 = vsel %vm987, %v2549, 0
    %2562 = vmatpush.msra.mxu0 0.0
    %2563 = vmatpush.msra.mxu0 0.0
    %2564 = vmatpush.msra.mxu0 0.0
    %2565 = vmatpush.msra.mxu0 0.0
    %2566 = vmatpush.msra.mxu0 0.0
    %2567 = vmatpush.msra.mxu0 0.0
    %2568 = vmatpush.msra.mxu0 0.0
    %2569 = vmatpush.msra.mxu0 0.0
    %2570 = vmatpush.msra.mxu0 0.0
    %2571 = vmatpush.msra.mxu0 0.0
    %2572 = vmatpush.msra.mxu0 0.0
    %2573 = vmatpush.msra.mxu0 0.0
    %2574 = vmatpush.msra.mxu0 0.0
    %2575 = vmatpush.msra.mxu0 0.0
    %2576 = vmatpush.msra.mxu0 %v2553
    %2577 = vmatpush.msra.mxu0 %v2551
    %2578 = vmatmul.f32.gmra.mxu0 %v2557
    %v2579 = vpop.f32.mrf.mxu0
    %v2580 = vadd.f32 0.0, %v2579
    %2581 = vmatmul.f32.gmra.mxu0 %v2560
    %v2582 = vpop.f32.mrf.mxu0
    %v2583 = vadd.f32 0.0, %v2582
    %2584 = vdwg.mxu0
    %2587 = vrot.lane.b32.xlu0 %v2480, 104
    %v2588 = vpop.permute.xlu0 %2587
    %2589 = vrot.lane.b32.xlu0 %v2483, 104
    %v2590 = vpop.permute.xlu0 %2589
    %v2592 = vsel %vm2327, %v2487, 0
    %v2595 = vsel %vm2327, %v2488, 0
    %v2597 = vsel %vm2327, %v2588, 0
    %v2599 = vsel %vm2327, %v2590, 0
    %2601 = vmatpush.xpose.msra.mxu0 0.0
    %2602 = vmatpush.xpose.msra.mxu0 0.0
    %2603 = vmatpush.xpose.msra.mxu0 0.0
    %2604 = vmatpush.xpose.msra.mxu0 0.0
    %2605 = vmatpush.xpose.msra.mxu0 0.0
    %2606 = vmatpush.xpose.msra.mxu0 0.0
    %2607 = vmatpush.xpose.msra.mxu0 0.0
    %2608 = vmatpush.xpose.msra.mxu0 0.0
    %2609 = vmatpush.xpose.msra.mxu0 0.0
    %2610 = vmatpush.xpose.msra.mxu0 0.0
    %2611 = vmatpush.xpose.msra.mxu0 0.0
    %2612 = vmatpush.xpose.msra.mxu0 0.0
    %2613 = vmatpush.xpose.msra.mxu0 0.0
    %2614 = vmatpush.xpose.msra.mxu0 0.0
    %2615 = vmatpush.xpose.msra.mxu0 %v2599
    %2616 = vmatpush.xpose.msra.mxu0 %v2597
    %2617 = vmatmul.f32.gmra.mxu0 %v2592
    %v2618 = vpop.f32.mrf.mxu0
    %v2619 = vadd.f32 %v903, %v2618
    %2620 = vmatmul.f32.gmra.mxu0 %v2595
    %v2621 = vpop.f32.mrf.mxu0
    %v2622 = vadd.f32 %v904, %v2621
    %2623 = vdwg.mxu0
    %v2624 = vsel %vm987, %v2619, -inf
    %2625 = vmax.xlane.f32.xlu0 %v2624
    %v2626 = vpop.xlane.xlu0 %2625
    %v2627 = vsel %vm987, %v2622, -inf
    %2628 = vmax.xlane.f32.xlu0 %v2627
    %v2629 = vpop.xlane.xlu0 %2628
    %v2630 = vsub.f32 %v2619, %v2626
    %v2631 = vsub.f32 %v2622, %v2629
    %v2632 = vmul.f32 %v2630, 1.442695
    %v2633 = vpow.pop %v2632
    %v2634 = vmul.f32 %v2631, 1.442695
    %v2635 = vpow.pop %v2634
    %v2636 = vsel %vm987, %v2633, 0.0
    %2637 = vadd.xlane.f32.xlu0 %v2636
    %v2638 = vpop.xlane.xlu0 %2637
    %v2639 = vsel %vm987, %v2635, 0.0
    %2640 = vadd.xlane.f32.xlu0 %v2639
    %v2641 = vpop.xlane.xlu0 %2640
    %v2642 = vrcp.pop %v2638
    %v2643 = vrcp.pop %v2641
    %v2644 = vmul.f32 %v2633, %v2642
    %v2645 = vmul.f32 %v2635, %v2643
    %2646 = vrot.lane.b32.xlu0 %v2480, 80
    %v2647 = vpop.permute.xlu0 %2646
    %2648 = vrot.lane.b32.xlu0 %v2483, 80
    %v2649 = vpop.permute.xlu0 %2648
    %v2653 = vsel %vm987, %v2644, 0
    %v2656 = vsel %vm987, %v2645, 0
    %2658 = vmatpush.msra.mxu0 0.0
    %2659 = vmatpush.msra.mxu0 0.0
    %2660 = vmatpush.msra.mxu0 0.0
    %2661 = vmatpush.msra.mxu0 0.0
    %2662 = vmatpush.msra.mxu0 0.0
    %2663 = vmatpush.msra.mxu0 0.0
    %2664 = vmatpush.msra.mxu0 0.0
    %2665 = vmatpush.msra.mxu0 0.0
    %2666 = vmatpush.msra.mxu0 0.0
    %2667 = vmatpush.msra.mxu0 0.0
    %2668 = vmatpush.msra.mxu0 0.0
    %2669 = vmatpush.msra.mxu0 0.0
    %2670 = vmatpush.msra.mxu0 0.0
    %2671 = vmatpush.msra.mxu0 0.0
    %2672 = vmatpush.msra.mxu0 %v2649
    %2673 = vmatpush.msra.mxu0 %v2647
    %2674 = vmatmul.f32.gmra.mxu0 %v2653
    %v2675 = vpop.f32.mrf.mxu0
    %v2676 = vadd.f32 0.0, %v2675
    %2677 = vmatmul.f32.gmra.mxu0 %v2656
    %v2678 = vpop.f32.mrf.mxu0
    %v2679 = vadd.f32 0.0, %v2678
    %2680 = vdwg.mxu0
    %v2681 = vld [vmem:[%s107] sm:$0xff]
    %v2682 = vld [vmem:[%s107 + $0x8] sm:$0xff]
    %v2683 = vld [vmem:[%s107 + $0x10] sm:$0xff]
    %v2684 = vld [vmem:[#allocation36] sm:$0x1]
    %v2686 = vperm.slane %v2684, 0
    %v2689 = vsel %vm2327, %v2580, 0
    %v2692 = vsel %vm2327, %v2583, 0
    %v2695 = vsel %vm2327, %v2676, 0
    %v2698 = vsel %vm2327, %v2679, 0
    %2700 = vmatpush.msra.mxu0 0.0
    %2701 = vmatpush.msra.mxu0 0.0
    %2702 = vmatpush.msra.mxu0 0.0
    %2703 = vmatpush.msra.mxu0 0.0
    %2704 = vmatpush.msra.mxu0 0.0
    %2705 = vmatpush.msra.mxu0 0.0
    %2706 = vmatpush.msra.mxu0 0.0
    %2707 = vmatpush.msra.mxu0 0.0
    %2708 = vmatpush.msra.mxu0 0.0
    %2709 = vmatpush.msra.mxu0 0.0
    %2710 = vmatpush.msra.mxu0 0.0
    %2711 = vmatpush.msra.mxu0 0.0
    %2712 = vmatpush.msra.mxu0 0.0
    %2713 = vmatpush.msra.mxu0 %v2683
    %2714 = vmatpush.msra.mxu0 %v2682
    %2715 = vmatpush.msra.mxu0 %v2681
    %2716 = vmatmul.f32.gmra.mxu0 %v2689
    %v2717 = vpop.f32.mrf.mxu0
    %v2718 = vadd.f32 %v2686, %v2717
    %2719 = vmatmul.f32.gmra.mxu0 %v2692
    %v2720 = vpop.f32.mrf.mxu0
    %v2721 = vadd.f32 %v2686, %v2720
    %2722 = vmatmul.f32.gmra.mxu0 %v2695
    %v2723 = vpop.f32.mrf.mxu0
    %v2724 = vadd.f32 %v2686, %v2723
    %2725 = vmatmul.f32.gmra.mxu0 %v2698
    %v2726 = vpop.f32.mrf.mxu0
    %v2727 = vadd.f32 %v2686, %v2726
    %2728 = vdwg.mxu0
    %v2729 = vadd.f32 %v2314, %v2718
    %v2730 = vadd.f32 %v2317, %v2721
    %v2731 = vadd.f32 %v2320, %v2724
    %v2732 = vadd.f32 %v2323, %v2727
    %v2733 = vld [vmem:[#allocation38] sm:$0x1]
    %v2734 = vld [vmem:[#allocation39] sm:$0x1]
    %v2735 = vsel %vm2327, %v2729, 0.0
    %2736 = vadd.xlane.f32.xlu0 %v2735
    %v2737 = vpop.xlane.xlu0 %2736
    %v2738 = vsel %vm2327, %v2730, 0.0
    %2739 = vadd.xlane.f32.xlu0 %v2738
    %v2740 = vpop.xlane.xlu0 %2739
    %v2741 = vsel %vm2327, %v2731, 0.0
    %2742 = vadd.xlane.f32.xlu0 %v2741
    %v2743 = vpop.xlane.xlu0 %2742
    %v2744 = vsel %vm2327, %v2732, 0.0
    %2745 = vadd.xlane.f32.xlu0 %v2744
    %v2746 = vpop.xlane.xlu0 %2745
    %v2747 = vmul.f32 %v2737, %v2346
    %v2748 = vmul.f32 %v2740, %v2346
    %v2749 = vmul.f32 %v2743, %v2346
    %v2750 = vmul.f32 %v2746, %v2346
    %v2751 = vsub.f32 %v2729, %v2747
    %v2752 = vsub.f32 %v2730, %v2748
    %v2753 = vsub.f32 %v2731, %v2749
    %v2754 = vsub.f32 %v2732, %v2750
    %v2755 = vmul.f32 %v2751, %v2751
    %v2756 = vmul.f32 %v2752, %v2752
    %v2757 = vmul.f32 %v2753, %v2753
    %v2758 = vmul.f32 %v2754, %v2754
    %v2759 = vsel %vm2327, %v2755, 0.0
    %2760 = vadd.xlane.f32.xlu0 %v2759
    %v2761 = vpop.xlane.xlu0 %2760
    %v2762 = vsel %vm2327, %v2756, 0.0
    %2763 = vadd.xlane.f32.xlu0 %v2762
    %v2764 = vpop.xlane.xlu0 %2763
    %v2765 = vsel %vm2327, %v2757, 0.0
    %2766 = vadd.xlane.f32.xlu0 %v2765
    %v2767 = vpop.xlane.xlu0 %2766
    %v2768 = vsel %vm2327, %v2758, 0.0
    %2769 = vadd.xlane.f32.xlu0 %v2768
    %v2770 = vpop.xlane.xlu0 %2769
    %v2771 = vmul.f32 %v2761, %v2346
    %v2772 = vmul.f32 %v2764, %v2346
    %v2773 = vmul.f32 %v2767, %v2346
    %v2774 = vmul.f32 %v2770, %v2346
    %v2775 = vadd.f32 %v2771, 1e-05
    %v2776 = vadd.f32 %v2772, 1e-05
    %v2777 = vadd.f32 %v2773, 1e-05
    %v2778 = vadd.f32 %v2774, 1e-05
    %v2779 = vrsqrt.pop %v2775
    %v2780 = vmul.f32 %v2779, %v2775
    %v2781 = vmul.f32 %v2780, %v2779
    %v2782 = vmul.f32 0.5, %v2781
    %v2783 = vsub.f32 1.5, %v2782
    %v2784 = vmul.f32 %v2779, %v2783
    %vm2785 = vweird.f32 %v2775
    %vm2786 = vweird.f32 %v2779
    %vm2787 = vmor %vm2785, %vm2786
    %v2788 = vsel %vm2787, %v2779, %v2784
    %v2789 = vrsqrt.pop %v2776
    %v2790 = vmul.f32 %v2789, %v2776
    %v2791 = vmul.f32 %v2790, %v2789
    %v2792 = vmul.f32 0.5, %v2791
    %v2793 = vsub.f32 1.5, %v2792
    %v2794 = vmul.f32 %v2789, %v2793
    %vm2795 = vweird.f32 %v2776
    %vm2796 = vweird.f32 %v2789
    %vm2797 = vmor %vm2795, %vm2796
    %v2798 = vsel %vm2797, %v2789, %v2794
    %v2799 = vrsqrt.pop %v2777
    %v2800 = vmul.f32 %v2799, %v2777
    %v2801 = vmul.f32 %v2800, %v2799
    %v2802 = vmul.f32 0.5, %v2801
    %v2803 = vsub.f32 1.5, %v2802
    %v2804 = vmul.f32 %v2799, %v2803
    %vm2805 = vweird.f32 %v2777
    %vm2806 = vweird.f32 %v2799
    %vm2807 = vmor %vm2805, %vm2806
    %v2808 = vsel %vm2807, %v2799, %v2804
    %v2809 = vrsqrt.pop %v2778
    %v2810 = vmul.f32 %v2809, %v2778
    %v2811 = vmul.f32 %v2810, %v2809
    %v2812 = vmul.f32 0.5, %v2811
    %v2813 = vsub.f32 1.5, %v2812
    %v2814 = vmul.f32 %v2809, %v2813
    %vm2815 = vweird.f32 %v2778
    %vm2816 = vweird.f32 %v2809
    %vm2817 = vmor %vm2815, %vm2816
    %v2818 = vsel %vm2817, %v2809, %v2814
    %v2819 = vmul.f32 %v2751, %v2788
    %v2820 = vmul.f32 %v2752, %v2798
    %v2821 = vmul.f32 %v2753, %v2808
    %v2822 = vmul.f32 %v2754, %v2818
    %v2824 = vperm.slane %v2733, 0
    %v2826 = vmul.f32 %v2819, %v2824
    %v2827 = vmul.f32 %v2820, %v2824
    %v2828 = vmul.f32 %v2821, %v2824
    %v2829 = vmul.f32 %v2822, %v2824
    %v2831 = vperm.slane %v2734, 0
    %v2833 = vadd.f32 %v2826, %v2831
    %v2834 = vadd.f32 %v2827, %v2831
    %v2835 = vadd.f32 %v2828, %v2831
    %v2836 = vadd.f32 %v2829, %v2831
    %v2837 = vld [vmem:[%s115] sm:$0xff]
    %v2838 = vld [vmem:[%s115 + $0x8] sm:$0xff]
    %v2839 = vld [vmem:[%s115 + $0x10] sm:$0xff]
    %v2840 = vld [vmem:[#allocation41] sm:$0x1]
    %v2842 = vperm.slane %v2840, 0
    %v2845 = vsel %vm2327, %v2833, 0
    %v2848 = vsel %vm2327, %v2834, 0
    %v2851 = vsel %vm2327, %v2835, 0
    %v2854 = vsel %vm2327, %v2836, 0
    %2856 = vmatpush.msra.mxu0 0.0
    %2857 = vmatpush.msra.mxu0 0.0
    %2858 = vmatpush.msra.mxu0 0.0
    %2859 = vmatpush.msra.mxu0 0.0
    %2860 = vmatpush.msra.mxu0 0.0
    %2861 = vmatpush.msra.mxu0 0.0
    %2862 = vmatpush.msra.mxu0 0.0
    %2863 = vmatpush.msra.mxu0 0.0
    %2864 = vmatpush.msra.mxu0 0.0
    %2865 = vmatpush.msra.mxu0 0.0
    %2866 = vmatpush.msra.mxu0 0.0
    %2867 = vmatpush.msra.mxu0 0.0
    %2868 = vmatpush.msra.mxu0 0.0
    %2869 = vmatpush.msra.mxu0 %v2839
    %2870 = vmatpush.msra.mxu0 %v2838
    %2871 = vmatpush.msra.mxu0 %v2837
    %2872 = vmatmul.f32.gmra.mxu0 %v2845
    %v2873 = vpop.f32.mrf.mxu0
    %v2874 = vadd.f32 %v2842, %v2873
    %2875 = vmatmul.f32.gmra.mxu0 %v2848
    %v2876 = vpop.f32.mrf.mxu0
    %v2877 = vadd.f32 %v2842, %v2876
    %2878 = vmatmul.f32.gmra.mxu0 %v2851
    %v2879 = vpop.f32.mrf.mxu0
    %v2880 = vadd.f32 %v2842, %v2879
    %2881 = vmatmul.f32.gmra.mxu0 %v2854
    %v2882 = vpop.f32.mrf.mxu0
    %v2883 = vadd.f32 %v2842, %v2882
    %2884 = vdwg.mxu0
    %v2885 = vmul.f32 %v2874, 0.5
    %v2886 = vmul.f32 %v2877, 0.5
    %v2887 = vmul.f32 %v2880, 0.5
    %v2888 = vmul.f32 %v2883, 0.5
    %v2889 = vmul.f32 %v2874, 0.044715
    %v2890 = vmul.f32 %v2877, 0.044715
    %v2891 = vmul.f32 %v2880, 0.044715
    %v2892 = vmul.f32 %v2883, 0.044715
    %v2893 = vmul.f32 %v2889, %v2874
    %v2894 = vmul.f32 %v2890, %v2877
    %v2895 = vmul.f32 %v2891, %v2880
    %v2896 = vmul.f32 %v2892, %v2883
    %v2897 = vmul.f32 %v2893, %v2874
    %v2898 = vmul.f32 %v2894, %v2877
    %v2899 = vmul.f32 %v2895, %v2880
    %v2900 = vmul.f32 %v2896, %v2883
    %v2901 = vadd.f32 %v2874, %v2897
    %v2902 = vadd.f32 %v2877, %v2898
    %v2903 = vadd.f32 %v2880, %v2899
    %v2904 = vadd.f32 %v2883, %v2900
    %v2905 = vmul.f32 %v2901, 0.7978846
    %v2906 = vmul.f32 %v2902, 0.7978846
    %v2907 = vmul.f32 %v2903, 0.7978846
    %v2908 = vmul.f32 %v2904, 0.7978846
    %v2909 = vtanh.pop %v2905
    %v2910 = vtanh.pop %v2906
    %v2911 = vtanh.pop %v2907
    %v2912 = vtanh.pop %v2908
    %v2913 = vadd.f32 %v2909, 1.0
    %v2914 = vadd.f32 %v2910, 1.0
    %v2915 = vadd.f32 %v2911, 1.0
    %v2916 = vadd.f32 %v2912, 1.0
    %v2917 = vmul.f32 %v2885, %v2913
    %v2918 = vmul.f32 %v2886, %v2914
    %v2919 = vmul.f32 %v2887, %v2915
    %v2920 = vmul.f32 %v2888, %v2916
    %v2921 = vld [vmem:[%s119] sm:$0xff]
    %v2922 = vld [vmem:[%s119 + $0x8] sm:$0xff]
    %v2923 = vld [vmem:[%s119 + $0x10] sm:$0xff]
    %v2924 = vld [vmem:[%s119 + $0x18] sm:$0xff]
    %v2925 = vld [vmem:[%s119 + $0x20] sm:$0xff]
    %v2926 = vld [vmem:[%s119 + $0x28] sm:$0xff]
    %v2927 = vld [vmem:[%s119 + $0x30] sm:$0xff]
    %v2928 = vld [vmem:[%s119 + $0x38] sm:$0xff]
    %v2929 = vld [vmem:[%s119 + $0x40] sm:$0xff]
    %v2930 = vld [vmem:[%s119 + $0x48] sm:$0xff]
    %v2931 = vld [vmem:[%s119 + $0x50] sm:$0xff]
    %v2932 = vld [vmem:[%s119 + $0x58] sm:$0xff]
    %v2933 = vld [vmem:[#allocation42] sm:$0x1]
    %v2935 = vperm.slane %v2933, 0
    %vm2937 = vcmask 785408
    %v2939 = vsel %vm2937, %v2917, 0
    %v2942 = vsel %vm2937, %v2918, 0
    %v2945 = vsel %vm2937, %v2919, 0
    %v2948 = vsel %vm2937, %v2920, 0
    %2950 = vmatpush.msra.mxu0 0.0
    %2951 = vmatpush.msra.mxu0 0.0
    %2952 = vmatpush.msra.mxu0 0.0
    %2953 = vmatpush.msra.mxu0 0.0
    %2954 = vmatpush.msra.mxu0 %v2932
    %2955 = vmatpush.msra.mxu0 %v2931
    %2956 = vmatpush.msra.mxu0 %v2930
    %2957 = vmatpush.msra.mxu0 %v2929
    %2958 = vmatpush.msra.mxu0 %v2928
    %2959 = vmatpush.msra.mxu0 %v2927
    %2960 = vmatpush.msra.mxu0 %v2926
    %2961 = vmatpush.msra.mxu0 %v2925
    %2962 = vmatpush.msra.mxu0 %v2924
    %2963 = vmatpush.msra.mxu0 %v2923
    %2964 = vmatpush.msra.mxu0 %v2922
    %2965 = vmatpush.msra.mxu0 %v2921
    %2966 = vmatmul.f32.gmra.mxu0 %v2939
    %v2967 = vpop.f32.mrf.mxu0
    %v2968 = vadd.f32 %v2935, %v2967
    %2969 = vmatmul.f32.gmra.mxu0 %v2942
    %v2970 = vpop.f32.mrf.mxu0
    %v2971 = vadd.f32 %v2935, %v2970
    %2972 = vmatmul.f32.gmra.mxu0 %v2945
    %v2973 = vpop.f32.mrf.mxu0
    %v2974 = vadd.f32 %v2935, %v2973
    %2975 = vmatmul.f32.gmra.mxu0 %v2948
    %v2976 = vpop.f32.mrf.mxu0
    %v2977 = vadd.f32 %v2935, %v2976
    %2978 = vdwg.mxu0
    %v2979 = vadd.f32 %v2729, %v2968
    %v2980 = vadd.f32 %v2730, %v2971
    %v2981 = vadd.f32 %v2731, %v2974
    %v2982 = vadd.f32 %v2732, %v2977
    %v2983 = vld [vmem:[#allocation44] sm:$0x1]
    %v2984 = vld [vmem:[#allocation45] sm:$0x1]
    %v2985 = vsel %vm2327, %v2979, 0.0
    %2986 = vadd.xlane.f32.xlu0 %v2985
    %v2987 = vpop.xlane.xlu0 %2986
    %v2988 = vsel %vm2327, %v2980, 0.0
    %2989 = vadd.xlane.f32.xlu0 %v2988
    %v2990 = vpop.xlane.xlu0 %2989
    %v2991 = vsel %vm2327, %v2981, 0.0
    %2992 = vadd.xlane.f32.xlu0 %v2991
    %v2993 = vpop.xlane.xlu0 %2992
    %v2994 = vsel %vm2327, %v2982, 0.0
    %2995 = vadd.xlane.f32.xlu0 %v2994
    %v2996 = vpop.xlane.xlu0 %2995
    %v2997 = vmul.f32 %v2987, %v2346
    %v2998 = vmul.f32 %v2990, %v2346
    %v2999 = vmul.f32 %v2993, %v2346
    %v3000 = vmul.f32 %v2996, %v2346
    %v3001 = vsub.f32 %v2979, %v2997
    %v3002 = vsub.f32 %v2980, %v2998
    %v3003 = vsub.f32 %v2981, %v2999
    %v3004 = vsub.f32 %v2982, %v3000
    %v3005 = vmul.f32 %v3001, %v3001
    %v3006 = vmul.f32 %v3002, %v3002
    %v3007 = vmul.f32 %v3003, %v3003
    %v3008 = vmul.f32 %v3004, %v3004
    %v3009 = vsel %vm2327, %v3005, 0.0
    %3010 = vadd.xlane.f32.xlu0 %v3009
    %v3011 = vpop.xlane.xlu0 %3010
    %v3012 = vsel %vm2327, %v3006, 0.0
    %3013 = vadd.xlane.f32.xlu0 %v3012
    %v3014 = vpop.xlane.xlu0 %3013
    %v3015 = vsel %vm2327, %v3007, 0.0
    %3016 = vadd.xlane.f32.xlu0 %v3015
    %v3017 = vpop.xlane.xlu0 %3016
    %v3018 = vsel %vm2327, %v3008, 0.0
    %3019 = vadd.xlane.f32.xlu0 %v3018
    %v3020 = vpop.xlane.xlu0 %3019
    %v3021 = vmul.f32 %v3011, %v2346
    %v3022 = vmul.f32 %v3014, %v2346
    %v3023 = vmul.f32 %v3017, %v2346
    %v3024 = vmul.f32 %v3020, %v2346
    %v3025 = vadd.f32 %v3021, 1e-05
    %v3026 = vadd.f32 %v3022, 1e-05
    %v3027 = vadd.f32 %v3023, 1e-05
    %v3028 = vadd.f32 %v3024, 1e-05
    %v3029 = vrsqrt.pop %v3025
    %v3030 = vmul.f32 %v3029, %v3025
    %v3031 = vmul.f32 %v3030, %v3029
    %v3032 = vmul.f32 0.5, %v3031
    %v3033 = vsub.f32 1.5, %v3032
    %v3034 = vmul.f32 %v3029, %v3033
    %vm3035 = vweird.f32 %v3025
    %vm3036 = vweird.f32 %v3029
    %vm3037 = vmor %vm3035, %vm3036
    %v3038 = vsel %vm3037, %v3029, %v3034
    %v3039 = vrsqrt.pop %v3026
    %v3040 = vmul.f32 %v3039, %v3026
    %v3041 = vmul.f32 %v3040, %v3039
    %v3042 = vmul.f32 0.5, %v3041
    %v3043 = vsub.f32 1.5, %v3042
    %v3044 = vmul.f32 %v3039, %v3043
    %vm3045 = vweird.f32 %v3026
    %vm3046 = vweird.f32 %v3039
    %vm3047 = vmor %vm3045, %vm3046
    %v3048 = vsel %vm3047, %v3039, %v3044
    %v3049 = vrsqrt.pop %v3027
    %v3050 = vmul.f32 %v3049, %v3027
    %v3051 = vmul.f32 %v3050, %v3049
    %v3052 = vmul.f32 0.5, %v3051
    %v3053 = vsub.f32 1.5, %v3052
    %v3054 = vmul.f32 %v3049, %v3053
    %vm3055 = vweird.f32 %v3027
    %vm3056 = vweird.f32 %v3049
    %vm3057 = vmor %vm3055, %vm3056
    %v3058 = vsel %vm3057, %v3049, %v3054
    %v3059 = vrsqrt.pop %v3028
    %v3060 = vmul.f32 %v3059, %v3028
    %v3061 = vmul.f32 %v3060, %v3059
    %v3062 = vmul.f32 0.5, %v3061
    %v3063 = vsub.f32 1.5, %v3062
    %v3064 = vmul.f32 %v3059, %v3063
    %vm3065 = vweird.f32 %v3028
    %vm3066 = vweird.f32 %v3059
    %vm3067 = vmor %vm3065, %vm3066
    %v3068 = vsel %vm3067, %v3059, %v3064
    %v3069 = vmul.f32 %v3001, %v3038
    %v3070 = vmul.f32 %v3002, %v3048
    %v3071 = vmul.f32 %v3003, %v3058
    %v3072 = vmul.f32 %v3004, %v3068
    %v3074 = vperm.slane %v2983, 0
    %v3076 = vmul.f32 %v3069, %v3074
    %v3077 = vmul.f32 %v3070, %v3074
    %v3078 = vmul.f32 %v3071, %v3074
    %v3079 = vmul.f32 %v3072, %v3074
    %v3081 = vperm.slane %v2984, 0
    %v3083 = vadd.f32 %v3076, %v3081
    %v3084 = vadd.f32 %v3077, %v3081
    %v3085 = vadd.f32 %v3078, %v3081
    %v3086 = vadd.f32 %v3079, %v3081
    %v3087 = vld [vmem:[%s127] sm:$0xff]
    %v3088 = vld [vmem:[%s127 + $0x8] sm:$0xff]
    %v3089 = vld [vmem:[%s127 + $0x10] sm:$0xff]
    %v3090 = vld [vmem:[#allocation47] sm:$0x1]
    %v3092 = vperm.slane %v3090, 0
    %v3095 = vsel %vm2327, %v3083, 0
    %v3098 = vsel %vm2327, %v3084, 0
    %v3101 = vsel %vm2327, %v3085, 0
    %v3104 = vsel %vm2327, %v3086, 0
    %3106 = vmatpush.msra.mxu0 0.0
    %3107 = vmatpush.msra.mxu0 0.0
    %3108 = vmatpush.msra.mxu0 0.0
    %3109 = vmatpush.msra.mxu0 0.0
    %3110 = vmatpush.msra.mxu0 0.0
    %3111 = vmatpush.msra.mxu0 0.0
    %3112 = vmatpush.msra.mxu0 0.0
    %3113 = vmatpush.msra.mxu0 0.0
    %3114 = vmatpush.msra.mxu0 0.0
    %3115 = vmatpush.msra.mxu0 0.0
    %3116 = vmatpush.msra.mxu0 0.0
    %3117 = vmatpush.msra.mxu0 0.0
    %3118 = vmatpush.msra.mxu0 0.0
    %3119 = vmatpush.msra.mxu0 %v3089
    %3120 = vmatpush.msra.mxu0 %v3088
    %3121 = vmatpush.msra.mxu0 %v3087
    %3122 = vmatmul.f32.gmra.mxu0 %v3095
    %v3123 = vpop.f32.mrf.mxu0
    %v3124 = vadd.f32 %v3092, %v3123
    %3125 = vmatmul.f32.gmra.mxu0 %v3098
    %v3126 = vpop.f32.mrf.mxu0
    %v3127 = vadd.f32 %v3092, %v3126
    %3128 = vmatmul.f32.gmra.mxu0 %v3101
    %v3129 = vpop.f32.mrf.mxu0
    %v3130 = vadd.f32 %v3092, %v3129
    %3131 = vmatmul.f32.gmra.mxu0 %v3104
    %v3132 = vpop.f32.mrf.mxu0
    %v3133 = vadd.f32 %v3092, %v3132
    %3134 = vdwg.mxu0
    %v3135 = vmul.f32 %v3124, 0.20412415
    %v3136 = vmul.f32 %v3127, 0.20412415
    %v3137 = vmul.f32 %v3130, 0.20412415
    %v3138 = vmul.f32 %v3133, 0.20412415
    %3141 = vrot.lane.b32.xlu0 %v3124, 104
    %v3142 = vpop.permute.xlu0 %3141
    %3143 = vrot.lane.b32.xlu0 %v3127, 104
    %v3144 = vpop.permute.xlu0 %3143
    %v3146 = vsel %vm2327, %v3135, 0
    %v3149 = vsel %vm2327, %v3136, 0
    %v3151 = vsel %vm2327, %v3142, 0
    %v3153 = vsel %vm2327, %v3144, 0
    %3155 = vmatpush.xpose.msra.mxu0 0.0
    %3156 = vmatpush.xpose.msra.mxu0 0.0
    %3157 = vmatpush.xpose.msra.mxu0 0.0
    %3158 = vmatpush.xpose.msra.mxu0 0.0
    %3159 = vmatpush.xpose.msra.mxu0 0.0
    %3160 = vmatpush.xpose.msra.mxu0 0.0
    %3161 = vmatpush.xpose.msra.mxu0 0.0
    %3162 = vmatpush.xpose.msra.mxu0 0.0
    %3163 = vmatpush.xpose.msra.mxu0 0.0
    %3164 = vmatpush.xpose.msra.mxu0 0.0
    %3165 = vmatpush.xpose.msra.mxu0 0.0
    %3166 = vmatpush.xpose.msra.mxu0 0.0
    %3167 = vmatpush.xpose.msra.mxu0 0.0
    %3168 = vmatpush.xpose.msra.mxu0 0.0
    %3169 = vmatpush.xpose.msra.mxu0 %v3153
    %3170 = vmatpush.xpose.msra.mxu0 %v3151
    %3171 = vmatmul.f32.gmra.mxu0 %v3146
    %v3172 = vpop.f32.mrf.mxu0
    %v3173 = vadd.f32 %v903, %v3172
    %3174 = vmatmul.f32.gmra.mxu0 %v3149
    %v3175 = vpop.f32.mrf.mxu0
    %v3176 = vadd.f32 %v904, %v3175
    %3177 = vdwg.mxu0
    %v3178 = vsel %vm987, %v3173, -inf
    %3179 = vmax.xlane.f32.xlu0 %v3178
    %v3180 = vpop.xlane.xlu0 %3179
    %v3181 = vsel %vm987, %v3176, -inf
    %3182 = vmax.xlane.f32.xlu0 %v3181
    %v3183 = vpop.xlane.xlu0 %3182
    %v3184 = vsub.f32 %v3173, %v3180
    %v3185 = vsub.f32 %v3176, %v3183
    %v3186 = vmul.f32 %v3184, 1.442695
    %v3187 = vpow.pop %v3186
    %v3188 = vmul.f32 %v3185, 1.442695
    %v3189 = vpow.pop %v3188
    %v3190 = vsel %vm987, %v3187, 0.0
    %3191 = vadd.xlane.f32.xlu0 %v3190
    %v3192 = vpop.xlane.xlu0 %3191
    %v3193 = vsel %vm987, %v3189, 0.0
    %3194 = vadd.xlane.f32.xlu0 %v3193
    %v3195 = vpop.xlane.xlu0 %3194
    %v3196 = vrcp.pop %v3192
    %v3197 = vrcp.pop %v3195
    %v3198 = vmul.f32 %v3187, %v3196
    %v3199 = vmul.f32 %v3189, %v3197
    %3200 = vrot.lane.b32.xlu0 %v3124, 80
    %v3201 = vpop.permute.xlu0 %3200
    %3202 = vrot.lane.b32.xlu0 %v3127, 80
    %v3203 = vpop.permute.xlu0 %3202
    %v3207 = vsel %vm987, %v3198, 0
    %v3210 = vsel %vm987, %v3199, 0
    %3212 = vmatpush.msra.mxu0 0.0
    %3213 = vmatpush.msra.mxu0 0.0
    %3214 = vmatpush.msra.mxu0 0.0
    %3215 = vmatpush.msra.mxu0 0.0
    %3216 = vmatpush.msra.mxu0 0.0
    %3217 = vmatpush.msra.mxu0 0.0
    %3218 = vmatpush.msra.mxu0 0.0
    %3219 = vmatpush.msra.mxu0 0.0
    %3220 = vmatpush.msra.mxu0 0.0
    %3221 = vmatpush.msra.mxu0 0.0
    %3222 = vmatpush.msra.mxu0 0.0
    %3223 = vmatpush.msra.mxu0 0.0
    %3224 = vmatpush.msra.mxu0 0.0
    %3225 = vmatpush.msra.mxu0 0.0
    %3226 = vmatpush.msra.mxu0 %v3203
    %3227 = vmatpush.msra.mxu0 %v3201
    %3228 = vmatmul.f32.gmra.mxu0 %v3207
    %v3229 = vpop.f32.mrf.mxu0
    %v3230 = vadd.f32 0.0, %v3229
    %3231 = vmatmul.f32.gmra.mxu0 %v3210
    %v3232 = vpop.f32.mrf.mxu0
    %v3233 = vadd.f32 0.0, %v3232
    %3234 = vdwg.mxu0
    %3237 = vrot.lane.b32.xlu0 %v3130, 104
    %v3238 = vpop.permute.xlu0 %3237
    %3239 = vrot.lane.b32.xlu0 %v3133, 104
    %v3240 = vpop.permute.xlu0 %3239
    %v3242 = vsel %vm2327, %v3137, 0
    %v3245 = vsel %vm2327, %v3138, 0
    %v3247 = vsel %vm2327, %v3238, 0
    %v3249 = vsel %vm2327, %v3240, 0
    %3251 = vmatpush.xpose.msra.mxu0 0.0
    %3252 = vmatpush.xpose.msra.mxu0 0.0
    %3253 = vmatpush.xpose.msra.mxu0 0.0
    %3254 = vmatpush.xpose.msra.mxu0 0.0
    %3255 = vmatpush.xpose.msra.mxu0 0.0
    %3256 = vmatpush.xpose.msra.mxu0 0.0
    %3257 = vmatpush.xpose.msra.mxu0 0.0
    %3258 = vmatpush.xpose.msra.mxu0 0.0
    %3259 = vmatpush.xpose.msra.mxu0 0.0
    %3260 = vmatpush.xpose.msra.mxu0 0.0
    %3261 = vmatpush.xpose.msra.mxu0 0.0
    %3262 = vmatpush.xpose.msra.mxu0 0.0
    %3263 = vmatpush.xpose.msra.mxu0 0.0
    %3264 = vmatpush.xpose.msra.mxu0 0.0
    %3265 = vmatpush.xpose.msra.mxu0 %v3249
    %3266 = vmatpush.xpose.msra.mxu0 %v3247
    %3267 = vmatmul.f32.gmra.mxu0 %v3242
    %v3268 = vpop.f32.mrf.mxu0
    %v3269 = vadd.f32 %v903, %v3268
    %3270 = vmatmul.f32.gmra.mxu0 %v3245
    %v3271 = vpop.f32.mrf.mxu0
    %v3272 = vadd.f32 %v904, %v3271
    %3273 = vdwg.mxu0
    %v3274 = vsel %vm987, %v3269, -inf
    %3275 = vmax.xlane.f32.xlu0 %v3274
    %v3276 = vpop.xlane.xlu0 %3275
    %v3277 = vsel %vm987, %v3272, -inf
    %3278 = vmax.xlane.f32.xlu0 %v3277
    %v3279 = vpop.xlane.xlu0 %3278
    %v3280 = vsub.f32 %v3269, %v3276
    %v3281 = vsub.f32 %v3272, %v3279
    %v3282 = vmul.f32 %v3280, 1.442695
    %v3283 = vpow.pop %v3282
    %v3284 = vmul.f32 %v3281, 1.442695
    %v3285 = vpow.pop %v3284
    %v3286 = vsel %vm987, %v3283, 0.0
    %3287 = vadd.xlane.f32.xlu0 %v3286
    %v3288 = vpop.xlane.xlu0 %3287
    %v3289 = vsel %vm987, %v3285, 0.0
    %3290 = vadd.xlane.f32.xlu0 %v3289
    %v3291 = vpop.xlane.xlu0 %3290
    %v3292 = vrcp.pop %v3288
    %v3293 = vrcp.pop %v3291
    %v3294 = vmul.f32 %v3283, %v3292
    %v3295 = vmul.f32 %v3285, %v3293
    %3296 = vrot.lane.b32.xlu0 %v3130, 80
    %v3297 = vpop.permute.xlu0 %3296
    %3298 = vrot.lane.b32.xlu0 %v3133, 80
    %v3299 = vpop.permute.xlu0 %3298
    %v3303 = vsel %vm987, %v3294, 0
    %v3306 = vsel %vm987, %v3295, 0
    %3308 = vmatpush.msra.mxu0 0.0
    %3309 = vmatpush.msra.mxu0 0.0
    %3310 = vmatpush.msra.mxu0 0.0
    %3311 = vmatpush.msra.mxu0 0.0
    %3312 = vmatpush.msra.mxu0 0.0
    %3313 = vmatpush.msra.mxu0 0.0
    %3314 = vmatpush.msra.mxu0 0.0
    %3315 = vmatpush.msra.mxu0 0.0
    %3316 = vmatpush.msra.mxu0 0.0
    %3317 = vmatpush.msra.mxu0 0.0
    %3318 = vmatpush.msra.mxu0 0.0
    %3319 = vmatpush.msra.mxu0 0.0
    %3320 = vmatpush.msra.mxu0 0.0
    %3321 = vmatpush.msra.mxu0 0.0
    %3322 = vmatpush.msra.mxu0 %v3299
    %3323 = vmatpush.msra.mxu0 %v3297
    %3324 = vmatmul.f32.gmra.mxu0 %v3303
    %v3325 = vpop.f32.mrf.mxu0
    %v3326 = vadd.f32 0.0, %v3325
    %3327 = vmatmul.f32.gmra.mxu0 %v3306
    %v3328 = vpop.f32.mrf.mxu0
    %v3329 = vadd.f32 0.0, %v3328
    %3330 = vdwg.mxu0
    %v3331 = vld [vmem:[%s131] sm:$0xff]
    %v3332 = vld [vmem:[%s131 + $0x8] sm:$0xff]
    %v3333 = vld [vmem:[%s131 + $0x10] sm:$0xff]
    %v3334 = vld [vmem:[#allocation48] sm:$0x1]
    %v3336 = vperm.slane %v3334, 0
    %v3339 = vsel %vm2327, %v3230, 0
    %v3342 = vsel %vm2327, %v3233, 0
    %v3345 = vsel %vm2327, %v3326, 0
    %v3348 = vsel %vm2327, %v3329, 0
    %3350 = vmatpush.msra.mxu0 0.0
    %3351 = vmatpush.msra.mxu0 0.0
    %3352 = vmatpush.msra.mxu0 0.0
    %3353 = vmatpush.msra.mxu0 0.0
    %3354 = vmatpush.msra.mxu0 0.0
    %3355 = vmatpush.msra.mxu0 0.0
    %3356 = vmatpush.msra.mxu0 0.0
    %3357 = vmatpush.msra.mxu0 0.0
    %3358 = vmatpush.msra.mxu0 0.0
    %3359 = vmatpush.msra.mxu0 0.0
    %3360 = vmatpush.msra.mxu0 0.0
    %3361 = vmatpush.msra.mxu0 0.0
    %3362 = vmatpush.msra.mxu0 0.0
    %3363 = vmatpush.msra.mxu0 %v3333
    %3364 = vmatpush.msra.mxu0 %v3332
    %3365 = vmatpush.msra.mxu0 %v3331
    %3366 = vmatmul.f32.gmra.mxu0 %v3339
    %v3367 = vpop.f32.mrf.mxu0
    %v3368 = vadd.f32 %v3336, %v3367
    %3369 = vmatmul.f32.gmra.mxu0 %v3342
    %v3370 = vpop.f32.mrf.mxu0
    %v3371 = vadd.f32 %v3336, %v3370
    %3372 = vmatmul.f32.gmra.mxu0 %v3345
    %v3373 = vpop.f32.mrf.mxu0
    %v3374 = vadd.f32 %v3336, %v3373
    %3375 = vmatmul.f32.gmra.mxu0 %v3348
    %v3376 = vpop.f32.mrf.mxu0
    %v3377 = vadd.f32 %v3336, %v3376
    %3378 = vdwg.mxu0
    %v3379 = vadd.f32 %v2979, %v3368
    %v3380 = vadd.f32 %v2980, %v3371
    %v3381 = vadd.f32 %v2981, %v3374
    %v3382 = vadd.f32 %v2982, %v3377
    %v3383 = vld [vmem:[#allocation50] sm:$0x1]
    %v3384 = vld [vmem:[#allocation51] sm:$0x1]
    %v3385 = vsel %vm2327, %v3379, 0.0
    %3386 = vadd.xlane.f32.xlu0 %v3385
    %v3387 = vpop.xlane.xlu0 %3386
    %v3388 = vsel %vm2327, %v3380, 0.0
    %3389 = vadd.xlane.f32.xlu0 %v3388
    %v3390 = vpop.xlane.xlu0 %3389
    %v3391 = vsel %vm2327, %v3381, 0.0
    %3392 = vadd.xlane.f32.xlu0 %v3391
    %v3393 = vpop.xlane.xlu0 %3392
    %v3394 = vsel %vm2327, %v3382, 0.0
    %3395 = vadd.xlane.f32.xlu0 %v3394
    %v3396 = vpop.xlane.xlu0 %3395
    %v3397 = vmul.f32 %v3387, %v2346
    %v3398 = vmul.f32 %v3390, %v2346
    %v3399 = vmul.f32 %v3393, %v2346
    %v3400 = vmul.f32 %v3396, %v2346
    %v3401 = vsub.f32 %v3379, %v3397
    %v3402 = vsub.f32 %v3380, %v3398
    %v3403 = vsub.f32 %v3381, %v3399
    %v3404 = vsub.f32 %v3382, %v3400
    %v3405 = vmul.f32 %v3401, %v3401
    %v3406 = vmul.f32 %v3402, %v3402
    %v3407 = vmul.f32 %v3403, %v3403
    %v3408 = vmul.f32 %v3404, %v3404
    %v3409 = vsel %vm2327, %v3405, 0.0
    %3410 = vadd.xlane.f32.xlu0 %v3409
    %v3411 = vpop.xlane.xlu0 %3410
    %v3412 = vsel %vm2327, %v3406, 0.0
    %3413 = vadd.xlane.f32.xlu0 %v3412
    %v3414 = vpop.xlane.xlu0 %3413
    %v3415 = vsel %vm2327, %v3407, 0.0
    %3416 = vadd.xlane.f32.xlu0 %v3415
    %v3417 = vpop.xlane.xlu0 %3416
    %v3418 = vsel %vm2327, %v3408, 0.0
    %3419 = vadd.xlane.f32.xlu0 %v3418
    %v3420 = vpop.xlane.xlu0 %3419
    %v3421 = vmul.f32 %v3411, %v2346
    %v3422 = vmul.f32 %v3414, %v2346
    %v3423 = vmul.f32 %v3417, %v2346
    %v3424 = vmul.f32 %v3420, %v2346
    %v3425 = vadd.f32 %v3421, 1e-05
    %v3426 = vadd.f32 %v3422, 1e-05
    %v3427 = vadd.f32 %v3423, 1e-05
    %v3428 = vadd.f32 %v3424, 1e-05
    %v3429 = vrsqrt.pop %v3425
    %v3430 = vmul.f32 %v3429, %v3425
    %v3431 = vmul.f32 %v3430, %v3429
    %v3432 = vmul.f32 0.5, %v3431
    %v3433 = vsub.f32 1.5, %v3432
    %v3434 = vmul.f32 %v3429, %v3433
    %vm3435 = vweird.f32 %v3425
    %vm3436 = vweird.f32 %v3429
    %vm3437 = vmor %vm3435, %vm3436
    %v3438 = vsel %vm3437, %v3429, %v3434
    %v3439 = vrsqrt.pop %v3426
    %v3440 = vmul.f32 %v3439, %v3426
    %v3441 = vmul.f32 %v3440, %v3439
    %v3442 = vmul.f32 0.5, %v3441
    %v3443 = vsub.f32 1.5, %v3442
    %v3444 = vmul.f32 %v3439, %v3443
    %vm3445 = vweird.f32 %v3426
    %vm3446 = vweird.f32 %v3439
    %vm3447 = vmor %vm3445, %vm3446
    %v3448 = vsel %vm3447, %v3439, %v3444
    %v3449 = vrsqrt.pop %v3427
    %v3450 = vmul.f32 %v3449, %v3427
    %v3451 = vmul.f32 %v3450, %v3449
    %v3452 = vmul.f32 0.5, %v3451
    %v3453 = vsub.f32 1.5, %v3452
    %v3454 = vmul.f32 %v3449, %v3453
    %vm3455 = vweird.f32 %v3427
    %vm3456 = vweird.f32 %v3449
    %vm3457 = vmor %vm3455, %vm3456
    %v3458 = vsel %vm3457, %v3449, %v3454
    %v3459 = vrsqrt.pop %v3428
    %v3460 = vmul.f32 %v3459, %v3428
    %v3461 = vmul.f32 %v3460, %v3459
    %v3462 = vmul.f32 0.5, %v3461
    %v3463 = vsub.f32 1.5, %v3462
    %v3464 = vmul.f32 %v3459, %v3463
    %vm3465 = vweird.f32 %v3428
    %vm3466 = vweird.f32 %v3459
    %vm3467 = vmor %vm3465, %vm3466
    %v3468 = vsel %vm3467, %v3459, %v3464
    %v3469 = vmul.f32 %v3401, %v3438
    %v3470 = vmul.f32 %v3402, %v3448
    %v3471 = vmul.f32 %v3403, %v3458
    %v3472 = vmul.f32 %v3404, %v3468
    %v3474 = vperm.slane %v3383, 0
    %v3476 = vmul.f32 %v3469, %v3474
    %v3477 = vmul.f32 %v3470, %v3474
    %v3478 = vmul.f32 %v3471, %v3474
    %v3479 = vmul.f32 %v3472, %v3474
    %v3481 = vperm.slane %v3384, 0
    %v3483 = vadd.f32 %v3476, %v3481
    %v3484 = vadd.f32 %v3477, %v3481
    %v3485 = vadd.f32 %v3478, %v3481
    %v3486 = vadd.f32 %v3479, %v3481
    %v3487 = vld [vmem:[%s139] sm:$0xff]
    %v3488 = vld [vmem:[%s139 + $0x8] sm:$0xff]
    %v3489 = vld [vmem:[%s139 + $0x10] sm:$0xff]
    %v3490 = vld [vmem:[#allocation53] sm:$0x1]
    %v3492 = vperm.slane %v3490, 0
    %v3495 = vsel %vm2327, %v3483, 0
    %v3498 = vsel %vm2327, %v3484, 0
    %v3501 = vsel %vm2327, %v3485, 0
    %v3504 = vsel %vm2327, %v3486, 0
    %3506 = vmatpush.msra.mxu0 0.0
    %3507 = vmatpush.msra.mxu0 0.0
    %3508 = vmatpush.msra.mxu0 0.0
    %3509 = vmatpush.msra.mxu0 0.0
    %3510 = vmatpush.msra.mxu0 0.0
    %3511 = vmatpush.msra.mxu0 0.0
    %3512 = vmatpush.msra.mxu0 0.0
    %3513 = vmatpush.msra.mxu0 0.0
    %3514 = vmatpush.msra.mxu0 0.0
    %3515 = vmatpush.msra.mxu0 0.0
    %3516 = vmatpush.msra.mxu0 0.0
    %3517 = vmatpush.msra.mxu0 0.0
    %3518 = vmatpush.msra.mxu0 0.0
    %3519 = vmatpush.msra.mxu0 %v3489
    %3520 = vmatpush.msra.mxu0 %v3488
    %3521 = vmatpush.msra.mxu0 %v3487
    %3522 = vmatmul.f32.gmra.mxu0 %v3495
    %v3523 = vpop.f32.mrf.mxu0
    %v3524 = vadd.f32 %v3492, %v3523
    %3525 = vmatmul.f32.gmra.mxu0 %v3498
    %v3526 = vpop.f32.mrf.mxu0
    %v3527 = vadd.f32 %v3492, %v3526
    %3528 = vmatmul.f32.gmra.mxu0 %v3501
    %v3529 = vpop.f32.mrf.mxu0
    %v3530 = vadd.f32 %v3492, %v3529
    %3531 = vmatmul.f32.gmra.mxu0 %v3504
    %v3532 = vpop.f32.mrf.mxu0
    %v3533 = vadd.f32 %v3492, %v3532
    %3534 = vdwg.mxu0
    %v3535 = vmul.f32 %v3524, 0.5
    %v3536 = vmul.f32 %v3527, 0.5
    %v3537 = vmul.f32 %v3530, 0.5
    %v3538 = vmul.f32 %v3533, 0.5
    %v3539 = vmul.f32 %v3524, 0.044715
    %v3540 = vmul.f32 %v3527, 0.044715
    %v3541 = vmul.f32 %v3530, 0.044715
    %v3542 = vmul.f32 %v3533, 0.044715
    %v3543 = vmul.f32 %v3539, %v3524
    %v3544 = vmul.f32 %v3540, %v3527
    %v3545 = vmul.f32 %v3541, %v3530
    %v3546 = vmul.f32 %v3542, %v3533
    %v3547 = vmul.f32 %v3543, %v3524
    %v3548 = vmul.f32 %v3544, %v3527
    %v3549 = vmul.f32 %v3545, %v3530
    %v3550 = vmul.f32 %v3546, %v3533
    %v3551 = vadd.f32 %v3524, %v3547
    %v3552 = vadd.f32 %v3527, %v3548
    %v3553 = vadd.f32 %v3530, %v3549
    %v3554 = vadd.f32 %v3533, %v3550
    %v3555 = vmul.f32 %v3551, 0.7978846
    %v3556 = vmul.f32 %v3552, 0.7978846
    %v3557 = vmul.f32 %v3553, 0.7978846
    %v3558 = vmul.f32 %v3554, 0.7978846
    %v3559 = vtanh.pop %v3555
    %v3560 = vtanh.pop %v3556
    %v3561 = vtanh.pop %v3557
    %v3562 = vtanh.pop %v3558
    %v3563 = vadd.f32 %v3559, 1.0
    %v3564 = vadd.f32 %v3560, 1.0
    %v3565 = vadd.f32 %v3561, 1.0
    %v3566 = vadd.f32 %v3562, 1.0
    %v3567 = vmul.f32 %v3535, %v3563
    %v3568 = vmul.f32 %v3536, %v3564
    %v3569 = vmul.f32 %v3537, %v3565
    %v3570 = vmul.f32 %v3538, %v3566
    %v3571 = vld [vmem:[%s143] sm:$0xff]
    %v3572 = vld [vmem:[%s143 + $0x8] sm:$0xff]
    %v3573 = vld [vmem:[%s143 + $0x10] sm:$0xff]
    %v3574 = vld [vmem:[%s143 + $0x18] sm:$0xff]
    %v3575 = vld [vmem:[%s143 + $0x20] sm:$0xff]
    %v3576 = vld [vmem:[%s143 + $0x28] sm:$0xff]
    %v3577 = vld [vmem:[%s143 + $0x30] sm:$0xff]
    %v3578 = vld [vmem:[%s143 + $0x38] sm:$0xff]
    %v3579 = vld [vmem:[%s143 + $0x40] sm:$0xff]
    %v3580 = vld [vmem:[%s143 + $0x48] sm:$0xff]
    %v3581 = vld [vmem:[%s143 + $0x50] sm:$0xff]
    %v3582 = vld [vmem:[%s143 + $0x58] sm:$0xff]
    %v3583 = vld [vmem:[#allocation54] sm:$0x1]
    %v3585 = vperm.slane %v3583, 0
    %v3588 = vsel %vm2937, %v3567, 0
    %v3591 = vsel %vm2937, %v3568, 0
    %v3594 = vsel %vm2937, %v3569, 0
    %v3597 = vsel %vm2937, %v3570, 0
    %3599 = vmatpush.msra.mxu0 0.0
    %3600 = vmatpush.msra.mxu0 0.0
    %3601 = vmatpush.msra.mxu0 0.0
    %3602 = vmatpush.msra.mxu0 0.0
    %3603 = vmatpush.msra.mxu0 %v3582
    %3604 = vmatpush.msra.mxu0 %v3581
    %3605 = vmatpush.msra.mxu0 %v3580
    %3606 = vmatpush.msra.mxu0 %v3579
    %3607 = vmatpush.msra.mxu0 %v3578
    %3608 = vmatpush.msra.mxu0 %v3577
    %3609 = vmatpush.msra.mxu0 %v3576
    %3610 = vmatpush.msra.mxu0 %v3575
    %3611 = vmatpush.msra.mxu0 %v3574
    %3612 = vmatpush.msra.mxu0 %v3573
    %3613 = vmatpush.msra.mxu0 %v3572
    %3614 = vmatpush.msra.mxu0 %v3571
    %3615 = vmatmul.f32.gmra.mxu0 %v3588
    %v3616 = vpop.f32.mrf.mxu0
    %v3617 = vadd.f32 %v3585, %v3616
    %3618 = vmatmul.f32.gmra.mxu0 %v3591
    %v3619 = vpop.f32.mrf.mxu0
    %v3620 = vadd.f32 %v3585, %v3619
    %3621 = vmatmul.f32.gmra.mxu0 %v3594
    %v3622 = vpop.f32.mrf.mxu0
    %v3623 = vadd.f32 %v3585, %v3622
    %3624 = vmatmul.f32.gmra.mxu0 %v3597
    %v3625 = vpop.f32.mrf.mxu0
    %v3626 = vadd.f32 %v3585, %v3625
    %3627 = vdwg.mxu0
    %v3628 = vadd.f32 %v3379, %v3617
    %v3629 = vadd.f32 %v3380, %v3620
    %v3630 = vadd.f32 %v3381, %v3623
    %v3631 = vadd.f32 %v3382, %v3626
    %v3632 = vld [vmem:[%s15] sm:$0xff]
    %v3633 = vld [vmem:[%s15 + $0x8] sm:$0xff]
    %v3634 = vld [vmem:[%s15 + $0x10] sm:$0xff]
    %v3635 = vld [vmem:[%s17] sm:$0x1]
    %v3637 = vperm.slane %v3635, 0
    %v3640 = vsel %vm2327, %v3628, 0
    %v3643 = vsel %vm2327, %v3629, 0
    %v3646 = vsel %vm2327, %v3630, 0
    %v3649 = vsel %vm2327, %v3631, 0
    %3651 = vmatpush.msra.mxu0 0.0
    %3652 = vmatpush.msra.mxu0 0.0
    %3653 = vmatpush.msra.mxu0 0.0
    %3654 = vmatpush.msra.mxu0 0.0
    %3655 = vmatpush.msra.mxu0 0.0
    %3656 = vmatpush.msra.mxu0 0.0
    %3657 = vmatpush.msra.mxu0 0.0
    %3658 = vmatpush.msra.mxu0 0.0
    %3659 = vmatpush.msra.mxu0 0.0
    %3660 = vmatpush.msra.mxu0 0.0
    %3661 = vmatpush.msra.mxu0 0.0
    %3662 = vmatpush.msra.mxu0 0.0
    %3663 = vmatpush.msra.mxu0 0.0
    %3664 = vmatpush.msra.mxu0 %v3634
    %3665 = vmatpush.msra.mxu0 %v3633
    %3666 = vmatpush.msra.mxu0 %v3632
    %3667 = vmatmul.f32.gmra.mxu0 %v3640
    %v3668 = vpop.f32.mrf.mxu0
    %v3669 = vadd.f32 %v3637, %v3668
    %3670 = vmatmul.f32.gmra.mxu0 %v3643
    %v3671 = vpop.f32.mrf.mxu0
    %v3672 = vadd.f32 %v3637, %v3671
    %3673 = vmatmul.f32.gmra.mxu0 %v3646
    %v3674 = vpop.f32.mrf.mxu0
    %v3675 = vadd.f32 %v3637, %v3674
    %3676 = vmatmul.f32.gmra.mxu0 %v3649
    %v3677 = vpop.f32.mrf.mxu0
    %v3678 = vadd.f32 %v3637, %v3677
    %3679 = vdwg.mxu0
    %v3680 = vld [vmem:[#allocation56] sm:$0x1]
    %v3681 = vld [vmem:[#allocation57] sm:$0x1]
    %vm3682 = vcmask 326656
    %v3683 = vsel %vm3682, %v3669, 0.0
    %3684 = vadd.xlane.f32.xlu0 %v3683
    %v3685 = vpop.xlane.xlu0 %3684
    %v3686 = vsel %vm3682, %v3672, 0.0
    %3687 = vadd.xlane.f32.xlu0 %v3686
    %v3688 = vpop.xlane.xlu0 %3687
    %v3689 = vsel %vm3682, %v3675, 0.0
    %3690 = vadd.xlane.f32.xlu0 %v3689
    %v3691 = vpop.xlane.xlu0 %3690
    %v3692 = vsel %vm3682, %v3678, 0.0
    %3693 = vadd.xlane.f32.xlu0 %v3692
    %v3694 = vpop.xlane.xlu0 %3693
    %v3695 = vrcp.pop 40.0
    %v3696 = vmul.f32 40.0, %v3695
    %v3697 = vsub.f32 1.0, %v3696
    %v3698 = vmul.f32 %v3695, %v3697
    %v3699 = vadd.f32 %v3695, %v3698
    %vm3700 = vweird.f32 %v3695
    %v3701 = vsel %vm3700, %v3695, %v3699
    %v3702 = vmul.f32 %v3685, %v3701
    %v3703 = vmul.f32 %v3688, %v3701
    %v3704 = vmul.f32 %v3691, %v3701
    %v3705 = vmul.f32 %v3694, %v3701
    %v3706 = vsub.f32 %v3669, %v3702
    %v3707 = vsub.f32 %v3672, %v3703
    %v3708 = vsub.f32 %v3675, %v3704
    %v3709 = vsub.f32 %v3678, %v3705
    %v3710 = vmul.f32 %v3706, %v3706
    %v3711 = vmul.f32 %v3707, %v3707
    %v3712 = vmul.f32 %v3708, %v3708
    %v3713 = vmul.f32 %v3709, %v3709
    %v3714 = vsel %vm3682, %v3710, 0.0
    %3715 = vadd.xlane.f32.xlu0 %v3714
    %v3716 = vpop.xlane.xlu0 %3715
    %v3717 = vsel %vm3682, %v3711, 0.0
    %3718 = vadd.xlane.f32.xlu0 %v3717
    %v3719 = vpop.xlane.xlu0 %3718
    %v3720 = vsel %vm3682, %v3712, 0.0
    %3721 = vadd.xlane.f32.xlu0 %v3720
    %v3722 = vpop.xlane.xlu0 %3721
    %v3723 = vsel %vm3682, %v3713, 0.0
    %3724 = vadd.xlane.f32.xlu0 %v3723
    %v3725 = vpop.xlane.xlu0 %3724
    %v3726 = vmul.f32 %v3716, %v3701
    %v3727 = vmul.f32 %v3719, %v3701
    %v3728 = vmul.f32 %v3722, %v3701
    %v3729 = vmul.f32 %v3725, %v3701
    %v3730 = vadd.f32 %v3726, 1e-05
    %v3731 = vadd.f32 %v3727, 1e-05
    %v3732 = vadd.f32 %v3728, 1e-05
    %v3733 = vadd.f32 %v3729, 1e-05
    %v3734 = vrsqrt.pop %v3730
    %v3735 = vmul.f32 %v3734, %v3730
    %v3736 = vmul.f32 %v3735, %v3734
    %v3737 = vmul.f32 0.5, %v3736
    %v3738 = vsub.f32 1.5, %v3737
    %v3739 = vmul.f32 %v3734, %v3738
    %vm3740 = vweird.f32 %v3730
    %vm3741 = vweird.f32 %v3734
    %vm3742 = vmor %vm3740, %vm3741
    %v3743 = vsel %vm3742, %v3734, %v3739
    %v3744 = vrsqrt.pop %v3731
    %v3745 = vmul.f32 %v3744, %v3731
    %v3746 = vmul.f32 %v3745, %v3744
    %v3747 = vmul.f32 0.5, %v3746
    %v3748 = vsub.f32 1.5, %v3747
    %v3749 = vmul.f32 %v3744, %v3748
    %vm3750 = vweird.f32 %v3731
    %vm3751 = vweird.f32 %v3744
    %vm3752 = vmor %vm3750, %vm3751
    %v3753 = vsel %vm3752, %v3744, %v3749
    %v3754 = vrsqrt.pop %v3732
    %v3755 = vmul.f32 %v3754, %v3732
    %v3756 = vmul.f32 %v3755, %v3754
    %v3757 = vmul.f32 0.5, %v3756
    %v3758 = vsub.f32 1.5, %v3757
    %v3759 = vmul.f32 %v3754, %v3758
    %vm3760 = vweird.f32 %v3732
    %vm3761 = vweird.f32 %v3754
    %vm3762 = vmor %vm3760, %vm3761
    %v3763 = vsel %vm3762, %v3754, %v3759
    %v3764 = vrsqrt.pop %v3733
    %v3765 = vmul.f32 %v3764, %v3733
    %v3766 = vmul.f32 %v3765, %v3764
    %v3767 = vmul.f32 0.5, %v3766
    %v3768 = vsub.f32 1.5, %v3767
    %v3769 = vmul.f32 %v3764, %v3768
    %vm3770 = vweird.f32 %v3733
    %vm3771 = vweird.f32 %v3764
    %vm3772 = vmor %vm3770, %vm3771
    %v3773 = vsel %vm3772, %v3764, %v3769
    %v3774 = vmul.f32 %v3706, %v3743
    %v3775 = vmul.f32 %v3707, %v3753
    %v3776 = vmul.f32 %v3708, %v3763
    %v3777 = vmul.f32 %v3709, %v3773
    %v3779 = vperm.slane %v3680, 0
    %v3781 = vmul.f32 %v3774, %v3779
    %v3782 = vmul.f32 %v3775, %v3779
    %v3783 = vmul.f32 %v3776, %v3779
    %v3784 = vmul.f32 %v3777, %v3779
    %v3786 = vperm.slane %v3681, 0
    %v3788 = vadd.f32 %v3781, %v3786
    %v3789 = vadd.f32 %v3782, %v3786
    %v3790 = vadd.f32 %v3783, %v3786
    %v3791 = vadd.f32 %v3784, %v3786
    %v3792 = vld [vmem:[%s151] sm:$0xff]
    %v3793 = vld [vmem:[%s151 + $0x8] sm:$0xff]
    %v3794 = vld [vmem:[%s151 + $0x10] sm:$0xff]
    %v3795 = vld [vmem:[%s151 + $0x18] sm:$0xff]
    %v3796 = vld [vmem:[%s151 + $0x20] sm:$0xff]
    %v3797 = vld [vmem:[#allocation59] sm:$0x1]
    %v3799 = vperm.slane %v3797, 0
    %v3802 = vsel %vm3682, %v3788, 0
    %v3805 = vsel %vm3682, %v3789, 0
    %v3808 = vsel %vm3682, %v3790, 0
    %v3811 = vsel %vm3682, %v3791, 0
    %3813 = vmatpush.msra.mxu0 0.0
    %3814 = vmatpush.msra.mxu0 0.0
    %3815 = vmatpush.msra.mxu0 0.0
    %3816 = vmatpush.msra.mxu0 0.0
    %3817 = vmatpush.msra.mxu0 0.0
    %3818 = vmatpush.msra.mxu0 0.0
    %3819 = vmatpush.msra.mxu0 0.0
    %3820 = vmatpush.msra.mxu0 0.0
    %3821 = vmatpush.msra.mxu0 0.0
    %3822 = vmatpush.msra.mxu0 0.0
    %3823 = vmatpush.msra.mxu0 0.0
    %3824 = vmatpush.msra.mxu0 %v3796
    %3825 = vmatpush.msra.mxu0 %v3795
    %3826 = vmatpush.msra.mxu0 %v3794
    %3827 = vmatpush.msra.mxu0 %v3793
    %3828 = vmatpush.msra.mxu0 %v3792
    %3829 = vmatmul.f32.gmra.mxu0 %v3802
    %v3830 = vpop.f32.mrf.mxu0
    %v3831 = vadd.f32 %v3799, %v3830
    %3832 = vmatmul.f32.gmra.mxu0 %v3805
    %v3833 = vpop.f32.mrf.mxu0
    %v3834 = vadd.f32 %v3799, %v3833
    %3835 = vmatmul.f32.gmra.mxu0 %v3808
    %v3836 = vpop.f32.mrf.mxu0
    %v3837 = vadd.f32 %v3799, %v3836
    %3838 = vmatmul.f32.gmra.mxu0 %v3811
    %v3839 = vpop.f32.mrf.mxu0
    %v3840 = vadd.f32 %v3799, %v3839
    %3841 = vdwg.mxu0
    %v3842 = vmul.f32 %v3831, 0.15811388
    %v3843 = vmul.f32 %v3834, 0.15811388
    %v3844 = vmul.f32 %v3837, 0.15811388
    %v3845 = vmul.f32 %v3840, 0.15811388
    %3848 = vrot.lane.b32.xlu0 %v3831, 88
    %v3849 = vpop.permute.xlu0 %3848
    %3850 = vrot.lane.b32.xlu0 %v3834, 88
    %v3851 = vpop.permute.xlu0 %3850
    %v3853 = vsel %vm3682, %v3842, 0
    %v3856 = vsel %vm3682, %v3843, 0
    %v3858 = vsel %vm3682, %v3849, 0
    %v3860 = vsel %vm3682, %v3851, 0
    %3862 = vmatpush.xpose.msra.mxu0 0.0
    %3863 = vmatpush.xpose.msra.mxu0 0.0
    %3864 = vmatpush.xpose.msra.mxu0 0.0
    %3865 = vmatpush.xpose.msra.mxu0 0.0
    %3866 = vmatpush.xpose.msra.mxu0 0.0
    %3867 = vmatpush.xpose.msra.mxu0 0.0
    %3868 = vmatpush.xpose.msra.mxu0 0.0
    %3869 = vmatpush.xpose.msra.mxu0 0.0
    %3870 = vmatpush.xpose.msra.mxu0 0.0
    %3871 = vmatpush.xpose.msra.mxu0 0.0
    %3872 = vmatpush.xpose.msra.mxu0 0.0
    %3873 = vmatpush.xpose.msra.mxu0 0.0
    %3874 = vmatpush.xpose.msra.mxu0 0.0
    %3875 = vmatpush.xpose.msra.mxu0 0.0
    %3876 = vmatpush.xpose.msra.mxu0 %v3860
    %3877 = vmatpush.xpose.msra.mxu0 %v3858
    %3878 = vmatmul.f32.gmra.mxu0 %v3853
    %v3879 = vpop.f32.mrf.mxu0
    %v3880 = vadd.f32 %v903, %v3879
    %3881 = vmatmul.f32.gmra.mxu0 %v3856
    %v3882 = vpop.f32.mrf.mxu0
    %v3883 = vadd.f32 %v904, %v3882
    %3884 = vdwg.mxu0
    %v3885 = vsel %vm987, %v3880, -inf
    %3886 = vmax.xlane.f32.xlu0 %v3885
    %v3887 = vpop.xlane.xlu0 %3886
    %v3888 = vsel %vm987, %v3883, -inf
    %3889 = vmax.xlane.f32.xlu0 %v3888
    %v3890 = vpop.xlane.xlu0 %3889
    %v3891 = vsub.f32 %v3880, %v3887
    %v3892 = vsub.f32 %v3883, %v3890
    %v3893 = vmul.f32 %v3891, 1.442695
    %v3894 = vpow.pop %v3893
    %v3895 = vmul.f32 %v3892, 1.442695
    %v3896 = vpow.pop %v3895
    %v3897 = vsel %vm987, %v3894, 0.0
    %3898 = vadd.xlane.f32.xlu0 %v3897
    %v3899 = vpop.xlane.xlu0 %3898
    %v3900 = vsel %vm987, %v3896, 0.0
    %3901 = vadd.xlane.f32.xlu0 %v3900
    %v3902 = vpop.xlane.xlu0 %3901
    %v3903 = vrcp.pop %v3899
    %v3904 = vrcp.pop %v3902
    %v3905 = vmul.f32 %v3894, %v3903
    %v3906 = vmul.f32 %v3896, %v3904
    %3907 = vrot.lane.b32.xlu0 %v3831, 48
    %v3908 = vpop.permute.xlu0 %3907
    %3909 = vrot.lane.b32.xlu0 %v3834, 48
    %v3910 = vpop.permute.xlu0 %3909
    %v3914 = vsel %vm987, %v3905, 0
    %v3917 = vsel %vm987, %v3906, 0
    %3919 = vmatpush.msra.mxu0 0.0
    %3920 = vmatpush.msra.mxu0 0.0
    %3921 = vmatpush.msra.mxu0 0.0
    %3922 = vmatpush.msra.mxu0 0.0
    %3923 = vmatpush.msra.mxu0 0.0
    %3924 = vmatpush.msra.mxu0 0.0
    %3925 = vmatpush.msra.mxu0 0.0
    %3926 = vmatpush.msra.mxu0 0.0
    %3927 = vmatpush.msra.mxu0 0.0
    %3928 = vmatpush.msra.mxu0 0.0
    %3929 = vmatpush.msra.mxu0 0.0
    %3930 = vmatpush.msra.mxu0 0.0
    %3931 = vmatpush.msra.mxu0 0.0
    %3932 = vmatpush.msra.mxu0 0.0
    %3933 = vmatpush.msra.mxu0 %v3910
    %3934 = vmatpush.msra.mxu0 %v3908
    %3935 = vmatmul.f32.gmra.mxu0 %v3914
    %v3936 = vpop.f32.mrf.mxu0
    %v3937 = vadd.f32 0.0, %v3936
    %3938 = vmatmul.f32.gmra.mxu0 %v3917
    %v3939 = vpop.f32.mrf.mxu0
    %v3940 = vadd.f32 0.0, %v3939
    %3941 = vdwg.mxu0
    %3944 = vrot.lane.b32.xlu0 %v3837, 88
    %v3945 = vpop.permute.xlu0 %3944
    %3946 = vrot.lane.b32.xlu0 %v3840, 88
    %v3947 = vpop.permute.xlu0 %3946
    %v3949 = vsel %vm3682, %v3844, 0
    %v3952 = vsel %vm3682, %v3845, 0
    %v3954 = vsel %vm3682, %v3945, 0
    %v3956 = vsel %vm3682, %v3947, 0
    %3958 = vmatpush.xpose.msra.mxu0 0.0
    %3959 = vmatpush.xpose.msra.mxu0 0.0
    %3960 = vmatpush.xpose.msra.mxu0 0.0
    %3961 = vmatpush.xpose.msra.mxu0 0.0
    %3962 = vmatpush.xpose.msra.mxu0 0.0
    %3963 = vmatpush.xpose.msra.mxu0 0.0
    %3964 = vmatpush.xpose.msra.mxu0 0.0
    %3965 = vmatpush.xpose.msra.mxu0 0.0
    %3966 = vmatpush.xpose.msra.mxu0 0.0
    %3967 = vmatpush.xpose.msra.mxu0 0.0
    %3968 = vmatpush.xpose.msra.mxu0 0.0
    %3969 = vmatpush.xpose.msra.mxu0 0.0
    %3970 = vmatpush.xpose.msra.mxu0 0.0
    %3971 = vmatpush.xpose.msra.mxu0 0.0
    %3972 = vmatpush.xpose.msra.mxu0 %v3956
    %3973 = vmatpush.xpose.msra.mxu0 %v3954
    %3974 = vmatmul.f32.gmra.mxu0 %v3949
    %v3975 = vpop.f32.mrf.mxu0
    %v3976 = vadd.f32 %v903, %v3975
    %3977 = vmatmul.f32.gmra.mxu0 %v3952
    %v3978 = vpop.f32.mrf.mxu0
    %v3979 = vadd.f32 %v904, %v3978
    %3980 = vdwg.mxu0
    %v3981 = vsel %vm987, %v3976, -inf
    %3982 = vmax.xlane.f32.xlu0 %v3981
    %v3983 = vpop.xlane.xlu0 %3982
    %v3984 = vsel %vm987, %v3979, -inf
    %3985 = vmax.xlane.f32.xlu0 %v3984
    %v3986 = vpop.xlane.xlu0 %3985
    %v3987 = vsub.f32 %v3976, %v3983
    %v3988 = vsub.f32 %v3979, %v3986
    %v3989 = vmul.f32 %v3987, 1.442695
    %v3990 = vpow.pop %v3989
    %v3991 = vmul.f32 %v3988, 1.442695
    %v3992 = vpow.pop %v3991
    %v3993 = vsel %vm987, %v3990, 0.0
    %3994 = vadd.xlane.f32.xlu0 %v3993
    %v3995 = vpop.xlane.xlu0 %3994
    %v3996 = vsel %vm987, %v3992, 0.0
    %3997 = vadd.xlane.f32.xlu0 %v3996
    %v3998 = vpop.xlane.xlu0 %3997
    %v3999 = vrcp.pop %v3995
    %v4000 = vrcp.pop %v3998
    %v4001 = vmul.f32 %v3990, %v3999
    %v4002 = vmul.f32 %v3992, %v4000
    %4003 = vrot.lane.b32.xlu0 %v3837, 48
    %v4004 = vpop.permute.xlu0 %4003
    %4005 = vrot.lane.b32.xlu0 %v3840, 48
    %v4006 = vpop.permute.xlu0 %4005
    %v4010 = vsel %vm987, %v4001, 0
    %v4013 = vsel %vm987, %v4002, 0
    %4015 = vmatpush.msra.mxu0 0.0
    %4016 = vmatpush.msra.mxu0 0.0
    %4017 = vmatpush.msra.mxu0 0.0
    %4018 = vmatpush.msra.mxu0 0.0
    %4019 = vmatpush.msra.mxu0 0.0
    %4020 = vmatpush.msra.mxu0 0.0
    %4021 = vmatpush.msra.mxu0 0.0
    %4022 = vmatpush.msra.mxu0 0.0
    %4023 = vmatpush.msra.mxu0 0.0
    %4024 = vmatpush.msra.mxu0 0.0
    %4025 = vmatpush.msra.mxu0 0.0
    %4026 = vmatpush.msra.mxu0 0.0
    %4027 = vmatpush.msra.mxu0 0.0
    %4028 = vmatpush.msra.mxu0 0.0
    %4029 = vmatpush.msra.mxu0 %v4006
    %4030 = vmatpush.msra.mxu0 %v4004
    %4031 = vmatmul.f32.gmra.mxu0 %v4010
    %v4032 = vpop.f32.mrf.mxu0
    %v4033 = vadd.f32 0.0, %v4032
    %4034 = vmatmul.f32.gmra.mxu0 %v4013
    %v4035 = vpop.f32.mrf.mxu0
    %v4036 = vadd.f32 0.0, %v4035
    %4037 = vdwg.mxu0
    %v4038 = vld [vmem:[%s155] sm:$0xff]
    %v4039 = vld [vmem:[%s155 + $0x8] sm:$0xff]
    %v4040 = vld [vmem:[%s155 + $0x10] sm:$0xff]
    %v4041 = vld [vmem:[%s155 + $0x18] sm:$0xff]
    %v4042 = vld [vmem:[%s155 + $0x20] sm:$0xff]
    %v4043 = vld [vmem:[#allocation60] sm:$0x1]
    %v4045 = vperm.slane %v4043, 0
    %v4048 = vsel %vm3682, %v3937, 0
    %v4051 = vsel %vm3682, %v3940, 0
    %v4054 = vsel %vm3682, %v4033, 0
    %v4057 = vsel %vm3682, %v4036, 0
    %4059 = vmatpush.msra.mxu0 0.0
    %4060 = vmatpush.msra.mxu0 0.0
    %4061 = vmatpush.msra.mxu0 0.0
    %4062 = vmatpush.msra.mxu0 0.0
    %4063 = vmatpush.msra.mxu0 0.0
    %4064 = vmatpush.msra.mxu0 0.0
    %4065 = vmatpush.msra.mxu0 0.0
    %4066 = vmatpush.msra.mxu0 0.0
    %4067 = vmatpush.msra.mxu0 0.0
    %4068 = vmatpush.msra.mxu0 0.0
    %4069 = vmatpush.msra.mxu0 0.0
    %4070 = vmatpush.msra.mxu0 %v4042
    %4071 = vmatpush.msra.mxu0 %v4041
    %4072 = vmatpush.msra.mxu0 %v4040
    %4073 = vmatpush.msra.mxu0 %v4039
    %4074 = vmatpush.msra.mxu0 %v4038
    %4075 = vmatmul.f32.gmra.mxu0 %v4048
    %v4076 = vpop.f32.mrf.mxu0
    %v4077 = vadd.f32 %v4045, %v4076
    %4078 = vmatmul.f32.gmra.mxu0 %v4051
    %v4079 = vpop.f32.mrf.mxu0
    %v4080 = vadd.f32 %v4045, %v4079
    %4081 = vmatmul.f32.gmra.mxu0 %v4054
    %v4082 = vpop.f32.mrf.mxu0
    %v4083 = vadd.f32 %v4045, %v4082
    %4084 = vmatmul.f32.gmra.mxu0 %v4057
    %v4085 = vpop.f32.mrf.mxu0
    %v4086 = vadd.f32 %v4045, %v4085
    %4087 = vdwg.mxu0
    %v4088 = vadd.f32 %v3669, %v4077
    %v4089 = vadd.f32 %v3672, %v4080
    %v4090 = vadd.f32 %v3675, %v4083
    %v4091 = vadd.f32 %v3678, %v4086
    %v4092 = vld [vmem:[#allocation62] sm:$0x1]
    %v4093 = vld [vmem:[#allocation63] sm:$0x1]
    %v4094 = vsel %vm3682, %v4088, 0.0
    %4095 = vadd.xlane.f32.xlu0 %v4094
    %v4096 = vpop.xlane.xlu0 %4095
    %v4097 = vsel %vm3682, %v4089, 0.0
    %4098 = vadd.xlane.f32.xlu0 %v4097
    %v4099 = vpop.xlane.xlu0 %4098
    %v4100 = vsel %vm3682, %v4090, 0.0
    %4101 = vadd.xlane.f32.xlu0 %v4100
    %v4102 = vpop.xlane.xlu0 %4101
    %v4103 = vsel %vm3682, %v4091, 0.0
    %4104 = vadd.xlane.f32.xlu0 %v4103
    %v4105 = vpop.xlane.xlu0 %4104
    %v4106 = vmul.f32 %v4096, %v3701
    %v4107 = vmul.f32 %v4099, %v3701
    %v4108 = vmul.f32 %v4102, %v3701
    %v4109 = vmul.f32 %v4105, %v3701
    %v4110 = vsub.f32 %v4088, %v4106
    %v4111 = vsub.f32 %v4089, %v4107
    %v4112 = vsub.f32 %v4090, %v4108
    %v4113 = vsub.f32 %v4091, %v4109
    %v4114 = vmul.f32 %v4110, %v4110
    %v4115 = vmul.f32 %v4111, %v4111
    %v4116 = vmul.f32 %v4112, %v4112
    %v4117 = vmul.f32 %v4113, %v4113
    %v4118 = vsel %vm3682, %v4114, 0.0
    %4119 = vadd.xlane.f32.xlu0 %v4118
    %v4120 = vpop.xlane.xlu0 %4119
    %v4121 = vsel %vm3682, %v4115, 0.0
    %4122 = vadd.xlane.f32.xlu0 %v4121
    %v4123 = vpop.xlane.xlu0 %4122
    %v4124 = vsel %vm3682, %v4116, 0.0
    %4125 = vadd.xlane.f32.xlu0 %v4124
    %v4126 = vpop.xlane.xlu0 %4125
    %v4127 = vsel %vm3682, %v4117, 0.0
    %4128 = vadd.xlane.f32.xlu0 %v4127
    %v4129 = vpop.xlane.xlu0 %4128
    %v4130 = vmul.f32 %v4120, %v3701
    %v4131 = vmul.f32 %v4123, %v3701
    %v4132 = vmul.f32 %v4126, %v3701
    %v4133 = vmul.f32 %v4129, %v3701
    %v4134 = vadd.f32 %v4130, 1e-05
    %v4135 = vadd.f32 %v4131, 1e-05
    %v4136 = vadd.f32 %v4132, 1e-05
    %v4137 = vadd.f32 %v4133, 1e-05
    %v4138 = vrsqrt.pop %v4134
    %v4139 = vmul.f32 %v4138, %v4134
    %v4140 = vmul.f32 %v4139, %v4138
    %v4141 = vmul.f32 0.5, %v4140
    %v4142 = vsub.f32 1.5, %v4141
    %v4143 = vmul.f32 %v4138, %v4142
    %vm4144 = vweird.f32 %v4134
    %vm4145 = vweird.f32 %v4138
    %vm4146 = vmor %vm4144, %vm4145
    %v4147 = vsel %vm4146, %v4138, %v4143
    %v4148 = vrsqrt.pop %v4135
    %v4149 = vmul.f32 %v4148, %v4135
    %v4150 = vmul.f32 %v4149, %v4148
    %v4151 = vmul.f32 0.5, %v4150
    %v4152 = vsub.f32 1.5, %v4151
    %v4153 = vmul.f32 %v4148, %v4152
    %vm4154 = vweird.f32 %v4135
    %vm4155 = vweird.f32 %v4148
    %vm4156 = vmor %vm4154, %vm4155
    %v4157 = vsel %vm4156, %v4148, %v4153
    %v4158 = vrsqrt.pop %v4136
    %v4159 = vmul.f32 %v4158, %v4136
    %v4160 = vmul.f32 %v4159, %v4158
    %v4161 = vmul.f32 0.5, %v4160
    %v4162 = vsub.f32 1.5, %v4161
    %v4163 = vmul.f32 %v4158, %v4162
    %vm4164 = vweird.f32 %v4136
    %vm4165 = vweird.f32 %v4158
    %vm4166 = vmor %vm4164, %vm4165
    %v4167 = vsel %vm4166, %v4158, %v4163
    %v4168 = vrsqrt.pop %v4137
    %v4169 = vmul.f32 %v4168, %v4137
    %v4170 = vmul.f32 %v4169, %v4168
    %v4171 = vmul.f32 0.5, %v4170
    %v4172 = vsub.f32 1.5, %v4171
    %v4173 = vmul.f32 %v4168, %v4172
    %vm4174 = vweird.f32 %v4137
    %vm4175 = vweird.f32 %v4168
    %vm4176 = vmor %vm4174, %vm4175
    %v4177 = vsel %vm4176, %v4168, %v4173
    %v4178 = vmul.f32 %v4110, %v4147
    %v4179 = vmul.f32 %v4111, %v4157
    %v4180 = vmul.f32 %v4112, %v4167
    %v4181 = vmul.f32 %v4113, %v4177
    %v4183 = vperm.slane %v4092, 0
    %v4185 = vmul.f32 %v4178, %v4183
    %v4186 = vmul.f32 %v4179, %v4183
    %v4187 = vmul.f32 %v4180, %v4183
    %v4188 = vmul.f32 %v4181, %v4183
    %v4190 = vperm.slane %v4093, 0
    %v4192 = vadd.f32 %v4185, %v4190
    %v4193 = vadd.f32 %v4186, %v4190
    %v4194 = vadd.f32 %v4187, %v4190
    %v4195 = vadd.f32 %v4188, %v4190
    %v4196 = vld [vmem:[%s163] sm:$0xff]
    %v4197 = vld [vmem:[%s163 + $0x8] sm:$0xff]
    %v4198 = vld [vmem:[%s163 + $0x10] sm:$0xff]
    %v4199 = vld [vmem:[%s163 + $0x18] sm:$0xff]
    %v4200 = vld [vmem:[%s163 + $0x20] sm:$0xff]
    %v4201 = vld [vmem:[%s163 + $0x28] sm:$0xff]
    %v4202 = vld [vmem:[%s163 + $0x30] sm:$0xff]
    %v4203 = vld [vmem:[%s163 + $0x38] sm:$0xff]
    %v4204 = vld [vmem:[%s163 + $0x40] sm:$0xff]
    %v4205 = vld [vmem:[%s163 + $0x48] sm:$0xff]
    %v4206 = vld [vmem:[%s165] sm:$0x3]
    %v4208 = vperm.slane %v4206, 0
    %v4209 = vperm.slane %v4206, 1
    %v4213 = vsel %vm3682, %v4192, 0
    %v4216 = vsel %vm3682, %v4193, 0
    %v4219 = vsel %vm3682, %v4194, 0
    %v4222 = vsel %vm3682, %v4195, 0
    %4224 = vmatpush.msra.mxu0 0.0
    %4225 = vmatpush.msra.mxu0 0.0
    %4226 = vmatpush.msra.mxu0 0.0
    %4227 = vmatpush.msra.mxu0 0.0
    %4228 = vmatpush.msra.mxu0 0.0
    %4229 = vmatpush.msra.mxu0 0.0
    %4230 = vmatpush.msra.mxu0 0.0
    %4231 = vmatpush.msra.mxu0 0.0
    %4232 = vmatpush.msra.mxu0 0.0
    %4233 = vmatpush.msra.mxu0 0.0
    %4234 = vmatpush.msra.mxu0 0.0
    %4235 = vmatpush.msra.mxu0 %v4204
    %4236 = vmatpush.msra.mxu0 %v4202
    %4237 = vmatpush.msra.mxu0 %v4200
    %4238 = vmatpush.msra.mxu0 %v4198
    %4239 = vmatpush.msra.mxu0 %v4196
    %4240 = vmatmul.f32.gmra.mxu0 %v4213
    %v4241 = vpop.f32.mrf.mxu0
    %v4242 = vadd.f32 %v4208, %v4241
    %4243 = vmatmul.f32.gmra.mxu0 %v4216
    %v4244 = vpop.f32.mrf.mxu0
    %v4245 = vadd.f32 %v4208, %v4244
    %4246 = vmatmul.f32.gmra.mxu0 %v4219
    %v4247 = vpop.f32.mrf.mxu0
    %v4248 = vadd.f32 %v4208, %v4247
    %4249 = vmatmul.f32.gmra.mxu0 %v4222
    %v4250 = vpop.f32.mrf.mxu0
    %v4251 = vadd.f32 %v4208, %v4250
    %4252 = vdwg.mxu0
    %4253 = vmatpush.msra.mxu0 0.0
    %4254 = vmatpush.msra.mxu0 0.0
    %4255 = vmatpush.msra.mxu0 0.0
    %4256 = vmatpush.msra.mxu0 0.0
    %4257 = vmatpush.msra.mxu0 0.0
    %4258 = vmatpush.msra.mxu0 0.0
    %4259 = vmatpush.msra.mxu0 0.0
    %4260 = vmatpush.msra.mxu0 0.0
    %4261 = vmatpush.msra.mxu0 0.0
    %4262 = vmatpush.msra.mxu0 0.0
    %4263 = vmatpush.msra.mxu0 0.0
    %4264 = vmatpush.msra.mxu0 %v4205
    %4265 = vmatpush.msra.mxu0 %v4203
    %4266 = vmatpush.msra.mxu0 %v4201
    %4267 = vmatpush.msra.mxu0 %v4199
    %4268 = vmatpush.msra.mxu0 %v4197
    %4269 = vmatmul.f32.gmra.mxu0 %v4213
    %v4270 = vpop.f32.mrf.mxu0
    %v4271 = vadd.f32 %v4209, %v4270
    %4272 = vmatmul.f32.gmra.mxu0 %v4216
    %v4273 = vpop.f32.mrf.mxu0
    %v4274 = vadd.f32 %v4209, %v4273
    %4275 = vmatmul.f32.gmra.mxu0 %v4219
    %v4276 = vpop.f32.mrf.mxu0
    %v4277 = vadd.f32 %v4209, %v4276
    %4278 = vmatmul.f32.gmra.mxu0 %v4222
    %v4279 = vpop.f32.mrf.mxu0
    %v4280 = vadd.f32 %v4209, %v4279
    %4281 = vdwg.mxu0
    %v4282 = vmul.f32 %v4242, 0.5
    %v4283 = vmul.f32 %v4271, 0.5
    %v4284 = vmul.f32 %v4245, 0.5
    %v4285 = vmul.f32 %v4274, 0.5
    %v4286 = vmul.f32 %v4248, 0.5
    %v4287 = vmul.f32 %v4277, 0.5
    %v4288 = vmul.f32 %v4251, 0.5
    %v4289 = vmul.f32 %v4280, 0.5
    %v4290 = vmul.f32 %v4242, 0.044715
    %v4291 = vmul.f32 %v4271, 0.044715
    %v4292 = vmul.f32 %v4245, 0.044715
    %v4293 = vmul.f32 %v4274, 0.044715
    %v4294 = vmul.f32 %v4248, 0.044715
    %v4295 = vmul.f32 %v4277, 0.044715
    %v4296 = vmul.f32 %v4251, 0.044715
    %v4297 = vmul.f32 %v4280, 0.044715
    %v4298 = vmul.f32 %v4290, %v4242
    %v4299 = vmul.f32 %v4291, %v4271
    %v4300 = vmul.f32 %v4292, %v4245
    %v4301 = vmul.f32 %v4293, %v4274
    %v4302 = vmul.f32 %v4294, %v4248
    %v4303 = vmul.f32 %v4295, %v4277
    %v4304 = vmul.f32 %v4296, %v4251
    %v4305 = vmul.f32 %v4297, %v4280
    %v4306 = vmul.f32 %v4298, %v4242
    %v4307 = vmul.f32 %v4299, %v4271
    %v4308 = vmul.f32 %v4300, %v4245
    %v4309 = vmul.f32 %v4301, %v4274
    %v4310 = vmul.f32 %v4302, %v4248
    %v4311 = vmul.f32 %v4303, %v4277
    %v4312 = vmul.f32 %v4304, %v4251
    %v4313 = vmul.f32 %v4305, %v4280
    %v4314 = vadd.f32 %v4242, %v4306
    %v4315 = vadd.f32 %v4271, %v4307
    %v4316 = vadd.f32 %v4245, %v4308
    %v4317 = vadd.f32 %v4274, %v4309
    %v4318 = vadd.f32 %v4248, %v4310
    %v4319 = vadd.f32 %v4277, %v4311
    %v4320 = vadd.f32 %v4251, %v4312
    %v4321 = vadd.f32 %v4280, %v4313
    %v4322 = vmul.f32 %v4314, 0.7978846
    %v4323 = vmul.f32 %v4315, 0.7978846
    %v4324 = vmul.f32 %v4316, 0.7978846
    %v4325 = vmul.f32 %v4317, 0.7978846
    %v4326 = vmul.f32 %v4318, 0.7978846
    %v4327 = vmul.f32 %v4319, 0.7978846
    %v4328 = vmul.f32 %v4320, 0.7978846
    %v4329 = vmul.f32 %v4321, 0.7978846
    %v4330 = vtanh.pop %v4322
    %v4331 = vtanh.pop %v4323
    %v4332 = vtanh.pop %v4324
    %v4333 = vtanh.pop %v4325
    %v4334 = vtanh.pop %v4326
    %v4335 = vtanh.pop %v4327
    %v4336 = vtanh.pop %v4328
    %v4337 = vtanh.pop %v4329
    %v4338 = vadd.f32 %v4330, 1.0
    %v4339 = vadd.f32 %v4331, 1.0
    %v4340 = vadd.f32 %v4332, 1.0
    %v4341 = vadd.f32 %v4333, 1.0
    %v4342 = vadd.f32 %v4334, 1.0
    %v4343 = vadd.f32 %v4335, 1.0
    %v4344 = vadd.f32 %v4336, 1.0
    %v4345 = vadd.f32 %v4337, 1.0
    %v4346 = vmul.f32 %v4282, %v4338
    %v4347 = vmul.f32 %v4283, %v4339
    %v4348 = vmul.f32 %v4284, %v4340
    %v4349 = vmul.f32 %v4285, %v4341
    %v4350 = vmul.f32 %v4286, %v4342
    %v4351 = vmul.f32 %v4287, %v4343
    %v4352 = vmul.f32 %v4288, %v4344
    %v4353 = vmul.f32 %v4289, %v4345
    %v4354 = vld [vmem:[%s167] sm:$0xff]
    %v4355 = vld [vmem:[%s167 + $0x8] sm:$0xff]
    %v4356 = vld [vmem:[%s167 + $0x10] sm:$0xff]
    %v4357 = vld [vmem:[%s167 + $0x18] sm:$0xff]
    %v4358 = vld [vmem:[%s167 + $0x20] sm:$0xff]
    %v4359 = vld [vmem:[%s167 + $0x28] sm:$0xff]
    %v4360 = vld [vmem:[%s167 + $0x30] sm:$0xff]
    %v4361 = vld [vmem:[%s167 + $0x38] sm:$0xff]
    %v4362 = vld [vmem:[%s167 + $0x40] sm:$0xff]
    %v4363 = vld [vmem:[%s167 + $0x48] sm:$0xff]
    %v4364 = vld [vmem:[%s167 + $0x50] sm:$0xff]
    %v4365 = vld [vmem:[%s167 + $0x58] sm:$0xff]
    %v4366 = vld [vmem:[%s167 + $0x60] sm:$0xff]
    %v4367 = vld [vmem:[%s167 + $0x68] sm:$0xff]
    %v4368 = vld [vmem:[%s167 + $0x70] sm:$0xff]
    %v4369 = vld [vmem:[%s167 + $0x78] sm:$0xff]
    %v4370 = vld [vmem:[%s167 + $0x80] sm:$0xff]
    %v4371 = vld [vmem:[%s167 + $0x88] sm:$0xff]
    %v4372 = vld [vmem:[%s167 + $0x90] sm:$0xff]
    %v4373 = vld [vmem:[%s167 + $0x98] sm:$0xff]
    %v4374 = vld [vmem:[#allocation65] sm:$0x1]
    %v4376 = vperm.slane %v4374, 0
    %v4379 = vsel %vm943, %v4347, 0
    %v4382 = vsel %vm943, %v4349, 0
    %v4385 = vsel %vm943, %v4351, 0
    %v4388 = vsel %vm943, %v4353, 0
    %4390 = vmatpush.msra.mxu0 %v4369
    %4391 = vmatpush.msra.mxu0 %v4368
    %4392 = vmatpush.msra.mxu0 %v4367
    %4393 = vmatpush.msra.mxu0 %v4366
    %4394 = vmatpush.msra.mxu0 %v4365
    %4395 = vmatpush.msra.mxu0 %v4364
    %4396 = vmatpush.msra.mxu0 %v4363
    %4397 = vmatpush.msra.mxu0 %v4362
    %4398 = vmatpush.msra.mxu0 %v4361
    %4399 = vmatpush.msra.mxu0 %v4360
    %4400 = vmatpush.msra.mxu0 %v4359
    %4401 = vmatpush.msra.mxu0 %v4358
    %4402 = vmatpush.msra.mxu0 %v4357
    %4403 = vmatpush.msra.mxu0 %v4356
    %4404 = vmatpush.msra.mxu0 %v4355
    %4405 = vmatpush.msra.mxu0 %v4354
    %4406 = vmatmul.f32.gmra.mxu0 %v4346
    %v4407 = vpop.f32.mrf.mxu0
    %v4408 = vadd.f32 %v4376, %v4407
    %4409 = vmatmul.f32.gmra.mxu0 %v4348
    %v4410 = vpop.f32.mrf.mxu0
    %v4411 = vadd.f32 %v4376, %v4410
    %4412 = vmatmul.f32.gmra.mxu0 %v4350
    %v4413 = vpop.f32.mrf.mxu0
    %v4414 = vadd.f32 %v4376, %v4413
    %4415 = vmatmul.f32.gmra.mxu0 %v4352
    %v4416 = vpop.f32.mrf.mxu0
    %v4417 = vadd.f32 %v4376, %v4416
    %4418 = vdwg.mxu0
    %4419 = vmatpush.msra.mxu0 0.0
    %4420 = vmatpush.msra.mxu0 0.0
    %4421 = vmatpush.msra.mxu0 0.0
    %4422 = vmatpush.msra.mxu0 0.0
    %4423 = vmatpush.msra.mxu0 0.0
    %4424 = vmatpush.msra.mxu0 0.0
    %4425 = vmatpush.msra.mxu0 0.0
    %4426 = vmatpush.msra.mxu0 0.0
    %4427 = vmatpush.msra.mxu0 0.0
    %4428 = vmatpush.msra.mxu0 0.0
    %4429 = vmatpush.msra.mxu0 0.0
    %4430 = vmatpush.msra.mxu0 0.0
    %4431 = vmatpush.msra.mxu0 %v4373
    %4432 = vmatpush.msra.mxu0 %v4372
    %4433 = vmatpush.msra.mxu0 %v4371
    %4434 = vmatpush.msra.mxu0 %v4370
    %4435 = vmatmul.f32.gmra.mxu0 %v4379
    %v4436 = vpop.f32.mrf.mxu0
    %v4437 = vadd.f32 %v4408, %v4436
    %4438 = vmatmul.f32.gmra.mxu0 %v4382
    %v4439 = vpop.f32.mrf.mxu0
    %v4440 = vadd.f32 %v4411, %v4439
    %4441 = vmatmul.f32.gmra.mxu0 %v4385
    %v4442 = vpop.f32.mrf.mxu0
    %v4443 = vadd.f32 %v4414, %v4442
    %4444 = vmatmul.f32.gmra.mxu0 %v4388
    %v4445 = vpop.f32.mrf.mxu0
    %v4446 = vadd.f32 %v4417, %v4445
    %4447 = vdwg.mxu0
    %v4448 = vadd.f32 %v4088, %v4437
    %v4449 = vadd.f32 %v4089, %v4440
    %v4450 = vadd.f32 %v4090, %v4443
    %v4451 = vadd.f32 %v4091, %v4446
    %v4452 = vld [vmem:[%s35] sm:$0x1]
    %v4453 = vld [vmem:[%s37] sm:$0x1]
    %v4454 = vsel %vm3682, %v4448, 0.0
    %4455 = vadd.xlane.f32.xlu0 %v4454
    %v4456 = vpop.xlane.xlu0 %4455
    %v4457 = vsel %vm3682, %v4449, 0.0
    %4458 = vadd.xlane.f32.xlu0 %v4457
    %v4459 = vpop.xlane.xlu0 %4458
    %v4460 = vsel %vm3682, %v4450, 0.0
    %4461 = vadd.xlane.f32.xlu0 %v4460
    %v4462 = vpop.xlane.xlu0 %4461
    %v4463 = vsel %vm3682, %v4451, 0.0
    %4464 = vadd.xlane.f32.xlu0 %v4463
    %v4465 = vpop.xlane.xlu0 %4464
    %v4466 = vmul.f32 %v4456, %v3701
    %v4467 = vmul.f32 %v4459, %v3701
    %v4468 = vmul.f32 %v4462, %v3701
    %v4469 = vmul.f32 %v4465, %v3701
    %v4470 = vsub.f32 %v4448, %v4466
    %v4471 = vsub.f32 %v4449, %v4467
    %v4472 = vsub.f32 %v4450, %v4468
    %v4473 = vsub.f32 %v4451, %v4469
    %v4474 = vmul.f32 %v4470, %v4470
    %v4475 = vmul.f32 %v4471, %v4471
    %v4476 = vmul.f32 %v4472, %v4472
    %v4477 = vmul.f32 %v4473, %v4473
    %v4478 = vsel %vm3682, %v4474, 0.0
    %4479 = vadd.xlane.f32.xlu0 %v4478
    %v4480 = vpop.xlane.xlu0 %4479
    %v4481 = vsel %vm3682, %v4475, 0.0
    %4482 = vadd.xlane.f32.xlu0 %v4481
    %v4483 = vpop.xlane.xlu0 %4482
    %v4484 = vsel %vm3682, %v4476, 0.0
    %4485 = vadd.xlane.f32.xlu0 %v4484
    %v4486 = vpop.xlane.xlu0 %4485
    %v4487 = vsel %vm3682, %v4477, 0.0
    %4488 = vadd.xlane.f32.xlu0 %v4487
    %v4489 = vpop.xlane.xlu0 %4488
    %v4490 = vmul.f32 %v4480, %v3701
    %v4491 = vmul.f32 %v4483, %v3701
    %v4492 = vmul.f32 %v4486, %v3701
    %v4493 = vmul.f32 %v4489, %v3701
    %v4494 = vadd.f32 %v4490, 1e-05
    %v4495 = vadd.f32 %v4491, 1e-05
    %v4496 = vadd.f32 %v4492, 1e-05
    %v4497 = vadd.f32 %v4493, 1e-05
    %v4498 = vrsqrt.pop %v4494
    %v4499 = vmul.f32 %v4498, %v4494
    %v4500 = vmul.f32 %v4499, %v4498
    %v4501 = vmul.f32 0.5, %v4500
    %v4502 = vsub.f32 1.5, %v4501
    %v4503 = vmul.f32 %v4498, %v4502
    %vm4504 = vweird.f32 %v4494
    %vm4505 = vweird.f32 %v4498
    %vm4506 = vmor %vm4504, %vm4505
    %v4507 = vsel %vm4506, %v4498, %v4503
    %v4508 = vrsqrt.pop %v4495
    %v4509 = vmul.f32 %v4508, %v4495
    %v4510 = vmul.f32 %v4509, %v4508
    %v4511 = vmul.f32 0.5, %v4510
    %v4512 = vsub.f32 1.5, %v4511
    %v4513 = vmul.f32 %v4508, %v4512
    %vm4514 = vweird.f32 %v4495
    %vm4515 = vweird.f32 %v4508
    %vm4516 = vmor %vm4514, %vm4515
    %v4517 = vsel %vm4516, %v4508, %v4513
    %v4518 = vrsqrt.pop %v4496
    %v4519 = vmul.f32 %v4518, %v4496
    %v4520 = vmul.f32 %v4519, %v4518
    %v4521 = vmul.f32 0.5, %v4520
    %v4522 = vsub.f32 1.5, %v4521
    %v4523 = vmul.f32 %v4518, %v4522
    %vm4524 = vweird.f32 %v4496
    %vm4525 = vweird.f32 %v4518
    %vm4526 = vmor %vm4524, %vm4525
    %v4527 = vsel %vm4526, %v4518, %v4523
    %v4528 = vrsqrt.pop %v4497
    %v4529 = vmul.f32 %v4528, %v4497
    %v4530 = vmul.f32 %v4529, %v4528
    %v4531 = vmul.f32 0.5, %v4530
    %v4532 = vsub.f32 1.5, %v4531
    %v4533 = vmul.f32 %v4528, %v4532
    %vm4534 = vweird.f32 %v4497
    %vm4535 = vweird.f32 %v4528
    %vm4536 = vmor %vm4534, %vm4535
    %v4537 = vsel %vm4536, %v4528, %v4533
    %v4538 = vmul.f32 %v4470, %v4507
    %v4539 = vmul.f32 %v4471, %v4517
    %v4540 = vmul.f32 %v4472, %v4527
    %v4541 = vmul.f32 %v4473, %v4537
    %v4543 = vperm.slane %v4452, 0
    %v4545 = vmul.f32 %v4538, %v4543
    %v4546 = vmul.f32 %v4539, %v4543
    %v4547 = vmul.f32 %v4540, %v4543
    %v4548 = vmul.f32 %v4541, %v4543
    %v4550 = vperm.slane %v4453, 0
    %v4552 = vadd.f32 %v4545, %v4550
    %v4553 = vadd.f32 %v4546, %v4550
    %v4554 = vadd.f32 %v4547, %v4550
    %v4555 = vadd.f32 %v4548, %v4550
    %v4556 = vld [vmem:[%s19] sm:$0xff]
    %v4557 = vld [vmem:[%s19 + $0x8] sm:$0xff]
    %v4558 = vld [vmem:[%s19 + $0x10] sm:$0xff]
    %v4559 = vld [vmem:[%s19 + $0x18] sm:$0xff]
    %v4560 = vld [vmem:[%s19 + $0x20] sm:$0xff]
    %v4561 = vld [vmem:[%s21] sm:$0x1]
    %v4563 = vperm.slane %v4561, 0
    %v4566 = vsel %vm3682, %v4552, 0
    %v4569 = vsel %vm3682, %v4553, 0
    %v4572 = vsel %vm3682, %v4554, 0
    %v4575 = vsel %vm3682, %v4555, 0
    %4577 = vmatpush.msra.mxu0 0.0
    %4578 = vmatpush.msra.mxu0 0.0
    %4579 = vmatpush.msra.mxu0 0.0
    %4580 = vmatpush.msra.mxu0 0.0
    %4581 = vmatpush.msra.mxu0 0.0
    %4582 = vmatpush.msra.mxu0 0.0
    %4583 = vmatpush.msra.mxu0 0.0
    %4584 = vmatpush.msra.mxu0 0.0
    %4585 = vmatpush.msra.mxu0 0.0
    %4586 = vmatpush.msra.mxu0 0.0
    %4587 = vmatpush.msra.mxu0 0.0
    %4588 = vmatpush.msra.mxu0 %v4560
    %4589 = vmatpush.msra.mxu0 %v4559
    %4590 = vmatpush.msra.mxu0 %v4558
    %4591 = vmatpush.msra.mxu0 %v4557
    %4592 = vmatpush.msra.mxu0 %v4556
    %4593 = vmatmul.f32.gmra.mxu0 %v4566
    %v4594 = vpop.f32.mrf.mxu0
    %v4595 = vadd.f32 %v4563, %v4594
    %4596 = vmatmul.f32.gmra.mxu0 %v4569
    %v4597 = vpop.f32.mrf.mxu0
    %v4598 = vadd.f32 %v4563, %v4597
    %4599 = vmatmul.f32.gmra.mxu0 %v4572
    %v4600 = vpop.f32.mrf.mxu0
    %v4601 = vadd.f32 %v4563, %v4600
    %4602 = vmatmul.f32.gmra.mxu0 %v4575
    %v4603 = vpop.f32.mrf.mxu0
    %v4604 = vadd.f32 %v4563, %v4603
    %4605 = vdwg.mxu0
    %v4606 = vmul.f32 %v4595, 0.5
    %v4607 = vmul.f32 %v4598, 0.5
    %v4608 = vmul.f32 %v4601, 0.5
    %v4609 = vmul.f32 %v4604, 0.5
    %v4610 = vmul.f32 %v4595, 0.044715
    %v4611 = vmul.f32 %v4598, 0.044715
    %v4612 = vmul.f32 %v4601, 0.044715
    %v4613 = vmul.f32 %v4604, 0.044715
    %v4614 = vmul.f32 %v4610, %v4595
    %v4615 = vmul.f32 %v4611, %v4598
    %v4616 = vmul.f32 %v4612, %v4601
    %v4617 = vmul.f32 %v4613, %v4604
    %v4618 = vmul.f32 %v4614, %v4595
    %v4619 = vmul.f32 %v4615, %v4598
    %v4620 = vmul.f32 %v4616, %v4601
    %v4621 = vmul.f32 %v4617, %v4604
    %v4622 = vadd.f32 %v4595, %v4618
    %v4623 = vadd.f32 %v4598, %v4619
    %v4624 = vadd.f32 %v4601, %v4620
    %v4625 = vadd.f32 %v4604, %v4621
    %v4626 = vmul.f32 %v4622, 0.7978846
    %v4627 = vmul.f32 %v4623, 0.7978846
    %v4628 = vmul.f32 %v4624, 0.7978846
    %v4629 = vmul.f32 %v4625, 0.7978846
    %v4630 = vtanh.pop %v4626
    %v4631 = vtanh.pop %v4627
    %v4632 = vtanh.pop %v4628
    %v4633 = vtanh.pop %v4629
    %v4634 = vadd.f32 %v4630, 1.0
    %v4635 = vadd.f32 %v4631, 1.0
    %v4636 = vadd.f32 %v4632, 1.0
    %v4637 = vadd.f32 %v4633, 1.0
    %v4638 = vmul.f32 %v4606, %v4634
    %v4639 = vmul.f32 %v4607, %v4635
    %v4640 = vmul.f32 %v4608, %v4636
    %v4641 = vmul.f32 %v4609, %v4637
    %v4642 = vld [vmem:[%s23] sm:$0xff]
    %v4643 = vld [vmem:[%s23 + $0x8] sm:$0xff]
    %v4644 = vld [vmem:[%s23 + $0x10] sm:$0xff]
    %v4645 = vld [vmem:[%s23 + $0x18] sm:$0xff]
    %v4646 = vld [vmem:[%s23 + $0x20] sm:$0xff]
    %v4647 = vld [vmem:[%s23 + $0x28] sm:$0xff]
    %v4648 = vld [vmem:[%s23 + $0x30] sm:$0xff]
    %v4649 = vld [vmem:[%s23 + $0x38] sm:$0xff]
    %v4650 = vld [vmem:[%s23 + $0x40] sm:$0xff]
    %v4651 = vld [vmem:[%s25] sm:$0x1]
    %v4653 = vperm.slane %v4651, 0
    %vm4655 = vcmask 588800
    %v4657 = vsel %vm4655, %v4638, 0
    %v4660 = vsel %vm4655, %v4639, 0
    %v4663 = vsel %vm4655, %v4640, 0
    %v4666 = vsel %vm4655, %v4641, 0
    %4668 = vmatpush.msra.mxu0 0.0
    %4669 = vmatpush.msra.mxu0 0.0
    %4670 = vmatpush.msra.mxu0 0.0
    %4671 = vmatpush.msra.mxu0 0.0
    %4672 = vmatpush.msra.mxu0 0.0
    %4673 = vmatpush.msra.mxu0 0.0
    %4674 = vmatpush.msra.mxu0 0.0
    %4675 = vmatpush.msra.mxu0 %v4650
    %4676 = vmatpush.msra.mxu0 %v4649
    %4677 = vmatpush.msra.mxu0 %v4648
    %4678 = vmatpush.msra.mxu0 %v4647
    %4679 = vmatpush.msra.mxu0 %v4646
    %4680 = vmatpush.msra.mxu0 %v4645
    %4681 = vmatpush.msra.mxu0 %v4644
    %4682 = vmatpush.msra.mxu0 %v4643
    %4683 = vmatpush.msra.mxu0 %v4642
    %4684 = vmatmul.f32.gmra.mxu0 %v4657
    %v4685 = vpop.f32.mrf.mxu0
    %v4686 = vadd.f32 %v4653, %v4685
    %4687 = vmatmul.f32.gmra.mxu0 %v4660
    %v4688 = vpop.f32.mrf.mxu0
    %v4689 = vadd.f32 %v4653, %v4688
    %4690 = vmatmul.f32.gmra.mxu0 %v4663
    %v4691 = vpop.f32.mrf.mxu0
    %v4692 = vadd.f32 %v4653, %v4691
    %4693 = vmatmul.f32.gmra.mxu0 %v4666
    %v4694 = vpop.f32.mrf.mxu0
    %v4695 = vadd.f32 %v4653, %v4694
    %4696 = vdwg.mxu0
    %v4697 = vmul.f32 %v4686, %v4448
    %v4698 = vmul.f32 %v4689, %v4449
    %v4699 = vmul.f32 %v4692, %v4450
    %v4700 = vmul.f32 %v4695, %v4451
    %v4701 = vsel %vm3682, %v4697, 0.0
    %4702 = vadd.xlane.f32.xlu0 %v4701
    %v4703 = vpop.xlane.xlu0 %4702
    %v4704 = vsel %vm3682, %v4698, 0.0
    %4705 = vadd.xlane.f32.xlu0 %v4704
    %v4706 = vpop.xlane.xlu0 %4705
    %v4707 = vsel %vm3682, %v4699, 0.0
    %4708 = vadd.xlane.f32.xlu0 %v4707
    %v4709 = vpop.xlane.xlu0 %4708
    %v4710 = vsel %vm3682, %v4700, 0.0
    %4711 = vadd.xlane.f32.xlu0 %v4710
    %v4712 = vpop.xlane.xlu0 %4711
    %v4713 = vmul.f32 %v4703, %v3701
    %v4714 = vmul.f32 %v4706, %v3701
    %v4715 = vmul.f32 %v4709, %v3701
    %v4716 = vmul.f32 %v4712, %v3701
    %v4717 = vsub.f32 %v4697, %v4713
    %v4718 = vsub.f32 %v4698, %v4714
    %v4719 = vsub.f32 %v4699, %v4715
    %v4720 = vsub.f32 %v4700, %v4716
    %v4721 = vmul.f32 %v4717, %v4717
    %v4722 = vmul.f32 %v4718, %v4718
    %v4723 = vmul.f32 %v4719, %v4719
    %v4724 = vmul.f32 %v4720, %v4720
    %v4725 = vsel %vm3682, %v4721, 0.0
    %4726 = vadd.xlane.f32.xlu0 %v4725
    %v4727 = vpop.xlane.xlu0 %4726
    %v4728 = vsel %vm3682, %v4722, 0.0
    %4729 = vadd.xlane.f32.xlu0 %v4728
    %v4730 = vpop.xlane.xlu0 %4729
    %v4731 = vsel %vm3682, %v4723, 0.0
    %4732 = vadd.xlane.f32.xlu0 %v4731
    %v4733 = vpop.xlane.xlu0 %4732
    %v4734 = vsel %vm3682, %v4724, 0.0
    %4735 = vadd.xlane.f32.xlu0 %v4734
    %v4736 = vpop.xlane.xlu0 %4735
    %v4737 = vmul.f32 %v4727, %v3701
    %v4738 = vmul.f32 %v4730, %v3701
    %v4739 = vmul.f32 %v4733, %v3701
    %v4740 = vmul.f32 %v4736, %v3701
    %v4741 = vadd.f32 %v4737, 1e-05
    %v4742 = vadd.f32 %v4738, 1e-05
    %v4743 = vadd.f32 %v4739, 1e-05
    %v4744 = vadd.f32 %v4740, 1e-05
    %v4745 = vrsqrt.pop %v4741
    %v4746 = vmul.f32 %v4745, %v4741
    %v4747 = vmul.f32 %v4746, %v4745
    %v4748 = vmul.f32 0.5, %v4747
    %v4749 = vsub.f32 1.5, %v4748
    %v4750 = vmul.f32 %v4745, %v4749
    %vm4751 = vweird.f32 %v4741
    %vm4752 = vweird.f32 %v4745
    %vm4753 = vmor %vm4751, %vm4752
    %v4754 = vsel %vm4753, %v4745, %v4750
    %v4755 = vrsqrt.pop %v4742
    %v4756 = vmul.f32 %v4755, %v4742
    %v4757 = vmul.f32 %v4756, %v4755
    %v4758 = vmul.f32 0.5, %v4757
    %v4759 = vsub.f32 1.5, %v4758
    %v4760 = vmul.f32 %v4755, %v4759
    %vm4761 = vweird.f32 %v4742
    %vm4762 = vweird.f32 %v4755
    %vm4763 = vmor %vm4761, %vm4762
    %v4764 = vsel %vm4763, %v4755, %v4760
    %v4765 = vrsqrt.pop %v4743
    %v4766 = vmul.f32 %v4765, %v4743
    %v4767 = vmul.f32 %v4766, %v4765
    %v4768 = vmul.f32 0.5, %v4767
    %v4769 = vsub.f32 1.5, %v4768
    %v4770 = vmul.f32 %v4765, %v4769
    %vm4771 = vweird.f32 %v4743
    %vm4772 = vweird.f32 %v4765
    %vm4773 = vmor %vm4771, %vm4772
    %v4774 = vsel %vm4773, %v4765, %v4770
    %v4775 = vrsqrt.pop %v4744
    %v4776 = vmul.f32 %v4775, %v4744
    %v4777 = vmul.f32 %v4776, %v4775
    %v4778 = vmul.f32 0.5, %v4777
    %v4779 = vsub.f32 1.5, %v4778
    %v4780 = vmul.f32 %v4775, %v4779
    %vm4781 = vweird.f32 %v4744
    %vm4782 = vweird.f32 %v4775
    %vm4783 = vmor %vm4781, %vm4782
    %v4784 = vsel %vm4783, %v4775, %v4780
    %v4785 = vmul.f32 %v4717, %v4754
    %v4786 = vmul.f32 %v4718, %v4764
    %v4787 = vmul.f32 %v4719, %v4774
    %v4788 = vmul.f32 %v4720, %v4784
    %v4789 = vmul.f32 %v4785, %v3779
    %v4790 = vmul.f32 %v4786, %v3779
    %v4791 = vmul.f32 %v4787, %v3779
    %v4792 = vmul.f32 %v4788, %v3779
    %v4793 = vadd.f32 %v4789, %v3786
    %v4794 = vadd.f32 %v4790, %v3786
    %v4795 = vadd.f32 %v4791, %v3786
    %v4796 = vadd.f32 %v4792, %v3786
    %v4798 = vsel %vm3682, %v4793, 0
    %v4801 = vsel %vm3682, %v4794, 0
    %v4804 = vsel %vm3682, %v4795, 0
    %v4807 = vsel %vm3682, %v4796, 0
    %4809 = vmatpush.msra.mxu0 0.0
    %4810 = vmatpush.msra.mxu0 0.0
    %4811 = vmatpush.msra.mxu0 0.0
    %4812 = vmatpush.msra.mxu0 0.0
    %4813 = vmatpush.msra.mxu0 0.0
    %4814 = vmatpush.msra.mxu0 0.0
    %4815 = vmatpush.msra.mxu0 0.0
    %4816 = vmatpush.msra.mxu0 0.0
    %4817 = vmatpush.msra.mxu0 0.0
    %4818 = vmatpush.msra.mxu0 0.0
    %4819 = vmatpush.msra.mxu0 0.0
    %4820 = vmatpush.msra.mxu0 %v3796
    %4821 = vmatpush.msra.mxu0 %v3795
    %4822 = vmatpush.msra.mxu0 %v3794
    %4823 = vmatpush.msra.mxu0 %v3793
    %4824 = vmatpush.msra.mxu0 %v3792
    %4825 = vmatmul.f32.gmra.mxu0 %v4798
    %v4826 = vpop.f32.mrf.mxu0
    %v4827 = vadd.f32 %v3799, %v4826
    %4828 = vmatmul.f32.gmra.mxu0 %v4801
    %v4829 = vpop.f32.mrf.mxu0
    %v4830 = vadd.f32 %v3799, %v4829
    %4831 = vmatmul.f32.gmra.mxu0 %v4804
    %v4832 = vpop.f32.mrf.mxu0
    %v4833 = vadd.f32 %v3799, %v4832
    %4834 = vmatmul.f32.gmra.mxu0 %v4807
    %v4835 = vpop.f32.mrf.mxu0
    %v4836 = vadd.f32 %v3799, %v4835
    %4837 = vdwg.mxu0
    %v4838 = vmul.f32 %v4827, 0.15811388
    %v4839 = vmul.f32 %v4830, 0.15811388
    %v4840 = vmul.f32 %v4833, 0.15811388
    %v4841 = vmul.f32 %v4836, 0.15811388
    %4844 = vrot.lane.b32.xlu0 %v4827, 88
    %v4845 = vpop.permute.xlu0 %4844
    %4846 = vrot.lane.b32.xlu0 %v4830, 88
    %v4847 = vpop.permute.xlu0 %4846
    %v4849 = vsel %vm3682, %v4838, 0
    %v4852 = vsel %vm3682, %v4839, 0
    %v4854 = vsel %vm3682, %v4845, 0
    %v4856 = vsel %vm3682, %v4847, 0
    %4858 = vmatpush.xpose.msra.mxu0 0.0
    %4859 = vmatpush.xpose.msra.mxu0 0.0
    %4860 = vmatpush.xpose.msra.mxu0 0.0
    %4861 = vmatpush.xpose.msra.mxu0 0.0
    %4862 = vmatpush.xpose.msra.mxu0 0.0
    %4863 = vmatpush.xpose.msra.mxu0 0.0
    %4864 = vmatpush.xpose.msra.mxu0 0.0
    %4865 = vmatpush.xpose.msra.mxu0 0.0
    %4866 = vmatpush.xpose.msra.mxu0 0.0
    %4867 = vmatpush.xpose.msra.mxu0 0.0
    %4868 = vmatpush.xpose.msra.mxu0 0.0
    %4869 = vmatpush.xpose.msra.mxu0 0.0
    %4870 = vmatpush.xpose.msra.mxu0 0.0
    %4871 = vmatpush.xpose.msra.mxu0 0.0
    %4872 = vmatpush.xpose.msra.mxu0 %v4856
    %4873 = vmatpush.xpose.msra.mxu0 %v4854
    %4874 = vmatmul.f32.gmra.mxu0 %v4849
    %v4875 = vpop.f32.mrf.mxu0
    %v4876 = vadd.f32 %v903, %v4875
    %4877 = vmatmul.f32.gmra.mxu0 %v4852
    %v4878 = vpop.f32.mrf.mxu0
    %v4879 = vadd.f32 %v904, %v4878
    %4880 = vdwg.mxu0
    %v4881 = vsel %vm987, %v4876, -inf
    %4882 = vmax.xlane.f32.xlu0 %v4881
    %v4883 = vpop.xlane.xlu0 %4882
    %v4884 = vsel %vm987, %v4879, -inf
    %4885 = vmax.xlane.f32.xlu0 %v4884
    %v4886 = vpop.xlane.xlu0 %4885
    %v4887 = vsub.f32 %v4876, %v4883
    %v4888 = vsub.f32 %v4879, %v4886
    %v4889 = vmul.f32 %v4887, 1.442695
    %v4890 = vpow.pop %v4889
    %v4891 = vmul.f32 %v4888, 1.442695
    %v4892 = vpow.pop %v4891
    %v4893 = vsel %vm987, %v4890, 0.0
    %4894 = vadd.xlane.f32.xlu0 %v4893
    %v4895 = vpop.xlane.xlu0 %4894
    %v4896 = vsel %vm987, %v4892, 0.0
    %4897 = vadd.xlane.f32.xlu0 %v4896
    %v4898 = vpop.xlane.xlu0 %4897
    %v4899 = vrcp.pop %v4895
    %v4900 = vrcp.pop %v4898
    %v4901 = vmul.f32 %v4890, %v4899
    %v4902 = vmul.f32 %v4892, %v4900
    %4903 = vrot.lane.b32.xlu0 %v4827, 48
    %v4904 = vpop.permute.xlu0 %4903
    %4905 = vrot.lane.b32.xlu0 %v4830, 48
    %v4906 = vpop.permute.xlu0 %4905
    %v4910 = vsel %vm987, %v4901, 0
    %v4913 = vsel %vm987, %v4902, 0
    %4915 = vmatpush.msra.mxu0 0.0
    %4916 = vmatpush.msra.mxu0 0.0
    %4917 = vmatpush.msra.mxu0 0.0
    %4918 = vmatpush.msra.mxu0 0.0
    %4919 = vmatpush.msra.mxu0 0.0
    %4920 = vmatpush.msra.mxu0 0.0
    %4921 = vmatpush.msra.mxu0 0.0
    %4922 = vmatpush.msra.mxu0 0.0
    %4923 = vmatpush.msra.mxu0 0.0
    %4924 = vmatpush.msra.mxu0 0.0
    %4925 = vmatpush.msra.mxu0 0.0
    %4926 = vmatpush.msra.mxu0 0.0
    %4927 = vmatpush.msra.mxu0 0.0
    %4928 = vmatpush.msra.mxu0 0.0
    %4929 = vmatpush.msra.mxu0 %v4906
    %4930 = vmatpush.msra.mxu0 %v4904
    %4931 = vmatmul.f32.gmra.mxu0 %v4910
    %v4932 = vpop.f32.mrf.mxu0
    %v4933 = vadd.f32 0.0, %v4932
    %4934 = vmatmul.f32.gmra.mxu0 %v4913
    %v4935 = vpop.f32.mrf.mxu0
    %v4936 = vadd.f32 0.0, %v4935
    %4937 = vdwg.mxu0
    %4940 = vrot.lane.b32.xlu0 %v4833, 88
    %v4941 = vpop.permute.xlu0 %4940
    %4942 = vrot.lane.b32.xlu0 %v4836, 88
    %v4943 = vpop.permute.xlu0 %4942
    %v4945 = vsel %vm3682, %v4840, 0
    %v4948 = vsel %vm3682, %v4841, 0
    %v4950 = vsel %vm3682, %v4941, 0
    %v4952 = vsel %vm3682, %v4943, 0
    %4954 = vmatpush.xpose.msra.mxu0 0.0
    %4955 = vmatpush.xpose.msra.mxu0 0.0
    %4956 = vmatpush.xpose.msra.mxu0 0.0
    %4957 = vmatpush.xpose.msra.mxu0 0.0
    %4958 = vmatpush.xpose.msra.mxu0 0.0
    %4959 = vmatpush.xpose.msra.mxu0 0.0
    %4960 = vmatpush.xpose.msra.mxu0 0.0
    %4961 = vmatpush.xpose.msra.mxu0 0.0
    %4962 = vmatpush.xpose.msra.mxu0 0.0
    %4963 = vmatpush.xpose.msra.mxu0 0.0
    %4964 = vmatpush.xpose.msra.mxu0 0.0
    %4965 = vmatpush.xpose.msra.mxu0 0.0
    %4966 = vmatpush.xpose.msra.mxu0 0.0
    %4967 = vmatpush.xpose.msra.mxu0 0.0
    %4968 = vmatpush.xpose.msra.mxu0 %v4952
    %4969 = vmatpush.xpose.msra.mxu0 %v4950
    %4970 = vmatmul.f32.gmra.mxu0 %v4945
    %v4971 = vpop.f32.mrf.mxu0
    %v4972 = vadd.f32 %v903, %v4971
    %4973 = vmatmul.f32.gmra.mxu0 %v4948
    %v4974 = vpop.f32.mrf.mxu0
    %v4975 = vadd.f32 %v904, %v4974
    %4976 = vdwg.mxu0
    %v4977 = vsel %vm987, %v4972, -inf
    %4978 = vmax.xlane.f32.xlu0 %v4977
    %v4979 = vpop.xlane.xlu0 %4978
    %v4980 = vsel %vm987, %v4975, -inf
    %4981 = vmax.xlane.f32.xlu0 %v4980
    %v4982 = vpop.xlane.xlu0 %4981
    %v4983 = vsub.f32 %v4972, %v4979
    %v4984 = vsub.f32 %v4975, %v4982
    %v4985 = vmul.f32 %v4983, 1.442695
    %v4986 = vpow.pop %v4985
    %v4987 = vmul.f32 %v4984, 1.442695
    %v4988 = vpow.pop %v4987
    %v4989 = vsel %vm987, %v4986, 0.0
    %4990 = vadd.xlane.f32.xlu0 %v4989
    %v4991 = vpop.xlane.xlu0 %4990
    %v4992 = vsel %vm987, %v4988, 0.0
    %4993 = vadd.xlane.f32.xlu0 %v4992
    %v4994 = vpop.xlane.xlu0 %4993
    %v4995 = vrcp.pop %v4991
    %v4996 = vrcp.pop %v4994
    %v4997 = vmul.f32 %v4986, %v4995
    %v4998 = vmul.f32 %v4988, %v4996
    %4999 = vrot.lane.b32.xlu0 %v4833, 48
    %v5000 = vpop.permute.xlu0 %4999
    %5001 = vrot.lane.b32.xlu0 %v4836, 48
    %v5002 = vpop.permute.xlu0 %5001
    %v5006 = vsel %vm987, %v4997, 0
    %v5009 = vsel %vm987, %v4998, 0
    %5011 = vmatpush.msra.mxu0 0.0
    %5012 = vmatpush.msra.mxu0 0.0
    %5013 = vmatpush.msra.mxu0 0.0
    %5014 = vmatpush.msra.mxu0 0.0
    %5015 = vmatpush.msra.mxu0 0.0
    %5016 = vmatpush.msra.mxu0 0.0
    %5017 = vmatpush.msra.mxu0 0.0
    %5018 = vmatpush.msra.mxu0 0.0
    %5019 = vmatpush.msra.mxu0 0.0
    %5020 = vmatpush.msra.mxu0 0.0
    %5021 = vmatpush.msra.mxu0 0.0
    %5022 = vmatpush.msra.mxu0 0.0
    %5023 = vmatpush.msra.mxu0 0.0
    %5024 = vmatpush.msra.mxu0 0.0
    %5025 = vmatpush.msra.mxu0 %v5002
    %5026 = vmatpush.msra.mxu0 %v5000
    %5027 = vmatmul.f32.gmra.mxu0 %v5006
    %v5028 = vpop.f32.mrf.mxu0
    %v5029 = vadd.f32 0.0, %v5028
    %5030 = vmatmul.f32.gmra.mxu0 %v5009
    %v5031 = vpop.f32.mrf.mxu0
    %v5032 = vadd.f32 0.0, %v5031
    %5033 = vdwg.mxu0
    %v5035 = vsel %vm3682, %v4933, 0
    %v5038 = vsel %vm3682, %v4936, 0
    %v5041 = vsel %vm3682, %v5029, 0
    %v5044 = vsel %vm3682, %v5032, 0
    %5046 = vmatpush.msra.mxu0 0.0
    %5047 = vmatpush.msra.mxu0 0.0
    %5048 = vmatpush.msra.mxu0 0.0
    %5049 = vmatpush.msra.mxu0 0.0
    %5050 = vmatpush.msra.mxu0 0.0
    %5051 = vmatpush.msra.mxu0 0.0
    %5052 = vmatpush.msra.mxu0 0.0
    %5053 = vmatpush.msra.mxu0 0.0
    %5054 = vmatpush.msra.mxu0 0.0
    %5055 = vmatpush.msra.mxu0 0.0
    %5056 = vmatpush.msra.mxu0 0.0
    %5057 = vmatpush.msra.mxu0 %v4042
    %5058 = vmatpush.msra.mxu0 %v4041
    %5059 = vmatpush.msra.mxu0 %v4040
    %5060 = vmatpush.msra.mxu0 %v4039
    %5061 = vmatpush.msra.mxu0 %v4038
    %5062 = vmatmul.f32.gmra.mxu0 %v5035
    %v5063 = vpop.f32.mrf.mxu0
    %v5064 = vadd.f32 %v4045, %v5063
    %5065 = vmatmul.f32.gmra.mxu0 %v5038
    %v5066 = vpop.f32.mrf.mxu0
    %v5067 = vadd.f32 %v4045, %v5066
    %5068 = vmatmul.f32.gmra.mxu0 %v5041
    %v5069 = vpop.f32.mrf.mxu0
    %v5070 = vadd.f32 %v4045, %v5069
    %5071 = vmatmul.f32.gmra.mxu0 %v5044
    %v5072 = vpop.f32.mrf.mxu0
    %v5073 = vadd.f32 %v4045, %v5072
    %5074 = vdwg.mxu0
    %v5075 = vadd.f32 %v4697, %v5064
    %v5076 = vadd.f32 %v4698, %v5067
    %v5077 = vadd.f32 %v4699, %v5070
    %v5078 = vadd.f32 %v4700, %v5073
    %v5079 = vsel %vm3682, %v5075, 0.0
    %5080 = vadd.xlane.f32.xlu0 %v5079
    %v5081 = vpop.xlane.xlu0 %5080
    %v5082 = vsel %vm3682, %v5076, 0.0
    %5083 = vadd.xlane.f32.xlu0 %v5082
    %v5084 = vpop.xlane.xlu0 %5083
    %v5085 = vsel %vm3682, %v5077, 0.0
    %5086 = vadd.xlane.f32.xlu0 %v5085
    %v5087 = vpop.xlane.xlu0 %5086
    %v5088 = vsel %vm3682, %v5078, 0.0
    %5089 = vadd.xlane.f32.xlu0 %v5088
    %v5090 = vpop.xlane.xlu0 %5089
    %v5091 = vmul.f32 %v5081, %v3701
    %v5092 = vmul.f32 %v5084, %v3701
    %v5093 = vmul.f32 %v5087, %v3701
    %v5094 = vmul.f32 %v5090, %v3701
    %v5095 = vsub.f32 %v5075, %v5091
    %v5096 = vsub.f32 %v5076, %v5092
    %v5097 = vsub.f32 %v5077, %v5093
    %v5098 = vsub.f32 %v5078, %v5094
    %v5099 = vmul.f32 %v5095, %v5095
    %v5100 = vmul.f32 %v5096, %v5096
    %v5101 = vmul.f32 %v5097, %v5097
    %v5102 = vmul.f32 %v5098, %v5098
    %v5103 = vsel %vm3682, %v5099, 0.0
    %5104 = vadd.xlane.f32.xlu0 %v5103
    %v5105 = vpop.xlane.xlu0 %5104
    %v5106 = vsel %vm3682, %v5100, 0.0
    %5107 = vadd.xlane.f32.xlu0 %v5106
    %v5108 = vpop.xlane.xlu0 %5107
    %v5109 = vsel %vm3682, %v5101, 0.0
    %5110 = vadd.xlane.f32.xlu0 %v5109
    %v5111 = vpop.xlane.xlu0 %5110
    %v5112 = vsel %vm3682, %v5102, 0.0
    %5113 = vadd.xlane.f32.xlu0 %v5112
    %v5114 = vpop.xlane.xlu0 %5113
    %v5115 = vmul.f32 %v5105, %v3701
    %v5116 = vmul.f32 %v5108, %v3701
    %v5117 = vmul.f32 %v5111, %v3701
    %v5118 = vmul.f32 %v5114, %v3701
    %v5119 = vadd.f32 %v5115, 1e-05
    %v5120 = vadd.f32 %v5116, 1e-05
    %v5121 = vadd.f32 %v5117, 1e-05
    %v5122 = vadd.f32 %v5118, 1e-05
    %v5123 = vrsqrt.pop %v5119
    %v5124 = vmul.f32 %v5123, %v5119
    %v5125 = vmul.f32 %v5124, %v5123
    %v5126 = vmul.f32 0.5, %v5125
    %v5127 = vsub.f32 1.5, %v5126
    %v5128 = vmul.f32 %v5123, %v5127
    %vm5129 = vweird.f32 %v5119
    %vm5130 = vweird.f32 %v5123
    %vm5131 = vmor %vm5129, %vm5130
    %v5132 = vsel %vm5131, %v5123, %v5128
    %v5133 = vrsqrt.pop %v5120
    %v5134 = vmul.f32 %v5133, %v5120
    %v5135 = vmul.f32 %v5134, %v5133
    %v5136 = vmul.f32 0.5, %v5135
    %v5137 = vsub.f32 1.5, %v5136
    %v5138 = vmul.f32 %v5133, %v5137
    %vm5139 = vweird.f32 %v5120
    %vm5140 = vweird.f32 %v5133
    %vm5141 = vmor %vm5139, %vm5140
    %v5142 = vsel %vm5141, %v5133, %v5138
    %v5143 = vrsqrt.pop %v5121
    %v5144 = vmul.f32 %v5143, %v5121
    %v5145 = vmul.f32 %v5144, %v5143
    %v5146 = vmul.f32 0.5, %v5145
    %v5147 = vsub.f32 1.5, %v5146
    %v5148 = vmul.f32 %v5143, %v5147
    %vm5149 = vweird.f32 %v5121
    %vm5150 = vweird.f32 %v5143
    %vm5151 = vmor %vm5149, %vm5150
    %v5152 = vsel %vm5151, %v5143, %v5148
    %v5153 = vrsqrt.pop %v5122
    %v5154 = vmul.f32 %v5153, %v5122
    %v5155 = vmul.f32 %v5154, %v5153
    %v5156 = vmul.f32 0.5, %v5155
    %v5157 = vsub.f32 1.5, %v5156
    %v5158 = vmul.f32 %v5153, %v5157
    %vm5159 = vweird.f32 %v5122
    %vm5160 = vweird.f32 %v5153
    %vm5161 = vmor %vm5159, %vm5160
    %v5162 = vsel %vm5161, %v5153, %v5158
    %v5163 = vmul.f32 %v5095, %v5132
    %v5164 = vmul.f32 %v5096, %v5142
    %v5165 = vmul.f32 %v5097, %v5152
    %v5166 = vmul.f32 %v5098, %v5162
    %v5167 = vmul.f32 %v5163, %v4183
    %v5168 = vmul.f32 %v5164, %v4183
    %v5169 = vmul.f32 %v5165, %v4183
    %v5170 = vmul.f32 %v5166, %v4183
    %v5171 = vadd.f32 %v5167, %v4190
    %v5172 = vadd.f32 %v5168, %v4190
    %v5173 = vadd.f32 %v5169, %v4190
    %v5174 = vadd.f32 %v5170, %v4190
    %v5176 = vsel %vm3682, %v5171, 0
    %v5179 = vsel %vm3682, %v5172, 0
    %v5182 = vsel %vm3682, %v5173, 0
    %v5185 = vsel %vm3682, %v5174, 0
    %5187 = vmatpush.msra.mxu0 0.0
    %5188 = vmatpush.msra.mxu0 0.0
    %5189 = vmatpush.msra.mxu0 0.0
    %5190 = vmatpush.msra.mxu0 0.0
    %5191 = vmatpush.msra.mxu0 0.0
    %5192 = vmatpush.msra.mxu0 0.0
    %5193 = vmatpush.msra.mxu0 0.0
    %5194 = vmatpush.msra.mxu0 0.0
    %5195 = vmatpush.msra.mxu0 0.0
    %5196 = vmatpush.msra.mxu0 0.0
    %5197 = vmatpush.msra.mxu0 0.0
    %5198 = vmatpush.msra.mxu0 %v4204
    %5199 = vmatpush.msra.mxu0 %v4202
    %5200 = vmatpush.msra.mxu0 %v4200
    %5201 = vmatpush.msra.mxu0 %v4198
    %5202 = vmatpush.msra.mxu0 %v4196
    %5203 = vmatmul.f32.gmra.mxu0 %v5176
    %v5204 = vpop.f32.mrf.mxu0
    %v5205 = vadd.f32 %v4208, %v5204
    %5206 = vmatmul.f32.gmra.mxu0 %v5179
    %v5207 = vpop.f32.mrf.mxu0
    %v5208 = vadd.f32 %v4208, %v5207
    %5209 = vmatmul.f32.gmra.mxu0 %v5182
    %v5210 = vpop.f32.mrf.mxu0
    %v5211 = vadd.f32 %v4208, %v5210
    %5212 = vmatmul.f32.gmra.mxu0 %v5185
    %v5213 = vpop.f32.mrf.mxu0
    %v5214 = vadd.f32 %v4208, %v5213
    %5215 = vdwg.mxu0
    %5216 = vmatpush.msra.mxu0 0.0
    %5217 = vmatpush.msra.mxu0 0.0
    %5218 = vmatpush.msra.mxu0 0.0
    %5219 = vmatpush.msra.mxu0 0.0
    %5220 = vmatpush.msra.mxu0 0.0
    %5221 = vmatpush.msra.mxu0 0.0
    %5222 = vmatpush.msra.mxu0 0.0
    %5223 = vmatpush.msra.mxu0 0.0
    %5224 = vmatpush.msra.mxu0 0.0
    %5225 = vmatpush.msra.mxu0 0.0
    %5226 = vmatpush.msra.mxu0 0.0
    %5227 = vmatpush.msra.mxu0 %v4205
    %5228 = vmatpush.msra.mxu0 %v4203
    %5229 = vmatpush.msra.mxu0 %v4201
    %5230 = vmatpush.msra.mxu0 %v4199
    %5231 = vmatpush.msra.mxu0 %v4197
    %5232 = vmatmul.f32.gmra.mxu0 %v5176
    %v5233 = vpop.f32.mrf.mxu0
    %v5234 = vadd.f32 %v4209, %v5233
    %5235 = vmatmul.f32.gmra.mxu0 %v5179
    %v5236 = vpop.f32.mrf.mxu0
    %v5237 = vadd.f32 %v4209, %v5236
    %5238 = vmatmul.f32.gmra.mxu0 %v5182
    %v5239 = vpop.f32.mrf.mxu0
    %v5240 = vadd.f32 %v4209, %v5239
    %5241 = vmatmul.f32.gmra.mxu0 %v5185
    %v5242 = vpop.f32.mrf.mxu0
    %v5243 = vadd.f32 %v4209, %v5242
    %5244 = vdwg.mxu0
    %v5245 = vmul.f32 %v5205, 0.5
    %v5246 = vmul.f32 %v5234, 0.5
    %v5247 = vmul.f32 %v5208, 0.5
    %v5248 = vmul.f32 %v5237, 0.5
    %v5249 = vmul.f32 %v5211, 0.5
    %v5250 = vmul.f32 %v5240, 0.5
    %v5251 = vmul.f32 %v5214, 0.5
    %v5252 = vmul.f32 %v5243, 0.5
    %v5253 = vmul.f32 %v5205, 0.044715
    %v5254 = vmul.f32 %v5234, 0.044715
    %v5255 = vmul.f32 %v5208, 0.044715
    %v5256 = vmul.f32 %v5237, 0.044715
    %v5257 = vmul.f32 %v5211, 0.044715
    %v5258 = vmul.f32 %v5240, 0.044715
    %v5259 = vmul.f32 %v5214, 0.044715
    %v5260 = vmul.f32 %v5243, 0.044715
    %v5261 = vmul.f32 %v5253, %v5205
    %v5262 = vmul.f32 %v5254, %v5234
    %v5263 = vmul.f32 %v5255, %v5208
    %v5264 = vmul.f32 %v5256, %v5237
    %v5265 = vmul.f32 %v5257, %v5211
    %v5266 = vmul.f32 %v5258, %v5240
    %v5267 = vmul.f32 %v5259, %v5214
    %v5268 = vmul.f32 %v5260, %v5243
    %v5269 = vmul.f32 %v5261, %v5205
    %v5270 = vmul.f32 %v5262, %v5234
    %v5271 = vmul.f32 %v5263, %v5208
    %v5272 = vmul.f32 %v5264, %v5237
    %v5273 = vmul.f32 %v5265, %v5211
    %v5274 = vmul.f32 %v5266, %v5240
    %v5275 = vmul.f32 %v5267, %v5214
    %v5276 = vmul.f32 %v5268, %v5243
    %v5277 = vadd.f32 %v5205, %v5269
    %v5278 = vadd.f32 %v5234, %v5270
    %v5279 = vadd.f32 %v5208, %v5271
    %v5280 = vadd.f32 %v5237, %v5272
    %v5281 = vadd.f32 %v5211, %v5273
    %v5282 = vadd.f32 %v5240, %v5274
    %v5283 = vadd.f32 %v5214, %v5275
    %v5284 = vadd.f32 %v5243, %v5276
    %v5285 = vmul.f32 %v5277, 0.7978846
    %v5286 = vmul.f32 %v5278, 0.7978846
    %v5287 = vmul.f32 %v5279, 0.7978846
    %v5288 = vmul.f32 %v5280, 0.7978846
    %v5289 = vmul.f32 %v5281, 0.7978846
    %v5290 = vmul.f32 %v5282, 0.7978846
    %v5291 = vmul.f32 %v5283, 0.7978846
    %v5292 = vmul.f32 %v5284, 0.7978846
    %v5293 = vtanh.pop %v5285
    %v5294 = vtanh.pop %v5286
    %v5295 = vtanh.pop %v5287
    %v5296 = vtanh.pop %v5288
    %v5297 = vtanh.pop %v5289
    %v5298 = vtanh.pop %v5290
    %v5299 = vtanh.pop %v5291
    %v5300 = vtanh.pop %v5292
    %v5301 = vadd.f32 %v5293, 1.0
    %v5302 = vadd.f32 %v5294, 1.0
    %v5303 = vadd.f32 %v5295, 1.0
    %v5304 = vadd.f32 %v5296, 1.0
    %v5305 = vadd.f32 %v5297, 1.0
    %v5306 = vadd.f32 %v5298, 1.0
    %v5307 = vadd.f32 %v5299, 1.0
    %v5308 = vadd.f32 %v5300, 1.0
    %v5309 = vmul.f32 %v5245, %v5301
    %v5310 = vmul.f32 %v5246, %v5302
    %v5311 = vmul.f32 %v5247, %v5303
    %v5312 = vmul.f32 %v5248, %v5304
    %v5313 = vmul.f32 %v5249, %v5305
    %v5314 = vmul.f32 %v5250, %v5306
    %v5315 = vmul.f32 %v5251, %v5307
    %v5316 = vmul.f32 %v5252, %v5308
    %v5318 = vsel %vm943, %v5310, 0
    %v5321 = vsel %vm943, %v5312, 0
    %v5324 = vsel %vm943, %v5314, 0
    %v5327 = vsel %vm943, %v5316, 0
    %5329 = vmatpush.msra.mxu0 %v4369
    %5330 = vmatpush.msra.mxu0 %v4368
    %5331 = vmatpush.msra.mxu0 %v4367
    %5332 = vmatpush.msra.mxu0 %v4366
    %5333 = vmatpush.msra.mxu0 %v4365
    %5334 = vmatpush.msra.mxu0 %v4364
    %5335 = vmatpush.msra.mxu0 %v4363
    %5336 = vmatpush.msra.mxu0 %v4362
    %5337 = vmatpush.msra.mxu0 %v4361
    %5338 = vmatpush.msra.mxu0 %v4360
    %5339 = vmatpush.msra.mxu0 %v4359
    %5340 = vmatpush.msra.mxu0 %v4358
    %5341 = vmatpush.msra.mxu0 %v4357
    %5342 = vmatpush.msra.mxu0 %v4356
    %5343 = vmatpush.msra.mxu0 %v4355
    %5344 = vmatpush.msra.mxu0 %v4354
    %5345 = vmatmul.f32.gmra.mxu0 %v5309
    %v5346 = vpop.f32.mrf.mxu0
    %v5347 = vadd.f32 %v4376, %v5346
    %5348 = vmatmul.f32.gmra.mxu0 %v5311
    %v5349 = vpop.f32.mrf.mxu0
    %v5350 = vadd.f32 %v4376, %v5349
    %5351 = vmatmul.f32.gmra.mxu0 %v5313
    %v5352 = vpop.f32.mrf.mxu0
    %v5353 = vadd.f32 %v4376, %v5352
    %5354 = vmatmul.f32.gmra.mxu0 %v5315
    %v5355 = vpop.f32.mrf.mxu0
    %v5356 = vadd.f32 %v4376, %v5355
    %5357 = vdwg.mxu0
    %5358 = vmatpush.msra.mxu0 0.0
    %5359 = vmatpush.msra.mxu0 0.0
    %5360 = vmatpush.msra.mxu0 0.0
    %5361 = vmatpush.msra.mxu0 0.0
    %5362 = vmatpush.msra.mxu0 0.0
    %5363 = vmatpush.msra.mxu0 0.0
    %5364 = vmatpush.msra.mxu0 0.0
    %5365 = vmatpush.msra.mxu0 0.0
    %5366 = vmatpush.msra.mxu0 0.0
    %5367 = vmatpush.msra.mxu0 0.0
    %5368 = vmatpush.msra.mxu0 0.0
    %5369 = vmatpush.msra.mxu0 0.0
    %5370 = vmatpush.msra.mxu0 %v4373
    %5371 = vmatpush.msra.mxu0 %v4372
    %5372 = vmatpush.msra.mxu0 %v4371
    %5373 = vmatpush.msra.mxu0 %v4370
    %5374 = vmatmul.f32.gmra.mxu0 %v5318
    %v5375 = vpop.f32.mrf.mxu0
    %v5376 = vadd.f32 %v5347, %v5375
    %5377 = vmatmul.f32.gmra.mxu0 %v5321
    %v5378 = vpop.f32.mrf.mxu0
    %v5379 = vadd.f32 %v5350, %v5378
    %5380 = vmatmul.f32.gmra.mxu0 %v5324
    %v5381 = vpop.f32.mrf.mxu0
    %v5382 = vadd.f32 %v5353, %v5381
    %5383 = vmatmul.f32.gmra.mxu0 %v5327
    %v5384 = vpop.f32.mrf.mxu0
    %v5385 = vadd.f32 %v5356, %v5384
    %5386 = vdwg.mxu0
    %v5387 = vadd.f32 %v5075, %v5376
    %v5388 = vadd.f32 %v5076, %v5379
    %v5389 = vadd.f32 %v5077, %v5382
    %v5390 = vadd.f32 %v5078, %v5385
    %v5391 = vld [vmem:[%s27] sm:$0xff]
    %v5392 = vld [vmem:[%s27 + $0x8] sm:$0xff]
    %v5393 = vld [vmem:[%s27 + $0x10] sm:$0xff]
    %v5394 = vld [vmem:[%s27 + $0x18] sm:$0xff]
    %v5395 = vld [vmem:[%s27 + $0x20] sm:$0xff]
    %v5396 = vld [vmem:[%s29] sm:$0x1]
    %v5398 = vperm.slane %v5396, 0
    %v5401 = vsel %vm3682, %v5387, 0
    %v5404 = vsel %vm3682, %v5388, 0
    %v5407 = vsel %vm3682, %v5389, 0
    %v5410 = vsel %vm3682, %v5390, 0
    %5412 = vmatpush.msra.mxu0 0.0
    %5413 = vmatpush.msra.mxu0 0.0
    %5414 = vmatpush.msra.mxu0 0.0
    %5415 = vmatpush.msra.mxu0 0.0
    %5416 = vmatpush.msra.mxu0 0.0
    %5417 = vmatpush.msra.mxu0 0.0
    %5418 = vmatpush.msra.mxu0 0.0
    %5419 = vmatpush.msra.mxu0 0.0
    %5420 = vmatpush.msra.mxu0 0.0
    %5421 = vmatpush.msra.mxu0 0.0
    %5422 = vmatpush.msra.mxu0 0.0
    %5423 = vmatpush.msra.mxu0 %v5395
    %5424 = vmatpush.msra.mxu0 %v5394
    %5425 = vmatpush.msra.mxu0 %v5393
    %5426 = vmatpush.msra.mxu0 %v5392
    %5427 = vmatpush.msra.mxu0 %v5391
    %5428 = vmatmul.f32.gmra.mxu0 %v5401
    %v5429 = vpop.f32.mrf.mxu0
    %v5430 = vadd.f32 %v5398, %v5429
    %5431 = vmatmul.f32.gmra.mxu0 %v5404
    %v5432 = vpop.f32.mrf.mxu0
    %v5433 = vadd.f32 %v5398, %v5432
    %5434 = vmatmul.f32.gmra.mxu0 %v5407
    %v5435 = vpop.f32.mrf.mxu0
    %v5436 = vadd.f32 %v5398, %v5435
    %5437 = vmatmul.f32.gmra.mxu0 %v5410
    %v5438 = vpop.f32.mrf.mxu0
    %v5439 = vadd.f32 %v5398, %v5438
    %5440 = vdwg.mxu0
    %v5441 = vmul.f32 %v5430, %v3628
    %v5442 = vmul.f32 %v5433, %v3629
    %v5443 = vmul.f32 %v5436, %v3630
    %v5444 = vmul.f32 %v5439, %v3631
    %v5445 = vsel %vm2327, %v5441, 0.0
    %5446 = vadd.xlane.f32.xlu0 %v5445
    %v5447 = vpop.xlane.xlu0 %5446
    %v5448 = vsel %vm2327, %v5442, 0.0
    %5449 = vadd.xlane.f32.xlu0 %v5448
    %v5450 = vpop.xlane.xlu0 %5449
    %v5451 = vsel %vm2327, %v5443, 0.0
    %5452 = vadd.xlane.f32.xlu0 %v5451
    %v5453 = vpop.xlane.xlu0 %5452
    %v5454 = vsel %vm2327, %v5444, 0.0
    %5455 = vadd.xlane.f32.xlu0 %v5454
    %v5456 = vpop.xlane.xlu0 %5455
    %v5457 = vmul.f32 %v5447, %v2346
    %v5458 = vmul.f32 %v5450, %v2346
    %v5459 = vmul.f32 %v5453, %v2346
    %v5460 = vmul.f32 %v5456, %v2346
    %v5461 = vsub.f32 %v5441, %v5457
    %v5462 = vsub.f32 %v5442, %v5458
    %v5463 = vsub.f32 %v5443, %v5459
    %v5464 = vsub.f32 %v5444, %v5460
    %v5465 = vmul.f32 %v5461, %v5461
    %v5466 = vmul.f32 %v5462, %v5462
    %v5467 = vmul.f32 %v5463, %v5463
    %v5468 = vmul.f32 %v5464, %v5464
    %v5469 = vsel %vm2327, %v5465, 0.0
    %5470 = vadd.xlane.f32.xlu0 %v5469
    %v5471 = vpop.xlane.xlu0 %5470
    %v5472 = vsel %vm2327, %v5466, 0.0
    %5473 = vadd.xlane.f32.xlu0 %v5472
    %v5474 = vpop.xlane.xlu0 %5473
    %v5475 = vsel %vm2327, %v5467, 0.0
    %5476 = vadd.xlane.f32.xlu0 %v5475
    %v5477 = vpop.xlane.xlu0 %5476
    %v5478 = vsel %vm2327, %v5468, 0.0
    %5479 = vadd.xlane.f32.xlu0 %v5478
    %v5480 = vpop.xlane.xlu0 %5479
    %v5481 = vmul.f32 %v5471, %v2346
    %v5482 = vmul.f32 %v5474, %v2346
    %v5483 = vmul.f32 %v5477, %v2346
    %v5484 = vmul.f32 %v5480, %v2346
    %v5485 = vadd.f32 %v5481, 1e-05
    %v5486 = vadd.f32 %v5482, 1e-05
    %v5487 = vadd.f32 %v5483, 1e-05
    %v5488 = vadd.f32 %v5484, 1e-05
    %v5489 = vrsqrt.pop %v5485
    %v5490 = vmul.f32 %v5489, %v5485
    %v5491 = vmul.f32 %v5490, %v5489
    %v5492 = vmul.f32 0.5, %v5491
    %v5493 = vsub.f32 1.5, %v5492
    %v5494 = vmul.f32 %v5489, %v5493
    %vm5495 = vweird.f32 %v5485
    %vm5496 = vweird.f32 %v5489
    %vm5497 = vmor %vm5495, %vm5496
    %v5498 = vsel %vm5497, %v5489, %v5494
    %v5499 = vrsqrt.pop %v5486
    %v5500 = vmul.f32 %v5499, %v5486
    %v5501 = vmul.f32 %v5500, %v5499
    %v5502 = vmul.f32 0.5, %v5501
    %v5503 = vsub.f32 1.5, %v5502
    %v5504 = vmul.f32 %v5499, %v5503
    %vm5505 = vweird.f32 %v5486
    %vm5506 = vweird.f32 %v5499
    %vm5507 = vmor %vm5505, %vm5506
    %v5508 = vsel %vm5507, %v5499, %v5504
    %v5509 = vrsqrt.pop %v5487
    %v5510 = vmul.f32 %v5509, %v5487
    %v5511 = vmul.f32 %v5510, %v5509
    %v5512 = vmul.f32 0.5, %v5511
    %v5513 = vsub.f32 1.5, %v5512
    %v5514 = vmul.f32 %v5509, %v5513
    %vm5515 = vweird.f32 %v5487
    %vm5516 = vweird.f32 %v5509
    %vm5517 = vmor %vm5515, %vm5516
    %v5518 = vsel %vm5517, %v5509, %v5514
    %v5519 = vrsqrt.pop %v5488
    %v5520 = vmul.f32 %v5519, %v5488
    %v5521 = vmul.f32 %v5520, %v5519
    %v5522 = vmul.f32 0.5, %v5521
    %v5523 = vsub.f32 1.5, %v5522
    %v5524 = vmul.f32 %v5519, %v5523
    %vm5525 = vweird.f32 %v5488
    %vm5526 = vweird.f32 %v5519
    %vm5527 = vmor %vm5525, %vm5526
    %v5528 = vsel %vm5527, %v5519, %v5524
    %v5529 = vmul.f32 %v5461, %v5498
    %v5530 = vmul.f32 %v5462, %v5508
    %v5531 = vmul.f32 %v5463, %v5518
    %v5532 = vmul.f32 %v5464, %v5528
    %v5533 = vmul.f32 %v5529, %v3074
    %v5534 = vmul.f32 %v5530, %v3074
    %v5535 = vmul.f32 %v5531, %v3074
    %v5536 = vmul.f32 %v5532, %v3074
    %v5537 = vadd.f32 %v5533, %v3081
    %v5538 = vadd.f32 %v5534, %v3081
    %v5539 = vadd.f32 %v5535, %v3081
    %v5540 = vadd.f32 %v5536, %v3081
    %v5542 = vsel %vm2327, %v5537, 0
    %v5545 = vsel %vm2327, %v5538, 0
    %v5548 = vsel %vm2327, %v5539, 0
    %v5551 = vsel %vm2327, %v5540, 0
    %5553 = vmatpush.msra.mxu0 0.0
    %5554 = vmatpush.msra.mxu0 0.0
    %5555 = vmatpush.msra.mxu0 0.0
    %5556 = vmatpush.msra.mxu0 0.0
    %5557 = vmatpush.msra.mxu0 0.0
    %5558 = vmatpush.msra.mxu0 0.0
    %5559 = vmatpush.msra.mxu0 0.0
    %5560 = vmatpush.msra.mxu0 0.0
    %5561 = vmatpush.msra.mxu0 0.0
    %5562 = vmatpush.msra.mxu0 0.0
    %5563 = vmatpush.msra.mxu0 0.0
    %5564 = vmatpush.msra.mxu0 0.0
    %5565 = vmatpush.msra.mxu0 0.0
    %5566 = vmatpush.msra.mxu0 %v3089
    %5567 = vmatpush.msra.mxu0 %v3088
    %5568 = vmatpush.msra.mxu0 %v3087
    %5569 = vmatmul.f32.gmra.mxu0 %v5542
    %v5570 = vpop.f32.mrf.mxu0
    %v5571 = vadd.f32 %v3092, %v5570
    %5572 = vmatmul.f32.gmra.mxu0 %v5545
    %v5573 = vpop.f32.mrf.mxu0
    %v5574 = vadd.f32 %v3092, %v5573
    %5575 = vmatmul.f32.gmra.mxu0 %v5548
    %v5576 = vpop.f32.mrf.mxu0
    %v5577 = vadd.f32 %v3092, %v5576
    %5578 = vmatmul.f32.gmra.mxu0 %v5551
    %v5579 = vpop.f32.mrf.mxu0
    %v5580 = vadd.f32 %v3092, %v5579
    %5581 = vdwg.mxu0
    %v5582 = vmul.f32 %v5571, 0.20412415
    %v5583 = vmul.f32 %v5574, 0.20412415
    %v5584 = vmul.f32 %v5577, 0.20412415
    %v5585 = vmul.f32 %v5580, 0.20412415
    %5588 = vrot.lane.b32.xlu0 %v5571, 104
    %v5589 = vpop.permute.xlu0 %5588
    %5590 = vrot.lane.b32.xlu0 %v5574, 104
    %v5591 = vpop.permute.xlu0 %5590
    %v5593 = vsel %vm2327, %v5582, 0
    %v5596 = vsel %vm2327, %v5583, 0
    %v5598 = vsel %vm2327, %v5589, 0
    %v5600 = vsel %vm2327, %v5591, 0
    %5602 = vmatpush.xpose.msra.mxu0 0.0
    %5603 = vmatpush.xpose.msra.mxu0 0.0
    %5604 = vmatpush.xpose.msra.mxu0 0.0
    %5605 = vmatpush.xpose.msra.mxu0 0.0
    %5606 = vmatpush.xpose.msra.mxu0 0.0
    %5607 = vmatpush.xpose.msra.mxu0 0.0
    %5608 = vmatpush.xpose.msra.mxu0 0.0
    %5609 = vmatpush.xpose.msra.mxu0 0.0
    %5610 = vmatpush.xpose.msra.mxu0 0.0
    %5611 = vmatpush.xpose.msra.mxu0 0.0
    %5612 = vmatpush.xpose.msra.mxu0 0.0
    %5613 = vmatpush.xpose.msra.mxu0 0.0
    %5614 = vmatpush.xpose.msra.mxu0 0.0
    %5615 = vmatpush.xpose.msra.mxu0 0.0
    %5616 = vmatpush.xpose.msra.mxu0 %v5600
    %5617 = vmatpush.xpose.msra.mxu0 %v5598
    %5618 = vmatmul.f32.gmra.mxu0 %v5593
    %v5619 = vpop.f32.mrf.mxu0
    %v5620 = vadd.f32 %v903, %v5619
    %5621 = vmatmul.f32.gmra.mxu0 %v5596
    %v5622 = vpop.f32.mrf.mxu0
    %v5623 = vadd.f32 %v904, %v5622
    %5624 = vdwg.mxu0
    %v5625 = vsel %vm987, %v5620, -inf
    %5626 = vmax.xlane.f32.xlu0 %v5625
    %v5627 = vpop.xlane.xlu0 %5626
    %v5628 = vsel %vm987, %v5623, -inf
    %5629 = vmax.xlane.f32.xlu0 %v5628
    %v5630 = vpop.xlane.xlu0 %5629
    %v5631 = vsub.f32 %v5620, %v5627
    %v5632 = vsub.f32 %v5623, %v5630
    %v5633 = vmul.f32 %v5631, 1.442695
    %v5634 = vpow.pop %v5633
    %v5635 = vmul.f32 %v5632, 1.442695
    %v5636 = vpow.pop %v5635
    %v5637 = vsel %vm987, %v5634, 0.0
    %5638 = vadd.xlane.f32.xlu0 %v5637
    %v5639 = vpop.xlane.xlu0 %5638
    %v5640 = vsel %vm987, %v5636, 0.0
    %5641 = vadd.xlane.f32.xlu0 %v5640
    %v5642 = vpop.xlane.xlu0 %5641
    %v5643 = vrcp.pop %v5639
    %v5644 = vrcp.pop %v5642
    %v5645 = vmul.f32 %v5634, %v5643
    %v5646 = vmul.f32 %v5636, %v5644
    %5647 = vrot.lane.b32.xlu0 %v5571, 80
    %v5648 = vpop.permute.xlu0 %5647
    %5649 = vrot.lane.b32.xlu0 %v5574, 80
    %v5650 = vpop.permute.xlu0 %5649
    %v5654 = vsel %vm987, %v5645, 0
    %v5657 = vsel %vm987, %v5646, 0
    %5659 = vmatpush.msra.mxu0 0.0
    %5660 = vmatpush.msra.mxu0 0.0
    %5661 = vmatpush.msra.mxu0 0.0
    %5662 = vmatpush.msra.mxu0 0.0
    %5663 = vmatpush.msra.mxu0 0.0
    %5664 = vmatpush.msra.mxu0 0.0
    %5665 = vmatpush.msra.mxu0 0.0
    %5666 = vmatpush.msra.mxu0 0.0
    %5667 = vmatpush.msra.mxu0 0.0
    %5668 = vmatpush.msra.mxu0 0.0
    %5669 = vmatpush.msra.mxu0 0.0
    %5670 = vmatpush.msra.mxu0 0.0
    %5671 = vmatpush.msra.mxu0 0.0
    %5672 = vmatpush.msra.mxu0 0.0
    %5673 = vmatpush.msra.mxu0 %v5650
    %5674 = vmatpush.msra.mxu0 %v5648
    %5675 = vmatmul.f32.gmra.mxu0 %v5654
    %v5676 = vpop.f32.mrf.mxu0
    %v5677 = vadd.f32 0.0, %v5676
    %5678 = vmatmul.f32.gmra.mxu0 %v5657
    %v5679 = vpop.f32.mrf.mxu0
    %v5680 = vadd.f32 0.0, %v5679
    %5681 = vdwg.mxu0
    %5684 = vrot.lane.b32.xlu0 %v5577, 104
    %v5685 = vpop.permute.xlu0 %5684
    %5686 = vrot.lane.b32.xlu0 %v5580, 104
    %v5687 = vpop.permute.xlu0 %5686
    %v5689 = vsel %vm2327, %v5584, 0
    %v5692 = vsel %vm2327, %v5585, 0
    %v5694 = vsel %vm2327, %v5685, 0
    %v5696 = vsel %vm2327, %v5687, 0
    %5698 = vmatpush.xpose.msra.mxu0 0.0
    %5699 = vmatpush.xpose.msra.mxu0 0.0
    %5700 = vmatpush.xpose.msra.mxu0 0.0
    %5701 = vmatpush.xpose.msra.mxu0 0.0
    %5702 = vmatpush.xpose.msra.mxu0 0.0
    %5703 = vmatpush.xpose.msra.mxu0 0.0
    %5704 = vmatpush.xpose.msra.mxu0 0.0
    %5705 = vmatpush.xpose.msra.mxu0 0.0
    %5706 = vmatpush.xpose.msra.mxu0 0.0
    %5707 = vmatpush.xpose.msra.mxu0 0.0
    %5708 = vmatpush.xpose.msra.mxu0 0.0
    %5709 = vmatpush.xpose.msra.mxu0 0.0
    %5710 = vmatpush.xpose.msra.mxu0 0.0
    %5711 = vmatpush.xpose.msra.mxu0 0.0
    %5712 = vmatpush.xpose.msra.mxu0 %v5696
    %5713 = vmatpush.xpose.msra.mxu0 %v5694
    %5714 = vmatmul.f32.gmra.mxu0 %v5689
    %v5715 = vpop.f32.mrf.mxu0
    %v5716 = vadd.f32 %v903, %v5715
    %5717 = vmatmul.f32.gmra.mxu0 %v5692
    %v5718 = vpop.f32.mrf.mxu0
    %v5719 = vadd.f32 %v904, %v5718
    %5720 = vdwg.mxu0
    %v5721 = vsel %vm987, %v5716, -inf
    %5722 = vmax.xlane.f32.xlu0 %v5721
    %v5723 = vpop.xlane.xlu0 %5722
    %v5724 = vsel %vm987, %v5719, -inf
    %5725 = vmax.xlane.f32.xlu0 %v5724
    %v5726 = vpop.xlane.xlu0 %5725
    %v5727 = vsub.f32 %v5716, %v5723
    %v5728 = vsub.f32 %v5719, %v5726
    %v5729 = vmul.f32 %v5727, 1.442695
    %v5730 = vpow.pop %v5729
    %v5731 = vmul.f32 %v5728, 1.442695
    %v5732 = vpow.pop %v5731
    %v5733 = vsel %vm987, %v5730, 0.0
    %5734 = vadd.xlane.f32.xlu0 %v5733
    %v5735 = vpop.xlane.xlu0 %5734
    %v5736 = vsel %vm987, %v5732, 0.0
    %5737 = vadd.xlane.f32.xlu0 %v5736
    %v5738 = vpop.xlane.xlu0 %5737
    %v5739 = vrcp.pop %v5735
    %v5740 = vrcp.pop %v5738
    %v5741 = vmul.f32 %v5730, %v5739
    %v5742 = vmul.f32 %v5732, %v5740
    %5743 = vrot.lane.b32.xlu0 %v5577, 80
    %v5744 = vpop.permute.xlu0 %5743
    %5745 = vrot.lane.b32.xlu0 %v5580, 80
    %v5746 = vpop.permute.xlu0 %5745
    %v5750 = vsel %vm987, %v5741, 0
    %v5753 = vsel %vm987, %v5742, 0
    %5755 = vmatpush.msra.mxu0 0.0
    %5756 = vmatpush.msra.mxu0 0.0
    %5757 = vmatpush.msra.mxu0 0.0
    %5758 = vmatpush.msra.mxu0 0.0
    %5759 = vmatpush.msra.mxu0 0.0
    %5760 = vmatpush.msra.mxu0 0.0
    %5761 = vmatpush.msra.mxu0 0.0
    %5762 = vmatpush.msra.mxu0 0.0
    %5763 = vmatpush.msra.mxu0 0.0
    %5764 = vmatpush.msra.mxu0 0.0
    %5765 = vmatpush.msra.mxu0 0.0
    %5766 = vmatpush.msra.mxu0 0.0
    %5767 = vmatpush.msra.mxu0 0.0
    %5768 = vmatpush.msra.mxu0 0.0
    %5769 = vmatpush.msra.mxu0 %v5746
    %5770 = vmatpush.msra.mxu0 %v5744
    %5771 = vmatmul.f32.gmra.mxu0 %v5750
    %v5772 = vpop.f32.mrf.mxu0
    %v5773 = vadd.f32 0.0, %v5772
    %5774 = vmatmul.f32.gmra.mxu0 %v5753
    %v5775 = vpop.f32.mrf.mxu0
    %v5776 = vadd.f32 0.0, %v5775
    %5777 = vdwg.mxu0
    %v5779 = vsel %vm2327, %v5677, 0
    %v5782 = vsel %vm2327, %v5680, 0
    %v5785 = vsel %vm2327, %v5773, 0
    %v5788 = vsel %vm2327, %v5776, 0
    %5790 = vmatpush.msra.mxu0 0.0
    %5791 = vmatpush.msra.mxu0 0.0
    %5792 = vmatpush.msra.mxu0 0.0
    %5793 = vmatpush.msra.mxu0 0.0
    %5794 = vmatpush.msra.mxu0 0.0
    %5795 = vmatpush.msra.mxu0 0.0
    %5796 = vmatpush.msra.mxu0 0.0
    %5797 = vmatpush.msra.mxu0 0.0
    %5798 = vmatpush.msra.mxu0 0.0
    %5799 = vmatpush.msra.mxu0 0.0
    %5800 = vmatpush.msra.mxu0 0.0
    %5801 = vmatpush.msra.mxu0 0.0
    %5802 = vmatpush.msra.mxu0 0.0
    %5803 = vmatpush.msra.mxu0 %v3333
    %5804 = vmatpush.msra.mxu0 %v3332
    %5805 = vmatpush.msra.mxu0 %v3331
    %5806 = vmatmul.f32.gmra.mxu0 %v5779
    %v5807 = vpop.f32.mrf.mxu0
    %v5808 = vadd.f32 %v3336, %v5807
    %5809 = vmatmul.f32.gmra.mxu0 %v5782
    %v5810 = vpop.f32.mrf.mxu0
    %v5811 = vadd.f32 %v3336, %v5810
    %5812 = vmatmul.f32.gmra.mxu0 %v5785
    %v5813 = vpop.f32.mrf.mxu0
    %v5814 = vadd.f32 %v3336, %v5813
    %5815 = vmatmul.f32.gmra.mxu0 %v5788
    %v5816 = vpop.f32.mrf.mxu0
    %v5817 = vadd.f32 %v3336, %v5816
    %5818 = vdwg.mxu0
    %v5819 = vadd.f32 %v5441, %v5808
    %v5820 = vadd.f32 %v5442, %v5811
    %v5821 = vadd.f32 %v5443, %v5814
    %v5822 = vadd.f32 %v5444, %v5817
    %v5823 = vsel %vm2327, %v5819, 0.0
    %5824 = vadd.xlane.f32.xlu0 %v5823
    %v5825 = vpop.xlane.xlu0 %5824
    %v5826 = vsel %vm2327, %v5820, 0.0
    %5827 = vadd.xlane.f32.xlu0 %v5826
    %v5828 = vpop.xlane.xlu0 %5827
    %v5829 = vsel %vm2327, %v5821, 0.0
    %5830 = vadd.xlane.f32.xlu0 %v5829
    %v5831 = vpop.xlane.xlu0 %5830
    %v5832 = vsel %vm2327, %v5822, 0.0
    %5833 = vadd.xlane.f32.xlu0 %v5832
    %v5834 = vpop.xlane.xlu0 %5833
    %v5835 = vmul.f32 %v5825, %v2346
    %v5836 = vmul.f32 %v5828, %v2346
    %v5837 = vmul.f32 %v5831, %v2346
    %v5838 = vmul.f32 %v5834, %v2346
    %v5839 = vsub.f32 %v5819, %v5835
    %v5840 = vsub.f32 %v5820, %v5836
    %v5841 = vsub.f32 %v5821, %v5837
    %v5842 = vsub.f32 %v5822, %v5838
    %v5843 = vmul.f32 %v5839, %v5839
    %v5844 = vmul.f32 %v5840, %v5840
    %v5845 = vmul.f32 %v5841, %v5841
    %v5846 = vmul.f32 %v5842, %v5842
    %v5847 = vsel %vm2327, %v5843, 0.0
    %5848 = vadd.xlane.f32.xlu0 %v5847
    %v5849 = vpop.xlane.xlu0 %5848
    %v5850 = vsel %vm2327, %v5844, 0.0
    %5851 = vadd.xlane.f32.xlu0 %v5850
    %v5852 = vpop.xlane.xlu0 %5851
    %v5853 = vsel %vm2327, %v5845, 0.0
    %5854 = vadd.xlane.f32.xlu0 %v5853
    %v5855 = vpop.xlane.xlu0 %5854
    %v5856 = vsel %vm2327, %v5846, 0.0
    %5857 = vadd.xlane.f32.xlu0 %v5856
    %v5858 = vpop.xlane.xlu0 %5857
    %v5859 = vmul.f32 %v5849, %v2346
    %v5860 = vmul.f32 %v5852, %v2346
    %v5861 = vmul.f32 %v5855, %v2346
    %v5862 = vmul.f32 %v5858, %v2346
    %v5863 = vadd.f32 %v5859, 1e-05
    %v5864 = vadd.f32 %v5860, 1e-05
    %v5865 = vadd.f32 %v5861, 1e-05
    %v5866 = vadd.f32 %v5862, 1e-05
    %v5867 = vrsqrt.pop %v5863
    %v5868 = vmul.f32 %v5867, %v5863
    %v5869 = vmul.f32 %v5868, %v5867
    %v5870 = vmul.f32 0.5, %v5869
    %v5871 = vsub.f32 1.5, %v5870
    %v5872 = vmul.f32 %v5867, %v5871
    %vm5873 = vweird.f32 %v5863
    %vm5874 = vweird.f32 %v5867
    %vm5875 = vmor %vm5873, %vm5874
    %v5876 = vsel %vm5875, %v5867, %v5872
    %v5877 = vrsqrt.pop %v5864
    %v5878 = vmul.f32 %v5877, %v5864
    %v5879 = vmul.f32 %v5878, %v5877
    %v5880 = vmul.f32 0.5, %v5879
    %v5881 = vsub.f32 1.5, %v5880
    %v5882 = vmul.f32 %v5877, %v5881
    %vm5883 = vweird.f32 %v5864
    %vm5884 = vweird.f32 %v5877
    %vm5885 = vmor %vm5883, %vm5884
    %v5886 = vsel %vm5885, %v5877, %v5882
    %v5887 = vrsqrt.pop %v5865
    %v5888 = vmul.f32 %v5887, %v5865
    %v5889 = vmul.f32 %v5888, %v5887
    %v5890 = vmul.f32 0.5, %v5889
    %v5891 = vsub.f32 1.5, %v5890
    %v5892 = vmul.f32 %v5887, %v5891
    %vm5893 = vweird.f32 %v5865
    %vm5894 = vweird.f32 %v5887
    %vm5895 = vmor %vm5893, %vm5894
    %v5896 = vsel %vm5895, %v5887, %v5892
    %v5897 = vrsqrt.pop %v5866
    %v5898 = vmul.f32 %v5897, %v5866
    %v5899 = vmul.f32 %v5898, %v5897
    %v5900 = vmul.f32 0.5, %v5899
    %v5901 = vsub.f32 1.5, %v5900
    %v5902 = vmul.f32 %v5897, %v5901
    %vm5903 = vweird.f32 %v5866
    %vm5904 = vweird.f32 %v5897
    %vm5905 = vmor %vm5903, %vm5904
    %v5906 = vsel %vm5905, %v5897, %v5902
    %v5907 = vmul.f32 %v5839, %v5876
    %v5908 = vmul.f32 %v5840, %v5886
    %v5909 = vmul.f32 %v5841, %v5896
    %v5910 = vmul.f32 %v5842, %v5906
    %v5911 = vmul.f32 %v5907, %v3474
    %v5912 = vmul.f32 %v5908, %v3474
    %v5913 = vmul.f32 %v5909, %v3474
    %v5914 = vmul.f32 %v5910, %v3474
    %v5915 = vadd.f32 %v5911, %v3481
    %v5916 = vadd.f32 %v5912, %v3481
    %v5917 = vadd.f32 %v5913, %v3481
    %v5918 = vadd.f32 %v5914, %v3481
    %v5920 = vsel %vm2327, %v5915, 0
    %v5923 = vsel %vm2327, %v5916, 0
    %v5926 = vsel %vm2327, %v5917, 0
    %v5929 = vsel %vm2327, %v5918, 0
    %5931 = vmatpush.msra.mxu0 0.0
    %5932 = vmatpush.msra.mxu0 0.0
    %5933 = vmatpush.msra.mxu0 0.0
    %5934 = vmatpush.msra.mxu0 0.0
    %5935 = vmatpush.msra.mxu0 0.0
    %5936 = vmatpush.msra.mxu0 0.0
    %5937 = vmatpush.msra.mxu0 0.0
    %5938 = vmatpush.msra.mxu0 0.0
    %5939 = vmatpush.msra.mxu0 0.0
    %5940 = vmatpush.msra.mxu0 0.0
    %5941 = vmatpush.msra.mxu0 0.0
    %5942 = vmatpush.msra.mxu0 0.0
    %5943 = vmatpush.msra.mxu0 0.0
    %5944 = vmatpush.msra.mxu0 %v3489
    %5945 = vmatpush.msra.mxu0 %v3488
    %5946 = vmatpush.msra.mxu0 %v3487
    %5947 = vmatmul.f32.gmra.mxu0 %v5920
    %v5948 = vpop.f32.mrf.mxu0
    %v5949 = vadd.f32 %v3492, %v5948
    %5950 = vmatmul.f32.gmra.mxu0 %v5923
    %v5951 = vpop.f32.mrf.mxu0
    %v5952 = vadd.f32 %v3492, %v5951
    %5953 = vmatmul.f32.gmra.mxu0 %v5926
    %v5954 = vpop.f32.mrf.mxu0
    %v5955 = vadd.f32 %v3492, %v5954
    %5956 = vmatmul.f32.gmra.mxu0 %v5929
    %v5957 = vpop.f32.mrf.mxu0
    %v5958 = vadd.f32 %v3492, %v5957
    %5959 = vdwg.mxu0
    %v5960 = vmul.f32 %v5949, 0.5
    %v5961 = vmul.f32 %v5952, 0.5
    %v5962 = vmul.f32 %v5955, 0.5
    %v5963 = vmul.f32 %v5958, 0.5
    %v5964 = vmul.f32 %v5949, 0.044715
    %v5965 = vmul.f32 %v5952, 0.044715
    %v5966 = vmul.f32 %v5955, 0.044715
    %v5967 = vmul.f32 %v5958, 0.044715
    %v5968 = vmul.f32 %v5964, %v5949
    %v5969 = vmul.f32 %v5965, %v5952
    %v5970 = vmul.f32 %v5966, %v5955
    %v5971 = vmul.f32 %v5967, %v5958
    %v5972 = vmul.f32 %v5968, %v5949
    %v5973 = vmul.f32 %v5969, %v5952
    %v5974 = vmul.f32 %v5970, %v5955
    %v5975 = vmul.f32 %v5971, %v5958
    %v5976 = vadd.f32 %v5949, %v5972
    %v5977 = vadd.f32 %v5952, %v5973
    %v5978 = vadd.f32 %v5955, %v5974
    %v5979 = vadd.f32 %v5958, %v5975
    %v5980 = vmul.f32 %v5976, 0.7978846
    %v5981 = vmul.f32 %v5977, 0.7978846
    %v5982 = vmul.f32 %v5978, 0.7978846
    %v5983 = vmul.f32 %v5979, 0.7978846
    %v5984 = vtanh.pop %v5980
    %v5985 = vtanh.pop %v5981
    %v5986 = vtanh.pop %v5982
    %v5987 = vtanh.pop %v5983
    %v5988 = vadd.f32 %v5984, 1.0
    %v5989 = vadd.f32 %v5985, 1.0
    %v5990 = vadd.f32 %v5986, 1.0
    %v5991 = vadd.f32 %v5987, 1.0
    %v5992 = vmul.f32 %v5960, %v5988
    %v5993 = vmul.f32 %v5961, %v5989
    %v5994 = vmul.f32 %v5962, %v5990
    %v5995 = vmul.f32 %v5963, %v5991
    %v5997 = vsel %vm2937, %v5992, 0
    %v6000 = vsel %vm2937, %v5993, 0
    %v6003 = vsel %vm2937, %v5994, 0
    %v6006 = vsel %vm2937, %v5995, 0
    %6008 = vmatpush.msra.mxu0 0.0
    %6009 = vmatpush.msra.mxu0 0.0
    %6010 = vmatpush.msra.mxu0 0.0
    %6011 = vmatpush.msra.mxu0 0.0
    %6012 = vmatpush.msra.mxu0 %v3582
    %6013 = vmatpush.msra.mxu0 %v3581
    %6014 = vmatpush.msra.mxu0 %v3580
    %6015 = vmatpush.msra.mxu0 %v3579
    %6016 = vmatpush.msra.mxu0 %v3578
    %6017 = vmatpush.msra.mxu0 %v3577
    %6018 = vmatpush.msra.mxu0 %v3576
    %6019 = vmatpush.msra.mxu0 %v3575
    %6020 = vmatpush.msra.mxu0 %v3574
    %6021 = vmatpush.msra.mxu0 %v3573
    %6022 = vmatpush.msra.mxu0 %v3572
    %6023 = vmatpush.msra.mxu0 %v3571
    %6024 = vmatmul.f32.gmra.mxu0 %v5997
    %v6025 = vpop.f32.mrf.mxu0
    %v6026 = vadd.f32 %v3585, %v6025
    %6027 = vmatmul.f32.gmra.mxu0 %v6000
    %v6028 = vpop.f32.mrf.mxu0
    %v6029 = vadd.f32 %v3585, %v6028
    %6030 = vmatmul.f32.gmra.mxu0 %v6003
    %v6031 = vpop.f32.mrf.mxu0
    %v6032 = vadd.f32 %v3585, %v6031
    %6033 = vmatmul.f32.gmra.mxu0 %v6006
    %v6034 = vpop.f32.mrf.mxu0
    %v6035 = vadd.f32 %v3585, %v6034
    %6036 = vdwg.mxu0
    %v6037 = vadd.f32 %v5819, %v6026
    %v6038 = vadd.f32 %v5820, %v6029
    %v6039 = vadd.f32 %v5821, %v6032
    %v6040 = vadd.f32 %v5822, %v6035
    %v6041 = vsel %vm2327, %v6037, 0.0
    %6042 = vadd.xlane.f32.xlu0 %v6041
    %v6043 = vpop.xlane.xlu0 %6042
    %v6044 = vsel %vm2327, %v6038, 0.0
    %6045 = vadd.xlane.f32.xlu0 %v6044
    %v6046 = vpop.xlane.xlu0 %6045
    %v6047 = vsel %vm2327, %v6039, 0.0
    %6048 = vadd.xlane.f32.xlu0 %v6047
    %v6049 = vpop.xlane.xlu0 %6048
    %v6050 = vsel %vm2327, %v6040, 0.0
    %6051 = vadd.xlane.f32.xlu0 %v6050
    %v6052 = vpop.xlane.xlu0 %6051
    %v6053 = vmul.f32 %v6043, %v2346
    %v6054 = vmul.f32 %v6046, %v2346
    %v6055 = vmul.f32 %v6049, %v2346
    %v6056 = vmul.f32 %v6052, %v2346
    %v6057 = vsub.f32 %v6037, %v6053
    %v6058 = vsub.f32 %v6038, %v6054
    %v6059 = vsub.f32 %v6039, %v6055
    %v6060 = vsub.f32 %v6040, %v6056
    %v6061 = vmul.f32 %v6057, %v6057
    %v6062 = vmul.f32 %v6058, %v6058
    %v6063 = vmul.f32 %v6059, %v6059
    %v6064 = vmul.f32 %v6060, %v6060
    %v6065 = vsel %vm2327, %v6061, 0.0
    %6066 = vadd.xlane.f32.xlu0 %v6065
    %v6067 = vpop.xlane.xlu0 %6066
    %v6068 = vsel %vm2327, %v6062, 0.0
    %6069 = vadd.xlane.f32.xlu0 %v6068
    %v6070 = vpop.xlane.xlu0 %6069
    %v6071 = vsel %vm2327, %v6063, 0.0
    %6072 = vadd.xlane.f32.xlu0 %v6071
    %v6073 = vpop.xlane.xlu0 %6072
    %v6074 = vsel %vm2327, %v6064, 0.0
    %6075 = vadd.xlane.f32.xlu0 %v6074
    %v6076 = vpop.xlane.xlu0 %6075
    %v6077 = vmul.f32 %v6067, %v2346
    %v6078 = vmul.f32 %v6070, %v2346
    %v6079 = vmul.f32 %v6073, %v2346
    %v6080 = vmul.f32 %v6076, %v2346
    %v6081 = vadd.f32 %v6077, 1e-05
    %v6082 = vadd.f32 %v6078, 1e-05
    %v6083 = vadd.f32 %v6079, 1e-05
    %v6084 = vadd.f32 %v6080, 1e-05
    %v6085 = vrsqrt.pop %v6081
    %v6086 = vmul.f32 %v6085, %v6081
    %v6087 = vmul.f32 %v6086, %v6085
    %v6088 = vmul.f32 0.5, %v6087
    %v6089 = vsub.f32 1.5, %v6088
    %v6090 = vmul.f32 %v6085, %v6089
    %vm6091 = vweird.f32 %v6081
    %vm6092 = vweird.f32 %v6085
    %vm6093 = vmor %vm6091, %vm6092
    %v6094 = vsel %vm6093, %v6085, %v6090
    %v6095 = vrsqrt.pop %v6082
    %v6096 = vmul.f32 %v6095, %v6082
    %v6097 = vmul.f32 %v6096, %v6095
    %v6098 = vmul.f32 0.5, %v6097
    %v6099 = vsub.f32 1.5, %v6098
    %v6100 = vmul.f32 %v6095, %v6099
    %vm6101 = vweird.f32 %v6082
    %vm6102 = vweird.f32 %v6095
    %vm6103 = vmor %vm6101, %vm6102
    %v6104 = vsel %vm6103, %v6095, %v6100
    %v6105 = vrsqrt.pop %v6083
    %v6106 = vmul.f32 %v6105, %v6083
    %v6107 = vmul.f32 %v6106, %v6105
    %v6108 = vmul.f32 0.5, %v6107
    %v6109 = vsub.f32 1.5, %v6108
    %v6110 = vmul.f32 %v6105, %v6109
    %vm6111 = vweird.f32 %v6083
    %vm6112 = vweird.f32 %v6105
    %vm6113 = vmor %vm6111, %vm6112
    %v6114 = vsel %vm6113, %v6105, %v6110
    %v6115 = vrsqrt.pop %v6084
    %v6116 = vmul.f32 %v6115, %v6084
    %v6117 = vmul.f32 %v6116, %v6115
    %v6118 = vmul.f32 0.5, %v6117
    %v6119 = vsub.f32 1.5, %v6118
    %v6120 = vmul.f32 %v6115, %v6119
    %vm6121 = vweird.f32 %v6084
    %vm6122 = vweird.f32 %v6115
    %vm6123 = vmor %vm6121, %vm6122
    %v6124 = vsel %vm6123, %v6115, %v6120
    %v6125 = vmul.f32 %v6057, %v6094
    %v6126 = vmul.f32 %v6058, %v6104
    %v6127 = vmul.f32 %v6059, %v6114
    %v6128 = vmul.f32 %v6060, %v6124
    %v6129 = vmul.f32 %v6125, %v2424
    %v6130 = vmul.f32 %v6126, %v2424
    %v6131 = vmul.f32 %v6127, %v2424
    %v6132 = vmul.f32 %v6128, %v2424
    %v6133 = vadd.f32 %v6129, %v2431
    %v6134 = vadd.f32 %v6130, %v2431
    %v6135 = vadd.f32 %v6131, %v2431
    %v6136 = vadd.f32 %v6132, %v2431
    %v6138 = vsel %vm2327, %v6133, 0
    %v6141 = vsel %vm2327, %v6134, 0
    %v6144 = vsel %vm2327, %v6135, 0
    %v6147 = vsel %vm2327, %v6136, 0
    %6149 = vmatpush.msra.mxu0 0.0
    %6150 = vmatpush.msra.mxu0 0.0
    %6151 = vmatpush.msra.mxu0 0.0
    %6152 = vmatpush.msra.mxu0 0.0
    %6153 = vmatpush.msra.mxu0 0.0
    %6154 = vmatpush.msra.mxu0 0.0
    %6155 = vmatpush.msra.mxu0 0.0
    %6156 = vmatpush.msra.mxu0 0.0
    %6157 = vmatpush.msra.mxu0 0.0
    %6158 = vmatpush.msra.mxu0 0.0
    %6159 = vmatpush.msra.mxu0 0.0
    %6160 = vmatpush.msra.mxu0 0.0
    %6161 = vmatpush.msra.mxu0 0.0
    %6162 = vmatpush.msra.mxu0 %v2439
    %6163 = vmatpush.msra.mxu0 %v2438
    %6164 = vmatpush.msra.mxu0 %v2437
    %6165 = vmatmul.f32.gmra.mxu0 %v6138
    %v6166 = vpop.f32.mrf.mxu0
    %v6167 = vadd.f32 %v2442, %v6166
    %6168 = vmatmul.f32.gmra.mxu0 %v6141
    %v6169 = vpop.f32.mrf.mxu0
    %v6170 = vadd.f32 %v2442, %v6169
    %6171 = vmatmul.f32.gmra.mxu0 %v6144
    %v6172 = vpop.f32.mrf.mxu0
    %v6173 = vadd.f32 %v2442, %v6172
    %6174 = vmatmul.f32.gmra.mxu0 %v6147
    %v6175 = vpop.f32.mrf.mxu0
    %v6176 = vadd.f32 %v2442, %v6175
    %6177 = vdwg.mxu0
    %v6178 = vmul.f32 %v6167, 0.20412415
    %v6179 = vmul.f32 %v6170, 0.20412415
    %v6180 = vmul.f32 %v6173, 0.20412415
    %v6181 = vmul.f32 %v6176, 0.20412415
    %6184 = vrot.lane.b32.xlu0 %v6167, 104
    %v6185 = vpop.permute.xlu0 %6184
    %6186 = vrot.lane.b32.xlu0 %v6170, 104
    %v6187 = vpop.permute.xlu0 %6186
    %v6189 = vsel %vm2327, %v6178, 0
    %v6192 = vsel %vm2327, %v6179, 0
    %v6194 = vsel %vm2327, %v6185, 0
    %v6196 = vsel %vm2327, %v6187, 0
    %6198 = vmatpush.xpose.msra.mxu0 0.0
    %6199 = vmatpush.xpose.msra.mxu0 0.0
    %6200 = vmatpush.xpose.msra.mxu0 0.0
    %6201 = vmatpush.xpose.msra.mxu0 0.0
    %6202 = vmatpush.xpose.msra.mxu0 0.0
    %6203 = vmatpush.xpose.msra.mxu0 0.0
    %6204 = vmatpush.xpose.msra.mxu0 0.0
    %6205 = vmatpush.xpose.msra.mxu0 0.0
    %6206 = vmatpush.xpose.msra.mxu0 0.0
    %6207 = vmatpush.xpose.msra.mxu0 0.0
    %6208 = vmatpush.xpose.msra.mxu0 0.0
    %6209 = vmatpush.xpose.msra.mxu0 0.0
    %6210 = vmatpush.xpose.msra.mxu0 0.0
    %6211 = vmatpush.xpose.msra.mxu0 0.0
    %6212 = vmatpush.xpose.msra.mxu0 %v6196
    %6213 = vmatpush.xpose.msra.mxu0 %v6194
    %6214 = vmatmul.f32.gmra.mxu0 %v6189
    %v6215 = vpop.f32.mrf.mxu0
    %v6216 = vadd.f32 %v903, %v6215
    %6217 = vmatmul.f32.gmra.mxu0 %v6192
    %v6218 = vpop.f32.mrf.mxu0
    %v6219 = vadd.f32 %v904, %v6218
    %6220 = vdwg.mxu0
    %v6221 = vsel %vm987, %v6216, -inf
    %6222 = vmax.xlane.f32.xlu0 %v6221
    %v6223 = vpop.xlane.xlu0 %6222
    %v6224 = vsel %vm987, %v6219, -inf
    %6225 = vmax.xlane.f32.xlu0 %v6224
    %v6226 = vpop.xlane.xlu0 %6225
    %v6227 = vsub.f32 %v6216, %v6223
    %v6228 = vsub.f32 %v6219, %v6226
    %v6229 = vmul.f32 %v6227, 1.442695
    %v6230 = vpow.pop %v6229
    %v6231 = vmul.f32 %v6228, 1.442695
    %v6232 = vpow.pop %v6231
    %v6233 = vsel %vm987, %v6230, 0.0
    %6234 = vadd.xlane.f32.xlu0 %v6233
    %v6235 = vpop.xlane.xlu0 %6234
    %v6236 = vsel %vm987, %v6232, 0.0
    %6237 = vadd.xlane.f32.xlu0 %v6236
    %v6238 = vpop.xlane.xlu0 %6237
    %v6239 = vrcp.pop %v6235
    %v6240 = vrcp.pop %v6238
    %v6241 = vmul.f32 %v6230, %v6239
    %v6242 = vmul.f32 %v6232, %v6240
    %6243 = vrot.lane.b32.xlu0 %v6167, 80
    %v6244 = vpop.permute.xlu0 %6243
    %6245 = vrot.lane.b32.xlu0 %v6170, 80
    %v6246 = vpop.permute.xlu0 %6245
    %v6250 = vsel %vm987, %v6241, 0
    %v6253 = vsel %vm987, %v6242, 0
    %6255 = vmatpush.msra.mxu0 0.0
    %6256 = vmatpush.msra.mxu0 0.0
    %6257 = vmatpush.msra.mxu0 0.0
    %6258 = vmatpush.msra.mxu0 0.0
    %6259 = vmatpush.msra.mxu0 0.0
    %6260 = vmatpush.msra.mxu0 0.0
    %6261 = vmatpush.msra.mxu0 0.0
    %6262 = vmatpush.msra.mxu0 0.0
    %6263 = vmatpush.msra.mxu0 0.0
    %6264 = vmatpush.msra.mxu0 0.0
    %6265 = vmatpush.msra.mxu0 0.0
    %6266 = vmatpush.msra.mxu0 0.0
    %6267 = vmatpush.msra.mxu0 0.0
    %6268 = vmatpush.msra.mxu0 0.0
    %6269 = vmatpush.msra.mxu0 %v6246
    %6270 = vmatpush.msra.mxu0 %v6244
    %6271 = vmatmul.f32.gmra.mxu0 %v6250
    %v6272 = vpop.f32.mrf.mxu0
    %v6273 = vadd.f32 0.0, %v6272
    %6274 = vmatmul.f32.gmra.mxu0 %v6253
    %v6275 = vpop.f32.mrf.mxu0
    %v6276 = vadd.f32 0.0, %v6275
    %6277 = vdwg.mxu0
    %6280 = vrot.lane.b32.xlu0 %v6173, 104
    %v6281 = vpop.permute.xlu0 %6280
    %6282 = vrot.lane.b32.xlu0 %v6176, 104
    %v6283 = vpop.permute.xlu0 %6282
    %v6285 = vsel %vm2327, %v6180, 0
    %v6288 = vsel %vm2327, %v6181, 0
    %v6290 = vsel %vm2327, %v6281, 0
    %v6292 = vsel %vm2327, %v6283, 0
    %6294 = vmatpush.xpose.msra.mxu0 0.0
    %6295 = vmatpush.xpose.msra.mxu0 0.0
    %6296 = vmatpush.xpose.msra.mxu0 0.0
    %6297 = vmatpush.xpose.msra.mxu0 0.0
    %6298 = vmatpush.xpose.msra.mxu0 0.0
    %6299 = vmatpush.xpose.msra.mxu0 0.0
    %6300 = vmatpush.xpose.msra.mxu0 0.0
    %6301 = vmatpush.xpose.msra.mxu0 0.0
    %6302 = vmatpush.xpose.msra.mxu0 0.0
    %6303 = vmatpush.xpose.msra.mxu0 0.0
    %6304 = vmatpush.xpose.msra.mxu0 0.0
    %6305 = vmatpush.xpose.msra.mxu0 0.0
    %6306 = vmatpush.xpose.msra.mxu0 0.0
    %6307 = vmatpush.xpose.msra.mxu0 0.0
    %6308 = vmatpush.xpose.msra.mxu0 %v6292
    %6309 = vmatpush.xpose.msra.mxu0 %v6290
    %6310 = vmatmul.f32.gmra.mxu0 %v6285
    %v6311 = vpop.f32.mrf.mxu0
    %v6312 = vadd.f32 %v903, %v6311
    %6313 = vmatmul.f32.gmra.mxu0 %v6288
    %v6314 = vpop.f32.mrf.mxu0
    %v6315 = vadd.f32 %v904, %v6314
    %6316 = vdwg.mxu0
    %v6317 = vsel %vm987, %v6312, -inf
    %6318 = vmax.xlane.f32.xlu0 %v6317
    %v6319 = vpop.xlane.xlu0 %6318
    %v6320 = vsel %vm987, %v6315, -inf
    %6321 = vmax.xlane.f32.xlu0 %v6320
    %v6322 = vpop.xlane.xlu0 %6321
    %v6323 = vsub.f32 %v6312, %v6319
    %v6324 = vsub.f32 %v6315, %v6322
    %v6325 = vmul.f32 %v6323, 1.442695
    %v6326 = vpow.pop %v6325
    %v6327 = vmul.f32 %v6324, 1.442695
    %v6328 = vpow.pop %v6327
    %v6329 = vsel %vm987, %v6326, 0.0
    %6330 = vadd.xlane.f32.xlu0 %v6329
    %v6331 = vpop.xlane.xlu0 %6330
    %v6332 = vsel %vm987, %v6328, 0.0
    %6333 = vadd.xlane.f32.xlu0 %v6332
    %v6334 = vpop.xlane.xlu0 %6333
    %v6335 = vrcp.pop %v6331
    %v6336 = vrcp.pop %v6334
    %v6337 = vmul.f32 %v6326, %v6335
    %v6338 = vmul.f32 %v6328, %v6336
    %6339 = vrot.lane.b32.xlu0 %v6173, 80
    %v6340 = vpop.permute.xlu0 %6339
    %6341 = vrot.lane.b32.xlu0 %v6176, 80
    %v6342 = vpop.permute.xlu0 %6341
    %v6346 = vsel %vm987, %v6337, 0
    %v6349 = vsel %vm987, %v6338, 0
    %6351 = vmatpush.msra.mxu0 0.0
    %6352 = vmatpush.msra.mxu0 0.0
    %6353 = vmatpush.msra.mxu0 0.0
    %6354 = vmatpush.msra.mxu0 0.0
    %6355 = vmatpush.msra.mxu0 0.0
    %6356 = vmatpush.msra.mxu0 0.0
    %6357 = vmatpush.msra.mxu0 0.0
    %6358 = vmatpush.msra.mxu0 0.0
    %6359 = vmatpush.msra.mxu0 0.0
    %6360 = vmatpush.msra.mxu0 0.0
    %6361 = vmatpush.msra.mxu0 0.0
    %6362 = vmatpush.msra.mxu0 0.0
    %6363 = vmatpush.msra.mxu0 0.0
    %6364 = vmatpush.msra.mxu0 0.0
    %6365 = vmatpush.msra.mxu0 %v6342
    %6366 = vmatpush.msra.mxu0 %v6340
    %6367 = vmatmul.f32.gmra.mxu0 %v6346
    %v6368 = vpop.f32.mrf.mxu0
    %v6369 = vadd.f32 0.0, %v6368
    %6370 = vmatmul.f32.gmra.mxu0 %v6349
    %v6371 = vpop.f32.mrf.mxu0
    %v6372 = vadd.f32 0.0, %v6371
    %6373 = vdwg.mxu0
    %v6375 = vsel %vm2327, %v6273, 0
    %v6378 = vsel %vm2327, %v6276, 0
    %v6381 = vsel %vm2327, %v6369, 0
    %v6384 = vsel %vm2327, %v6372, 0
    %6386 = vmatpush.msra.mxu0 0.0
    %6387 = vmatpush.msra.mxu0 0.0
    %6388 = vmatpush.msra.mxu0 0.0
    %6389 = vmatpush.msra.mxu0 0.0
    %6390 = vmatpush.msra.mxu0 0.0
    %6391 = vmatpush.msra.mxu0 0.0
    %6392 = vmatpush.msra.mxu0 0.0
    %6393 = vmatpush.msra.mxu0 0.0
    %6394 = vmatpush.msra.mxu0 0.0
    %6395 = vmatpush.msra.mxu0 0.0
    %6396 = vmatpush.msra.mxu0 0.0
    %6397 = vmatpush.msra.mxu0 0.0
    %6398 = vmatpush.msra.mxu0 0.0
    %6399 = vmatpush.msra.mxu0 %v2683
    %6400 = vmatpush.msra.mxu0 %v2682
    %6401 = vmatpush.msra.mxu0 %v2681
    %6402 = vmatmul.f32.gmra.mxu0 %v6375
    %v6403 = vpop.f32.mrf.mxu0
    %v6404 = vadd.f32 %v2686, %v6403
    %6405 = vmatmul.f32.gmra.mxu0 %v6378
    %v6406 = vpop.f32.mrf.mxu0
    %v6407 = vadd.f32 %v2686, %v6406
    %6408 = vmatmul.f32.gmra.mxu0 %v6381
    %v6409 = vpop.f32.mrf.mxu0
    %v6410 = vadd.f32 %v2686, %v6409
    %6411 = vmatmul.f32.gmra.mxu0 %v6384
    %v6412 = vpop.f32.mrf.mxu0
    %v6413 = vadd.f32 %v2686, %v6412
    %6414 = vdwg.mxu0
    %v6415 = vadd.f32 %v6037, %v6404
    %v6416 = vadd.f32 %v6038, %v6407
    %v6417 = vadd.f32 %v6039, %v6410
    %v6418 = vadd.f32 %v6040, %v6413
    %v6419 = vsel %vm2327, %v6415, 0.0
    %6420 = vadd.xlane.f32.xlu0 %v6419
    %v6421 = vpop.xlane.xlu0 %6420
    %v6422 = vsel %vm2327, %v6416, 0.0
    %6423 = vadd.xlane.f32.xlu0 %v6422
    %v6424 = vpop.xlane.xlu0 %6423
    %v6425 = vsel %vm2327, %v6417, 0.0
    %6426 = vadd.xlane.f32.xlu0 %v6425
    %v6427 = vpop.xlane.xlu0 %6426
    %v6428 = vsel %vm2327, %v6418, 0.0
    %6429 = vadd.xlane.f32.xlu0 %v6428
    %v6430 = vpop.xlane.xlu0 %6429
    %v6431 = vmul.f32 %v6421, %v2346
    %v6432 = vmul.f32 %v6424, %v2346
    %v6433 = vmul.f32 %v6427, %v2346
    %v6434 = vmul.f32 %v6430, %v2346
    %v6435 = vsub.f32 %v6415, %v6431
    %v6436 = vsub.f32 %v6416, %v6432
    %v6437 = vsub.f32 %v6417, %v6433
    %v6438 = vsub.f32 %v6418, %v6434
    %v6439 = vmul.f32 %v6435, %v6435
    %v6440 = vmul.f32 %v6436, %v6436
    %v6441 = vmul.f32 %v6437, %v6437
    %v6442 = vmul.f32 %v6438, %v6438
    %v6443 = vsel %vm2327, %v6439, 0.0
    %6444 = vadd.xlane.f32.xlu0 %v6443
    %v6445 = vpop.xlane.xlu0 %6444
    %v6446 = vsel %vm2327, %v6440, 0.0
    %6447 = vadd.xlane.f32.xlu0 %v6446
    %v6448 = vpop.xlane.xlu0 %6447
    %v6449 = vsel %vm2327, %v6441, 0.0
    %6450 = vadd.xlane.f32.xlu0 %v6449
    %v6451 = vpop.xlane.xlu0 %6450
    %v6452 = vsel %vm2327, %v6442, 0.0
    %6453 = vadd.xlane.f32.xlu0 %v6452
    %v6454 = vpop.xlane.xlu0 %6453
    %v6455 = vmul.f32 %v6445, %v2346
    %v6456 = vmul.f32 %v6448, %v2346
    %v6457 = vmul.f32 %v6451, %v2346
    %v6458 = vmul.f32 %v6454, %v2346
    %v6459 = vadd.f32 %v6455, 1e-05
    %v6460 = vadd.f32 %v6456, 1e-05
    %v6461 = vadd.f32 %v6457, 1e-05
    %v6462 = vadd.f32 %v6458, 1e-05
    %v6463 = vrsqrt.pop %v6459
    %v6464 = vmul.f32 %v6463, %v6459
    %v6465 = vmul.f32 %v6464, %v6463
    %v6466 = vmul.f32 0.5, %v6465
    %v6467 = vsub.f32 1.5, %v6466
    %v6468 = vmul.f32 %v6463, %v6467
    %vm6469 = vweird.f32 %v6459
    %vm6470 = vweird.f32 %v6463
    %vm6471 = vmor %vm6469, %vm6470
    %v6472 = vsel %vm6471, %v6463, %v6468
    %v6473 = vrsqrt.pop %v6460
    %v6474 = vmul.f32 %v6473, %v6460
    %v6475 = vmul.f32 %v6474, %v6473
    %v6476 = vmul.f32 0.5, %v6475
    %v6477 = vsub.f32 1.5, %v6476
    %v6478 = vmul.f32 %v6473, %v6477
    %vm6479 = vweird.f32 %v6460
    %vm6480 = vweird.f32 %v6473
    %vm6481 = vmor %vm6479, %vm6480
    %v6482 = vsel %vm6481, %v6473, %v6478
    %v6483 = vrsqrt.pop %v6461
    %v6484 = vmul.f32 %v6483, %v6461
    %v6485 = vmul.f32 %v6484, %v6483
    %v6486 = vmul.f32 0.5, %v6485
    %v6487 = vsub.f32 1.5, %v6486
    %v6488 = vmul.f32 %v6483, %v6487
    %vm6489 = vweird.f32 %v6461
    %vm6490 = vweird.f32 %v6483
    %vm6491 = vmor %vm6489, %vm6490
    %v6492 = vsel %vm6491, %v6483, %v6488
    %v6493 = vrsqrt.pop %v6462
    %v6494 = vmul.f32 %v6493, %v6462
    %v6495 = vmul.f32 %v6494, %v6493
    %v6496 = vmul.f32 0.5, %v6495
    %v6497 = vsub.f32 1.5, %v6496
    %v6498 = vmul.f32 %v6493, %v6497
    %vm6499 = vweird.f32 %v6462
    %vm6500 = vweird.f32 %v6493
    %vm6501 = vmor %vm6499, %vm6500
    %v6502 = vsel %vm6501, %v6493, %v6498
    %v6503 = vmul.f32 %v6435, %v6472
    %v6504 = vmul.f32 %v6436, %v6482
    %v6505 = vmul.f32 %v6437, %v6492
    %v6506 = vmul.f32 %v6438, %v6502
    %v6507 = vmul.f32 %v6503, %v2824
    %v6508 = vmul.f32 %v6504, %v2824
    %v6509 = vmul.f32 %v6505, %v2824
    %v6510 = vmul.f32 %v6506, %v2824
    %v6511 = vadd.f32 %v6507, %v2831
    %v6512 = vadd.f32 %v6508, %v2831
    %v6513 = vadd.f32 %v6509, %v2831
    %v6514 = vadd.f32 %v6510, %v2831
    %v6516 = vsel %vm2327, %v6511, 0
    %v6519 = vsel %vm2327, %v6512, 0
    %v6522 = vsel %vm2327, %v6513, 0
    %v6525 = vsel %vm2327, %v6514, 0
    %6527 = vmatpush.msra.mxu0 0.0
    %6528 = vmatpush.msra.mxu0 0.0
    %6529 = vmatpush.msra.mxu0 0.0
    %6530 = vmatpush.msra.mxu0 0.0
    %6531 = vmatpush.msra.mxu0 0.0
    %6532 = vmatpush.msra.mxu0 0.0
    %6533 = vmatpush.msra.mxu0 0.0
    %6534 = vmatpush.msra.mxu0 0.0
    %6535 = vmatpush.msra.mxu0 0.0
    %6536 = vmatpush.msra.mxu0 0.0
    %6537 = vmatpush.msra.mxu0 0.0
    %6538 = vmatpush.msra.mxu0 0.0
    %6539 = vmatpush.msra.mxu0 0.0
    %6540 = vmatpush.msra.mxu0 %v2839
    %6541 = vmatpush.msra.mxu0 %v2838
    %6542 = vmatpush.msra.mxu0 %v2837
    %6543 = vmatmul.f32.gmra.mxu0 %v6516
    %v6544 = vpop.f32.mrf.mxu0
    %v6545 = vadd.f32 %v2842, %v6544
    %6546 = vmatmul.f32.gmra.mxu0 %v6519
    %v6547 = vpop.f32.mrf.mxu0
    %v6548 = vadd.f32 %v2842, %v6547
    %6549 = vmatmul.f32.gmra.mxu0 %v6522
    %v6550 = vpop.f32.mrf.mxu0
    %v6551 = vadd.f32 %v2842, %v6550
    %6552 = vmatmul.f32.gmra.mxu0 %v6525
    %v6553 = vpop.f32.mrf.mxu0
    %v6554 = vadd.f32 %v2842, %v6553
    %6555 = vdwg.mxu0
    %v6556 = vmul.f32 %v6545, 0.5
    %v6557 = vmul.f32 %v6548, 0.5
    %v6558 = vmul.f32 %v6551, 0.5
    %v6559 = vmul.f32 %v6554, 0.5
    %v6560 = vmul.f32 %v6545, 0.044715
    %v6561 = vmul.f32 %v6548, 0.044715
    %v6562 = vmul.f32 %v6551, 0.044715
    %v6563 = vmul.f32 %v6554, 0.044715
    %v6564 = vmul.f32 %v6560, %v6545
    %v6565 = vmul.f32 %v6561, %v6548
    %v6566 = vmul.f32 %v6562, %v6551
    %v6567 = vmul.f32 %v6563, %v6554
    %v6568 = vmul.f32 %v6564, %v6545
    %v6569 = vmul.f32 %v6565, %v6548
    %v6570 = vmul.f32 %v6566, %v6551
    %v6571 = vmul.f32 %v6567, %v6554
    %v6572 = vadd.f32 %v6545, %v6568
    %v6573 = vadd.f32 %v6548, %v6569
    %v6574 = vadd.f32 %v6551, %v6570
    %v6575 = vadd.f32 %v6554, %v6571
    %v6576 = vmul.f32 %v6572, 0.7978846
    %v6577 = vmul.f32 %v6573, 0.7978846
    %v6578 = vmul.f32 %v6574, 0.7978846
    %v6579 = vmul.f32 %v6575, 0.7978846
    %v6580 = vtanh.pop %v6576
    %v6581 = vtanh.pop %v6577
    %v6582 = vtanh.pop %v6578
    %v6583 = vtanh.pop %v6579
    %v6584 = vadd.f32 %v6580, 1.0
    %v6585 = vadd.f32 %v6581, 1.0
    %v6586 = vadd.f32 %v6582, 1.0
    %v6587 = vadd.f32 %v6583, 1.0
    %v6588 = vmul.f32 %v6556, %v6584
    %v6589 = vmul.f32 %v6557, %v6585
    %v6590 = vmul.f32 %v6558, %v6586
    %v6591 = vmul.f32 %v6559, %v6587
    %v6593 = vsel %vm2937, %v6588, 0
    %v6596 = vsel %vm2937, %v6589, 0
    %v6599 = vsel %vm2937, %v6590, 0
    %v6602 = vsel %vm2937, %v6591, 0
    %6604 = vmatpush.msra.mxu0 0.0
    %6605 = vmatpush.msra.mxu0 0.0
    %6606 = vmatpush.msra.mxu0 0.0
    %6607 = vmatpush.msra.mxu0 0.0
    %6608 = vmatpush.msra.mxu0 %v2932
    %6609 = vmatpush.msra.mxu0 %v2931
    %6610 = vmatpush.msra.mxu0 %v2930
    %6611 = vmatpush.msra.mxu0 %v2929
    %6612 = vmatpush.msra.mxu0 %v2928
    %6613 = vmatpush.msra.mxu0 %v2927
    %6614 = vmatpush.msra.mxu0 %v2926
    %6615 = vmatpush.msra.mxu0 %v2925
    %6616 = vmatpush.msra.mxu0 %v2924
    %6617 = vmatpush.msra.mxu0 %v2923
    %6618 = vmatpush.msra.mxu0 %v2922
    %6619 = vmatpush.msra.mxu0 %v2921
    %6620 = vmatmul.f32.gmra.mxu0 %v6593
    %v6621 = vpop.f32.mrf.mxu0
    %v6622 = vadd.f32 %v2935, %v6621
    %6623 = vmatmul.f32.gmra.mxu0 %v6596
    %v6624 = vpop.f32.mrf.mxu0
    %v6625 = vadd.f32 %v2935, %v6624
    %6626 = vmatmul.f32.gmra.mxu0 %v6599
    %v6627 = vpop.f32.mrf.mxu0
    %v6628 = vadd.f32 %v2935, %v6627
    %6629 = vmatmul.f32.gmra.mxu0 %v6602
    %v6630 = vpop.f32.mrf.mxu0
    %v6631 = vadd.f32 %v2935, %v6630
    %6632 = vdwg.mxu0
    %v6633 = vadd.f32 %v6415, %v6622
    %v6634 = vadd.f32 %v6416, %v6625
    %v6635 = vadd.f32 %v6417, %v6628
    %v6636 = vadd.f32 %v6418, %v6631
    %v6637 = vld [vmem:[%s31] sm:$0xff]
    %v6638 = vld [vmem:[%s31 + $0x8] sm:$0xff]
    %v6639 = vld [vmem:[%s31 + $0x10] sm:$0xff]
    %v6640 = vld [vmem:[%s33] sm:$0x1]
    %v6642 = vperm.slane %v6640, 0
    %v6645 = vsel %vm2327, %v6633, 0
    %v6648 = vsel %vm2327, %v6634, 0
    %v6651 = vsel %vm2327, %v6635, 0
    %v6654 = vsel %vm2327, %v6636, 0
    %6656 = vmatpush.msra.mxu0 0.0
    %6657 = vmatpush.msra.mxu0 0.0
    %6658 = vmatpush.msra.mxu0 0.0
    %6659 = vmatpush.msra.mxu0 0.0
    %6660 = vmatpush.msra.mxu0 0.0
    %6661 = vmatpush.msra.mxu0 0.0
    %6662 = vmatpush.msra.mxu0 0.0
    %6663 = vmatpush.msra.mxu0 0.0
    %6664 = vmatpush.msra.mxu0 0.0
    %6665 = vmatpush.msra.mxu0 0.0
    %6666 = vmatpush.msra.mxu0 0.0
    %6667 = vmatpush.msra.mxu0 0.0
    %6668 = vmatpush.msra.mxu0 0.0
    %6669 = vmatpush.msra.mxu0 %v6639
    %6670 = vmatpush.msra.mxu0 %v6638
    %6671 = vmatpush.msra.mxu0 %v6637
    %6672 = vmatmul.f32.gmra.mxu0 %v6645
    %v6673 = vpop.f32.mrf.mxu0
    %v6674 = vadd.f32 %v6642, %v6673
    %6675 = vmatmul.f32.gmra.mxu0 %v6648
    %v6676 = vpop.f32.mrf.mxu0
    %v6677 = vadd.f32 %v6642, %v6676
    %6678 = vmatmul.f32.gmra.mxu0 %v6651
    %v6679 = vpop.f32.mrf.mxu0
    %v6680 = vadd.f32 %v6642, %v6679
    %6681 = vmatmul.f32.gmra.mxu0 %v6654
    %v6682 = vpop.f32.mrf.mxu0
    %v6683 = vadd.f32 %v6642, %v6682
    %6684 = vdwg.mxu0
    %v6685 = vmul.f32 %v6674, %v2274
    %v6686 = vmul.f32 %v6677, %v2275
    %v6687 = vmul.f32 %v6680, %v2276
    %v6688 = vmul.f32 %v6683, %v2277
    %v6689 = vsel %vm987, %v6685, 0.0
    %6690 = vadd.xlane.f32.xlu0 %v6689
    %v6691 = vpop.xlane.xlu0 %6690
    %v6692 = vsel %vm987, %v6686, 0.0
    %6693 = vadd.xlane.f32.xlu0 %v6692
    %v6694 = vpop.xlane.xlu0 %6693
    %v6695 = vsel %vm987, %v6687, 0.0
    %6696 = vadd.xlane.f32.xlu0 %v6695
    %v6697 = vpop.xlane.xlu0 %6696
    %v6698 = vsel %vm987, %v6688, 0.0
    %6699 = vadd.xlane.f32.xlu0 %v6698
    %v6700 = vpop.xlane.xlu0 %6699
    %v6701 = vmul.f32 %v6691, %v1006
    %v6702 = vmul.f32 %v6694, %v1006
    %v6703 = vmul.f32 %v6697, %v1006
    %v6704 = vmul.f32 %v6700, %v1006
    %v6705 = vsub.f32 %v6685, %v6701
    %v6706 = vsub.f32 %v6686, %v6702
    %v6707 = vsub.f32 %v6687, %v6703
    %v6708 = vsub.f32 %v6688, %v6704
    %v6709 = vmul.f32 %v6705, %v6705
    %v6710 = vmul.f32 %v6706, %v6706
    %v6711 = vmul.f32 %v6707, %v6707
    %v6712 = vmul.f32 %v6708, %v6708
    %v6713 = vsel %vm987, %v6709, 0.0
    %6714 = vadd.xlane.f32.xlu0 %v6713
    %v6715 = vpop.xlane.xlu0 %6714
    %v6716 = vsel %vm987, %v6710, 0.0
    %6717 = vadd.xlane.f32.xlu0 %v6716
    %v6718 = vpop.xlane.xlu0 %6717
    %v6719 = vsel %vm987, %v6711, 0.0
    %6720 = vadd.xlane.f32.xlu0 %v6719
    %v6721 = vpop.xlane.xlu0 %6720
    %v6722 = vsel %vm987, %v6712, 0.0
    %6723 = vadd.xlane.f32.xlu0 %v6722
    %v6724 = vpop.xlane.xlu0 %6723
    %v6725 = vmul.f32 %v6715, %v1006
    %v6726 = vmul.f32 %v6718, %v1006
    %v6727 = vmul.f32 %v6721, %v1006
    %v6728 = vmul.f32 %v6724, %v1006
    %v6729 = vadd.f32 %v6725, 1e-05
    %v6730 = vadd.f32 %v6726, 1e-05
    %v6731 = vadd.f32 %v6727, 1e-05
    %v6732 = vadd.f32 %v6728, 1e-05
    %v6733 = vrsqrt.pop %v6729
    %v6734 = vmul.f32 %v6733, %v6729
    %v6735 = vmul.f32 %v6734, %v6733
    %v6736 = vmul.f32 0.5, %v6735
    %v6737 = vsub.f32 1.5, %v6736
    %v6738 = vmul.f32 %v6733, %v6737
    %vm6739 = vweird.f32 %v6729
    %vm6740 = vweird.f32 %v6733
    %vm6741 = vmor %vm6739, %vm6740
    %v6742 = vsel %vm6741, %v6733, %v6738
    %v6743 = vrsqrt.pop %v6730
    %v6744 = vmul.f32 %v6743, %v6730
    %v6745 = vmul.f32 %v6744, %v6743
    %v6746 = vmul.f32 0.5, %v6745
    %v6747 = vsub.f32 1.5, %v6746
    %v6748 = vmul.f32 %v6743, %v6747
    %vm6749 = vweird.f32 %v6730
    %vm6750 = vweird.f32 %v6743
    %vm6751 = vmor %vm6749, %vm6750
    %v6752 = vsel %vm6751, %v6743, %v6748
    %v6753 = vrsqrt.pop %v6731
    %v6754 = vmul.f32 %v6753, %v6731
    %v6755 = vmul.f32 %v6754, %v6753
    %v6756 = vmul.f32 0.5, %v6755
    %v6757 = vsub.f32 1.5, %v6756
    %v6758 = vmul.f32 %v6753, %v6757
    %vm6759 = vweird.f32 %v6731
    %vm6760 = vweird.f32 %v6753
    %vm6761 = vmor %vm6759, %vm6760
    %v6762 = vsel %vm6761, %v6753, %v6758
    %v6763 = vrsqrt.pop %v6732
    %v6764 = vmul.f32 %v6763, %v6732
    %v6765 = vmul.f32 %v6764, %v6763
    %v6766 = vmul.f32 0.5, %v6765
    %v6767 = vsub.f32 1.5, %v6766
    %v6768 = vmul.f32 %v6763, %v6767
    %vm6769 = vweird.f32 %v6732
    %vm6770 = vweird.f32 %v6763
    %vm6771 = vmor %vm6769, %vm6770
    %v6772 = vsel %vm6771, %v6763, %v6768
    %v6773 = vmul.f32 %v6705, %v6742
    %v6774 = vmul.f32 %v6706, %v6752
    %v6775 = vmul.f32 %v6707, %v6762
    %v6776 = vmul.f32 %v6708, %v6772
    %v6777 = vmul.f32 %v6773, %v1727
    %v6778 = vmul.f32 %v6774, %v1727
    %v6779 = vmul.f32 %v6775, %v1727
    %v6780 = vmul.f32 %v6776, %v1727
    %v6781 = vadd.f32 %v6777, %v1734
    %v6782 = vadd.f32 %v6778, %v1734
    %v6783 = vadd.f32 %v6779, %v1734
    %v6784 = vadd.f32 %v6780, %v1734
    %v6786 = vsel %vm987, %v6781, 0
    %v6789 = vsel %vm987, %v6782, 0
    %v6792 = vsel %vm987, %v6783, 0
    %v6795 = vsel %vm987, %v6784, 0
    %6797 = vmatpush.msra.mxu0 0.0
    %6798 = vmatpush.msra.mxu0 0.0
    %6799 = vmatpush.msra.mxu0 0.0
    %6800 = vmatpush.msra.mxu0 0.0
    %6801 = vmatpush.msra.mxu0 0.0
    %6802 = vmatpush.msra.mxu0 0.0
    %6803 = vmatpush.msra.mxu0 0.0
    %6804 = vmatpush.msra.mxu0 0.0
    %6805 = vmatpush.msra.mxu0 0.0
    %6806 = vmatpush.msra.mxu0 0.0
    %6807 = vmatpush.msra.mxu0 0.0
    %6808 = vmatpush.msra.mxu0 0.0
    %6809 = vmatpush.msra.mxu0 0.0
    %6810 = vmatpush.msra.mxu0 0.0
    %6811 = vmatpush.msra.mxu0 %v1741
    %6812 = vmatpush.msra.mxu0 %v1740
    %6813 = vmatmul.f32.gmra.mxu0 %v6786
    %v6814 = vpop.f32.mrf.mxu0
    %v6815 = vadd.f32 %v1744, %v6814
    %6816 = vmatmul.f32.gmra.mxu0 %v6789
    %v6817 = vpop.f32.mrf.mxu0
    %v6818 = vadd.f32 %v1744, %v6817
    %6819 = vmatmul.f32.gmra.mxu0 %v6792
    %v6820 = vpop.f32.mrf.mxu0
    %v6821 = vadd.f32 %v1744, %v6820
    %6822 = vmatmul.f32.gmra.mxu0 %v6795
    %v6823 = vpop.f32.mrf.mxu0
    %v6824 = vadd.f32 %v1744, %v6823
    %6825 = vdwg.mxu0
    %v6826 = vmul.f32 %v6815, 0.25
    %v6827 = vmul.f32 %v6818, 0.25
    %v6828 = vmul.f32 %v6821, 0.25
    %v6829 = vmul.f32 %v6824, 0.25
    %6832 = vrot.lane.b32.xlu0 %v6815, 112
    %v6833 = vpop.permute.xlu0 %6832
    %6834 = vrot.lane.b32.xlu0 %v6818, 112
    %v6835 = vpop.permute.xlu0 %6834
    %v6837 = vsel %vm987, %v6826, 0
    %v6840 = vsel %vm987, %v6827, 0
    %v6842 = vsel %vm987, %v6833, 0
    %v6844 = vsel %vm987, %v6835, 0
    %6846 = vmatpush.xpose.msra.mxu0 0.0
    %6847 = vmatpush.xpose.msra.mxu0 0.0
    %6848 = vmatpush.xpose.msra.mxu0 0.0
    %6849 = vmatpush.xpose.msra.mxu0 0.0
    %6850 = vmatpush.xpose.msra.mxu0 0.0
    %6851 = vmatpush.xpose.msra.mxu0 0.0
    %6852 = vmatpush.xpose.msra.mxu0 0.0
    %6853 = vmatpush.xpose.msra.mxu0 0.0
    %6854 = vmatpush.xpose.msra.mxu0 0.0
    %6855 = vmatpush.xpose.msra.mxu0 0.0
    %6856 = vmatpush.xpose.msra.mxu0 0.0
    %6857 = vmatpush.xpose.msra.mxu0 0.0
    %6858 = vmatpush.xpose.msra.mxu0 0.0
    %6859 = vmatpush.xpose.msra.mxu0 0.0
    %6860 = vmatpush.xpose.msra.mxu0 %v6844
    %6861 = vmatpush.xpose.msra.mxu0 %v6842
    %6862 = vmatmul.f32.gmra.mxu0 %v6837
    %v6863 = vpop.f32.mrf.mxu0
    %v6864 = vadd.f32 %v903, %v6863
    %6865 = vmatmul.f32.gmra.mxu0 %v6840
    %v6866 = vpop.f32.mrf.mxu0
    %v6867 = vadd.f32 %v904, %v6866
    %6868 = vdwg.mxu0
    %v6869 = vsel %vm987, %v6864, -inf
    %6870 = vmax.xlane.f32.xlu0 %v6869
    %v6871 = vpop.xlane.xlu0 %6870
    %v6872 = vsel %vm987, %v6867, -inf
    %6873 = vmax.xlane.f32.xlu0 %v6872
    %v6874 = vpop.xlane.xlu0 %6873
    %v6875 = vsub.f32 %v6864, %v6871
    %v6876 = vsub.f32 %v6867, %v6874
    %v6877 = vmul.f32 %v6875, 1.442695
    %v6878 = vpow.pop %v6877
    %v6879 = vmul.f32 %v6876, 1.442695
    %v6880 = vpow.pop %v6879
    %v6881 = vsel %vm987, %v6878, 0.0
    %6882 = vadd.xlane.f32.xlu0 %v6881
    %v6883 = vpop.xlane.xlu0 %6882
    %v6884 = vsel %vm987, %v6880, 0.0
    %6885 = vadd.xlane.f32.xlu0 %v6884
    %v6886 = vpop.xlane.xlu0 %6885
    %v6887 = vrcp.pop %v6883
    %v6888 = vrcp.pop %v6886
    %v6889 = vmul.f32 %v6878, %v6887
    %v6890 = vmul.f32 %v6880, %v6888
    %6891 = vrot.lane.b32.xlu0 %v6815, 96
    %v6892 = vpop.permute.xlu0 %6891
    %6893 = vrot.lane.b32.xlu0 %v6818, 96
    %v6894 = vpop.permute.xlu0 %6893
    %v6898 = vsel %vm987, %v6889, 0
    %v6901 = vsel %vm987, %v6890, 0
    %6903 = vmatpush.msra.mxu0 0.0
    %6904 = vmatpush.msra.mxu0 0.0
    %6905 = vmatpush.msra.mxu0 0.0
    %6906 = vmatpush.msra.mxu0 0.0
    %6907 = vmatpush.msra.mxu0 0.0
    %6908 = vmatpush.msra.mxu0 0.0
    %6909 = vmatpush.msra.mxu0 0.0
    %6910 = vmatpush.msra.mxu0 0.0
    %6911 = vmatpush.msra.mxu0 0.0
    %6912 = vmatpush.msra.mxu0 0.0
    %6913 = vmatpush.msra.mxu0 0.0
    %6914 = vmatpush.msra.mxu0 0.0
    %6915 = vmatpush.msra.mxu0 0.0
    %6916 = vmatpush.msra.mxu0 0.0
    %6917 = vmatpush.msra.mxu0 %v6894
    %6918 = vmatpush.msra.mxu0 %v6892
    %6919 = vmatmul.f32.gmra.mxu0 %v6898
    %v6920 = vpop.f32.mrf.mxu0
    %v6921 = vadd.f32 0.0, %v6920
    %6922 = vmatmul.f32.gmra.mxu0 %v6901
    %v6923 = vpop.f32.mrf.mxu0
    %v6924 = vadd.f32 0.0, %v6923
    %6925 = vdwg.mxu0
    %6928 = vrot.lane.b32.xlu0 %v6821, 112
    %v6929 = vpop.permute.xlu0 %6928
    %6930 = vrot.lane.b32.xlu0 %v6824, 112
    %v6931 = vpop.permute.xlu0 %6930
    %v6933 = vsel %vm987, %v6828, 0
    %v6936 = vsel %vm987, %v6829, 0
    %v6938 = vsel %vm987, %v6929, 0
    %v6940 = vsel %vm987, %v6931, 0
    %6942 = vmatpush.xpose.msra.mxu0 0.0
    %6943 = vmatpush.xpose.msra.mxu0 0.0
    %6944 = vmatpush.xpose.msra.mxu0 0.0
    %6945 = vmatpush.xpose.msra.mxu0 0.0
    %6946 = vmatpush.xpose.msra.mxu0 0.0
    %6947 = vmatpush.xpose.msra.mxu0 0.0
    %6948 = vmatpush.xpose.msra.mxu0 0.0
    %6949 = vmatpush.xpose.msra.mxu0 0.0
    %6950 = vmatpush.xpose.msra.mxu0 0.0
    %6951 = vmatpush.xpose.msra.mxu0 0.0
    %6952 = vmatpush.xpose.msra.mxu0 0.0
    %6953 = vmatpush.xpose.msra.mxu0 0.0
    %6954 = vmatpush.xpose.msra.mxu0 0.0
    %6955 = vmatpush.xpose.msra.mxu0 0.0
    %6956 = vmatpush.xpose.msra.mxu0 %v6940
    %6957 = vmatpush.xpose.msra.mxu0 %v6938
    %6958 = vmatmul.f32.gmra.mxu0 %v6933
    %v6959 = vpop.f32.mrf.mxu0
    %v6960 = vadd.f32 %v903, %v6959
    %6961 = vmatmul.f32.gmra.mxu0 %v6936
    %v6962 = vpop.f32.mrf.mxu0
    %v6963 = vadd.f32 %v904, %v6962
    %6964 = vdwg.mxu0
    %v6965 = vsel %vm987, %v6960, -inf
    %6966 = vmax.xlane.f32.xlu0 %v6965
    %v6967 = vpop.xlane.xlu0 %6966
    %v6968 = vsel %vm987, %v6963, -inf
    %6969 = vmax.xlane.f32.xlu0 %v6968
    %v6970 = vpop.xlane.xlu0 %6969
    %v6971 = vsub.f32 %v6960, %v6967
    %v6972 = vsub.f32 %v6963, %v6970
    %v6973 = vmul.f32 %v6971, 1.442695
    %v6974 = vpow.pop %v6973
    %v6975 = vmul.f32 %v6972, 1.442695
    %v6976 = vpow.pop %v6975
    %v6977 = vsel %vm987, %v6974, 0.0
    %6978 = vadd.xlane.f32.xlu0 %v6977
    %v6979 = vpop.xlane.xlu0 %6978
    %v6980 = vsel %vm987, %v6976, 0.0
    %6981 = vadd.xlane.f32.xlu0 %v6980
    %v6982 = vpop.xlane.xlu0 %6981
    %v6983 = vrcp.pop %v6979
    %v6984 = vrcp.pop %v6982
    %v6985 = vmul.f32 %v6974, %v6983
    %v6986 = vmul.f32 %v6976, %v6984
    %6987 = vrot.lane.b32.xlu0 %v6821, 96
    %v6988 = vpop.permute.xlu0 %6987
    %6989 = vrot.lane.b32.xlu0 %v6824, 96
    %v6990 = vpop.permute.xlu0 %6989
    %v6994 = vsel %vm987, %v6985, 0
    %v6997 = vsel %vm987, %v6986, 0
    %6999 = vmatpush.msra.mxu0 0.0
    %7000 = vmatpush.msra.mxu0 0.0
    %7001 = vmatpush.msra.mxu0 0.0
    %7002 = vmatpush.msra.mxu0 0.0
    %7003 = vmatpush.msra.mxu0 0.0
    %7004 = vmatpush.msra.mxu0 0.0
    %7005 = vmatpush.msra.mxu0 0.0
    %7006 = vmatpush.msra.mxu0 0.0
    %7007 = vmatpush.msra.mxu0 0.0
    %7008 = vmatpush.msra.mxu0 0.0
    %7009 = vmatpush.msra.mxu0 0.0
    %7010 = vmatpush.msra.mxu0 0.0
    %7011 = vmatpush.msra.mxu0 0.0
    %7012 = vmatpush.msra.mxu0 0.0
    %7013 = vmatpush.msra.mxu0 %v6990
    %7014 = vmatpush.msra.mxu0 %v6988
    %7015 = vmatmul.f32.gmra.mxu0 %v6994
    %v7016 = vpop.f32.mrf.mxu0
    %v7017 = vadd.f32 0.0, %v7016
    %7018 = vmatmul.f32.gmra.mxu0 %v6997
    %v7019 = vpop.f32.mrf.mxu0
    %v7020 = vadd.f32 0.0, %v7019
    %7021 = vdwg.mxu0
    %v7023 = vsel %vm987, %v6921, 0
    %v7026 = vsel %vm987, %v6924, 0
    %v7029 = vsel %vm987, %v7017, 0
    %v7032 = vsel %vm987, %v7020, 0
    %7034 = vmatpush.msra.mxu0 0.0
    %7035 = vmatpush.msra.mxu0 0.0
    %7036 = vmatpush.msra.mxu0 0.0
    %7037 = vmatpush.msra.mxu0 0.0
    %7038 = vmatpush.msra.mxu0 0.0
    %7039 = vmatpush.msra.mxu0 0.0
    %7040 = vmatpush.msra.mxu0 0.0
    %7041 = vmatpush.msra.mxu0 0.0
    %7042 = vmatpush.msra.mxu0 0.0
    %7043 = vmatpush.msra.mxu0 0.0
    %7044 = vmatpush.msra.mxu0 0.0
    %7045 = vmatpush.msra.mxu0 0.0
    %7046 = vmatpush.msra.mxu0 0.0
    %7047 = vmatpush.msra.mxu0 0.0
    %7048 = vmatpush.msra.mxu0 %v1984
    %7049 = vmatpush.msra.mxu0 %v1983
    %7050 = vmatmul.f32.gmra.mxu0 %v7023
    %v7051 = vpop.f32.mrf.mxu0
    %v7052 = vadd.f32 %v1987, %v7051
    %7053 = vmatmul.f32.gmra.mxu0 %v7026
    %v7054 = vpop.f32.mrf.mxu0
    %v7055 = vadd.f32 %v1987, %v7054
    %7056 = vmatmul.f32.gmra.mxu0 %v7029
    %v7057 = vpop.f32.mrf.mxu0
    %v7058 = vadd.f32 %v1987, %v7057
    %7059 = vmatmul.f32.gmra.mxu0 %v7032
    %v7060 = vpop.f32.mrf.mxu0
    %v7061 = vadd.f32 %v1987, %v7060
    %7062 = vdwg.mxu0
    %v7063 = vadd.f32 %v6685, %v7052
    %v7064 = vadd.f32 %v6686, %v7055
    %v7065 = vadd.f32 %v6687, %v7058
    %v7066 = vadd.f32 %v6688, %v7061
    %v7067 = vsel %vm987, %v7063, 0.0
    %7068 = vadd.xlane.f32.xlu0 %v7067
    %v7069 = vpop.xlane.xlu0 %7068
    %v7070 = vsel %vm987, %v7064, 0.0
    %7071 = vadd.xlane.f32.xlu0 %v7070
    %v7072 = vpop.xlane.xlu0 %7071
    %v7073 = vsel %vm987, %v7065, 0.0
    %7074 = vadd.xlane.f32.xlu0 %v7073
    %v7075 = vpop.xlane.xlu0 %7074
    %v7076 = vsel %vm987, %v7066, 0.0
    %7077 = vadd.xlane.f32.xlu0 %v7076
    %v7078 = vpop.xlane.xlu0 %7077
    %v7079 = vmul.f32 %v7069, %v1006
    %v7080 = vmul.f32 %v7072, %v1006
    %v7081 = vmul.f32 %v7075, %v1006
    %v7082 = vmul.f32 %v7078, %v1006
    %v7083 = vsub.f32 %v7063, %v7079
    %v7084 = vsub.f32 %v7064, %v7080
    %v7085 = vsub.f32 %v7065, %v7081
    %v7086 = vsub.f32 %v7066, %v7082
    %v7087 = vmul.f32 %v7083, %v7083
    %v7088 = vmul.f32 %v7084, %v7084
    %v7089 = vmul.f32 %v7085, %v7085
    %v7090 = vmul.f32 %v7086, %v7086
    %v7091 = vsel %vm987, %v7087, 0.0
    %7092 = vadd.xlane.f32.xlu0 %v7091
    %v7093 = vpop.xlane.xlu0 %7092
    %v7094 = vsel %vm987, %v7088, 0.0
    %7095 = vadd.xlane.f32.xlu0 %v7094
    %v7096 = vpop.xlane.xlu0 %7095
    %v7097 = vsel %vm987, %v7089, 0.0
    %7098 = vadd.xlane.f32.xlu0 %v7097
    %v7099 = vpop.xlane.xlu0 %7098
    %v7100 = vsel %vm987, %v7090, 0.0
    %7101 = vadd.xlane.f32.xlu0 %v7100
    %v7102 = vpop.xlane.xlu0 %7101
    %v7103 = vmul.f32 %v7093, %v1006
    %v7104 = vmul.f32 %v7096, %v1006
    %v7105 = vmul.f32 %v7099, %v1006
    %v7106 = vmul.f32 %v7102, %v1006
    %v7107 = vadd.f32 %v7103, 1e-05
    %v7108 = vadd.f32 %v7104, 1e-05
    %v7109 = vadd.f32 %v7105, 1e-05
    %v7110 = vadd.f32 %v7106, 1e-05
    %v7111 = vrsqrt.pop %v7107
    %v7112 = vmul.f32 %v7111, %v7107
    %v7113 = vmul.f32 %v7112, %v7111
    %v7114 = vmul.f32 0.5, %v7113
    %v7115 = vsub.f32 1.5, %v7114
    %v7116 = vmul.f32 %v7111, %v7115
    %vm7117 = vweird.f32 %v7107
    %vm7118 = vweird.f32 %v7111
    %vm7119 = vmor %vm7117, %vm7118
    %v7120 = vsel %vm7119, %v7111, %v7116
    %v7121 = vrsqrt.pop %v7108
    %v7122 = vmul.f32 %v7121, %v7108
    %v7123 = vmul.f32 %v7122, %v7121
    %v7124 = vmul.f32 0.5, %v7123
    %v7125 = vsub.f32 1.5, %v7124
    %v7126 = vmul.f32 %v7121, %v7125
    %vm7127 = vweird.f32 %v7108
    %vm7128 = vweird.f32 %v7121
    %vm7129 = vmor %vm7127, %vm7128
    %v7130 = vsel %vm7129, %v7121, %v7126
    %v7131 = vrsqrt.pop %v7109
    %v7132 = vmul.f32 %v7131, %v7109
    %v7133 = vmul.f32 %v7132, %v7131
    %v7134 = vmul.f32 0.5, %v7133
    %v7135 = vsub.f32 1.5, %v7134
    %v7136 = vmul.f32 %v7131, %v7135
    %vm7137 = vweird.f32 %v7109
    %vm7138 = vweird.f32 %v7131
    %vm7139 = vmor %vm7137, %vm7138
    %v7140 = vsel %vm7139, %v7131, %v7136
    %v7141 = vrsqrt.pop %v7110
    %v7142 = vmul.f32 %v7141, %v7110
    %v7143 = vmul.f32 %v7142, %v7141
    %v7144 = vmul.f32 0.5, %v7143
    %v7145 = vsub.f32 1.5, %v7144
    %v7146 = vmul.f32 %v7141, %v7145
    %vm7147 = vweird.f32 %v7110
    %vm7148 = vweird.f32 %v7141
    %vm7149 = vmor %vm7147, %vm7148
    %v7150 = vsel %vm7149, %v7141, %v7146
    %v7151 = vmul.f32 %v7083, %v7120
    %v7152 = vmul.f32 %v7084, %v7130
    %v7153 = vmul.f32 %v7085, %v7140
    %v7154 = vmul.f32 %v7086, %v7150
    %v7155 = vmul.f32 %v7151, %v2125
    %v7156 = vmul.f32 %v7152, %v2125
    %v7157 = vmul.f32 %v7153, %v2125
    %v7158 = vmul.f32 %v7154, %v2125
    %v7159 = vadd.f32 %v7155, %v2132
    %v7160 = vadd.f32 %v7156, %v2132
    %v7161 = vadd.f32 %v7157, %v2132
    %v7162 = vadd.f32 %v7158, %v2132
    %v7164 = vsel %vm987, %v7159, 0
    %v7167 = vsel %vm987, %v7160, 0
    %v7170 = vsel %vm987, %v7161, 0
    %v7173 = vsel %vm987, %v7162, 0
    %7175 = vmatpush.msra.mxu0 0.0
    %7176 = vmatpush.msra.mxu0 0.0
    %7177 = vmatpush.msra.mxu0 0.0
    %7178 = vmatpush.msra.mxu0 0.0
    %7179 = vmatpush.msra.mxu0 0.0
    %7180 = vmatpush.msra.mxu0 0.0
    %7181 = vmatpush.msra.mxu0 0.0
    %7182 = vmatpush.msra.mxu0 0.0
    %7183 = vmatpush.msra.mxu0 0.0
    %7184 = vmatpush.msra.mxu0 0.0
    %7185 = vmatpush.msra.mxu0 0.0
    %7186 = vmatpush.msra.mxu0 0.0
    %7187 = vmatpush.msra.mxu0 0.0
    %7188 = vmatpush.msra.mxu0 0.0
    %7189 = vmatpush.msra.mxu0 %v2139
    %7190 = vmatpush.msra.mxu0 %v2138
    %7191 = vmatmul.f32.gmra.mxu0 %v7164
    %v7192 = vpop.f32.mrf.mxu0
    %v7193 = vadd.f32 %v2142, %v7192
    %7194 = vmatmul.f32.gmra.mxu0 %v7167
    %v7195 = vpop.f32.mrf.mxu0
    %v7196 = vadd.f32 %v2142, %v7195
    %7197 = vmatmul.f32.gmra.mxu0 %v7170
    %v7198 = vpop.f32.mrf.mxu0
    %v7199 = vadd.f32 %v2142, %v7198
    %7200 = vmatmul.f32.gmra.mxu0 %v7173
    %v7201 = vpop.f32.mrf.mxu0
    %v7202 = vadd.f32 %v2142, %v7201
    %7203 = vdwg.mxu0
    %v7204 = vmul.f32 %v7193, 0.5
    %v7205 = vmul.f32 %v7196, 0.5
    %v7206 = vmul.f32 %v7199, 0.5
    %v7207 = vmul.f32 %v7202, 0.5
    %v7208 = vmul.f32 %v7193, 0.044715
    %v7209 = vmul.f32 %v7196, 0.044715
    %v7210 = vmul.f32 %v7199, 0.044715
    %v7211 = vmul.f32 %v7202, 0.044715
    %v7212 = vmul.f32 %v7208, %v7193
    %v7213 = vmul.f32 %v7209, %v7196
    %v7214 = vmul.f32 %v7210, %v7199
    %v7215 = vmul.f32 %v7211, %v7202
    %v7216 = vmul.f32 %v7212, %v7193
    %v7217 = vmul.f32 %v7213, %v7196
    %v7218 = vmul.f32 %v7214, %v7199
    %v7219 = vmul.f32 %v7215, %v7202
    %v7220 = vadd.f32 %v7193, %v7216
    %v7221 = vadd.f32 %v7196, %v7217
    %v7222 = vadd.f32 %v7199, %v7218
    %v7223 = vadd.f32 %v7202, %v7219
    %v7224 = vmul.f32 %v7220, 0.7978846
    %v7225 = vmul.f32 %v7221, 0.7978846
    %v7226 = vmul.f32 %v7222, 0.7978846
    %v7227 = vmul.f32 %v7223, 0.7978846
    %v7228 = vtanh.pop %v7224
    %v7229 = vtanh.pop %v7225
    %v7230 = vtanh.pop %v7226
    %v7231 = vtanh.pop %v7227
    %v7232 = vadd.f32 %v7228, 1.0
    %v7233 = vadd.f32 %v7229, 1.0
    %v7234 = vadd.f32 %v7230, 1.0
    %v7235 = vadd.f32 %v7231, 1.0
    %v7236 = vmul.f32 %v7204, %v7232
    %v7237 = vmul.f32 %v7205, %v7233
    %v7238 = vmul.f32 %v7206, %v7234
    %v7239 = vmul.f32 %v7207, %v7235
    %v7241 = vsel %vm1590, %v7236, 0
    %v7244 = vsel %vm1590, %v7237, 0
    %v7247 = vsel %vm1590, %v7238, 0
    %v7250 = vsel %vm1590, %v7239, 0
    %7252 = vmatpush.msra.mxu0 0.0
    %7253 = vmatpush.msra.mxu0 0.0
    %7254 = vmatpush.msra.mxu0 0.0
    %7255 = vmatpush.msra.mxu0 0.0
    %7256 = vmatpush.msra.mxu0 0.0
    %7257 = vmatpush.msra.mxu0 0.0
    %7258 = vmatpush.msra.mxu0 0.0
    %7259 = vmatpush.msra.mxu0 0.0
    %7260 = vmatpush.msra.mxu0 %v2228
    %7261 = vmatpush.msra.mxu0 %v2227
    %7262 = vmatpush.msra.mxu0 %v2226
    %7263 = vmatpush.msra.mxu0 %v2225
    %7264 = vmatpush.msra.mxu0 %v2224
    %7265 = vmatpush.msra.mxu0 %v2223
    %7266 = vmatpush.msra.mxu0 %v2222
    %7267 = vmatpush.msra.mxu0 %v2221
    %7268 = vmatmul.f32.gmra.mxu0 %v7241
    %v7269 = vpop.f32.mrf.mxu0
    %v7270 = vadd.f32 %v2231, %v7269
    %7271 = vmatmul.f32.gmra.mxu0 %v7244
    %v7272 = vpop.f32.mrf.mxu0
    %v7273 = vadd.f32 %v2231, %v7272
    %7274 = vmatmul.f32.gmra.mxu0 %v7247
    %v7275 = vpop.f32.mrf.mxu0
    %v7276 = vadd.f32 %v2231, %v7275
    %7277 = vmatmul.f32.gmra.mxu0 %v7250
    %v7278 = vpop.f32.mrf.mxu0
    %v7279 = vadd.f32 %v2231, %v7278
    %7280 = vdwg.mxu0
    %v7281 = vadd.f32 %v7063, %v7270
    %v7282 = vadd.f32 %v7064, %v7273
    %v7283 = vadd.f32 %v7065, %v7276
    %v7284 = vadd.f32 %v7066, %v7279
    %v7285 = vsel %vm987, %v7281, 0.0
    %7286 = vadd.xlane.f32.xlu0 %v7285
    %v7287 = vpop.xlane.xlu0 %7286
    %v7288 = vsel %vm987, %v7282, 0.0
    %7289 = vadd.xlane.f32.xlu0 %v7288
    %v7290 = vpop.xlane.xlu0 %7289
    %v7291 = vsel %vm987, %v7283, 0.0
    %7292 = vadd.xlane.f32.xlu0 %v7291
    %v7293 = vpop.xlane.xlu0 %7292
    %v7294 = vsel %vm987, %v7284, 0.0
    %7295 = vadd.xlane.f32.xlu0 %v7294
    %v7296 = vpop.xlane.xlu0 %7295
    %v7297 = vmul.f32 %v7287, %v1006
    %v7298 = vmul.f32 %v7290, %v1006
    %v7299 = vmul.f32 %v7293, %v1006
    %v7300 = vmul.f32 %v7296, %v1006
    %v7301 = vsub.f32 %v7281, %v7297
    %v7302 = vsub.f32 %v7282, %v7298
    %v7303 = vsub.f32 %v7283, %v7299
    %v7304 = vsub.f32 %v7284, %v7300
    %v7305 = vmul.f32 %v7301, %v7301
    %v7306 = vmul.f32 %v7302, %v7302
    %v7307 = vmul.f32 %v7303, %v7303
    %v7308 = vmul.f32 %v7304, %v7304
    %v7309 = vsel %vm987, %v7305, 0.0
    %7310 = vadd.xlane.f32.xlu0 %v7309
    %v7311 = vpop.xlane.xlu0 %7310
    %v7312 = vsel %vm987, %v7306, 0.0
    %7313 = vadd.xlane.f32.xlu0 %v7312
    %v7314 = vpop.xlane.xlu0 %7313
    %v7315 = vsel %vm987, %v7307, 0.0
    %7316 = vadd.xlane.f32.xlu0 %v7315
    %v7317 = vpop.xlane.xlu0 %7316
    %v7318 = vsel %vm987, %v7308, 0.0
    %7319 = vadd.xlane.f32.xlu0 %v7318
    %v7320 = vpop.xlane.xlu0 %7319
    %v7321 = vmul.f32 %v7311, %v1006
    %v7322 = vmul.f32 %v7314, %v1006
    %v7323 = vmul.f32 %v7317, %v1006
    %v7324 = vmul.f32 %v7320, %v1006
    %v7325 = vadd.f32 %v7321, 1e-05
    %v7326 = vadd.f32 %v7322, 1e-05
    %v7327 = vadd.f32 %v7323, 1e-05
    %v7328 = vadd.f32 %v7324, 1e-05
    %v7329 = vrsqrt.pop %v7325
    %v7330 = vmul.f32 %v7329, %v7325
    %v7331 = vmul.f32 %v7330, %v7329
    %v7332 = vmul.f32 0.5, %v7331
    %v7333 = vsub.f32 1.5, %v7332
    %v7334 = vmul.f32 %v7329, %v7333
    %vm7335 = vweird.f32 %v7325
    %vm7336 = vweird.f32 %v7329
    %vm7337 = vmor %vm7335, %vm7336
    %v7338 = vsel %vm7337, %v7329, %v7334
    %v7339 = vrsqrt.pop %v7326
    %v7340 = vmul.f32 %v7339, %v7326
    %v7341 = vmul.f32 %v7340, %v7339
    %v7342 = vmul.f32 0.5, %v7341
    %v7343 = vsub.f32 1.5, %v7342
    %v7344 = vmul.f32 %v7339, %v7343
    %vm7345 = vweird.f32 %v7326
    %vm7346 = vweird.f32 %v7339
    %vm7347 = vmor %vm7345, %vm7346
    %v7348 = vsel %vm7347, %v7339, %v7344
    %v7349 = vrsqrt.pop %v7327
    %v7350 = vmul.f32 %v7349, %v7327
    %v7351 = vmul.f32 %v7350, %v7349
    %v7352 = vmul.f32 0.5, %v7351
    %v7353 = vsub.f32 1.5, %v7352
    %v7354 = vmul.f32 %v7349, %v7353
    %vm7355 = vweird.f32 %v7327
    %vm7356 = vweird.f32 %v7349
    %vm7357 = vmor %vm7355, %vm7356
    %v7358 = vsel %vm7357, %v7349, %v7354
    %v7359 = vrsqrt.pop %v7328
    %v7360 = vmul.f32 %v7359, %v7328
    %v7361 = vmul.f32 %v7360, %v7359
    %v7362 = vmul.f32 0.5, %v7361
    %v7363 = vsub.f32 1.5, %v7362
    %v7364 = vmul.f32 %v7359, %v7363
    %vm7365 = vweird.f32 %v7328
    %vm7366 = vweird.f32 %v7359
    %vm7367 = vmor %vm7365, %vm7366
    %v7368 = vsel %vm7367, %v7359, %v7364
    %v7369 = vmul.f32 %v7301, %v7338
    %v7370 = vmul.f32 %v7302, %v7348
    %v7371 = vmul.f32 %v7303, %v7358
    %v7372 = vmul.f32 %v7304, %v7368
    %v7373 = vmul.f32 %v7369, %v1084
    %v7374 = vmul.f32 %v7370, %v1084
    %v7375 = vmul.f32 %v7371, %v1084
    %v7376 = vmul.f32 %v7372, %v1084
    %v7377 = vadd.f32 %v7373, %v1091
    %v7378 = vadd.f32 %v7374, %v1091
    %v7379 = vadd.f32 %v7375, %v1091
    %v7380 = vadd.f32 %v7376, %v1091
    %v7382 = vsel %vm987, %v7377, 0
    %v7385 = vsel %vm987, %v7378, 0
    %v7388 = vsel %vm987, %v7379, 0
    %v7391 = vsel %vm987, %v7380, 0
    %7393 = vmatpush.msra.mxu0 0.0
    %7394 = vmatpush.msra.mxu0 0.0
    %7395 = vmatpush.msra.mxu0 0.0
    %7396 = vmatpush.msra.mxu0 0.0
    %7397 = vmatpush.msra.mxu0 0.0
    %7398 = vmatpush.msra.mxu0 0.0
    %7399 = vmatpush.msra.mxu0 0.0
    %7400 = vmatpush.msra.mxu0 0.0
    %7401 = vmatpush.msra.mxu0 0.0
    %7402 = vmatpush.msra.mxu0 0.0
    %7403 = vmatpush.msra.mxu0 0.0
    %7404 = vmatpush.msra.mxu0 0.0
    %7405 = vmatpush.msra.mxu0 0.0
    %7406 = vmatpush.msra.mxu0 0.0
    %7407 = vmatpush.msra.mxu0 %v1098
    %7408 = vmatpush.msra.mxu0 %v1097
    %7409 = vmatmul.f32.gmra.mxu0 %v7382
    %v7410 = vpop.f32.mrf.mxu0
    %v7411 = vadd.f32 %v1101, %v7410
    %7412 = vmatmul.f32.gmra.mxu0 %v7385
    %v7413 = vpop.f32.mrf.mxu0
    %v7414 = vadd.f32 %v1101, %v7413
    %7415 = vmatmul.f32.gmra.mxu0 %v7388
    %v7416 = vpop.f32.mrf.mxu0
    %v7417 = vadd.f32 %v1101, %v7416
    %7418 = vmatmul.f32.gmra.mxu0 %v7391
    %v7419 = vpop.f32.mrf.mxu0
    %v7420 = vadd.f32 %v1101, %v7419
    %7421 = vdwg.mxu0
    %v7422 = vmul.f32 %v7411, 0.25
    %v7423 = vmul.f32 %v7414, 0.25
    %v7424 = vmul.f32 %v7417, 0.25
    %v7425 = vmul.f32 %v7420, 0.25
    %7428 = vrot.lane.b32.xlu0 %v7411, 112
    %v7429 = vpop.permute.xlu0 %7428
    %7430 = vrot.lane.b32.xlu0 %v7414, 112
    %v7431 = vpop.permute.xlu0 %7430
    %v7433 = vsel %vm987, %v7422, 0
    %v7436 = vsel %vm987, %v7423, 0
    %v7438 = vsel %vm987, %v7429, 0
    %v7440 = vsel %vm987, %v7431, 0
    %7442 = vmatpush.xpose.msra.mxu0 0.0
    %7443 = vmatpush.xpose.msra.mxu0 0.0
    %7444 = vmatpush.xpose.msra.mxu0 0.0
    %7445 = vmatpush.xpose.msra.mxu0 0.0
    %7446 = vmatpush.xpose.msra.mxu0 0.0
    %7447 = vmatpush.xpose.msra.mxu0 0.0
    %7448 = vmatpush.xpose.msra.mxu0 0.0
    %7449 = vmatpush.xpose.msra.mxu0 0.0
    %7450 = vmatpush.xpose.msra.mxu0 0.0
    %7451 = vmatpush.xpose.msra.mxu0 0.0
    %7452 = vmatpush.xpose.msra.mxu0 0.0
    %7453 = vmatpush.xpose.msra.mxu0 0.0
    %7454 = vmatpush.xpose.msra.mxu0 0.0
    %7455 = vmatpush.xpose.msra.mxu0 0.0
    %7456 = vmatpush.xpose.msra.mxu0 %v7440
    %7457 = vmatpush.xpose.msra.mxu0 %v7438
    %7458 = vmatmul.f32.gmra.mxu0 %v7433
    %v7459 = vpop.f32.mrf.mxu0
    %v7460 = vadd.f32 %v903, %v7459
    %7461 = vmatmul.f32.gmra.mxu0 %v7436
    %v7462 = vpop.f32.mrf.mxu0
    %v7463 = vadd.f32 %v904, %v7462
    %7464 = vdwg.mxu0
    %v7465 = vsel %vm987, %v7460, -inf
    %7466 = vmax.xlane.f32.xlu0 %v7465
    %v7467 = vpop.xlane.xlu0 %7466
    %v7468 = vsel %vm987, %v7463, -inf
    %7469 = vmax.xlane.f32.xlu0 %v7468
    %v7470 = vpop.xlane.xlu0 %7469
    %v7471 = vsub.f32 %v7460, %v7467
    %v7472 = vsub.f32 %v7463, %v7470
    %v7473 = vmul.f32 %v7471, 1.442695
    %v7474 = vpow.pop %v7473
    %v7475 = vmul.f32 %v7472, 1.442695
    %v7476 = vpow.pop %v7475
    %v7477 = vsel %vm987, %v7474, 0.0
    %7478 = vadd.xlane.f32.xlu0 %v7477
    %v7479 = vpop.xlane.xlu0 %7478
    %v7480 = vsel %vm987, %v7476, 0.0
    %7481 = vadd.xlane.f32.xlu0 %v7480
    %v7482 = vpop.xlane.xlu0 %7481
    %v7483 = vrcp.pop %v7479
    %v7484 = vrcp.pop %v7482
    %v7485 = vmul.f32 %v7474, %v7483
    %v7486 = vmul.f32 %v7476, %v7484
    %7487 = vrot.lane.b32.xlu0 %v7411, 96
    %v7488 = vpop.permute.xlu0 %7487
    %7489 = vrot.lane.b32.xlu0 %v7414, 96
    %v7490 = vpop.permute.xlu0 %7489
    %v7494 = vsel %vm987, %v7485, 0
    %v7497 = vsel %vm987, %v7486, 0
    %7499 = vmatpush.msra.mxu0 0.0
    %7500 = vmatpush.msra.mxu0 0.0
    %7501 = vmatpush.msra.mxu0 0.0
    %7502 = vmatpush.msra.mxu0 0.0
    %7503 = vmatpush.msra.mxu0 0.0
    %7504 = vmatpush.msra.mxu0 0.0
    %7505 = vmatpush.msra.mxu0 0.0
    %7506 = vmatpush.msra.mxu0 0.0
    %7507 = vmatpush.msra.mxu0 0.0
    %7508 = vmatpush.msra.mxu0 0.0
    %7509 = vmatpush.msra.mxu0 0.0
    %7510 = vmatpush.msra.mxu0 0.0
    %7511 = vmatpush.msra.mxu0 0.0
    %7512 = vmatpush.msra.mxu0 0.0
    %7513 = vmatpush.msra.mxu0 %v7490
    %7514 = vmatpush.msra.mxu0 %v7488
    %7515 = vmatmul.f32.gmra.mxu0 %v7494
    %v7516 = vpop.f32.mrf.mxu0
    %v7517 = vadd.f32 0.0, %v7516
    %7518 = vmatmul.f32.gmra.mxu0 %v7497
    %v7519 = vpop.f32.mrf.mxu0
    %v7520 = vadd.f32 0.0, %v7519
    %7521 = vdwg.mxu0
    %7524 = vrot.lane.b32.xlu0 %v7417, 112
    %v7525 = vpop.permute.xlu0 %7524
    %7526 = vrot.lane.b32.xlu0 %v7420, 112
    %v7527 = vpop.permute.xlu0 %7526
    %v7529 = vsel %vm987, %v7424, 0
    %v7532 = vsel %vm987, %v7425, 0
    %v7534 = vsel %vm987, %v7525, 0
    %v7536 = vsel %vm987, %v7527, 0
    %7538 = vmatpush.xpose.msra.mxu0 0.0
    %7539 = vmatpush.xpose.msra.mxu0 0.0
    %7540 = vmatpush.xpose.msra.mxu0 0.0
    %7541 = vmatpush.xpose.msra.mxu0 0.0
    %7542 = vmatpush.xpose.msra.mxu0 0.0
    %7543 = vmatpush.xpose.msra.mxu0 0.0
    %7544 = vmatpush.xpose.msra.mxu0 0.0
    %7545 = vmatpush.xpose.msra.mxu0 0.0
    %7546 = vmatpush.xpose.msra.mxu0 0.0
    %7547 = vmatpush.xpose.msra.mxu0 0.0
    %7548 = vmatpush.xpose.msra.mxu0 0.0
    %7549 = vmatpush.xpose.msra.mxu0 0.0
    %7550 = vmatpush.xpose.msra.mxu0 0.0
    %7551 = vmatpush.xpose.msra.mxu0 0.0
    %7552 = vmatpush.xpose.msra.mxu0 %v7536
    %7553 = vmatpush.xpose.msra.mxu0 %v7534
    %7554 = vmatmul.f32.gmra.mxu0 %v7529
    %v7555 = vpop.f32.mrf.mxu0
    %v7556 = vadd.f32 %v903, %v7555
    %7557 = vmatmul.f32.gmra.mxu0 %v7532
    %v7558 = vpop.f32.mrf.mxu0
    %v7559 = vadd.f32 %v904, %v7558
    %7560 = vdwg.mxu0
    %v7561 = vsel %vm987, %v7556, -inf
    %7562 = vmax.xlane.f32.xlu0 %v7561
    %v7563 = vpop.xlane.xlu0 %7562
    %v7564 = vsel %vm987, %v7559, -inf
    %7565 = vmax.xlane.f32.xlu0 %v7564
    %v7566 = vpop.xlane.xlu0 %7565
    %v7567 = vsub.f32 %v7556, %v7563
    %v7568 = vsub.f32 %v7559, %v7566
    %v7569 = vmul.f32 %v7567, 1.442695
    %v7570 = vpow.pop %v7569
    %v7571 = vmul.f32 %v7568, 1.442695
    %v7572 = vpow.pop %v7571
    %v7573 = vsel %vm987, %v7570, 0.0
    %7574 = vadd.xlane.f32.xlu0 %v7573
    %v7575 = vpop.xlane.xlu0 %7574
    %v7576 = vsel %vm987, %v7572, 0.0
    %7577 = vadd.xlane.f32.xlu0 %v7576
    %v7578 = vpop.xlane.xlu0 %7577
    %v7579 = vrcp.pop %v7575
    %v7580 = vrcp.pop %v7578
    %v7581 = vmul.f32 %v7570, %v7579
    %v7582 = vmul.f32 %v7572, %v7580
    %7583 = vrot.lane.b32.xlu0 %v7417, 96
    %v7584 = vpop.permute.xlu0 %7583
    %7585 = vrot.lane.b32.xlu0 %v7420, 96
    %v7586 = vpop.permute.xlu0 %7585
    %v7590 = vsel %vm987, %v7581, 0
    %v7593 = vsel %vm987, %v7582, 0
    %7595 = vmatpush.msra.mxu0 0.0
    %7596 = vmatpush.msra.mxu0 0.0
    %7597 = vmatpush.msra.mxu0 0.0
    %7598 = vmatpush.msra.mxu0 0.0
    %7599 = vmatpush.msra.mxu0 0.0
    %7600 = vmatpush.msra.mxu0 0.0
    %7601 = vmatpush.msra.mxu0 0.0
    %7602 = vmatpush.msra.mxu0 0.0
    %7603 = vmatpush.msra.mxu0 0.0
    %7604 = vmatpush.msra.mxu0 0.0
    %7605 = vmatpush.msra.mxu0 0.0
    %7606 = vmatpush.msra.mxu0 0.0
    %7607 = vmatpush.msra.mxu0 0.0
    %7608 = vmatpush.msra.mxu0 0.0
    %7609 = vmatpush.msra.mxu0 %v7586
    %7610 = vmatpush.msra.mxu0 %v7584
    %7611 = vmatmul.f32.gmra.mxu0 %v7590
    %v7612 = vpop.f32.mrf.mxu0
    %v7613 = vadd.f32 0.0, %v7612
    %7614 = vmatmul.f32.gmra.mxu0 %v7593
    %v7615 = vpop.f32.mrf.mxu0
    %v7616 = vadd.f32 0.0, %v7615
    %7617 = vdwg.mxu0
    %v7619 = vsel %vm987, %v7517, 0
    %v7622 = vsel %vm987, %v7520, 0
    %v7625 = vsel %vm987, %v7613, 0
    %v7628 = vsel %vm987, %v7616, 0
    %7630 = vmatpush.msra.mxu0 0.0
    %7631 = vmatpush.msra.mxu0 0.0
    %7632 = vmatpush.msra.mxu0 0.0
    %7633 = vmatpush.msra.mxu0 0.0
    %7634 = vmatpush.msra.mxu0 0.0
    %7635 = vmatpush.msra.mxu0 0.0
    %7636 = vmatpush.msra.mxu0 0.0
    %7637 = vmatpush.msra.mxu0 0.0
    %7638 = vmatpush.msra.mxu0 0.0
    %7639 = vmatpush.msra.mxu0 0.0
    %7640 = vmatpush.msra.mxu0 0.0
    %7641 = vmatpush.msra.mxu0 0.0
    %7642 = vmatpush.msra.mxu0 0.0
    %7643 = vmatpush.msra.mxu0 0.0
    %7644 = vmatpush.msra.mxu0 %v1341
    %7645 = vmatpush.msra.mxu0 %v1340
    %7646 = vmatmul.f32.gmra.mxu0 %v7619
    %v7647 = vpop.f32.mrf.mxu0
    %v7648 = vadd.f32 %v1344, %v7647
    %7649 = vmatmul.f32.gmra.mxu0 %v7622
    %v7650 = vpop.f32.mrf.mxu0
    %v7651 = vadd.f32 %v1344, %v7650
    %7652 = vmatmul.f32.gmra.mxu0 %v7625
    %v7653 = vpop.f32.mrf.mxu0
    %v7654 = vadd.f32 %v1344, %v7653
    %7655 = vmatmul.f32.gmra.mxu0 %v7628
    %v7656 = vpop.f32.mrf.mxu0
    %v7657 = vadd.f32 %v1344, %v7656
    %7658 = vdwg.mxu0
    %v7659 = vadd.f32 %v7281, %v7648
    %v7660 = vadd.f32 %v7282, %v7651
    %v7661 = vadd.f32 %v7283, %v7654
    %v7662 = vadd.f32 %v7284, %v7657
    %v7663 = vsel %vm987, %v7659, 0.0
    %7664 = vadd.xlane.f32.xlu0 %v7663
    %v7665 = vpop.xlane.xlu0 %7664
    %v7666 = vsel %vm987, %v7660, 0.0
    %7667 = vadd.xlane.f32.xlu0 %v7666
    %v7668 = vpop.xlane.xlu0 %7667
    %v7669 = vsel %vm987, %v7661, 0.0
    %7670 = vadd.xlane.f32.xlu0 %v7669
    %v7671 = vpop.xlane.xlu0 %7670
    %v7672 = vsel %vm987, %v7662, 0.0
    %7673 = vadd.xlane.f32.xlu0 %v7672
    %v7674 = vpop.xlane.xlu0 %7673
    %v7675 = vmul.f32 %v7665, %v1006
    %v7676 = vmul.f32 %v7668, %v1006
    %v7677 = vmul.f32 %v7671, %v1006
    %v7678 = vmul.f32 %v7674, %v1006
    %v7679 = vsub.f32 %v7659, %v7675
    %v7680 = vsub.f32 %v7660, %v7676
    %v7681 = vsub.f32 %v7661, %v7677
    %v7682 = vsub.f32 %v7662, %v7678
    %v7683 = vmul.f32 %v7679, %v7679
    %v7684 = vmul.f32 %v7680, %v7680
    %v7685 = vmul.f32 %v7681, %v7681
    %v7686 = vmul.f32 %v7682, %v7682
    %v7687 = vsel %vm987, %v7683, 0.0
    %7688 = vadd.xlane.f32.xlu0 %v7687
    %v7689 = vpop.xlane.xlu0 %7688
    %v7690 = vsel %vm987, %v7684, 0.0
    %7691 = vadd.xlane.f32.xlu0 %v7690
    %v7692 = vpop.xlane.xlu0 %7691
    %v7693 = vsel %vm987, %v7685, 0.0
    %7694 = vadd.xlane.f32.xlu0 %v7693
    %v7695 = vpop.xlane.xlu0 %7694
    %v7696 = vsel %vm987, %v7686, 0.0
    %7697 = vadd.xlane.f32.xlu0 %v7696
    %v7698 = vpop.xlane.xlu0 %7697
    %v7699 = vmul.f32 %v7689, %v1006
    %v7700 = vmul.f32 %v7692, %v1006
    %v7701 = vmul.f32 %v7695, %v1006
    %v7702 = vmul.f32 %v7698, %v1006
    %v7703 = vadd.f32 %v7699, 1e-05
    %v7704 = vadd.f32 %v7700, 1e-05
    %v7705 = vadd.f32 %v7701, 1e-05
    %v7706 = vadd.f32 %v7702, 1e-05
    %v7707 = vrsqrt.pop %v7703
    %v7708 = vmul.f32 %v7707, %v7703
    %v7709 = vmul.f32 %v7708, %v7707
    %v7710 = vmul.f32 0.5, %v7709
    %v7711 = vsub.f32 1.5, %v7710
    %v7712 = vmul.f32 %v7707, %v7711
    %vm7713 = vweird.f32 %v7703
    %vm7714 = vweird.f32 %v7707
    %vm7715 = vmor %vm7713, %vm7714
    %v7716 = vsel %vm7715, %v7707, %v7712
    %v7717 = vrsqrt.pop %v7704
    %v7718 = vmul.f32 %v7717, %v7704
    %v7719 = vmul.f32 %v7718, %v7717
    %v7720 = vmul.f32 0.5, %v7719
    %v7721 = vsub.f32 1.5, %v7720
    %v7722 = vmul.f32 %v7717, %v7721
    %vm7723 = vweird.f32 %v7704
    %vm7724 = vweird.f32 %v7717
    %vm7725 = vmor %vm7723, %vm7724
    %v7726 = vsel %vm7725, %v7717, %v7722
    %v7727 = vrsqrt.pop %v7705
    %v7728 = vmul.f32 %v7727, %v7705
    %v7729 = vmul.f32 %v7728, %v7727
    %v7730 = vmul.f32 0.5, %v7729
    %v7731 = vsub.f32 1.5, %v7730
    %v7732 = vmul.f32 %v7727, %v7731
    %vm7733 = vweird.f32 %v7705
    %vm7734 = vweird.f32 %v7727
    %vm7735 = vmor %vm7733, %vm7734
    %v7736 = vsel %vm7735, %v7727, %v7732
    %v7737 = vrsqrt.pop %v7706
    %v7738 = vmul.f32 %v7737, %v7706
    %v7739 = vmul.f32 %v7738, %v7737
    %v7740 = vmul.f32 0.5, %v7739
    %v7741 = vsub.f32 1.5, %v7740
    %v7742 = vmul.f32 %v7737, %v7741
    %vm7743 = vweird.f32 %v7706
    %vm7744 = vweird.f32 %v7737
    %vm7745 = vmor %vm7743, %vm7744
    %v7746 = vsel %vm7745, %v7737, %v7742
    %v7747 = vmul.f32 %v7679, %v7716
    %v7748 = vmul.f32 %v7680, %v7726
    %v7749 = vmul.f32 %v7681, %v7736
    %v7750 = vmul.f32 %v7682, %v7746
    %v7751 = vmul.f32 %v7747, %v1482
    %v7752 = vmul.f32 %v7748, %v1482
    %v7753 = vmul.f32 %v7749, %v1482
    %v7754 = vmul.f32 %v7750, %v1482
    %v7755 = vadd.f32 %v7751, %v1489
    %v7756 = vadd.f32 %v7752, %v1489
    %v7757 = vadd.f32 %v7753, %v1489
    %v7758 = vadd.f32 %v7754, %v1489
    %v7760 = vsel %vm987, %v7755, 0
    %v7763 = vsel %vm987, %v7756, 0
    %v7766 = vsel %vm987, %v7757, 0
    %v7769 = vsel %vm987, %v7758, 0
    %7771 = vmatpush.msra.mxu0 0.0
    %7772 = vmatpush.msra.mxu0 0.0
    %7773 = vmatpush.msra.mxu0 0.0
    %7774 = vmatpush.msra.mxu0 0.0
    %7775 = vmatpush.msra.mxu0 0.0
    %7776 = vmatpush.msra.mxu0 0.0
    %7777 = vmatpush.msra.mxu0 0.0
    %7778 = vmatpush.msra.mxu0 0.0
    %7779 = vmatpush.msra.mxu0 0.0
    %7780 = vmatpush.msra.mxu0 0.0
    %7781 = vmatpush.msra.mxu0 0.0
    %7782 = vmatpush.msra.mxu0 0.0
    %7783 = vmatpush.msra.mxu0 0.0
    %7784 = vmatpush.msra.mxu0 0.0
    %7785 = vmatpush.msra.mxu0 %v1496
    %7786 = vmatpush.msra.mxu0 %v1495
    %7787 = vmatmul.f32.gmra.mxu0 %v7760
    %v7788 = vpop.f32.mrf.mxu0
    %v7789 = vadd.f32 %v1499, %v7788
    %7790 = vmatmul.f32.gmra.mxu0 %v7763
    %v7791 = vpop.f32.mrf.mxu0
    %v7792 = vadd.f32 %v1499, %v7791
    %7793 = vmatmul.f32.gmra.mxu0 %v7766
    %v7794 = vpop.f32.mrf.mxu0
    %v7795 = vadd.f32 %v1499, %v7794
    %7796 = vmatmul.f32.gmra.mxu0 %v7769
    %v7797 = vpop.f32.mrf.mxu0
    %v7798 = vadd.f32 %v1499, %v7797
    %7799 = vdwg.mxu0
    %v7800 = vmul.f32 %v7789, 0.5
    %v7801 = vmul.f32 %v7792, 0.5
    %v7802 = vmul.f32 %v7795, 0.5
    %v7803 = vmul.f32 %v7798, 0.5
    %v7804 = vmul.f32 %v7789, 0.044715
    %v7805 = vmul.f32 %v7792, 0.044715
    %v7806 = vmul.f32 %v7795, 0.044715
    %v7807 = vmul.f32 %v7798, 0.044715
    %v7808 = vmul.f32 %v7804, %v7789
    %v7809 = vmul.f32 %v7805, %v7792
    %v7810 = vmul.f32 %v7806, %v7795
    %v7811 = vmul.f32 %v7807, %v7798
    %v7812 = vmul.f32 %v7808, %v7789
    %v7813 = vmul.f32 %v7809, %v7792
    %v7814 = vmul.f32 %v7810, %v7795
    %v7815 = vmul.f32 %v7811, %v7798
    %v7816 = vadd.f32 %v7789, %v7812
    %v7817 = vadd.f32 %v7792, %v7813
    %v7818 = vadd.f32 %v7795, %v7814
    %v7819 = vadd.f32 %v7798, %v7815
    %v7820 = vmul.f32 %v7816, 0.7978846
    %v7821 = vmul.f32 %v7817, 0.7978846
    %v7822 = vmul.f32 %v7818, 0.7978846
    %v7823 = vmul.f32 %v7819, 0.7978846
    %v7824 = vtanh.pop %v7820
    %v7825 = vtanh.pop %v7821
    %v7826 = vtanh.pop %v7822
    %v7827 = vtanh.pop %v7823
    %v7828 = vadd.f32 %v7824, 1.0
    %v7829 = vadd.f32 %v7825, 1.0
    %v7830 = vadd.f32 %v7826, 1.0
    %v7831 = vadd.f32 %v7827, 1.0
    %v7832 = vmul.f32 %v7800, %v7828
    %v7833 = vmul.f32 %v7801, %v7829
    %v7834 = vmul.f32 %v7802, %v7830
    %v7835 = vmul.f32 %v7803, %v7831
    %v7837 = vsel %vm1590, %v7832, 0
    %v7840 = vsel %vm1590, %v7833, 0
    %v7843 = vsel %vm1590, %v7834, 0
    %v7846 = vsel %vm1590, %v7835, 0
    %7848 = vmatpush.msra.mxu0 0.0
    %7849 = vmatpush.msra.mxu0 0.0
    %7850 = vmatpush.msra.mxu0 0.0
    %7851 = vmatpush.msra.mxu0 0.0
    %7852 = vmatpush.msra.mxu0 0.0
    %7853 = vmatpush.msra.mxu0 0.0
    %7854 = vmatpush.msra.mxu0 0.0
    %7855 = vmatpush.msra.mxu0 0.0
    %7856 = vmatpush.msra.mxu0 %v1585
    %7857 = vmatpush.msra.mxu0 %v1584
    %7858 = vmatpush.msra.mxu0 %v1583
    %7859 = vmatpush.msra.mxu0 %v1582
    %7860 = vmatpush.msra.mxu0 %v1581
    %7861 = vmatpush.msra.mxu0 %v1580
    %7862 = vmatpush.msra.mxu0 %v1579
    %7863 = vmatpush.msra.mxu0 %v1578
    %7864 = vmatmul.f32.gmra.mxu0 %v7837
    %v7865 = vpop.f32.mrf.mxu0
    %v7866 = vadd.f32 %v1588, %v7865
    %7867 = vmatmul.f32.gmra.mxu0 %v7840
    %v7868 = vpop.f32.mrf.mxu0
    %v7869 = vadd.f32 %v1588, %v7868
    %7870 = vmatmul.f32.gmra.mxu0 %v7843
    %v7871 = vpop.f32.mrf.mxu0
    %v7872 = vadd.f32 %v1588, %v7871
    %7873 = vmatmul.f32.gmra.mxu0 %v7846
    %v7874 = vpop.f32.mrf.mxu0
    %v7875 = vadd.f32 %v1588, %v7874
    %7876 = vdwg.mxu0
    %v7877 = vadd.f32 %v7659, %v7866
    %v7878 = vadd.f32 %v7660, %v7869
    %v7879 = vadd.f32 %v7661, %v7872
    %v7880 = vadd.f32 %v7662, %v7875
    %v7881 = vld [vmem:[%s39] sm:$0x1]
    %v7882 = vld [vmem:[%s41] sm:$0x1]
    %v7883 = vsel %vm987, %v7877, 0.0
    %7884 = vadd.xlane.f32.xlu0 %v7883
    %v7885 = vpop.xlane.xlu0 %7884
    %v7886 = vsel %vm987, %v7878, 0.0
    %7887 = vadd.xlane.f32.xlu0 %v7886
    %v7888 = vpop.xlane.xlu0 %7887
    %v7889 = vsel %vm987, %v7879, 0.0
    %7890 = vadd.xlane.f32.xlu0 %v7889
    %v7891 = vpop.xlane.xlu0 %7890
    %v7892 = vsel %vm987, %v7880, 0.0
    %7893 = vadd.xlane.f32.xlu0 %v7892
    %v7894 = vpop.xlane.xlu0 %7893
    %v7895 = vmul.f32 %v7885, %v1006
    %v7896 = vmul.f32 %v7888, %v1006
    %v7897 = vmul.f32 %v7891, %v1006
    %v7898 = vmul.f32 %v7894, %v1006
    %v7899 = vsub.f32 %v7877, %v7895
    %v7900 = vsub.f32 %v7878, %v7896
    %v7901 = vsub.f32 %v7879, %v7897
    %v7902 = vsub.f32 %v7880, %v7898
    %v7903 = vmul.f32 %v7899, %v7899
    %v7904 = vmul.f32 %v7900, %v7900
    %v7905 = vmul.f32 %v7901, %v7901
    %v7906 = vmul.f32 %v7902, %v7902
    %v7907 = vsel %vm987, %v7903, 0.0
    %7908 = vadd.xlane.f32.xlu0 %v7907
    %v7909 = vpop.xlane.xlu0 %7908
    %v7910 = vsel %vm987, %v7904, 0.0
    %7911 = vadd.xlane.f32.xlu0 %v7910
    %v7912 = vpop.xlane.xlu0 %7911
    %v7913 = vsel %vm987, %v7905, 0.0
    %7914 = vadd.xlane.f32.xlu0 %v7913
    %v7915 = vpop.xlane.xlu0 %7914
    %v7916 = vsel %vm987, %v7906, 0.0
    %7917 = vadd.xlane.f32.xlu0 %v7916
    %v7918 = vpop.xlane.xlu0 %7917
    %v7919 = vmul.f32 %v7909, %v1006
    %v7920 = vmul.f32 %v7912, %v1006
    %v7921 = vmul.f32 %v7915, %v1006
    %v7922 = vmul.f32 %v7918, %v1006
    %v7923 = vadd.f32 %v7919, 1e-05
    %v7924 = vadd.f32 %v7920, 1e-05
    %v7925 = vadd.f32 %v7921, 1e-05
    %v7926 = vadd.f32 %v7922, 1e-05
    %v7927 = vrsqrt.pop %v7923
    %v7928 = vmul.f32 %v7927, %v7923
    %v7929 = vmul.f32 %v7928, %v7927
    %v7930 = vmul.f32 0.5, %v7929
    %v7931 = vsub.f32 1.5, %v7930
    %v7932 = vmul.f32 %v7927, %v7931
    %vm7933 = vweird.f32 %v7923
    %vm7934 = vweird.f32 %v7927
    %vm7935 = vmor %vm7933, %vm7934
    %v7936 = vsel %vm7935, %v7927, %v7932
    %v7937 = vrsqrt.pop %v7924
    %v7938 = vmul.f32 %v7937, %v7924
    %v7939 = vmul.f32 %v7938, %v7937
    %v7940 = vmul.f32 0.5, %v7939
    %v7941 = vsub.f32 1.5, %v7940
    %v7942 = vmul.f32 %v7937, %v7941
    %vm7943 = vweird.f32 %v7924
    %vm7944 = vweird.f32 %v7937
    %vm7945 = vmor %vm7943, %vm7944
    %v7946 = vsel %vm7945, %v7937, %v7942
    %v7947 = vrsqrt.pop %v7925
    %v7948 = vmul.f32 %v7947, %v7925
    %v7949 = vmul.f32 %v7948, %v7947
    %v7950 = vmul.f32 0.5, %v7949
    %v7951 = vsub.f32 1.5, %v7950
    %v7952 = vmul.f32 %v7947, %v7951
    %vm7953 = vweird.f32 %v7925
    %vm7954 = vweird.f32 %v7947
    %vm7955 = vmor %vm7953, %vm7954
    %v7956 = vsel %vm7955, %v7947, %v7952
    %v7957 = vrsqrt.pop %v7926
    %v7958 = vmul.f32 %v7957, %v7926
    %v7959 = vmul.f32 %v7958, %v7957
    %v7960 = vmul.f32 0.5, %v7959
    %v7961 = vsub.f32 1.5, %v7960
    %v7962 = vmul.f32 %v7957, %v7961
    %vm7963 = vweird.f32 %v7926
    %vm7964 = vweird.f32 %v7957
    %vm7965 = vmor %vm7963, %vm7964
    %v7966 = vsel %vm7965, %v7957, %v7962
    %v7967 = vmul.f32 %v7899, %v7936
    %v7968 = vmul.f32 %v7900, %v7946
    %v7969 = vmul.f32 %v7901, %v7956
    %v7970 = vmul.f32 %v7902, %v7966
    %v7972 = vperm.slane %v7881, 0
    %v7974 = vmul.f32 %v7967, %v7972
    %v7975 = vmul.f32 %v7968, %v7972
    %v7976 = vmul.f32 %v7969, %v7972
    %v7977 = vmul.f32 %v7970, %v7972
    %v7979 = vperm.slane %v7882, 0
    %v7981 = vadd.f32 %v7974, %v7979
    %v7982 = vadd.f32 %v7975, %v7979
    %v7983 = vadd.f32 %v7976, %v7979
    %v7984 = vadd.f32 %v7977, %v7979
    %v7985 = vld [vmem:[#allocation3] sm:$0x1]
    %v7987 = vperm.slane %v7985, 0
    %v7989 = vmul.f32 %v7981, %v7987
    %v7990 = vmul.f32 %v7982, %v7987
    %v7991 = vmul.f32 %v7983, %v7987
    %v7992 = vmul.f32 %v7984, %v7987
    %v7993 = vsel %vm987, %v7989, 0.0
    %7994 = vadd.xlane.f32.xlu0 %v7993
    %v7995 = vpop.xlane.xlu0 %7994
    %v7996 = vsel %vm987, %v7990, 0.0
    %7997 = vadd.xlane.f32.xlu0 %v7996
    %v7998 = vpop.xlane.xlu0 %7997
    %v7999 = vsel %vm987, %v7991, 0.0
    %8000 = vadd.xlane.f32.xlu0 %v7999
    %v8001 = vpop.xlane.xlu0 %8000
    %v8002 = vsel %vm987, %v7992, 0.0
    %8003 = vadd.xlane.f32.xlu0 %v8002
    %v8004 = vpop.xlane.xlu0 %8003
    %v8005 = vld [vmem:[#allocation2] sm:$0x1]
    %v8007 = vperm.slane %v8005, 0
    %v8009 = vadd.f32 %v7995, %v8007
    %v8010 = vadd.f32 %v7998, %v8007
    %v8011 = vadd.f32 %v8001, %v8007
    %v8012 = vadd.f32 %v8004, %v8007
    %v8013 = vld [vmem:[%s47] sm:$0xff]
    %v8014 = vld [vmem:[%s47 + $0x8] sm:$0xff]
    %v8015 = vld [vmem:[#allocation6] sm:$0x1]
    %8017 = vset.pattern.permute.xlu0 0
    %8018 = vperm.xlu0 %8017, %v8009
    %v8019 = vpop.permute.xlu0 %8018
    %8022 = vset.pattern.permute.xlu0 0
    %8023 = vperm.xlu0 %8022, %v8010
    %v8024 = vpop.permute.xlu0 %8023
    %v8026 = vmul.f32 %v8019, %v8013
    %v8027 = vmul.f32 %v8024, %v8014
    %vm8028 = vcmask 97280
    %v8029 = vsel %vm8028, %v8026, 0.0
    %v8030 = vsel %vm8028, %v8027, 0.0
    %v8031 = vadd.f32 %v8029, %v8030
    %v8032 = vrot.slane %v8031, 4
    %v8033 = vadd.f32 %v8031, %v8032
    %v8034 = vrot.slane %v8033, 2
    %v8035 = vadd.f32 %v8033, %v8034
    %v8036 = vrot.slane %v8035, 1
    %v8037 = vadd.f32 %v8035, %v8036
    %v8038 = vadd.f32 %v8037, %v8015
    %8040 = vset.pattern.permute.xlu0 0
    %8041 = vperm.xlu0 %8040, %v8011
    %v8042 = vpop.permute.xlu0 %8041
    %8045 = vset.pattern.permute.xlu0 0
    %8046 = vperm.xlu0 %8045, %v8012
    %v8047 = vpop.permute.xlu0 %8046
    %v8049 = vmul.f32 %v8042, %v8013
    %v8050 = vmul.f32 %v8047, %v8014
    %v8051 = vsel %vm8028, %v8049, 0.0
    %v8052 = vsel %vm8028, %v8050, 0.0
    %v8053 = vadd.f32 %v8051, %v8052
    %v8054 = vrot.slane %v8053, 4
    %v8055 = vadd.f32 %v8053, %v8054
    %v8056 = vrot.slane %v8055, 2
    %v8057 = vadd.f32 %v8055, %v8056
    %v8058 = vrot.slane %v8057, 1
    %v8059 = vadd.f32 %v8057, %v8058
    %v8060 = vadd.f32 %v8059, %v8015
    %v8062 = vrot.slane %v8060, 7
    %vm8064 = vcmask 1040384
    %v8065 = vsel %vm8064, %v8038, %v8062
    %vm8066 = vcmask 91136
    %8067 = vst.msk [vmem:[#allocation66] sm:$0x3] %vm8066, %v8065
    // Predicated region
    $region506: #{ecct_forward.1} parent=1 // pred_check
      _
    $region507: #{ecct_forward.1} parent=1 // pred_check_branch
      %8069 = sbr.rel (0) target = $region509
    $region508: #{ecct_forward.1} parent=1 // pred_region
      %8071 = vsyncadd [#allocation5], 0
      %s8073 = sshll.u32 [#allocation66], 4
      %s8074 = int_to_ptr.vmem [resolvable:$true] %s8073
      %s8075 = sshll.u32 %s171, 4
      %s8076 = int_to_ptr.hbm [resolvable:$true] %s8075
      %8078 = dma.vmem_to_hbm [thread:$0]  %s8074, 32, %s8076, [#allocation5]
    $region509: #{ecct_forward.1} parent=1 // pred_fallthru
      _
    // Predicated region
    $region510: #{ecct_forward.1} parent=1 // pred_check
      _
    $region511: #{ecct_forward.1} parent=1 // pred_check_branch
      %8080 = sbr.rel (0) target = $region513
    $region512: #{ecct_forward.1} parent=1 // pred_region
      %8082 = dma.done [#allocation5], 32
    $region513: #{ecct_forward.1} parent=1 // pred_fallthru
      _
    %8083 = vsyncpa [#allocation4], 1
    %8084 = vsyncpa [#allocation7], 1
    %8085 = vsyncpa [#allocation10], 1
    %8086 = vsyncpa [#allocation13], 1
    %8087 = vsyncpa [#allocation16], 1
    %8088 = vsyncpa [#allocation19], 1
    %8089 = vsyncpa [#allocation22], 1
    %8090 = vsyncpa [#allocation25], 1
    %8091 = vsyncpa [#allocation28], 1
    %8092 = vsyncpa [#allocation31], 1
    %8093 = vsyncpa [#allocation34], 1
    %8094 = vsyncpa [#allocation37], 1
    %8095 = vsyncpa [#allocation40], 1
    %8096 = vsyncpa [#allocation43], 1
    %8097 = vsyncpa [#allocation46], 1
    %8098 = vsyncpa [#allocation49], 1
    %8099 = vsyncpa [#allocation52], 1
    %8100 = vsyncpa [#allocation55], 1
    %8101 = vsyncpa [#allocation58], 1
    %8102 = vsyncpa [#allocation61], 1
    %8103 = vsyncpa [#allocation64], 1
    %8104 = vsyncpa [#allocation5], 1

</llo_original>
